<compile_context>
chip_gen: v7x
topology: tpu7x:2x2x1
jax: 0.10.0
libtpu: 0.0.40
codegen_flags: <defaults>
</compile_context>

<pallas_src>
import functools

import jax
import jax.numpy as jnp
from jax import lax
from jax.experimental import pallas as pl
from jax.experimental.pallas import tpu as pltpu

EPS = 1e-5
LANES = 128


# ------------------------------ kernel helpers ------------------------------

def _conv3x3_taps(src, w_ref, ml, mr, *, hw, w, pad, cp):
    """3x3 / stride-1 / pad-1 conv on a row-flattened, zero-row-padded slab.

    src    : (hw + 2*pad, k) ref or array; rows [pad, pad+hw) hold the image in
             raster (h*W + w) order, all other rows are zero.
    w_ref  : (9, k, cp) weights, tap index = (dy+1)*3 + (dx+1).
    ml, mr : (hw, 1) masks zeroing output pixels in the first / last column
             (those would otherwise pick up horizontally wrapped neighbours).
    Returns the (hw, cp) f32 conv output, accumulated on the MXU in f32.
    """
    acc = jnp.zeros((hw, cp), jnp.float32)
    tap_idx = 0
    for dy in (-1, 0, 1):
        for dx in (-1, 0, 1):
            start = pad + dy * w + dx          # static per-tap row offset
            tap = src[start:start + hw, :]
            if dx == -1:
                tap = tap * ml
            elif dx == 1:
                tap = tap * mr
            acc = acc + jnp.dot(tap, w_ref[tap_idx],
                                preferred_element_type=jnp.float32)
            tap_idx += 1
    return acc


# -------------------------------- kernels -----------------------------------

def _stage_a_kernel(xp_ref, w3_ref, w1_ref, ml_ref, mr_ref,
                    ypad_ref, s_ref, stats_ref, *, hw, w, pad, cp):
    # One image per grid step.  conv biases intentionally absent (cancelled by BN).
    xp = xp_ref[0]                                   # (hw + 2*pad, cin)
    ml = ml_ref[...]
    mr = mr_ref[...]
    y = _conv3x3_taps(xp, w3_ref, ml, mr, hw=hw, w=w, pad=pad, cp=cp)
    s = jnp.dot(xp[pad:pad + hw, :], w1_ref[...],
                preferred_element_type=jnp.float32)  # 1x1 shortcut conv
    # Write y in zero-row-padded form so stage B can take its 3x3 taps directly.
    ypad_ref[0, 0:pad, :] = jnp.zeros((pad, cp), jnp.float32)
    ypad_ref[0, pad + hw:pad + hw + pad, :] = jnp.zeros((pad, cp), jnp.float32)
    ypad_ref[0, pad:pad + hw, :] = y
    s_ref[...] = s
    # Per-image BatchNorm partial statistics (padded channels are exactly zero).
    stats_ref[0, 0:1, :] = jnp.sum(y, axis=0, keepdims=True)
    stats_ref[0, 1:2, :] = jnp.sum(y * y, axis=0, keepdims=True)
    stats_ref[0, 2:3, :] = jnp.sum(s, axis=0, keepdims=True)
    stats_ref[0, 3:4, :] = jnp.sum(s * s, axis=0, keepdims=True)


def _stage_b_kernel(ypad_ref, w3_ref, scale_ref, shift_ref, cmask_ref,
                    ml_ref, mr_ref, out_ref, stats_ref, zpad_ref,
                    *, hw, w, pad, cp):
    # BN_a + ReLU as a per-channel affine; cmask forces the pad rows back to 0.
    zpad_ref[...] = (jnp.maximum(ypad_ref[0] * scale_ref[...] + shift_ref[...],
                                 0.0) * cmask_ref[...])
    ml = ml_ref[...]
    mr = mr_ref[...]
    v = _conv3x3_taps(zpad_ref, w3_ref, ml, mr, hw=hw, w=w, pad=pad, cp=cp)
    out_ref[...] = v
    stats_ref[0, 0:1, :] = jnp.sum(v, axis=0, keepdims=True)
    stats_ref[0, 1:2, :] = jnp.sum(v * v, axis=0, keepdims=True)


def _stage_c_kernel(v_ref, s_ref, scale_b_ref, shift_b_ref,
                    scale_s_ref, shift_s_ref, o_ref):
    part1 = jnp.maximum(v_ref[...] * scale_b_ref[...] + shift_b_ref[...], 0.0)
    shortcut = s_ref[...] * scale_s_ref[...] + shift_s_ref[...]
    o_ref[...] = part1 + shortcut


# -------------------------------- wrapper ------------------------------------

def _bn_affine(s1, s2, count, gamma, beta):
    """Training-mode BN (biased variance) as a per-channel scale/shift."""
    mean = s1 / count
    var = jnp.maximum(s2 / count - mean * mean, 0.0)
    scale = gamma * lax.rsqrt(var + EPS)
    shift = beta - mean * scale
    return scale.reshape(1, -1), shift.reshape(1, -1)


def res_block_forward_nhwc(x_nhwc, params):
    n, h, w, cin = x_nhwc.shape
    cout = params["p1a_w"].shape[0]
    cp = max(LANES, ((cout + LANES - 1) // LANES) * LANES)  # lane-dense channels
    hw = h * w
    pad = w + 1                       # zero rows before/after each image slab
    hwp = hw + 2 * pad
    m = n * hw
    f32 = jnp.float32

    # ---- weights: PyTorch OIHW -> matmul layout, channels zero-padded to cp ----
    w3a = jnp.transpose(params["p1a_w"], (2, 3, 1, 0)).reshape(9, cin, cout)
    w3a = jnp.pad(w3a.astype(f32), ((0, 0), (0, 0), (0, cp - cout)))
    w3b = jnp.transpose(params["p1b_w"], (2, 3, 1, 0)).reshape(9, cout, cout)
    w3b = jnp.pad(w3b.astype(f32), ((0, 0), (0, cp - cout), (0, cp - cout)))
    w1 = jnp.transpose(params["conv1_w"][:, :, 0, 0], (1, 0))
    w1 = jnp.pad(w1.astype(f32), ((0, 0), (0, cp - cout)))
    # Conv biases (p1a_b, p1b_b, conv1_b) are intentionally unused: a bias right
    # before a training-mode BatchNorm cancels exactly.

    def padc(v):
        return jnp.pad(v.astype(f32), (0, cp - cout))

    g_a, b_a = padc(params["p1a_g"]), padc(params["p1a_bb"])
    g_b, b_b = padc(params["p1b_g"]), padc(params["p1b_bb"])
    g_s, b_s = padc(params["bn1_g"]), padc(params["bn1_b"])

    # ---- activations: per-image row-flattened slabs with zero rows fore/aft ----
    x_pad = jnp.pad(x_nhwc.astype(f32).reshape(n, hw, cin),
                    ((0, 0), (pad, pad), (0, 0)))

    # Column-boundary masks (output pixel in first / last column of its row).
    col = jnp.arange(hw, dtype=jnp.int32) % w
    mask_l = (col != 0).astype(f32).reshape(hw, 1)
    mask_r = (col != w - 1).astype(f32).reshape(hw, 1)
    cmask = jnp.pad(jnp.ones((hw, 1), f32), ((pad, pad), (0, 0)))

    cparams = pltpu.CompilerParams(dimension_semantics=("parallel",),
                                   vmem_limit_bytes=32 * 1024 * 1024)

    # TODO(synk): for very large H*W a whole image no longer fits one grid step;
    # add halo'd row tiling (manual DMA of overlapping row windows) for that case.

    # -------- stage A: conv3x3_a + 1x1 shortcut + BN partial statistics --------
    y_pad, s_flat, stats_a = pl.pallas_call(
        functools.partial(_stage_a_kernel, hw=hw, w=w, pad=pad, cp=cp),
        grid=(n,),
        in_specs=[
            pl.BlockSpec((1, hwp, cin), lambda i: (i, 0, 0)),
            pl.BlockSpec((9, cin, cp), lambda i: (0, 0, 0)),
            pl.BlockSpec((cin, cp), lambda i: (0, 0)),
            pl.BlockSpec((hw, 1), lambda i: (0, 0)),
            pl.BlockSpec((hw, 1), lambda i: (0, 0)),
        ],
        out_specs=(
            pl.BlockSpec((1, hwp, cp), lambda i: (i, 0, 0)),
            pl.BlockSpec((hw, cp), lambda i: (i, 0)),
            pl.BlockSpec((1, 4, cp), lambda i: (i, 0, 0)),
        ),
        out_shape=(
            jax.ShapeDtypeStruct((n, hwp, cp), f32),
            jax.ShapeDtypeStruct((m, cp), f32),
            jax.ShapeDtypeStruct((n, 4, cp), f32),
        ),
        compiler_params=cparams,
    )(x_pad, w3a, w1, mask_l, mask_r)

    count = float(m)
    tot_a = jnp.sum(stats_a, axis=0)                       # tiny XLA reduction
    scale_a, shift_a = _bn_affine(tot_a[0], tot_a[1], count, g_a, b_a)
    scale_s, shift_s = _bn_affine(tot_a[2], tot_a[3], count, g_s, b_s)

    # -------- stage B: BN_a+ReLU (affine) -> conv3x3_b + BN partial stats --------
    v_flat, stats_b = pl.pallas_call(
        functools.partial(_stage_b_kernel, hw=hw, w=w, pad=pad, cp=cp),
        grid=(n,),
        in_specs=[
            pl.BlockSpec((1, hwp, cp), lambda i: (i, 0, 0)),
            pl.BlockSpec((9, cp, cp), lambda i: (0, 0, 0)),
            pl.BlockSpec((1, cp), lambda i: (0, 0)),
            pl.BlockSpec((1, cp), lambda i: (0, 0)),
            pl.BlockSpec((hwp, 1), lambda i: (0, 0)),
            pl.BlockSpec((hw, 1), lambda i: (0, 0)),
            pl.BlockSpec((hw, 1), lambda i: (0, 0)),
        ],
        out_specs=(
            pl.BlockSpec((hw, cp), lambda i: (i, 0)),
            pl.BlockSpec((1, 2, cp), lambda i: (i, 0, 0)),
        ),
        out_shape=(
            jax.ShapeDtypeStruct((m, cp), f32),
            jax.ShapeDtypeStruct((n, 2, cp), f32),
        ),
        scratch_shapes=[pltpu.VMEM((hwp, cp), f32)],
        compiler_params=cparams,
    )(y_pad, w3b, scale_a, shift_a, cmask, mask_l, mask_r)

    tot_b = jnp.sum(stats_b, axis=0)
    scale_b, shift_b = _bn_affine(tot_b[0], tot_b[1], count, g_b, b_b)

    # -------- stage C: BN_b+ReLU + BN_shortcut + residual add (row-tiled) --------
    tm = m
    for cand in (2048, 1024, 512, 256, 128, 64, 32, 16, 8):
        if m % cand == 0 and m // cand >= 2:
            tm = cand
            break
    out_flat = pl.pallas_call(
        _stage_c_kernel,
        grid=(m // tm,),
        in_specs=[
            pl.BlockSpec((tm, cp), lambda i: (i, 0)),
            pl.BlockSpec((tm, cp), lambda i: (i, 0)),
            pl.BlockSpec((1, cp), lambda i: (0, 0)),
            pl.BlockSpec((1, cp), lambda i: (0, 0)),
            pl.BlockSpec((1, cp), lambda i: (0, 0)),
            pl.BlockSpec((1, cp), lambda i: (0, 0)),
        ],
        out_specs=pl.BlockSpec((tm, cp), lambda i: (i, 0)),
        out_shape=jax.ShapeDtypeStruct((m, cp), f32),
        compiler_params=cparams,
    )(v_flat, s_flat, scale_b, shift_b, scale_s, shift_s)

    # Drop the zero pad channels once, at the very end.
    return out_flat[:, :cout].reshape(n, h, w, cout)


def res_block_forward(x_nchw, params):
    # NCHW <-> NHWC only at the module boundary; in a stacked network you would
    # stay channel-last end-to-end and drop these transposes.
    x_nhwc = jnp.transpose(x_nchw, (0, 2, 3, 1))
    out_nhwc = res_block_forward_nhwc(x_nhwc, params)
    return jnp.transpose(out_nhwc, (0, 3, 1, 2))


# ---------------------------- pure-JAX reference -----------------------------

def ref_forward(x, params):
    def conv(x, w, b, p):
        y = lax.conv_general_dilated(x, w, (1, 1), [(p, p), (p, p)],
                                     dimension_numbers=("NCHW", "OIHW", "NCHW"))
        return y + b[None, :, None, None]

    def bn(x, g, b):
        mean = jnp.mean(x, axis=(0, 2, 3), keepdims=True)
        var = jnp.mean((x - mean) ** 2, axis=(0, 2, 3), keepdims=True)
        return ((x - mean) * lax.rsqrt(var + EPS) * g[None, :, None, None]
                + b[None, :, None, None])

    s = bn(conv(x, params["conv1_w"], params["conv1_b"], 0),
           params["bn1_g"], params["bn1_b"])
    p = jax.nn.relu(bn(conv(x, params["p1a_w"], params["p1a_b"], 1),
                       params["p1a_g"], params["p1a_bb"]))
    p = jax.nn.relu(bn(conv(p, params["p1b_w"], params["p1b_b"], 1),
                       params["p1b_g"], params["p1b_bb"]))
    return p + s


# ---------------------------------- main --------------------------------------

if __name__ == "__main__":
    N, CIN, H, W = 2, 4, 16, 16
    COUT = 8

    key = jax.random.PRNGKey(0)
    ks = jax.random.split(key, 13)

    def rnd(k, shape, scale=0.1):
        return scale * jax.random.normal(k, shape, dtype=jnp.float32)

    params = {
        # part1 conv A (3x3, Cin->Cout) + its BN
        "p1a_w": rnd(ks[0], (COUT, CIN, 3, 3)),
        "p1a_b": rnd(ks[1], (COUT,)),
        "p1a_g": 1.0 + rnd(ks[2], (COUT,)),
        "p1a_bb": rnd(ks[3], (COUT,)),
        # part1 conv B (3x3, Cout->Cout) + its BN
        "p1b_w": rnd(ks[4], (COUT, COUT, 3, 3)),
        "p1b_b": rnd(ks[5], (COUT,)),
        "p1b_g": 1.0 + rnd(ks[6], (COUT,)),
        "p1b_bb": rnd(ks[7], (COUT,)),
        # shortcut conv1 (1x1, Cin->Cout) + batch1
        "conv1_w": rnd(ks[8], (COUT, CIN, 1, 1)),
        "conv1_b": rnd(ks[9], (COUT,)),
        "bn1_g": 1.0 + rnd(ks[10], (COUT,)),
        "bn1_b": rnd(ks[11], (COUT,)),
    }
    x = jax.random.normal(ks[12], (N, CIN, H, W), dtype=jnp.float32)

    fwd = jax.jit(res_block_forward)
    out = jax.block_until_ready(fwd(x, params))
    ref = jax.block_until_ready(ref_forward(x, params))

    assert out.shape == (N, COUT, H, W), out.shape
    err = float(jnp.max(jnp.abs(out - ref)))
    assert err < 5e-4, err
    print("KERNEL_OK")
</pallas_src>

<mosaic_0001>
module attributes {stable_mosaic.version = 11 : i64} {
  func.func @_stage_a_kernel(%arg0: i32, %arg1: memref<1x290x4xf32, #tpu.memory_space<vmem>>, %arg2: memref<9x4x128xf32, #tpu.memory_space<vmem>>, %arg3: memref<4x128xf32, #tpu.memory_space<vmem>>, %arg4: memref<256x1xf32, #tpu.memory_space<vmem>>, %arg5: memref<256x1xf32, #tpu.memory_space<vmem>>, %arg6: memref<1x290x128xf32, #tpu.memory_space<vmem>>, %arg7: memref<256x128xf32, #tpu.memory_space<vmem>>, %arg8: memref<1x4x128xf32, #tpu.memory_space<vmem>>) attributes {dimension_semantics = [#tpu.dimension_semantics<parallel>], iteration_bounds = array<i64: 2>, scalar_prefetch = 0 : i64, scratch_operands = 0 : i64, tpu.core_type = #tpu.core_type<tc>, window_params = [{transform_indices = @transform_0, window_bounds = array<i64: 1, 290, 4>}, {pipeline_mode = #tpu.pipeline_mode<synchronous>, transform_indices = @transform_1, window_bounds = array<i64: 9, 4, 128>}, {pipeline_mode = #tpu.pipeline_mode<synchronous>, transform_indices = @transform_2, window_bounds = array<i64: 4, 128>}, {pipeline_mode = #tpu.pipeline_mode<synchronous>, transform_indices = @transform_3, window_bounds = array<i64: 256, 1>}, {pipeline_mode = #tpu.pipeline_mode<synchronous>, transform_indices = @transform_4, window_bounds = array<i64: 256, 1>}, {transform_indices = @transform_5, window_bounds = array<i64: 1, 290, 128>}, {transform_indices = @transform_6, window_bounds = array<i64: 256, 128>}, {transform_indices = @transform_7, window_bounds = array<i64: 1, 4, 128>}]} {
    %c0 = arith.constant 0 : index
    %c0_0 = arith.constant 0 : index
    %c0_1 = arith.constant 0 : index
    %0 = vector.load %arg1[%c0, %c0_0, %c0_1] : memref<1x290x4xf32, #tpu.memory_space<vmem>>, vector<1x290x4xf32>
    %1 = vector.shape_cast %0 : vector<1x290x4xf32> to vector<290x4xf32>
    %c0_2 = arith.constant 0 : index
    %c0_3 = arith.constant 0 : index
    %2 = vector.load %arg4[%c0_2, %c0_3] : memref<256x1xf32, #tpu.memory_space<vmem>>, vector<256x1xf32>
    %c0_4 = arith.constant 0 : index
    %c0_5 = arith.constant 0 : index
    %3 = vector.load %arg5[%c0_4, %c0_5] : memref<256x1xf32, #tpu.memory_space<vmem>>, vector<256x1xf32>
    %cst = arith.constant 0.000000e+00 : f32
    %4 = vector.broadcast %cst : f32 to vector<256x128xf32>
    %5 = vector.extract_strided_slice %1 {offsets = [0, 0], sizes = [256, 4], strides = [1, 1]} : vector<290x4xf32> to vector<256x4xf32>
    %6 = vector.broadcast %2 : vector<256x1xf32> to vector<256x4xf32>
    %7 = arith.mulf %5, %6 : vector<256x4xf32>
    %c0_6 = arith.constant 0 : index
    %c0_7 = arith.constant 0 : index
    %c0_8 = arith.constant 0 : index
    %8 = vector.load %arg2[%c0_6, %c0_7, %c0_8] : memref<9x4x128xf32, #tpu.memory_space<vmem>>, vector<1x4x128xf32>
    %9 = vector.shape_cast %8 : vector<1x4x128xf32> to vector<4x128xf32>
    %cst_9 = arith.constant dense<0.000000e+00> : vector<256x128xf32>
    %10 = tpu.matmul %7, %9, %cst_9 {dimension_numbers = #tpu.dot_dimension_numbers<[1], [0], [0], [1], [0, 0, 1, 1], [], []>} : vector<256x4xf32>, vector<4x128xf32>, vector<256x128xf32> -> vector<256x128xf32>
    %11 = arith.addf %4, %10 : vector<256x128xf32>
    %12 = vector.extract_strided_slice %1 {offsets = [1, 0], sizes = [256, 4], strides = [1, 1]} : vector<290x4xf32> to vector<256x4xf32>
    %c1 = arith.constant 1 : index
    %c0_10 = arith.constant 0 : index
    %c0_11 = arith.constant 0 : index
    %13 = vector.load %arg2[%c1, %c0_10, %c0_11] : memref<9x4x128xf32, #tpu.memory_space<vmem>>, vector<1x4x128xf32>
    %14 = vector.shape_cast %13 : vector<1x4x128xf32> to vector<4x128xf32>
    %cst_12 = arith.constant dense<0.000000e+00> : vector<256x128xf32>
    %15 = tpu.matmul %12, %14, %cst_12 {dimension_numbers = #tpu.dot_dimension_numbers<[1], [0], [0], [1], [0, 0, 1, 1], [], []>} : vector<256x4xf32>, vector<4x128xf32>, vector<256x128xf32> -> vector<256x128xf32>
    %16 = arith.addf %11, %15 : vector<256x128xf32>
    %17 = vector.extract_strided_slice %1 {offsets = [2, 0], sizes = [256, 4], strides = [1, 1]} : vector<290x4xf32> to vector<256x4xf32>
    %18 = vector.broadcast %3 : vector<256x1xf32> to vector<256x4xf32>
    %19 = arith.mulf %17, %18 : vector<256x4xf32>
    %c2 = arith.constant 2 : index
    %c0_13 = arith.constant 0 : index
    %c0_14 = arith.constant 0 : index
    %20 = vector.load %arg2[%c2, %c0_13, %c0_14] : memref<9x4x128xf32, #tpu.memory_space<vmem>>, vector<1x4x128xf32>
    %21 = vector.shape_cast %20 : vector<1x4x128xf32> to vector<4x128xf32>
    %cst_15 = arith.constant dense<0.000000e+00> : vector<256x128xf32>
    %22 = tpu.matmul %19, %21, %cst_15 {dimension_numbers = #tpu.dot_dimension_numbers<[1], [0], [0], [1], [0, 0, 1, 1], [], []>} : vector<256x4xf32>, vector<4x128xf32>, vector<256x128xf32> -> vector<256x128xf32>
    %23 = arith.addf %16, %22 : vector<256x128xf32>
    %24 = vector.extract_strided_slice %1 {offsets = [16, 0], sizes = [256, 4], strides = [1, 1]} : vector<290x4xf32> to vector<256x4xf32>
    %25 = vector.broadcast %2 : vector<256x1xf32> to vector<256x4xf32>
    %26 = arith.mulf %24, %25 : vector<256x4xf32>
    %c3 = arith.constant 3 : index
    %c0_16 = arith.constant 0 : index
    %c0_17 = arith.constant 0 : index
    %27 = vector.load %arg2[%c3, %c0_16, %c0_17] : memref<9x4x128xf32, #tpu.memory_space<vmem>>, vector<1x4x128xf32>
    %28 = vector.shape_cast %27 : vector<1x4x128xf32> to vector<4x128xf32>
    %cst_18 = arith.constant dense<0.000000e+00> : vector<256x128xf32>
    %29 = tpu.matmul %26, %28, %cst_18 {dimension_numbers = #tpu.dot_dimension_numbers<[1], [0], [0], [1], [0, 0, 1, 1], [], []>} : vector<256x4xf32>, vector<4x128xf32>, vector<256x128xf32> -> vector<256x128xf32>
    %30 = arith.addf %23, %29 : vector<256x128xf32>
    %31 = vector.extract_strided_slice %1 {offsets = [17, 0], sizes = [256, 4], strides = [1, 1]} : vector<290x4xf32> to vector<256x4xf32>
    %c4 = arith.constant 4 : index
    %c0_19 = arith.constant 0 : index
    %c0_20 = arith.constant 0 : index
    %32 = vector.load %arg2[%c4, %c0_19, %c0_20] : memref<9x4x128xf32, #tpu.memory_space<vmem>>, vector<1x4x128xf32>
    %33 = vector.shape_cast %32 : vector<1x4x128xf32> to vector<4x128xf32>
    %cst_21 = arith.constant dense<0.000000e+00> : vector<256x128xf32>
    %34 = tpu.matmul %31, %33, %cst_21 {dimension_numbers = #tpu.dot_dimension_numbers<[1], [0], [0], [1], [0, 0, 1, 1], [], []>} : vector<256x4xf32>, vector<4x128xf32>, vector<256x128xf32> -> vector<256x128xf32>
    %35 = arith.addf %30, %34 : vector<256x128xf32>
    %36 = vector.extract_strided_slice %1 {offsets = [18, 0], sizes = [256, 4], strides = [1, 1]} : vector<290x4xf32> to vector<256x4xf32>
    %37 = vector.broadcast %3 : vector<256x1xf32> to vector<256x4xf32>
    %38 = arith.mulf %36, %37 : vector<256x4xf32>
    %c5 = arith.constant 5 : index
    %c0_22 = arith.constant 0 : index
    %c0_23 = arith.constant 0 : index
    %39 = vector.load %arg2[%c5, %c0_22, %c0_23] : memref<9x4x128xf32, #tpu.memory_space<vmem>>, vector<1x4x128xf32>
    %40 = vector.shape_cast %39 : vector<1x4x128xf32> to vector<4x128xf32>
    %cst_24 = arith.constant dense<0.000000e+00> : vector<256x128xf32>
    %41 = tpu.matmul %38, %40, %cst_24 {dimension_numbers = #tpu.dot_dimension_numbers<[1], [0], [0], [1], [0, 0, 1, 1], [], []>} : vector<256x4xf32>, vector<4x128xf32>, vector<256x128xf32> -> vector<256x128xf32>
    %42 = arith.addf %35, %41 : vector<256x128xf32>
    %43 = vector.extract_strided_slice %1 {offsets = [32, 0], sizes = [256, 4], strides = [1, 1]} : vector<290x4xf32> to vector<256x4xf32>
    %44 = vector.broadcast %2 : vector<256x1xf32> to vector<256x4xf32>
    %45 = arith.mulf %43, %44 : vector<256x4xf32>
    %c6 = arith.constant 6 : index
    %c0_25 = arith.constant 0 : index
    %c0_26 = arith.constant 0 : index
    %46 = vector.load %arg2[%c6, %c0_25, %c0_26] : memref<9x4x128xf32, #tpu.memory_space<vmem>>, vector<1x4x128xf32>
    %47 = vector.shape_cast %46 : vector<1x4x128xf32> to vector<4x128xf32>
    %cst_27 = arith.constant dense<0.000000e+00> : vector<256x128xf32>
    %48 = tpu.matmul %45, %47, %cst_27 {dimension_numbers = #tpu.dot_dimension_numbers<[1], [0], [0], [1], [0, 0, 1, 1], [], []>} : vector<256x4xf32>, vector<4x128xf32>, vector<256x128xf32> -> vector<256x128xf32>
    %49 = arith.addf %42, %48 : vector<256x128xf32>
    %50 = vector.extract_strided_slice %1 {offsets = [33, 0], sizes = [256, 4], strides = [1, 1]} : vector<290x4xf32> to vector<256x4xf32>
    %c7 = arith.constant 7 : index
    %c0_28 = arith.constant 0 : index
    %c0_29 = arith.constant 0 : index
    %51 = vector.load %arg2[%c7, %c0_28, %c0_29] : memref<9x4x128xf32, #tpu.memory_space<vmem>>, vector<1x4x128xf32>
    %52 = vector.shape_cast %51 : vector<1x4x128xf32> to vector<4x128xf32>
    %cst_30 = arith.constant dense<0.000000e+00> : vector<256x128xf32>
    %53 = tpu.matmul %50, %52, %cst_30 {dimension_numbers = #tpu.dot_dimension_numbers<[1], [0], [0], [1], [0, 0, 1, 1], [], []>} : vector<256x4xf32>, vector<4x128xf32>, vector<256x128xf32> -> vector<256x128xf32>
    %54 = arith.addf %49, %53 : vector<256x128xf32>
    %55 = vector.extract_strided_slice %1 {offsets = [34, 0], sizes = [256, 4], strides = [1, 1]} : vector<290x4xf32> to vector<256x4xf32>
    %56 = vector.broadcast %3 : vector<256x1xf32> to vector<256x4xf32>
    %57 = arith.mulf %55, %56 : vector<256x4xf32>
    %c8 = arith.constant 8 : index
    %c0_31 = arith.constant 0 : index
    %c0_32 = arith.constant 0 : index
    %58 = vector.load %arg2[%c8, %c0_31, %c0_32] : memref<9x4x128xf32, #tpu.memory_space<vmem>>, vector<1x4x128xf32>
    %59 = vector.shape_cast %58 : vector<1x4x128xf32> to vector<4x128xf32>
    %cst_33 = arith.constant dense<0.000000e+00> : vector<256x128xf32>
    %60 = tpu.matmul %57, %59, %cst_33 {dimension_numbers = #tpu.dot_dimension_numbers<[1], [0], [0], [1], [0, 0, 1, 1], [], []>} : vector<256x4xf32>, vector<4x128xf32>, vector<256x128xf32> -> vector<256x128xf32>
    %61 = arith.addf %54, %60 : vector<256x128xf32>
    %62 = vector.extract_strided_slice %1 {offsets = [17, 0], sizes = [256, 4], strides = [1, 1]} : vector<290x4xf32> to vector<256x4xf32>
    %c0_34 = arith.constant 0 : index
    %c0_35 = arith.constant 0 : index
    %63 = vector.load %arg3[%c0_34, %c0_35] : memref<4x128xf32, #tpu.memory_space<vmem>>, vector<4x128xf32>
    %cst_36 = arith.constant dense<0.000000e+00> : vector<256x128xf32>
    %64 = tpu.matmul %62, %63, %cst_36 {dimension_numbers = #tpu.dot_dimension_numbers<[1], [0], [0], [1], [0, 0, 1, 1], [], []>} : vector<256x4xf32>, vector<4x128xf32>, vector<256x128xf32> -> vector<256x128xf32>
    %cst_37 = arith.constant 0.000000e+00 : f32
    %65 = vector.broadcast %cst_37 : f32 to vector<17x128xf32>
    %c0_38 = arith.constant 0 : index
    %c0_39 = arith.constant 0 : index
    %c0_40 = arith.constant 0 : index
    %66 = vector.load %arg6[%c0_38, %c0_39, %c0_40] : memref<1x290x128xf32, #tpu.memory_space<vmem>>, vector<1x17x128xf32>
    %67 = vector.shape_cast %66 : vector<1x17x128xf32> to vector<17x128xf32>
    %68 = vector.shape_cast %65 : vector<17x128xf32> to vector<1x17x128xf32>
    tpu.vector_store %arg6[%c0_38, %c0_39, %c0_40], %68 {strides = array<i32>} : memref<1x290x128xf32, #tpu.memory_space<vmem>>, vector<1x17x128xf32>,
    %cst_41 = arith.constant 0.000000e+00 : f32
    %69 = vector.broadcast %cst_41 : f32 to vector<17x128xf32>
    %c0_42 = arith.constant 0 : index
    %c273 = arith.constant 273 : index
    %c0_43 = arith.constant 0 : index
    %70 = vector.load %arg6[%c0_42, %c273, %c0_43] : memref<1x290x128xf32, #tpu.memory_space<vmem>>, vector<1x17x128xf32>
    %71 = vector.shape_cast %70 : vector<1x17x128xf32> to vector<17x128xf32>
    %72 = vector.shape_cast %69 : vector<17x128xf32> to vector<1x17x128xf32>
    tpu.vector_store %arg6[%c0_42, %c273, %c0_43], %72 {strides = array<i32>} : memref<1x290x128xf32, #tpu.memory_space<vmem>>, vector<1x17x128xf32>,
    %c0_44 = arith.constant 0 : index
    %c17 = arith.constant 17 : index
    %c0_45 = arith.constant 0 : index
    %73 = vector.load %arg6[%c0_44, %c17, %c0_45] : memref<1x290x128xf32, #tpu.memory_space<vmem>>, vector<1x256x128xf32>
    %74 = vector.shape_cast %73 : vector<1x256x128xf32> to vector<256x128xf32>
    %75 = vector.shape_cast %61 : vector<256x128xf32> to vector<1x256x128xf32>
    tpu.vector_store %arg6[%c0_44, %c17, %c0_45], %75 {strides = array<i32>} : memref<1x290x128xf32, #tpu.memory_space<vmem>>, vector<1x256x128xf32>,
    %c0_46 = arith.constant 0 : index
    %c0_47 = arith.constant 0 : index
    %76 = vector.load %arg7[%c0_46, %c0_47] : memref<256x128xf32, #tpu.memory_space<vmem>>, vector<256x128xf32>
    tpu.vector_store %arg7[%c0_46, %c0_47], %64 {strides = array<i32>} : memref<256x128xf32, #tpu.memory_space<vmem>>, vector<256x128xf32>,
    %cst_48 = arith.constant dense<0.000000e+00> : vector<128xf32>
    %77 = vector.multi_reduction <add>, %61, %cst_48 [0] : vector<256x128xf32> to vector<128xf32>
    %78 = vector.shape_cast %77 : vector<128xf32> to vector<1x128xf32>
    %c0_49 = arith.constant 0 : index
    %c0_50 = arith.constant 0 : index
    %c0_51 = arith.constant 0 : index
    %79 = vector.load %arg8[%c0_49, %c0_50, %c0_51] : memref<1x4x128xf32, #tpu.memory_space<vmem>>, vector<1x1x128xf32>
    %80 = vector.shape_cast %79 : vector<1x1x128xf32> to vector<1x128xf32>
    %81 = vector.shape_cast %78 : vector<1x128xf32> to vector<1x1x128xf32>
    tpu.vector_store %arg8[%c0_49, %c0_50, %c0_51], %81 {strides = array<i32>} : memref<1x4x128xf32, #tpu.memory_space<vmem>>, vector<1x1x128xf32>,
    %82 = arith.mulf %61, %61 : vector<256x128xf32>
    %cst_52 = arith.constant dense<0.000000e+00> : vector<128xf32>
    %83 = vector.multi_reduction <add>, %82, %cst_52 [0] : vector<256x128xf32> to vector<128xf32>
    %84 = vector.shape_cast %83 : vector<128xf32> to vector<1x128xf32>
    %c0_53 = arith.constant 0 : index
    %c1_54 = arith.constant 1 : index
    %c0_55 = arith.constant 0 : index
    %85 = vector.load %arg8[%c0_53, %c1_54, %c0_55] : memref<1x4x128xf32, #tpu.memory_space<vmem>>, vector<1x1x128xf32>
    %86 = vector.shape_cast %85 : vector<1x1x128xf32> to vector<1x128xf32>
    %87 = vector.shape_cast %84 : vector<1x128xf32> to vector<1x1x128xf32>
    tpu.vector_store %arg8[%c0_53, %c1_54, %c0_55], %87 {strides = array<i32>} : memref<1x4x128xf32, #tpu.memory_space<vmem>>, vector<1x1x128xf32>,
    %cst_56 = arith.constant dense<0.000000e+00> : vector<128xf32>
    %88 = vector.multi_reduction <add>, %64, %cst_56 [0] : vector<256x128xf32> to vector<128xf32>
    %89 = vector.shape_cast %88 : vector<128xf32> to vector<1x128xf32>
    %c0_57 = arith.constant 0 : index
    %c2_58 = arith.constant 2 : index
    %c0_59 = arith.constant 0 : index
    %90 = vector.load %arg8[%c0_57, %c2_58, %c0_59] : memref<1x4x128xf32, #tpu.memory_space<vmem>>, vector<1x1x128xf32>
    %91 = vector.shape_cast %90 : vector<1x1x128xf32> to vector<1x128xf32>
    %92 = vector.shape_cast %89 : vector<1x128xf32> to vector<1x1x128xf32>
    tpu.vector_store %arg8[%c0_57, %c2_58, %c0_59], %92 {strides = array<i32>} : memref<1x4x128xf32, #tpu.memory_space<vmem>>, vector<1x1x128xf32>,
    %93 = arith.mulf %64, %64 : vector<256x128xf32>
    %cst_60 = arith.constant dense<0.000000e+00> : vector<128xf32>
    %94 = vector.multi_reduction <add>, %93, %cst_60 [0] : vector<256x128xf32> to vector<128xf32>
    %95 = vector.shape_cast %94 : vector<128xf32> to vector<1x128xf32>
    %c0_61 = arith.constant 0 : index
    %c3_62 = arith.constant 3 : index
    %c0_63 = arith.constant 0 : index
    %96 = vector.load %arg8[%c0_61, %c3_62, %c0_63] : memref<1x4x128xf32, #tpu.memory_space<vmem>>, vector<1x1x128xf32>
    %97 = vector.shape_cast %96 : vector<1x1x128xf32> to vector<1x128xf32>
    %98 = vector.shape_cast %95 : vector<1x128xf32> to vector<1x1x128xf32>
    tpu.vector_store %arg8[%c0_61, %c3_62, %c0_63], %98 {strides = array<i32>} : memref<1x4x128xf32, #tpu.memory_space<vmem>>, vector<1x1x128xf32>,
    return
  }
  func.func @transform_0(%arg0: i32) -> (i32, i32, i32) {
    %c0_i32 = arith.constant 0 : i32
    %c0_i32_0 = arith.constant 0 : i32
    %c0_i32_1 = arith.constant 0 : i32
    return %arg0, %c0_i32, %c0_i32_0 : i32, i32, i32
  }
  func.func @transform_1(%arg0: i32) -> (i32, i32, i32) {
    %c0_i32 = arith.constant 0 : i32
    %c0_i32_0 = arith.constant 0 : i32
    %c0_i32_1 = arith.constant 0 : i32
    %c0_i32_2 = arith.constant 0 : i32
    return %c0_i32, %c0_i32_0, %c0_i32_1 : i32, i32, i32
  }
  func.func @transform_2(%arg0: i32) -> (i32, i32) {
    %c0_i32 = arith.constant 0 : i32
    %c0_i32_0 = arith.constant 0 : i32
    %c0_i32_1 = arith.constant 0 : i32
    return %c0_i32, %c0_i32_0 : i32, i32
  }
  func.func @transform_3(%arg0: i32) -> (i32, i32) {
    %c0_i32 = arith.constant 0 : i32
    %c0_i32_0 = arith.constant 0 : i32
    %c0_i32_1 = arith.constant 0 : i32
    return %c0_i32, %c0_i32_0 : i32, i32
  }
  func.func @transform_4(%arg0: i32) -> (i32, i32) {
    %c0_i32 = arith.constant 0 : i32
    %c0_i32_0 = arith.constant 0 : i32
    %c0_i32_1 = arith.constant 0 : i32
    return %c0_i32, %c0_i32_0 : i32, i32
  }
  func.func @transform_5(%arg0: i32) -> (i32, i32, i32) {
    %c0_i32 = arith.constant 0 : i32
    %c0_i32_0 = arith.constant 0 : i32
    %c0_i32_1 = arith.constant 0 : i32
    return %arg0, %c0_i32, %c0_i32_0 : i32, i32, i32
  }
  func.func @transform_6(%arg0: i32) -> (i32, i32) {
    %c0_i32 = arith.constant 0 : i32
    %c0_i32_0 = arith.constant 0 : i32
    return %arg0, %c0_i32 : i32, i32
  }
  func.func @transform_7(%arg0: i32) -> (i32, i32, i32) {
    %c0_i32 = arith.constant 0 : i32
    %c0_i32_0 = arith.constant 0 : i32
    %c0_i32_1 = arith.constant 0 : i32
    return %arg0, %c0_i32, %c0_i32_0 : i32, i32, i32
  }
}

module attributes {stable_mosaic.version = 11 : i64} {
  func.func @_stage_c_kernel(%arg0: i32, %arg1: memref<256x128xf32, #tpu.memory_space<vmem>>, %arg2: memref<256x128xf32, #tpu.memory_space<vmem>>, %arg3: memref<1x128xf32, #tpu.memory_space<vmem>>, %arg4: memref<1x128xf32, #tpu.memory_space<vmem>>, %arg5: memref<1x128xf32, #tpu.memory_space<vmem>>, %arg6: memref<1x128xf32, #tpu.memory_space<vmem>>, %arg7: memref<256x128xf32, #tpu.memory_space<vmem>>) attributes {dimension_semantics = [#tpu.dimension_semantics<parallel>], iteration_bounds = array<i64: 2>, scalar_prefetch = 0 : i64, scratch_operands = 0 : i64, tpu.core_type = #tpu.core_type<tc>, window_params = [{transform_indices = @transform_0, window_bounds = array<i64: 256, 128>}, {transform_indices = @transform_1, window_bounds = array<i64: 256, 128>}, {pipeline_mode = #tpu.pipeline_mode<synchronous>, transform_indices = @transform_2, window_bounds = array<i64: 1, 128>}, {pipeline_mode = #tpu.pipeline_mode<synchronous>, transform_indices = @transform_3, window_bounds = array<i64: 1, 128>}, {pipeline_mode = #tpu.pipeline_mode<synchronous>, transform_indices = @transform_4, window_bounds = array<i64: 1, 128>}, {pipeline_mode = #tpu.pipeline_mode<synchronous>, transform_indices = @transform_5, window_bounds = array<i64: 1, 128>}, {transform_indices = @transform_6, window_bounds = array<i64: 256, 128>}]} {
    %c0 = arith.constant 0 : index
    %c0_0 = arith.constant 0 : index
    %0 = vector.load %arg1[%c0, %c0_0] : memref<256x128xf32, #tpu.memory_space<vmem>>, vector<256x128xf32>
    %c0_1 = arith.constant 0 : index
    %c0_2 = arith.constant 0 : index
    %1 = vector.load %arg3[%c0_1, %c0_2] : memref<1x128xf32, #tpu.memory_space<vmem>>, vector<1x128xf32>
    %2 = vector.broadcast %1 : vector<1x128xf32> to vector<256x128xf32>
    %3 = arith.mulf %0, %2 : vector<256x128xf32>
    %c0_3 = arith.constant 0 : index
    %c0_4 = arith.constant 0 : index
    %4 = vector.load %arg4[%c0_3, %c0_4] : memref<1x128xf32, #tpu.memory_space<vmem>>, vector<1x128xf32>
    %5 = vector.broadcast %4 : vector<1x128xf32> to vector<256x128xf32>
    %6 = arith.addf %3, %5 : vector<256x128xf32>
    %cst = arith.constant 0.000000e+00 : f32
    %7 = vector.broadcast %cst : f32 to vector<256x128xf32>
    %8 = arith.maximumf %6, %7 : vector<256x128xf32>
    %c0_5 = arith.constant 0 : index
    %c0_6 = arith.constant 0 : index
    %9 = vector.load %arg2[%c0_5, %c0_6] : memref<256x128xf32, #tpu.memory_space<vmem>>, vector<256x128xf32>
    %c0_7 = arith.constant 0 : index
    %c0_8 = arith.constant 0 : index
    %10 = vector.load %arg5[%c0_7, %c0_8] : memref<1x128xf32, #tpu.memory_space<vmem>>, vector<1x128xf32>
    %11 = vector.broadcast %10 : vector<1x128xf32> to vector<256x128xf32>
    %12 = arith.mulf %9, %11 : vector<256x128xf32>
    %c0_9 = arith.constant 0 : index
    %c0_10 = arith.constant 0 : index
    %13 = vector.load %arg6[%c0_9, %c0_10] : memref<1x128xf32, #tpu.memory_space<vmem>>, vector<1x128xf32>
    %14 = vector.broadcast %13 : vector<1x128xf32> to vector<256x128xf32>
    %15 = arith.addf %12, %14 : vector<256x128xf32>
    %16 = arith.addf %8, %15 : vector<256x128xf32>
    %c0_11 = arith.constant 0 : index
    %c0_12 = arith.constant 0 : index
    %17 = vector.load %arg7[%c0_11, %c0_12] : memref<256x128xf32, #tpu.memory_space<vmem>>, vector<256x128xf32>
    tpu.vector_store %arg7[%c0_11, %c0_12], %16 {strides = array<i32>} : memref<256x128xf32, #tpu.memory_space<vmem>>, vector<256x128xf32>,
    return
  }
  func.func @transform_0(%arg0: i32) -> (i32, i32) {
    %c0_i32 = arith.constant 0 : i32
    %c0_i32_0 = arith.constant 0 : i32
    return %arg0, %c0_i32 : i32, i32
  }
  func.func @transform_1(%arg0: i32) -> (i32, i32) {
    %c0_i32 = arith.constant 0 : i32
    %c0_i32_0 = arith.constant 0 : i32
    return %arg0, %c0_i32 : i32, i32
  }
  func.func @transform_2(%arg0: i32) -> (i32, i32) {
    %c0_i32 = arith.constant 0 : i32
    %c0_i32_0 = arith.constant 0 : i32
    %c0_i32_1 = arith.constant 0 : i32
    return %c0_i32, %c0_i32_0 : i32, i32
  }
  func.func @transform_3(%arg0: i32) -> (i32, i32) {
    %c0_i32 = arith.constant 0 : i32
    %c0_i32_0 = arith.constant 0 : i32
    %c0_i32_1 = arith.constant 0 : i32
    return %c0_i32, %c0_i32_0 : i32, i32
  }
  func.func @transform_4(%arg0: i32) -> (i32, i32) {
    %c0_i32 = arith.constant 0 : i32
    %c0_i32_0 = arith.constant 0 : i32
    %c0_i32_1 = arith.constant 0 : i32
    return %c0_i32, %c0_i32_0 : i32, i32
  }
  func.func @transform_5(%arg0: i32) -> (i32, i32) {
    %c0_i32 = arith.constant 0 : i32
    %c0_i32_0 = arith.constant 0 : i32
    %c0_i32_1 = arith.constant 0 : i32
    return %c0_i32, %c0_i32_0 : i32, i32
  }
  func.func @transform_6(%arg0: i32) -> (i32, i32) {
    %c0_i32 = arith.constant 0 : i32
    %c0_i32_0 = arith.constant 0 : i32
    return %arg0, %c0_i32 : i32, i32
  }
}

module attributes {stable_mosaic.version = 11 : i64} {
  func.func @_stage_b_kernel(%arg0: i32, %arg1: memref<1x290x128xf32, #tpu.memory_space<vmem>>, %arg2: memref<9x128x128xf32, #tpu.memory_space<vmem>>, %arg3: memref<1x128xf32, #tpu.memory_space<vmem>>, %arg4: memref<1x128xf32, #tpu.memory_space<vmem>>, %arg5: memref<290x1xf32, #tpu.memory_space<vmem>>, %arg6: memref<256x1xf32, #tpu.memory_space<vmem>>, %arg7: memref<256x1xf32, #tpu.memory_space<vmem>>, %arg8: memref<256x128xf32, #tpu.memory_space<vmem>>, %arg9: memref<1x2x128xf32, #tpu.memory_space<vmem>>, %arg10: memref<290x128xf32, #tpu.memory_space<vmem>>) attributes {dimension_semantics = [#tpu.dimension_semantics<parallel>], iteration_bounds = array<i64: 2>, scalar_prefetch = 0 : i64, scratch_operands = 1 : i64, tpu.core_type = #tpu.core_type<tc>, window_params = [{transform_indices = @transform_0, window_bounds = array<i64: 1, 290, 128>}, {pipeline_mode = #tpu.pipeline_mode<synchronous>, transform_indices = @transform_1, window_bounds = array<i64: 9, 128, 128>}, {pipeline_mode = #tpu.pipeline_mode<synchronous>, transform_indices = @transform_2, window_bounds = array<i64: 1, 128>}, {pipeline_mode = #tpu.pipeline_mode<synchronous>, transform_indices = @transform_3, window_bounds = array<i64: 1, 128>}, {pipeline_mode = #tpu.pipeline_mode<synchronous>, transform_indices = @transform_4, window_bounds = array<i64: 290, 1>}, {pipeline_mode = #tpu.pipeline_mode<synchronous>, transform_indices = @transform_5, window_bounds = array<i64: 256, 1>}, {pipeline_mode = #tpu.pipeline_mode<synchronous>, transform_indices = @transform_6, window_bounds = array<i64: 256, 1>}, {transform_indices = @transform_7, window_bounds = array<i64: 256, 128>}, {transform_indices = @transform_8, window_bounds = array<i64: 1, 2, 128>}]} {
    %c0 = arith.constant 0 : index
    %c0_0 = arith.constant 0 : index
    %c0_1 = arith.constant 0 : index
    %0 = vector.load %arg1[%c0, %c0_0, %c0_1] : memref<1x290x128xf32, #tpu.memory_space<vmem>>, vector<1x290x128xf32>
    %1 = vector.shape_cast %0 : vector<1x290x128xf32> to vector<290x128xf32>
    %c0_2 = arith.constant 0 : index
    %c0_3 = arith.constant 0 : index
    %2 = vector.load %arg3[%c0_2, %c0_3] : memref<1x128xf32, #tpu.memory_space<vmem>>, vector<1x128xf32>
    %3 = vector.broadcast %2 : vector<1x128xf32> to vector<290x128xf32>
    %4 = arith.mulf %1, %3 : vector<290x128xf32>
    %c0_4 = arith.constant 0 : index
    %c0_5 = arith.constant 0 : index
    %5 = vector.load %arg4[%c0_4, %c0_5] : memref<1x128xf32, #tpu.memory_space<vmem>>, vector<1x128xf32>
    %6 = vector.broadcast %5 : vector<1x128xf32> to vector<290x128xf32>
    %7 = arith.addf %4, %6 : vector<290x128xf32>
    %cst = arith.constant 0.000000e+00 : f32
    %8 = vector.broadcast %cst : f32 to vector<290x128xf32>
    %9 = arith.maximumf %7, %8 : vector<290x128xf32>
    %c0_6 = arith.constant 0 : index
    %c0_7 = arith.constant 0 : index
    %10 = vector.load %arg5[%c0_6, %c0_7] : memref<290x1xf32, #tpu.memory_space<vmem>>, vector<290x1xf32>
    %11 = vector.broadcast %10 : vector<290x1xf32> to vector<290x128xf32>
    %12 = arith.mulf %9, %11 : vector<290x128xf32>
    %c0_8 = arith.constant 0 : index
    %c0_9 = arith.constant 0 : index
    %13 = vector.load %arg10[%c0_8, %c0_9] : memref<290x128xf32, #tpu.memory_space<vmem>>, vector<290x128xf32>
    tpu.vector_store %arg10[%c0_8, %c0_9], %12 {strides = array<i32>} : memref<290x128xf32, #tpu.memory_space<vmem>>, vector<290x128xf32>,
    %c0_10 = arith.constant 0 : index
    %c0_11 = arith.constant 0 : index
    %14 = vector.load %arg6[%c0_10, %c0_11] : memref<256x1xf32, #tpu.memory_space<vmem>>, vector<256x1xf32>
    %c0_12 = arith.constant 0 : index
    %c0_13 = arith.constant 0 : index
    %15 = vector.load %arg7[%c0_12, %c0_13] : memref<256x1xf32, #tpu.memory_space<vmem>>, vector<256x1xf32>
    %cst_14 = arith.constant 0.000000e+00 : f32
    %16 = vector.broadcast %cst_14 : f32 to vector<256x128xf32>
    %c0_15 = arith.constant 0 : index
    %c0_16 = arith.constant 0 : index
    %17 = vector.load %arg10[%c0_15, %c0_16] : memref<290x128xf32, #tpu.memory_space<vmem>>, vector<256x128xf32>
    %18 = vector.broadcast %14 : vector<256x1xf32> to vector<256x128xf32>
    %19 = arith.mulf %17, %18 : vector<256x128xf32>
    %c0_17 = arith.constant 0 : index
    %c0_18 = arith.constant 0 : index
    %c0_19 = arith.constant 0 : index
    %20 = vector.load %arg2[%c0_17, %c0_18, %c0_19] : memref<9x128x128xf32, #tpu.memory_space<vmem>>, vector<1x128x128xf32>
    %21 = vector.shape_cast %20 : vector<1x128x128xf32> to vector<128x128xf32>
    %cst_20 = arith.constant dense<0.000000e+00> : vector<256x128xf32>
    %22 = tpu.matmul %19, %21, %cst_20 {dimension_numbers = #tpu.dot_dimension_numbers<[1], [0], [0], [1], [0, 0, 1, 1], [], []>} : vector<256x128xf32>, vector<128x128xf32>, vector<256x128xf32> -> vector<256x128xf32>
    %23 = arith.addf %16, %22 : vector<256x128xf32>
    %c1 = arith.constant 1 : index
    %c0_21 = arith.constant 0 : index
    %24 = vector.load %arg10[%c1, %c0_21] : memref<290x128xf32, #tpu.memory_space<vmem>>, vector<256x128xf32>
    %c1_22 = arith.constant 1 : index
    %c0_23 = arith.constant 0 : index
    %c0_24 = arith.constant 0 : index
    %25 = vector.load %arg2[%c1_22, %c0_23, %c0_24] : memref<9x128x128xf32, #tpu.memory_space<vmem>>, vector<1x128x128xf32>
    %26 = vector.shape_cast %25 : vector<1x128x128xf32> to vector<128x128xf32>
    %cst_25 = arith.constant dense<0.000000e+00> : vector<256x128xf32>
    %27 = tpu.matmul %24, %26, %cst_25 {dimension_numbers = #tpu.dot_dimension_numbers<[1], [0], [0], [1], [0, 0, 1, 1], [], []>} : vector<256x128xf32>, vector<128x128xf32>, vector<256x128xf32> -> vector<256x128xf32>
    %28 = arith.addf %23, %27 : vector<256x128xf32>
    %c2 = arith.constant 2 : index
    %c0_26 = arith.constant 0 : index
    %29 = vector.load %arg10[%c2, %c0_26] : memref<290x128xf32, #tpu.memory_space<vmem>>, vector<256x128xf32>
    %30 = vector.broadcast %15 : vector<256x1xf32> to vector<256x128xf32>
    %31 = arith.mulf %29, %30 : vector<256x128xf32>
    %c2_27 = arith.constant 2 : index
    %c0_28 = arith.constant 0 : index
    %c0_29 = arith.constant 0 : index
    %32 = vector.load %arg2[%c2_27, %c0_28, %c0_29] : memref<9x128x128xf32, #tpu.memory_space<vmem>>, vector<1x128x128xf32>
    %33 = vector.shape_cast %32 : vector<1x128x128xf32> to vector<128x128xf32>
    %cst_30 = arith.constant dense<0.000000e+00> : vector<256x128xf32>
    %34 = tpu.matmul %31, %33, %cst_30 {dimension_numbers = #tpu.dot_dimension_numbers<[1], [0], [0], [1], [0, 0, 1, 1], [], []>} : vector<256x128xf32>, vector<128x128xf32>, vector<256x128xf32> -> vector<256x128xf32>
    %35 = arith.addf %28, %34 : vector<256x128xf32>
    %c16 = arith.constant 16 : index
    %c0_31 = arith.constant 0 : index
    %36 = vector.load %arg10[%c16, %c0_31] : memref<290x128xf32, #tpu.memory_space<vmem>>, vector<256x128xf32>
    %37 = vector.broadcast %14 : vector<256x1xf32> to vector<256x128xf32>
    %38 = arith.mulf %36, %37 : vector<256x128xf32>
    %c3 = arith.constant 3 : index
    %c0_32 = arith.constant 0 : index
    %c0_33 = arith.constant 0 : index
    %39 = vector.load %arg2[%c3, %c0_32, %c0_33] : memref<9x128x128xf32, #tpu.memory_space<vmem>>, vector<1x128x128xf32>
    %40 = vector.shape_cast %39 : vector<1x128x128xf32> to vector<128x128xf32>
    %cst_34 = arith.constant dense<0.000000e+00> : vector<256x128xf32>
    %41 = tpu.matmul %38, %40, %cst_34 {dimension_numbers = #tpu.dot_dimension_numbers<[1], [0], [0], [1], [0, 0, 1, 1], [], []>} : vector<256x128xf32>, vector<128x128xf32>, vector<256x128xf32> -> vector<256x128xf32>
    %42 = arith.addf %35, %41 : vector<256x128xf32>
    %c17 = arith.constant 17 : index
    %c0_35 = arith.constant 0 : index
    %43 = vector.load %arg10[%c17, %c0_35] : memref<290x128xf32, #tpu.memory_space<vmem>>, vector<256x128xf32>
    %c4 = arith.constant 4 : index
    %c0_36 = arith.constant 0 : index
    %c0_37 = arith.constant 0 : index
    %44 = vector.load %arg2[%c4, %c0_36, %c0_37] : memref<9x128x128xf32, #tpu.memory_space<vmem>>, vector<1x128x128xf32>
    %45 = vector.shape_cast %44 : vector<1x128x128xf32> to vector<128x128xf32>
    %cst_38 = arith.constant dense<0.000000e+00> : vector<256x128xf32>
    %46 = tpu.matmul %43, %45, %cst_38 {dimension_numbers = #tpu.dot_dimension_numbers<[1], [0], [0], [1], [0, 0, 1, 1], [], []>} : vector<256x128xf32>, vector<128x128xf32>, vector<256x128xf32> -> vector<256x128xf32>
    %47 = arith.addf %42, %46 : vector<256x128xf32>
    %c18 = arith.constant 18 : index
    %c0_39 = arith.constant 0 : index
    %48 = vector.load %arg10[%c18, %c0_39] : memref<290x128xf32, #tpu.memory_space<vmem>>, vector<256x128xf32>
    %49 = vector.broadcast %15 : vector<256x1xf32> to vector<256x128xf32>
    %50 = arith.mulf %48, %49 : vector<256x128xf32>
    %c5 = arith.constant 5 : index
    %c0_40 = arith.constant 0 : index
    %c0_41 = arith.constant 0 : index
    %51 = vector.load %arg2[%c5, %c0_40, %c0_41] : memref<9x128x128xf32, #tpu.memory_space<vmem>>, vector<1x128x128xf32>
    %52 = vector.shape_cast %51 : vector<1x128x128xf32> to vector<128x128xf32>
    %cst_42 = arith.constant dense<0.000000e+00> : vector<256x128xf32>
    %53 = tpu.matmul %50, %52, %cst_42 {dimension_numbers = #tpu.dot_dimension_numbers<[1], [0], [0], [1], [0, 0, 1, 1], [], []>} : vector<256x128xf32>, vector<128x128xf32>, vector<256x128xf32> -> vector<256x128xf32>
    %54 = arith.addf %47, %53 : vector<256x128xf32>
    %c32 = arith.constant 32 : index
    %c0_43 = arith.constant 0 : index
    %55 = vector.load %arg10[%c32, %c0_43] : memref<290x128xf32, #tpu.memory_space<vmem>>, vector<256x128xf32>
    %56 = vector.broadcast %14 : vector<256x1xf32> to vector<256x128xf32>
    %57 = arith.mulf %55, %56 : vector<256x128xf32>
    %c6 = arith.constant 6 : index
    %c0_44 = arith.constant 0 : index
    %c0_45 = arith.constant 0 : index
    %58 = vector.load %arg2[%c6, %c0_44, %c0_45] : memref<9x128x128xf32, #tpu.memory_space<vmem>>, vector<1x128x128xf32>
    %59 = vector.shape_cast %58 : vector<1x128x128xf32> to vector<128x128xf32>
    %cst_46 = arith.constant dense<0.000000e+00> : vector<256x128xf32>
    %60 = tpu.matmul %57, %59, %cst_46 {dimension_numbers = #tpu.dot_dimension_numbers<[1], [0], [0], [1], [0, 0, 1, 1], [], []>} : vector<256x128xf32>, vector<128x128xf32>, vector<256x128xf32> -> vector<256x128xf32>
    %61 = arith.addf %54, %60 : vector<256x128xf32>
    %c33 = arith.constant 33 : index
    %c0_47 = arith.constant 0 : index
    %62 = vector.load %arg10[%c33, %c0_47] : memref<290x128xf32, #tpu.memory_space<vmem>>, vector<256x128xf32>
    %c7 = arith.constant 7 : index
    %c0_48 = arith.constant 0 : index
    %c0_49 = arith.constant 0 : index
    %63 = vector.load %arg2[%c7, %c0_48, %c0_49] : memref<9x128x128xf32, #tpu.memory_space<vmem>>, vector<1x128x128xf32>
    %64 = vector.shape_cast %63 : vector<1x128x128xf32> to vector<128x128xf32>
    %cst_50 = arith.constant dense<0.000000e+00> : vector<256x128xf32>
    %65 = tpu.matmul %62, %64, %cst_50 {dimension_numbers = #tpu.dot_dimension_numbers<[1], [0], [0], [1], [0, 0, 1, 1], [], []>} : vector<256x128xf32>, vector<128x128xf32>, vector<256x128xf32> -> vector<256x128xf32>
    %66 = arith.addf %61, %65 : vector<256x128xf32>
    %c34 = arith.constant 34 : index
    %c0_51 = arith.constant 0 : index
    %67 = vector.load %arg10[%c34, %c0_51] : memref<290x128xf32, #tpu.memory_space<vmem>>, vector<256x128xf32>
    %68 = vector.broadcast %15 : vector<256x1xf32> to vector<256x128xf32>
    %69 = arith.mulf %67, %68 : vector<256x128xf32>
    %c8 = arith.constant 8 : index
    %c0_52 = arith.constant 0 : index
    %c0_53 = arith.constant 0 : index
    %70 = vector.load %arg2[%c8, %c0_52, %c0_53] : memref<9x128x128xf32, #tpu.memory_space<vmem>>, vector<1x128x128xf32>
    %71 = vector.shape_cast %70 : vector<1x128x128xf32> to vector<128x128xf32>
    %cst_54 = arith.constant dense<0.000000e+00> : vector<256x128xf32>
    %72 = tpu.matmul %69, %71, %cst_54 {dimension_numbers = #tpu.dot_dimension_numbers<[1], [0], [0], [1], [0, 0, 1, 1], [], []>} : vector<256x128xf32>, vector<128x128xf32>, vector<256x128xf32> -> vector<256x128xf32>
    %73 = arith.addf %66, %72 : vector<256x128xf32>
    %c0_55 = arith.constant 0 : index
    %c0_56 = arith.constant 0 : index
    %74 = vector.load %arg8[%c0_55, %c0_56] : memref<256x128xf32, #tpu.memory_space<vmem>>, vector<256x128xf32>
    tpu.vector_store %arg8[%c0_55, %c0_56], %73 {strides = array<i32>} : memref<256x128xf32, #tpu.memory_space<vmem>>, vector<256x128xf32>,
    %cst_57 = arith.constant dense<0.000000e+00> : vector<128xf32>
    %75 = vector.multi_reduction <add>, %73, %cst_57 [0] : vector<256x128xf32> to vector<128xf32>
    %76 = vector.shape_cast %75 : vector<128xf32> to vector<1x128xf32>
    %c0_58 = arith.constant 0 : index
    %c0_59 = arith.constant 0 : index
    %c0_60 = arith.constant 0 : index
    %77 = vector.load %arg9[%c0_58, %c0_59, %c0_60] : memref<1x2x128xf32, #tpu.memory_space<vmem>>, vector<1x1x128xf32>
    %78 = vector.shape_cast %77 : vector<1x1x128xf32> to vector<1x128xf32>
    %79 = vector.shape_cast %76 : vector<1x128xf32> to vector<1x1x128xf32>
    tpu.vector_store %arg9[%c0_58, %c0_59, %c0_60], %79 {strides = array<i32>} : memref<1x2x128xf32, #tpu.memory_space<vmem>>, vector<1x1x128xf32>,
    %80 = arith.mulf %73, %73 : vector<256x128xf32>
    %cst_61 = arith.constant dense<0.000000e+00> : vector<128xf32>
    %81 = vector.multi_reduction <add>, %80, %cst_61 [0] : vector<256x128xf32> to vector<128xf32>
    %82 = vector.shape_cast %81 : vector<128xf32> to vector<1x128xf32>
    %c0_62 = arith.constant 0 : index
    %c1_63 = arith.constant 1 : index
    %c0_64 = arith.constant 0 : index
    %83 = vector.load %arg9[%c0_62, %c1_63, %c0_64] : memref<1x2x128xf32, #tpu.memory_space<vmem>>, vector<1x1x128xf32>
    %84 = vector.shape_cast %83 : vector<1x1x128xf32> to vector<1x128xf32>
    %85 = vector.shape_cast %82 : vector<1x128xf32> to vector<1x1x128xf32>
    tpu.vector_store %arg9[%c0_62, %c1_63, %c0_64], %85 {strides = array<i32>} : memref<1x2x128xf32, #tpu.memory_space<vmem>>, vector<1x1x128xf32>,
    return
  }
  func.func @transform_0(%arg0: i32) -> (i32, i32, i32) {
    %c0_i32 = arith.constant 0 : i32
    %c0_i32_0 = arith.constant 0 : i32
    %c0_i32_1 = arith.constant 0 : i32
    return %arg0, %c0_i32, %c0_i32_0 : i32, i32, i32
  }
  func.func @transform_1(%arg0: i32) -> (i32, i32, i32) {
    %c0_i32 = arith.constant 0 : i32
    %c0_i32_0 = arith.constant 0 : i32
    %c0_i32_1 = arith.constant 0 : i32
    %c0_i32_2 = arith.constant 0 : i32
    return %c0_i32, %c0_i32_0, %c0_i32_1 : i32, i32, i32
  }
  func.func @transform_2(%arg0: i32) -> (i32, i32) {
    %c0_i32 = arith.constant 0 : i32
    %c0_i32_0 = arith.constant 0 : i32
    %c0_i32_1 = arith.constant 0 : i32
    return %c0_i32, %c0_i32_0 : i32, i32
  }
  func.func @transform_3(%arg0: i32) -> (i32, i32) {
    %c0_i32 = arith.constant 0 : i32
    %c0_i32_0 = arith.constant 0 : i32
    %c0_i32_1 = arith.constant 0 : i32
    return %c0_i32, %c0_i32_0 : i32, i32
  }
  func.func @transform_4(%arg0: i32) -> (i32, i32) {
    %c0_i32 = arith.constant 0 : i32
    %c0_i32_0 = arith.constant 0 : i32
    %c0_i32_1 = arith.constant 0 : i32
    return %c0_i32, %c0_i32_0 : i32, i32
  }
  func.func @transform_5(%arg0: i32) -> (i32, i32) {
    %c0_i32 = arith.constant 0 : i32
    %c0_i32_0 = arith.constant 0 : i32
    %c0_i32_1 = arith.constant 0 : i32
    return %c0_i32, %c0_i32_0 : i32, i32
  }
  func.func @transform_6(%arg0: i32) -> (i32, i32) {
    %c0_i32 = arith.constant 0 : i32
    %c0_i32_0 = arith.constant 0 : i32
    %c0_i32_1 = arith.constant 0 : i32
    return %c0_i32, %c0_i32_0 : i32, i32
  }
  func.func @transform_7(%arg0: i32) -> (i32, i32) {
    %c0_i32 = arith.constant 0 : i32
    %c0_i32_0 = arith.constant 0 : i32
    return %arg0, %c0_i32 : i32, i32
  }
  func.func @transform_8(%arg0: i32) -> (i32, i32, i32) {
    %c0_i32 = arith.constant 0 : i32
    %c0_i32_0 = arith.constant 0 : i32
    %c0_i32_1 = arith.constant 0 : i32
    return %arg0, %c0_i32, %c0_i32_0 : i32, i32, i32
  }
}

</mosaic_0001>

<llo_original>
// kernel: res_block_forward.5
$region0: #{res_block_forward.5}
  #allocation0 [shape = 'u32[]', space=smem, size = 0x4, offset = 0x4, fixed_abs, tag = 'smem constant byte address 0x4 - core index']
  #allocation1 [shape = 'u32[144,128]{1,0:T(1,128)}', space=vmem, size = 0x12000, scoped, tag = 'internal scratch']
  %s0 = inlined_call_operand.vmem [shape: f32[512,128], index: 0, kind: input, shape index: {}]
  %s1 = inlined_call_operand.vmem [shape: f32[512,128], index: 1, kind: input, shape index: {}]
  %s2 = inlined_call_operand.vmem [shape: f32[1,128], index: 2, kind: input, shape index: {}]
  %s3 = inlined_call_operand.vmem [shape: f32[1,128], index: 3, kind: input, shape index: {}]
  %s4 = inlined_call_operand.vmem [shape: f32[1,128], index: 4, kind: input, shape index: {}]
  %s5 = inlined_call_operand.vmem [shape: f32[1,128], index: 5, kind: input, shape index: {}]
  %s6 = inlined_call_operand.vmem [shape: f32[512,128], index: 6, kind: output, shape index: {}]
  %s7 = sld [smem:[#allocation0]]
  $region57: #{res_block_forward.5} parent=0
    _
  %s9 = ssub.s32 1, %s7
  %s10 = scalar_select 0, %s9, %s7
  loop: start=0, step=1, limit=4
  $region2: #{res_block_forward.5} parent=0 // loop_pre_header
    _
  $region3: #{res_block_forward.5} parent=0 // loop_header
    %s12 = sphi 0, %s16
    %p13 = scmp.ge.s32.totalorder %s12, 4
    %s22 = sphi 0, %s24
    %s25 = sphi 0, %s22
    %s26 = sphi 0, %s25
    %s42 = sphi 0, %s26
    %s48 = sphi 0, %s50
    %s51 = sphi 0, %s48
    %s52 = sphi 0, %s51
    %s68 = sphi 0, %s52
    %s72 = sphi 0, %s72
    %s74 = sphi 0, %s72
    %s75 = sphi 0, %s74
    %s89 = sphi 0, %s75
    %s93 = sphi 0, %s93
    %s95 = sphi 0, %s93
    %s96 = sphi 0, %s95
    %s110 = sphi 0, %s96
    %s114 = sphi 0, %s114
    %s116 = sphi 0, %s114
    %s117 = sphi 0, %s116
    %s131 = sphi 0, %s117
    %s135 = sphi 0, %s135
    %s137 = sphi 0, %s135
    %s138 = sphi 0, %s137
    %s152 = sphi 0, %s138
    %s158 = sphi 0, %s160
    %s161 = sphi 0, %s158
    %s162 = sphi 0, %s161
    %s178 = sphi 0, %s162
  $region4: #{res_block_forward.5} parent=0 // loop_header_branch
    %15 = sbr.rel (%p13) target = $region8
  $region5: #{res_block_forward.5} parent=0 // loop_body
    %s17 = ssub.s32 %s12, 1
    %s18 = ssub.s32 %s12, 2
    %s19 = sadd.s32 %s12, 1
    %s20 = ssub.s32 %s12, %s19
    %p21 = scmp.eq.s32.totalorder %s20, 0
    %s23 = sadd.s32 %s22, 1
    %s24 = scalar_select %p21, %s22, %s23
    %p27 = pneg %p21
    %p28 = scmp.eq.s32.totalorder %s12, 1
    %p29 = por %p27, %p28
    %p30 = scmp.ne.s32.totalorder %s22, %s25
    %p31 = scmp.eq.s32.totalorder %s12, 0
    %p32 = por %p30, %p31
    %p33 = scmp.ne.s32.totalorder %s22, %s25
    %p34 = scmp.eq.s32.totalorder %s17, 1
    %p35 = por %p33, %p34
    %p36 = scmp.ne.s32.totalorder %s25, %s26
    %p37 = scmp.eq.s32.totalorder %s17, 0
    %p38 = por %p36, %p37
    %p39 = scmp.ne.s32.totalorder %s25, %s26
    %p40 = scmp.eq.s32.totalorder %s18, 1
    %p41 = por %p39, %p40
    %p43 = scmp.ne.s32.totalorder %s26, %s42
    %p44 = scmp.eq.s32.totalorder %s18, 0
    %p45 = por %p43, %p44
    %s46 = ssub.s32 %s12, %s19
    %p47 = scmp.eq.s32.totalorder %s46, 0
    %s49 = sadd.s32 %s48, 1
    %s50 = scalar_select %p47, %s48, %s49
    %p53 = pneg %p47
    %p54 = scmp.eq.s32.totalorder %s12, 1
    %p55 = por %p53, %p54
    %p56 = scmp.ne.s32.totalorder %s48, %s51
    %p57 = scmp.eq.s32.totalorder %s12, 0
    %p58 = por %p56, %p57
    %p59 = scmp.ne.s32.totalorder %s48, %s51
    %p60 = scmp.eq.s32.totalorder %s17, 1
    %p61 = por %p59, %p60
    %p62 = scmp.ne.s32.totalorder %s51, %s52
    %p63 = scmp.eq.s32.totalorder %s17, 0
    %p64 = por %p62, %p63
    %p65 = scmp.ne.s32.totalorder %s51, %s52
    %p66 = scmp.eq.s32.totalorder %s18, 1
    %p67 = por %p65, %p66
    %p69 = scmp.ne.s32.totalorder %s52, %s68
    %p70 = scmp.eq.s32.totalorder %s18, 0
    %p71 = por %p69, %p70
    %s73 = sadd.s32 %s72, 1
    %p76 = scmp.eq.s32.totalorder %s12, 1
    %p77 = scmp.ne.s32.totalorder %s72, %s74
    %p78 = scmp.eq.s32.totalorder %s12, 0
    %p79 = por %p77, %p78
    %p80 = scmp.ne.s32.totalorder %s72, %s74
    %p81 = scmp.eq.s32.totalorder %s17, 1
    %p82 = por %p80, %p81
    %p83 = scmp.ne.s32.totalorder %s74, %s75
    %p84 = scmp.eq.s32.totalorder %s17, 0
    %p85 = por %p83, %p84
    %p86 = scmp.ne.s32.totalorder %s74, %s75
    %p87 = scmp.eq.s32.totalorder %s18, 1
    %p88 = por %p86, %p87
    %p90 = scmp.ne.s32.totalorder %s75, %s89
    %p91 = scmp.eq.s32.totalorder %s18, 0
    %p92 = por %p90, %p91
    %s94 = sadd.s32 %s93, 1
    %p97 = scmp.eq.s32.totalorder %s12, 1
    %p98 = scmp.ne.s32.totalorder %s93, %s95
    %p99 = scmp.eq.s32.totalorder %s12, 0
    %p100 = por %p98, %p99
    %p101 = scmp.ne.s32.totalorder %s93, %s95
    %p102 = scmp.eq.s32.totalorder %s17, 1
    %p103 = por %p101, %p102
    %p104 = scmp.ne.s32.totalorder %s95, %s96
    %p105 = scmp.eq.s32.totalorder %s17, 0
    %p106 = por %p104, %p105
    %p107 = scmp.ne.s32.totalorder %s95, %s96
    %p108 = scmp.eq.s32.totalorder %s18, 1
    %p109 = por %p107, %p108
    %p111 = scmp.ne.s32.totalorder %s96, %s110
    %p112 = scmp.eq.s32.totalorder %s18, 0
    %p113 = por %p111, %p112
    %s115 = sadd.s32 %s114, 1
    %p118 = scmp.eq.s32.totalorder %s12, 1
    %p119 = scmp.ne.s32.totalorder %s114, %s116
    %p120 = scmp.eq.s32.totalorder %s12, 0
    %p121 = por %p119, %p120
    %p122 = scmp.ne.s32.totalorder %s114, %s116
    %p123 = scmp.eq.s32.totalorder %s17, 1
    %p124 = por %p122, %p123
    %p125 = scmp.ne.s32.totalorder %s116, %s117
    %p126 = scmp.eq.s32.totalorder %s17, 0
    %p127 = por %p125, %p126
    %p128 = scmp.ne.s32.totalorder %s116, %s117
    %p129 = scmp.eq.s32.totalorder %s18, 1
    %p130 = por %p128, %p129
    %p132 = scmp.ne.s32.totalorder %s117, %s131
    %p133 = scmp.eq.s32.totalorder %s18, 0
    %p134 = por %p132, %p133
    %s136 = sadd.s32 %s135, 1
    %p139 = scmp.eq.s32.totalorder %s12, 1
    %p140 = scmp.ne.s32.totalorder %s135, %s137
    %p141 = scmp.eq.s32.totalorder %s12, 0
    %p142 = por %p140, %p141
    %p143 = scmp.ne.s32.totalorder %s135, %s137
    %p144 = scmp.eq.s32.totalorder %s17, 1
    %p145 = por %p143, %p144
    %p146 = scmp.ne.s32.totalorder %s137, %s138
    %p147 = scmp.eq.s32.totalorder %s17, 0
    %p148 = por %p146, %p147
    %p149 = scmp.ne.s32.totalorder %s137, %s138
    %p150 = scmp.eq.s32.totalorder %s18, 1
    %p151 = por %p149, %p150
    %p153 = scmp.ne.s32.totalorder %s138, %s152
    %p154 = scmp.eq.s32.totalorder %s18, 0
    %p155 = por %p153, %p154
    %s156 = ssub.s32 %s12, %s19
    %p157 = scmp.eq.s32.totalorder %s156, 0
    %s159 = sadd.s32 %s158, 1
    %s160 = scalar_select %p157, %s158, %s159
    %p163 = pneg %p157
    %p164 = scmp.eq.s32.totalorder %s12, 1
    %p165 = por %p163, %p164
    %p166 = scmp.ne.s32.totalorder %s158, %s161
    %p167 = scmp.eq.s32.totalorder %s12, 0
    %p168 = por %p166, %p167
    %p169 = scmp.ne.s32.totalorder %s158, %s161
    %p170 = scmp.eq.s32.totalorder %s17, 1
    %p171 = por %p169, %p170
    %p172 = scmp.ne.s32.totalorder %s161, %s162
    %p173 = scmp.eq.s32.totalorder %s17, 0
    %p174 = por %p172, %p173
    %p175 = scmp.ne.s32.totalorder %s161, %s162
    %p176 = scmp.eq.s32.totalorder %s18, 1
    %p177 = por %p175, %p176
    %p179 = scmp.ne.s32.totalorder %s162, %s178
    %p180 = scmp.eq.s32.totalorder %s18, 0
    %p181 = por %p179, %p180
    %p182 = scmp.le.s32.totalorder 1, %s12
    %p183 = scmp.lt.s32.totalorder %s12, 3
    %p184 = pnand %p182, %p183
    %p185 = pneg %p184
    // Predicated region
    $region9: #{res_block_forward.5} parent=5 // pred_check
      _
    $region10: #{res_block_forward.5} parent=5 // pred_check_branch
      %187 = sbr.rel (%p184) target = $region12
    $region11: #{res_block_forward.5} parent=5 // pred_region
      %s188 = ssub.s32 %s12, 1
      // Predicated region
      $region13: #{res_block_forward.5} parent=11 // pred_check
        %p189 = pneg %p85
      $region14: #{res_block_forward.5} parent=11 // pred_check_branch
        %191 = sbr.rel (%p189) target = $region16
      $region15: #{res_block_forward.5} parent=11 // pred_region
        _
      $region16: #{res_block_forward.5} parent=11 // pred_fallthru
        _
      // Predicated region
      $region17: #{res_block_forward.5} parent=11 // pred_check
        %p192 = pneg %p106
      $region18: #{res_block_forward.5} parent=11 // pred_check_branch
        %194 = sbr.rel (%p192) target = $region20
      $region19: #{res_block_forward.5} parent=11 // pred_region
        _
      $region20: #{res_block_forward.5} parent=11 // pred_fallthru
        _
      // Predicated region
      $region21: #{res_block_forward.5} parent=11 // pred_check
        %p195 = pneg %p127
      $region22: #{res_block_forward.5} parent=11 // pred_check_branch
        %197 = sbr.rel (%p195) target = $region24
      $region23: #{res_block_forward.5} parent=11 // pred_region
        _
      $region24: #{res_block_forward.5} parent=11 // pred_fallthru
        _
      // Predicated region
      $region25: #{res_block_forward.5} parent=11 // pred_check
        %p198 = pneg %p148
      $region26: #{res_block_forward.5} parent=11 // pred_check_branch
        %200 = sbr.rel (%p198) target = $region28
      $region27: #{res_block_forward.5} parent=11 // pred_region
        _
      $region28: #{res_block_forward.5} parent=11 // pred_fallthru
        _
    $region12: #{res_block_forward.5} parent=5 // pred_fallthru
      _
    %p201 = scmp.lt.s32.totalorder %s12, 2
    // Predicated region
    $region29: #{res_block_forward.5} parent=5 // pred_check
      %p202 = pneg %p201
    $region30: #{res_block_forward.5} parent=5 // pred_check_branch
      %204 = sbr.rel (%p202) target = $region32
    $region31: #{res_block_forward.5} parent=5 // pred_region
      // Predicated region
      $region33: #{res_block_forward.5} parent=31 // pred_check
        %p205 = pneg %p32
      $region34: #{res_block_forward.5} parent=31 // pred_check_branch
        %207 = sbr.rel (%p205) target = $region36
      $region35: #{res_block_forward.5} parent=31 // pred_region
        %s208 = smul.u32 32, %s12
        %p209 = scmp.lt.s32.totalorder %s208, 63
        %s210 = scalar_select %p209, %s208, 63
        %s211 = smul.addr %s210, 8
        %s212 = scalar_lea.vmem %s0, %s211
        %s213 = smul.u32 32, %s12
      $region36: #{res_block_forward.5} parent=31 // pred_fallthru
        _
      // Predicated region
      $region37: #{res_block_forward.5} parent=31 // pred_check
        %p214 = pneg %p58
      $region38: #{res_block_forward.5} parent=31 // pred_check_branch
        %216 = sbr.rel (%p214) target = $region40
      $region39: #{res_block_forward.5} parent=31 // pred_region
        %s217 = smul.u32 32, %s12
        %p218 = scmp.lt.s32.totalorder %s217, 63
        %s219 = scalar_select %p218, %s217, 63
        %s220 = smul.addr %s219, 8
        %s221 = scalar_lea.vmem %s1, %s220
        %s222 = smul.u32 32, %s12
      $region40: #{res_block_forward.5} parent=31 // pred_fallthru
        _
    $region32: #{res_block_forward.5} parent=5 // pred_fallthru
      _
    %p223 = scmp.le.s32.totalorder 1, %s12
    %p224 = scmp.lt.s32.totalorder %s12, 3
    %p225 = pnand %p223, %p224
    %p226 = pneg %p225
    // Predicated region
    $region41: #{res_block_forward.5} parent=5 // pred_check
      _
    $region42: #{res_block_forward.5} parent=5 // pred_check_branch
      %228 = sbr.rel (%p225) target = $region44
    $region43: #{res_block_forward.5} parent=5 // pred_region
      %s229 = ssub.s32 %s12, 1
      %s230 = smul.u32 32, %s17
      %p231 = scmp.lt.s32.totalorder %s230, 63
      %s232 = scalar_select %p231, %s230, 63
      %s233 = smul.addr %s232, 8
      %s234 = scalar_lea.vmem %s0, %s233
      %p235 = pneg %p38
      %p236 = pneg %p35
      %s237 = smul.u32 32, %s17
      %p238 = scmp.lt.s32.totalorder %s237, 63
      %s239 = scalar_select %p238, %s237, 63
      %s240 = smul.addr %s239, 8
      %s241 = scalar_lea.vmem %s1, %s240
      %p242 = pneg %p64
      %p243 = pneg %p61
      %p244 = pneg %p85
      %p245 = pneg %p82
      %p246 = pneg %p106
      %p247 = pneg %p103
      %p248 = pneg %p127
      %p249 = pneg %p124
      %p250 = pneg %p148
      %p251 = pneg %p145
      %p252 = pneg %p174
      %p253 = pneg %p171
      %s254 = smul.u32 32, %s17
      %p255 = scmp.lt.s32.totalorder %s254, 63
      %s256 = scalar_select %p255, %s254, 63
      %s257 = smul.addr %s256, 8
      %s258 = scalar_lea.vmem %s6, %s257
      %s259 = smul.u32 32, %s17
      %p260 = scmp.lt.s32.totalorder %s259, 63
      %s261 = scalar_select %p260, %s259, 63
      %s262 = smul.addr %s261, 8
      %s263 = scalar_lea.vmem %s0, %s262
      %s264 = smul.u32 32, %s17
      %s265 = smul.u32 32, %s17
      %p266 = scmp.lt.s32.totalorder %s265, 63
      %s267 = scalar_select %p266, %s265, 63
      %s268 = smul.addr %s267, 8
      %s269 = scalar_lea.vmem %s1, %s268
      %s270 = smul.u32 32, %s17
      %s271 = smul.u32 32, %s17
      %p272 = scmp.lt.s32.totalorder %s271, 63
      %s273 = scalar_select %p272, %s271, 63
      %s274 = smul.addr %s273, 8
      %s275 = scalar_lea.vmem %s6, %s274
      %s276 = smul.u32 32, %s17
      %v277 = vld [vmem:[%s263] sm:$0xff]
      %v278 = vld [vmem:[%s263 + $0x8] sm:$0xff]
      %v279 = vld [vmem:[%s263 + $0x10] sm:$0xff]
      %v280 = vld [vmem:[%s263 + $0x18] sm:$0xff]
      %v281 = vld [vmem:[%s263 + $0x20] sm:$0xff]
      %v282 = vld [vmem:[%s263 + $0x28] sm:$0xff]
      %v283 = vld [vmem:[%s263 + $0x30] sm:$0xff]
      %v284 = vld [vmem:[%s263 + $0x38] sm:$0xff]
      %v285 = vld [vmem:[%s263 + $0x40] sm:$0xff]
      %v286 = vld [vmem:[%s263 + $0x48] sm:$0xff]
      %v287 = vld [vmem:[%s263 + $0x50] sm:$0xff]
      %v288 = vld [vmem:[%s263 + $0x58] sm:$0xff]
      %v289 = vld [vmem:[%s263 + $0x60] sm:$0xff]
      %v290 = vld [vmem:[%s263 + $0x68] sm:$0xff]
      %v291 = vld [vmem:[%s263 + $0x70] sm:$0xff]
      %v292 = vld [vmem:[%s263 + $0x78] sm:$0xff]
      %v293 = vld [vmem:[%s263 + $0x80] sm:$0xff]
      %v294 = vld [vmem:[%s263 + $0x88] sm:$0xff]
      %v295 = vld [vmem:[%s263 + $0x90] sm:$0xff]
      %v296 = vld [vmem:[%s263 + $0x98] sm:$0xff]
      %v297 = vld [vmem:[%s263 + $0xa0] sm:$0xff]
      %v298 = vld [vmem:[%s263 + $0xa8] sm:$0xff]
      %v299 = vld [vmem:[%s263 + $0xb0] sm:$0xff]
      %v300 = vld [vmem:[%s263 + $0xb8] sm:$0xff]
      %v301 = vld [vmem:[%s263 + $0xc0] sm:$0xff]
      %v302 = vld [vmem:[%s263 + $0xc8] sm:$0xff]
      %v303 = vld [vmem:[%s263 + $0xd0] sm:$0xff]
      %v304 = vld [vmem:[%s263 + $0xd8] sm:$0xff]
      %v305 = vld [vmem:[%s263 + $0xe0] sm:$0xff]
      %v306 = vld [vmem:[%s263 + $0xe8] sm:$0xff]
      %v307 = vld [vmem:[%s263 + $0xf0] sm:$0xff]
      %v308 = vld [vmem:[%s263 + $0xf8] sm:$0xff]
      %v309 = vld [vmem:[%s2] sm:$0x1]
      %v311 = vlaneseq
      %v312 = vshrl.u32 %v311, 7
      %v313 = vsub.s32 0, %v312
      %v314 = vrot.slane %v309, %v313
      %v316 = vmul.f32 %v277, %v314
      %v317 = vmul.f32 %v278, %v314
      %v318 = vmul.f32 %v279, %v314
      %v319 = vmul.f32 %v280, %v314
      %v320 = vmul.f32 %v281, %v314
      %v321 = vmul.f32 %v282, %v314
      %v322 = vmul.f32 %v283, %v314
      %v323 = vmul.f32 %v284, %v314
      %v324 = vmul.f32 %v285, %v314
      %v325 = vmul.f32 %v286, %v314
      %v326 = vmul.f32 %v287, %v314
      %v327 = vmul.f32 %v288, %v314
      %v328 = vmul.f32 %v289, %v314
      %v329 = vmul.f32 %v290, %v314
      %v330 = vmul.f32 %v291, %v314
      %v331 = vmul.f32 %v292, %v314
      %v332 = vmul.f32 %v293, %v314
      %v333 = vmul.f32 %v294, %v314
      %v334 = vmul.f32 %v295, %v314
      %v335 = vmul.f32 %v296, %v314
      %v336 = vmul.f32 %v297, %v314
      %v337 = vmul.f32 %v298, %v314
      %v338 = vmul.f32 %v299, %v314
      %v339 = vmul.f32 %v300, %v314
      %v340 = vmul.f32 %v301, %v314
      %v341 = vmul.f32 %v302, %v314
      %v342 = vmul.f32 %v303, %v314
      %v343 = vmul.f32 %v304, %v314
      %v344 = vmul.f32 %v305, %v314
      %v345 = vmul.f32 %v306, %v314
      %v346 = vmul.f32 %v307, %v314
      %v347 = vmul.f32 %v308, %v314
      %v348 = vld [vmem:[%s3] sm:$0x1]
      %v350 = vlaneseq
      %v351 = vshrl.u32 %v350, 7
      %v352 = vsub.s32 0, %v351
      %v353 = vrot.slane %v348, %v352
      %v355 = vadd.f32 %v316, %v353
      %v356 = vadd.f32 %v317, %v353
      %v357 = vadd.f32 %v318, %v353
      %v358 = vadd.f32 %v319, %v353
      %v359 = vadd.f32 %v320, %v353
      %v360 = vadd.f32 %v321, %v353
      %v361 = vadd.f32 %v322, %v353
      %v362 = vadd.f32 %v323, %v353
      %v363 = vadd.f32 %v324, %v353
      %v364 = vadd.f32 %v325, %v353
      %v365 = vadd.f32 %v326, %v353
      %v366 = vadd.f32 %v327, %v353
      %v367 = vadd.f32 %v328, %v353
      %v368 = vadd.f32 %v329, %v353
      %v369 = vadd.f32 %v330, %v353
      %v370 = vadd.f32 %v331, %v353
      %v371 = vadd.f32 %v332, %v353
      %v372 = vadd.f32 %v333, %v353
      %v373 = vadd.f32 %v334, %v353
      %v374 = vadd.f32 %v335, %v353
      %v375 = vadd.f32 %v336, %v353
      %v376 = vadd.f32 %v337, %v353
      %v377 = vadd.f32 %v338, %v353
      %v378 = vadd.f32 %v339, %v353
      %v379 = vadd.f32 %v340, %v353
      %v380 = vadd.f32 %v341, %v353
      %v381 = vadd.f32 %v342, %v353
      %v382 = vadd.f32 %v343, %v353
      %v383 = vadd.f32 %v344, %v353
      %v384 = vadd.f32 %v345, %v353
      %v385 = vadd.f32 %v346, %v353
      %v386 = vadd.f32 %v347, %v353
      %v387 = vmax.f32 %v355, 0.0
      %v388 = vmax.f32 %v356, 0.0
      %v389 = vmax.f32 %v357, 0.0
      %v390 = vmax.f32 %v358, 0.0
      %v391 = vmax.f32 %v359, 0.0
      %v392 = vmax.f32 %v360, 0.0
      %v393 = vmax.f32 %v361, 0.0
      %v394 = vmax.f32 %v362, 0.0
      %v395 = vmax.f32 %v363, 0.0
      %v396 = vmax.f32 %v364, 0.0
      %v397 = vmax.f32 %v365, 0.0
      %v398 = vmax.f32 %v366, 0.0
      %v399 = vmax.f32 %v367, 0.0
      %v400 = vmax.f32 %v368, 0.0
      %v401 = vmax.f32 %v369, 0.0
      %v402 = vmax.f32 %v370, 0.0
      %v403 = vmax.f32 %v371, 0.0
      %v404 = vmax.f32 %v372, 0.0
      %v405 = vmax.f32 %v373, 0.0
      %v406 = vmax.f32 %v374, 0.0
      %v407 = vmax.f32 %v375, 0.0
      %v408 = vmax.f32 %v376, 0.0
      %v409 = vmax.f32 %v377, 0.0
      %v410 = vmax.f32 %v378, 0.0
      %v411 = vmax.f32 %v379, 0.0
      %v412 = vmax.f32 %v380, 0.0
      %v413 = vmax.f32 %v381, 0.0
      %v414 = vmax.f32 %v382, 0.0
      %v415 = vmax.f32 %v383, 0.0
      %v416 = vmax.f32 %v384, 0.0
      %v417 = vmax.f32 %v385, 0.0
      %v418 = vmax.f32 %v386, 0.0
      %v419 = vld [vmem:[%s269] sm:$0xff]
      %v420 = vld [vmem:[%s269 + $0x8] sm:$0xff]
      %v421 = vld [vmem:[%s269 + $0x10] sm:$0xff]
      %v422 = vld [vmem:[%s269 + $0x18] sm:$0xff]
      %v423 = vld [vmem:[%s269 + $0x20] sm:$0xff]
      %v424 = vld [vmem:[%s269 + $0x28] sm:$0xff]
      %v425 = vld [vmem:[%s269 + $0x30] sm:$0xff]
      %v426 = vld [vmem:[%s269 + $0x38] sm:$0xff]
      %v427 = vld [vmem:[%s269 + $0x40] sm:$0xff]
      %v428 = vld [vmem:[%s269 + $0x48] sm:$0xff]
      %v429 = vld [vmem:[%s269 + $0x50] sm:$0xff]
      %v430 = vld [vmem:[%s269 + $0x58] sm:$0xff]
      %v431 = vld [vmem:[%s269 + $0x60] sm:$0xff]
      %v432 = vld [vmem:[%s269 + $0x68] sm:$0xff]
      %v433 = vld [vmem:[%s269 + $0x70] sm:$0xff]
      %v434 = vld [vmem:[%s269 + $0x78] sm:$0xff]
      %v435 = vld [vmem:[%s269 + $0x80] sm:$0xff]
      %v436 = vld [vmem:[%s269 + $0x88] sm:$0xff]
      %v437 = vld [vmem:[%s269 + $0x90] sm:$0xff]
      %v438 = vld [vmem:[%s269 + $0x98] sm:$0xff]
      %v439 = vld [vmem:[%s269 + $0xa0] sm:$0xff]
      %v440 = vld [vmem:[%s269 + $0xa8] sm:$0xff]
      %v441 = vld [vmem:[%s269 + $0xb0] sm:$0xff]
      %v442 = vld [vmem:[%s269 + $0xb8] sm:$0xff]
      %v443 = vld [vmem:[%s269 + $0xc0] sm:$0xff]
      %v444 = vld [vmem:[%s269 + $0xc8] sm:$0xff]
      %v445 = vld [vmem:[%s269 + $0xd0] sm:$0xff]
      %v446 = vld [vmem:[%s269 + $0xd8] sm:$0xff]
      %v447 = vld [vmem:[%s269 + $0xe0] sm:$0xff]
      %v448 = vld [vmem:[%s269 + $0xe8] sm:$0xff]
      %v449 = vld [vmem:[%s269 + $0xf0] sm:$0xff]
      %v450 = vld [vmem:[%s269 + $0xf8] sm:$0xff]
      %v451 = vld [vmem:[%s4] sm:$0x1]
      %v453 = vlaneseq
      %v454 = vshrl.u32 %v453, 7
      %v455 = vsub.s32 0, %v454
      %v456 = vrot.slane %v451, %v455
      %v458 = vmul.f32 %v419, %v456
      %v459 = vmul.f32 %v420, %v456
      %v460 = vmul.f32 %v421, %v456
      %v461 = vmul.f32 %v422, %v456
      %v462 = vmul.f32 %v423, %v456
      %v463 = vmul.f32 %v424, %v456
      %v464 = vmul.f32 %v425, %v456
      %v465 = vmul.f32 %v426, %v456
      %v466 = vmul.f32 %v427, %v456
      %v467 = vmul.f32 %v428, %v456
      %v468 = vmul.f32 %v429, %v456
      %v469 = vmul.f32 %v430, %v456
      %v470 = vmul.f32 %v431, %v456
      %v471 = vmul.f32 %v432, %v456
      %v472 = vmul.f32 %v433, %v456
      %v473 = vmul.f32 %v434, %v456
      %v474 = vmul.f32 %v435, %v456
      %v475 = vmul.f32 %v436, %v456
      %v476 = vmul.f32 %v437, %v456
      %v477 = vmul.f32 %v438, %v456
      %v478 = vmul.f32 %v439, %v456
      %v479 = vmul.f32 %v440, %v456
      %v480 = vmul.f32 %v441, %v456
      %v481 = vmul.f32 %v442, %v456
      %v482 = vmul.f32 %v443, %v456
      %v483 = vmul.f32 %v444, %v456
      %v484 = vmul.f32 %v445, %v456
      %v485 = vmul.f32 %v446, %v456
      %v486 = vmul.f32 %v447, %v456
      %v487 = vmul.f32 %v448, %v456
      %v488 = vmul.f32 %v449, %v456
      %v489 = vmul.f32 %v450, %v456
      %v490 = vld [vmem:[%s5] sm:$0x1]
      %v492 = vlaneseq
      %v493 = vshrl.u32 %v492, 7
      %v494 = vsub.s32 0, %v493
      %v495 = vrot.slane %v490, %v494
      %v497 = vadd.f32 %v458, %v495
      %v498 = vadd.f32 %v459, %v495
      %v499 = vadd.f32 %v460, %v495
      %v500 = vadd.f32 %v461, %v495
      %v501 = vadd.f32 %v462, %v495
      %v502 = vadd.f32 %v463, %v495
      %v503 = vadd.f32 %v464, %v495
      %v504 = vadd.f32 %v465, %v495
      %v505 = vadd.f32 %v466, %v495
      %v506 = vadd.f32 %v467, %v495
      %v507 = vadd.f32 %v468, %v495
      %v508 = vadd.f32 %v469, %v495
      %v509 = vadd.f32 %v470, %v495
      %v510 = vadd.f32 %v471, %v495
      %v511 = vadd.f32 %v472, %v495
      %v512 = vadd.f32 %v473, %v495
      %v513 = vadd.f32 %v474, %v495
      %v514 = vadd.f32 %v475, %v495
      %v515 = vadd.f32 %v476, %v495
      %v516 = vadd.f32 %v477, %v495
      %v517 = vadd.f32 %v478, %v495
      %v518 = vadd.f32 %v479, %v495
      %v519 = vadd.f32 %v480, %v495
      %v520 = vadd.f32 %v481, %v495
      %v521 = vadd.f32 %v482, %v495
      %v522 = vadd.f32 %v483, %v495
      %v523 = vadd.f32 %v484, %v495
      %v524 = vadd.f32 %v485, %v495
      %v525 = vadd.f32 %v486, %v495
      %v526 = vadd.f32 %v487, %v495
      %v527 = vadd.f32 %v488, %v495
      %v528 = vadd.f32 %v489, %v495
      %v529 = vadd.f32 %v387, %v497
      %v530 = vadd.f32 %v388, %v498
      %v531 = vadd.f32 %v389, %v499
      %v532 = vadd.f32 %v390, %v500
      %v533 = vadd.f32 %v391, %v501
      %v534 = vadd.f32 %v392, %v502
      %v535 = vadd.f32 %v393, %v503
      %v536 = vadd.f32 %v394, %v504
      %v537 = vadd.f32 %v395, %v505
      %v538 = vadd.f32 %v396, %v506
      %v539 = vadd.f32 %v397, %v507
      %v540 = vadd.f32 %v398, %v508
      %v541 = vadd.f32 %v399, %v509
      %v542 = vadd.f32 %v400, %v510
      %v543 = vadd.f32 %v401, %v511
      %v544 = vadd.f32 %v402, %v512
      %v545 = vadd.f32 %v403, %v513
      %v546 = vadd.f32 %v404, %v514
      %v547 = vadd.f32 %v405, %v515
      %v548 = vadd.f32 %v406, %v516
      %v549 = vadd.f32 %v407, %v517
      %v550 = vadd.f32 %v408, %v518
      %v551 = vadd.f32 %v409, %v519
      %v552 = vadd.f32 %v410, %v520
      %v553 = vadd.f32 %v411, %v521
      %v554 = vadd.f32 %v412, %v522
      %v555 = vadd.f32 %v413, %v523
      %v556 = vadd.f32 %v414, %v524
      %v557 = vadd.f32 %v415, %v525
      %v558 = vadd.f32 %v416, %v526
      %v559 = vadd.f32 %v417, %v527
      %v560 = vadd.f32 %v418, %v528
      %561 = vst [vmem:[%s275] sm:$0xff] %v529
      %562 = vst [vmem:[%s275 + $0x8] sm:$0xff] %v530
      %563 = vst [vmem:[%s275 + $0x10] sm:$0xff] %v531
      %564 = vst [vmem:[%s275 + $0x18] sm:$0xff] %v532
      %565 = vst [vmem:[%s275 + $0x20] sm:$0xff] %v533
      %566 = vst [vmem:[%s275 + $0x28] sm:$0xff] %v534
      %567 = vst [vmem:[%s275 + $0x30] sm:$0xff] %v535
      %568 = vst [vmem:[%s275 + $0x38] sm:$0xff] %v536
      %569 = vst [vmem:[%s275 + $0x40] sm:$0xff] %v537
      %570 = vst [vmem:[%s275 + $0x48] sm:$0xff] %v538
      %571 = vst [vmem:[%s275 + $0x50] sm:$0xff] %v539
      %572 = vst [vmem:[%s275 + $0x58] sm:$0xff] %v540
      %573 = vst [vmem:[%s275 + $0x60] sm:$0xff] %v541
      %574 = vst [vmem:[%s275 + $0x68] sm:$0xff] %v542
      %575 = vst [vmem:[%s275 + $0x70] sm:$0xff] %v543
      %576 = vst [vmem:[%s275 + $0x78] sm:$0xff] %v544
      %577 = vst [vmem:[%s275 + $0x80] sm:$0xff] %v545
      %578 = vst [vmem:[%s275 + $0x88] sm:$0xff] %v546
      %579 = vst [vmem:[%s275 + $0x90] sm:$0xff] %v547
      %580 = vst [vmem:[%s275 + $0x98] sm:$0xff] %v548
      %581 = vst [vmem:[%s275 + $0xa0] sm:$0xff] %v549
      %582 = vst [vmem:[%s275 + $0xa8] sm:$0xff] %v550
      %583 = vst [vmem:[%s275 + $0xb0] sm:$0xff] %v551
      %584 = vst [vmem:[%s275 + $0xb8] sm:$0xff] %v552
      %585 = vst [vmem:[%s275 + $0xc0] sm:$0xff] %v553
      %586 = vst [vmem:[%s275 + $0xc8] sm:$0xff] %v554
      %587 = vst [vmem:[%s275 + $0xd0] sm:$0xff] %v555
      %588 = vst [vmem:[%s275 + $0xd8] sm:$0xff] %v556
      %589 = vst [vmem:[%s275 + $0xe0] sm:$0xff] %v557
      %590 = vst [vmem:[%s275 + $0xe8] sm:$0xff] %v558
      %591 = vst [vmem:[%s275 + $0xf0] sm:$0xff] %v559
      %592 = vst [vmem:[%s275 + $0xf8] sm:$0xff] %v560
      %s593 = smul.u32 32, %s17
      %p594 = scmp.lt.s32.totalorder %s593, 63
      %s595 = scalar_select %p594, %s593, 63
      %s596 = smul.addr %s595, 8
      %s597 = scalar_lea.vmem %s6, %s596
      // Predicated region
      $region45: #{res_block_forward.5} parent=43 // pred_check
        %p598 = pneg %p171
      $region46: #{res_block_forward.5} parent=43 // pred_check_branch
        %600 = sbr.rel (%p598) target = $region48
      $region47: #{res_block_forward.5} parent=43 // pred_region
        %s601 = smul.u32 32, %s17
      $region48: #{res_block_forward.5} parent=43 // pred_fallthru
        _
    $region44: #{res_block_forward.5} parent=5 // pred_fallthru
      _
    %p602 = scmp.le.s32.totalorder 2, %s12
    // Predicated region
    $region49: #{res_block_forward.5} parent=5 // pred_check
      %p603 = pneg %p602
    $region50: #{res_block_forward.5} parent=5 // pred_check_branch
      %605 = sbr.rel (%p603) target = $region52
    $region51: #{res_block_forward.5} parent=5 // pred_region
      %s606 = ssub.s32 %s12, 2
      // Predicated region
      $region53: #{res_block_forward.5} parent=51 // pred_check
        %p607 = pneg %p177
      $region54: #{res_block_forward.5} parent=51 // pred_check_branch
        %609 = sbr.rel (%p607) target = $region56
      $region55: #{res_block_forward.5} parent=51 // pred_region
        %s610 = smul.u32 32, %s18
        %p611 = scmp.lt.s32.totalorder %s610, 63
        %s612 = scalar_select %p611, %s610, 63
        %s613 = smul.addr %s612, 8
        %s614 = scalar_lea.vmem %s6, %s613
      $region56: #{res_block_forward.5} parent=51 // pred_fallthru
        _
    $region52: #{res_block_forward.5} parent=5 // pred_fallthru
      _
  $region6: #{res_block_forward.5} parent=0 // loop_footer
    %s16 = sadd.s32 1, %s12
  $region7: #{res_block_forward.5} parent=0 // loop_footer_branch
    %11 = sbr.rel target = $region3
  $region8: #{res_block_forward.5} parent=0 // loop_exit
    _

// kernel: res_block_forward.3
$region0: #{res_block_forward.3}
  #allocation0 [shape = 'u32[]', space=smem, size = 0x4, offset = 0x4, fixed_abs, tag = 'smem constant byte address 0x4 - core index']
  #allocation1 [shape = 'u32[144,128]{1,0:T(1,128)}', space=vmem, size = 0x12000, scoped, tag = 'internal scratch']
  %s0 = inlined_call_operand.vmem [shape: f32[2,290,4], index: 0, kind: input, shape index: {}]
  %s1 = inlined_call_operand.vmem [shape: f32[9,4,128], index: 1, kind: input, shape index: {}]
  %s2 = inlined_call_operand.vmem [shape: f32[4,128], index: 2, kind: input, shape index: {}]
  %s3 = inlined_call_operand.vmem [shape: f32[256,1], index: 3, kind: input, shape index: {}]
  %s4 = inlined_call_operand.vmem [shape: f32[256,1], index: 4, kind: input, shape index: {}]
  %s5 = inlined_call_operand.vmem [shape: f32[2,290,128], index: 5, kind: output, shape index: {0}]
  %s6 = inlined_call_operand.vmem [shape: f32[512,128], index: 6, kind: output, shape index: {1}]
  %s7 = inlined_call_operand.vmem [shape: f32[2,4,128], index: 7, kind: output, shape index: {2}]
  %8 = xla_tuple %s5, %s6, %s7
  %s9 = sld [smem:[#allocation0]]
  $region69: #{res_block_forward.3} parent=0
    _
  %s11 = ssub.s32 1, %s9
  %s12 = scalar_select 0, %s11, %s9
  loop: start=0, step=1, limit=4
  $region2: #{res_block_forward.3} parent=0 // loop_pre_header
    _
  $region3: #{res_block_forward.3} parent=0 // loop_header
    %s14 = sphi 0, %s18
    %p15 = scmp.ge.s32.totalorder %s14, 4
    %s24 = sphi 0, %s26
    %s27 = sphi 0, %s24
    %s28 = sphi 0, %s27
    %s44 = sphi 0, %s28
    %s48 = sphi 0, %s48
    %s50 = sphi 0, %s48
    %s51 = sphi 0, %s50
    %s65 = sphi 0, %s51
    %s69 = sphi 0, %s69
    %s71 = sphi 0, %s69
    %s72 = sphi 0, %s71
    %s86 = sphi 0, %s72
    %s90 = sphi 0, %s90
    %s92 = sphi 0, %s90
    %s93 = sphi 0, %s92
    %s107 = sphi 0, %s93
    %s111 = sphi 0, %s111
    %s113 = sphi 0, %s111
    %s114 = sphi 0, %s113
    %s128 = sphi 0, %s114
    %s134 = sphi 0, %s136
    %s137 = sphi 0, %s134
    %s138 = sphi 0, %s137
    %s154 = sphi 0, %s138
    %s160 = sphi 0, %s162
    %s163 = sphi 0, %s160
    %s164 = sphi 0, %s163
    %s180 = sphi 0, %s164
    %s186 = sphi 0, %s188
    %s189 = sphi 0, %s186
    %s190 = sphi 0, %s189
    %s206 = sphi 0, %s190
  $region4: #{res_block_forward.3} parent=0 // loop_header_branch
    %17 = sbr.rel (%p15) target = $region8
  $region5: #{res_block_forward.3} parent=0 // loop_body
    %s19 = ssub.s32 %s14, 1
    %s20 = ssub.s32 %s14, 2
    %s21 = sadd.s32 %s14, 1
    %s22 = ssub.s32 %s14, %s21
    %p23 = scmp.eq.s32.totalorder %s22, 0
    %s25 = sadd.s32 %s24, 1
    %s26 = scalar_select %p23, %s24, %s25
    %p29 = pneg %p23
    %p30 = scmp.eq.s32.totalorder %s14, 1
    %p31 = por %p29, %p30
    %p32 = scmp.ne.s32.totalorder %s24, %s27
    %p33 = scmp.eq.s32.totalorder %s14, 0
    %p34 = por %p32, %p33
    %p35 = scmp.ne.s32.totalorder %s24, %s27
    %p36 = scmp.eq.s32.totalorder %s19, 1
    %p37 = por %p35, %p36
    %p38 = scmp.ne.s32.totalorder %s27, %s28
    %p39 = scmp.eq.s32.totalorder %s19, 0
    %p40 = por %p38, %p39
    %p41 = scmp.ne.s32.totalorder %s27, %s28
    %p42 = scmp.eq.s32.totalorder %s20, 1
    %p43 = por %p41, %p42
    %p45 = scmp.ne.s32.totalorder %s28, %s44
    %p46 = scmp.eq.s32.totalorder %s20, 0
    %p47 = por %p45, %p46
    %s49 = sadd.s32 %s48, 1
    %p52 = scmp.eq.s32.totalorder %s14, 1
    %p53 = scmp.ne.s32.totalorder %s48, %s50
    %p54 = scmp.eq.s32.totalorder %s14, 0
    %p55 = por %p53, %p54
    %p56 = scmp.ne.s32.totalorder %s48, %s50
    %p57 = scmp.eq.s32.totalorder %s19, 1
    %p58 = por %p56, %p57
    %p59 = scmp.ne.s32.totalorder %s50, %s51
    %p60 = scmp.eq.s32.totalorder %s19, 0
    %p61 = por %p59, %p60
    %p62 = scmp.ne.s32.totalorder %s50, %s51
    %p63 = scmp.eq.s32.totalorder %s20, 1
    %p64 = por %p62, %p63
    %p66 = scmp.ne.s32.totalorder %s51, %s65
    %p67 = scmp.eq.s32.totalorder %s20, 0
    %p68 = por %p66, %p67
    %s70 = sadd.s32 %s69, 1
    %p73 = scmp.eq.s32.totalorder %s14, 1
    %p74 = scmp.ne.s32.totalorder %s69, %s71
    %p75 = scmp.eq.s32.totalorder %s14, 0
    %p76 = por %p74, %p75
    %p77 = scmp.ne.s32.totalorder %s69, %s71
    %p78 = scmp.eq.s32.totalorder %s19, 1
    %p79 = por %p77, %p78
    %p80 = scmp.ne.s32.totalorder %s71, %s72
    %p81 = scmp.eq.s32.totalorder %s19, 0
    %p82 = por %p80, %p81
    %p83 = scmp.ne.s32.totalorder %s71, %s72
    %p84 = scmp.eq.s32.totalorder %s20, 1
    %p85 = por %p83, %p84
    %p87 = scmp.ne.s32.totalorder %s72, %s86
    %p88 = scmp.eq.s32.totalorder %s20, 0
    %p89 = por %p87, %p88
    %s91 = sadd.s32 %s90, 1
    %p94 = scmp.eq.s32.totalorder %s14, 1
    %p95 = scmp.ne.s32.totalorder %s90, %s92
    %p96 = scmp.eq.s32.totalorder %s14, 0
    %p97 = por %p95, %p96
    %p98 = scmp.ne.s32.totalorder %s90, %s92
    %p99 = scmp.eq.s32.totalorder %s19, 1
    %p100 = por %p98, %p99
    %p101 = scmp.ne.s32.totalorder %s92, %s93
    %p102 = scmp.eq.s32.totalorder %s19, 0
    %p103 = por %p101, %p102
    %p104 = scmp.ne.s32.totalorder %s92, %s93
    %p105 = scmp.eq.s32.totalorder %s20, 1
    %p106 = por %p104, %p105
    %p108 = scmp.ne.s32.totalorder %s93, %s107
    %p109 = scmp.eq.s32.totalorder %s20, 0
    %p110 = por %p108, %p109
    %s112 = sadd.s32 %s111, 1
    %p115 = scmp.eq.s32.totalorder %s14, 1
    %p116 = scmp.ne.s32.totalorder %s111, %s113
    %p117 = scmp.eq.s32.totalorder %s14, 0
    %p118 = por %p116, %p117
    %p119 = scmp.ne.s32.totalorder %s111, %s113
    %p120 = scmp.eq.s32.totalorder %s19, 1
    %p121 = por %p119, %p120
    %p122 = scmp.ne.s32.totalorder %s113, %s114
    %p123 = scmp.eq.s32.totalorder %s19, 0
    %p124 = por %p122, %p123
    %p125 = scmp.ne.s32.totalorder %s113, %s114
    %p126 = scmp.eq.s32.totalorder %s20, 1
    %p127 = por %p125, %p126
    %p129 = scmp.ne.s32.totalorder %s114, %s128
    %p130 = scmp.eq.s32.totalorder %s20, 0
    %p131 = por %p129, %p130
    %s132 = ssub.s32 %s14, %s21
    %p133 = scmp.eq.s32.totalorder %s132, 0
    %s135 = sadd.s32 %s134, 1
    %s136 = scalar_select %p133, %s134, %s135
    %p139 = pneg %p133
    %p140 = scmp.eq.s32.totalorder %s14, 1
    %p141 = por %p139, %p140
    %p142 = scmp.ne.s32.totalorder %s134, %s137
    %p143 = scmp.eq.s32.totalorder %s14, 0
    %p144 = por %p142, %p143
    %p145 = scmp.ne.s32.totalorder %s134, %s137
    %p146 = scmp.eq.s32.totalorder %s19, 1
    %p147 = por %p145, %p146
    %p148 = scmp.ne.s32.totalorder %s137, %s138
    %p149 = scmp.eq.s32.totalorder %s19, 0
    %p150 = por %p148, %p149
    %p151 = scmp.ne.s32.totalorder %s137, %s138
    %p152 = scmp.eq.s32.totalorder %s20, 1
    %p153 = por %p151, %p152
    %p155 = scmp.ne.s32.totalorder %s138, %s154
    %p156 = scmp.eq.s32.totalorder %s20, 0
    %p157 = por %p155, %p156
    %s158 = ssub.s32 %s14, %s21
    %p159 = scmp.eq.s32.totalorder %s158, 0
    %s161 = sadd.s32 %s160, 1
    %s162 = scalar_select %p159, %s160, %s161
    %p165 = pneg %p159
    %p166 = scmp.eq.s32.totalorder %s14, 1
    %p167 = por %p165, %p166
    %p168 = scmp.ne.s32.totalorder %s160, %s163
    %p169 = scmp.eq.s32.totalorder %s14, 0
    %p170 = por %p168, %p169
    %p171 = scmp.ne.s32.totalorder %s160, %s163
    %p172 = scmp.eq.s32.totalorder %s19, 1
    %p173 = por %p171, %p172
    %p174 = scmp.ne.s32.totalorder %s163, %s164
    %p175 = scmp.eq.s32.totalorder %s19, 0
    %p176 = por %p174, %p175
    %p177 = scmp.ne.s32.totalorder %s163, %s164
    %p178 = scmp.eq.s32.totalorder %s20, 1
    %p179 = por %p177, %p178
    %p181 = scmp.ne.s32.totalorder %s164, %s180
    %p182 = scmp.eq.s32.totalorder %s20, 0
    %p183 = por %p181, %p182
    %s184 = ssub.s32 %s14, %s21
    %p185 = scmp.eq.s32.totalorder %s184, 0
    %s187 = sadd.s32 %s186, 1
    %s188 = scalar_select %p185, %s186, %s187
    %p191 = pneg %p185
    %p192 = scmp.eq.s32.totalorder %s14, 1
    %p193 = por %p191, %p192
    %p194 = scmp.ne.s32.totalorder %s186, %s189
    %p195 = scmp.eq.s32.totalorder %s14, 0
    %p196 = por %p194, %p195
    %p197 = scmp.ne.s32.totalorder %s186, %s189
    %p198 = scmp.eq.s32.totalorder %s19, 1
    %p199 = por %p197, %p198
    %p200 = scmp.ne.s32.totalorder %s189, %s190
    %p201 = scmp.eq.s32.totalorder %s19, 0
    %p202 = por %p200, %p201
    %p203 = scmp.ne.s32.totalorder %s189, %s190
    %p204 = scmp.eq.s32.totalorder %s20, 1
    %p205 = por %p203, %p204
    %p207 = scmp.ne.s32.totalorder %s190, %s206
    %p208 = scmp.eq.s32.totalorder %s20, 0
    %p209 = por %p207, %p208
    %p210 = scmp.le.s32.totalorder 1, %s14
    %p211 = scmp.lt.s32.totalorder %s14, 3
    %p212 = pnand %p210, %p211
    %p213 = pneg %p212
    // Predicated region
    $region9: #{res_block_forward.3} parent=5 // pred_check
      _
    $region10: #{res_block_forward.3} parent=5 // pred_check_branch
      %215 = sbr.rel (%p212) target = $region12
    $region11: #{res_block_forward.3} parent=5 // pred_region
      %s216 = ssub.s32 %s14, 1
      // Predicated region
      $region13: #{res_block_forward.3} parent=11 // pred_check
        %p217 = pneg %p61
      $region14: #{res_block_forward.3} parent=11 // pred_check_branch
        %219 = sbr.rel (%p217) target = $region16
      $region15: #{res_block_forward.3} parent=11 // pred_region
        _
      $region16: #{res_block_forward.3} parent=11 // pred_fallthru
        _
      // Predicated region
      $region17: #{res_block_forward.3} parent=11 // pred_check
        %p220 = pneg %p82
      $region18: #{res_block_forward.3} parent=11 // pred_check_branch
        %222 = sbr.rel (%p220) target = $region20
      $region19: #{res_block_forward.3} parent=11 // pred_region
        _
      $region20: #{res_block_forward.3} parent=11 // pred_fallthru
        _
      // Predicated region
      $region21: #{res_block_forward.3} parent=11 // pred_check
        %p223 = pneg %p103
      $region22: #{res_block_forward.3} parent=11 // pred_check_branch
        %225 = sbr.rel (%p223) target = $region24
      $region23: #{res_block_forward.3} parent=11 // pred_region
        _
      $region24: #{res_block_forward.3} parent=11 // pred_fallthru
        _
      // Predicated region
      $region25: #{res_block_forward.3} parent=11 // pred_check
        %p226 = pneg %p124
      $region26: #{res_block_forward.3} parent=11 // pred_check_branch
        %228 = sbr.rel (%p226) target = $region28
      $region27: #{res_block_forward.3} parent=11 // pred_region
        _
      $region28: #{res_block_forward.3} parent=11 // pred_fallthru
        _
    $region12: #{res_block_forward.3} parent=5 // pred_fallthru
      _
    %p229 = scmp.lt.s32.totalorder %s14, 2
    // Predicated region
    $region29: #{res_block_forward.3} parent=5 // pred_check
      %p230 = pneg %p229
    $region30: #{res_block_forward.3} parent=5 // pred_check_branch
      %232 = sbr.rel (%p230) target = $region32
    $region31: #{res_block_forward.3} parent=5 // pred_region
      // Predicated region
      $region33: #{res_block_forward.3} parent=31 // pred_check
        %p233 = pneg %p34
      $region34: #{res_block_forward.3} parent=31 // pred_check_branch
        %235 = sbr.rel (%p233) target = $region36
      $region35: #{res_block_forward.3} parent=31 // pred_region
        %p236 = scmp.lt.s32.totalorder %s14, 1
        %s237 = scalar_select %p236, %s14, 1
        %s238 = smul.addr %s237, 37
        %s239 = smul.addr %s238, 8
        %s240 = scalar_lea.vmem %s0, %s239
      $region36: #{res_block_forward.3} parent=31 // pred_fallthru
        _
    $region32: #{res_block_forward.3} parent=5 // pred_fallthru
      _
    %p241 = scmp.le.s32.totalorder 1, %s14
    %p242 = scmp.lt.s32.totalorder %s14, 3
    %p243 = pnand %p241, %p242
    %p244 = pneg %p243
    // Predicated region
    $region37: #{res_block_forward.3} parent=5 // pred_check
      _
    $region38: #{res_block_forward.3} parent=5 // pred_check_branch
      %246 = sbr.rel (%p243) target = $region40
    $region39: #{res_block_forward.3} parent=5 // pred_region
      %s247 = ssub.s32 %s14, 1
      %p248 = scmp.lt.s32.totalorder %s19, 1
      %s249 = scalar_select %p248, %s19, 1
      %s250 = smul.addr %s249, 37
      %s251 = smul.addr %s250, 8
      %s252 = scalar_lea.vmem %s0, %s251
      %p253 = pneg %p40
      %p254 = pneg %p37
      %p255 = pneg %p61
      %p256 = pneg %p58
      %p257 = pneg %p82
      %p258 = pneg %p79
      %p259 = pneg %p103
      %p260 = pneg %p100
      %p261 = pneg %p124
      %p262 = pneg %p121
      %p263 = pneg %p150
      %p264 = pneg %p147
      %p265 = scmp.lt.s32.totalorder %s19, 1
      %s266 = scalar_select %p265, %s19, 1
      %s267 = smul.addr %s266, 37
      %s268 = smul.addr %s267, 8
      %s269 = scalar_lea.vmem %s5, %s268
      %p270 = pneg %p176
      %p271 = pneg %p173
      %s272 = smul.u32 32, %s19
      %p273 = scmp.lt.s32.totalorder %s272, 63
      %s274 = scalar_select %p273, %s272, 63
      %s275 = smul.addr %s274, 8
      %s276 = scalar_lea.vmem %s6, %s275
      %p277 = pneg %p202
      %p278 = pneg %p199
      %p279 = scmp.lt.s32.totalorder %s19, 1
      %s280 = scalar_select %p279, %s19, 1
      %s281 = smul.addr %s280, 4
      %s282 = scalar_lea.vmem %s7, %s281
      %p283 = scmp.lt.s32.totalorder %s19, 1
      %s284 = scalar_select %p283, %s19, 1
      %s285 = smul.addr %s284, 37
      %s286 = smul.addr %s285, 8
      %s287 = scalar_lea.vmem %s0, %s286
      %p288 = scmp.lt.s32.totalorder %s19, 1
      %s289 = scalar_select %p288, %s19, 1
      %s290 = smul.addr %s289, 37
      %s291 = smul.addr %s290, 8
      %s292 = scalar_lea.vmem %s5, %s291
      %s293 = smul.u32 32, %s19
      %p294 = scmp.lt.s32.totalorder %s293, 63
      %s295 = scalar_select %p294, %s293, 63
      %s296 = smul.addr %s295, 8
      %s297 = scalar_lea.vmem %s6, %s296
      %s298 = smul.u32 32, %s19
      %p299 = scmp.lt.s32.totalorder %s19, 1
      %s300 = scalar_select %p299, %s19, 1
      %s301 = smul.addr %s300, 4
      %s302 = scalar_lea.vmem %s7, %s301
      %v303 = vld [vmem:[%s287] sm:$0xff]
      %v304 = vld [vmem:[%s287 + $0x8] sm:$0xff]
      %v305 = vld [vmem:[%s287 + $0x10] sm:$0xff]
      %v306 = vld [vmem:[%s287 + $0x18] sm:$0xff]
      %v307 = vld [vmem:[%s287 + $0x20] sm:$0xff]
      %v308 = vld [vmem:[%s287 + $0x28] sm:$0xff]
      %v309 = vld [vmem:[%s287 + $0x30] sm:$0xff]
      %v310 = vld [vmem:[%s287 + $0x38] sm:$0xff]
      %v311 = vld [vmem:[%s287 + $0x40] sm:$0xff]
      %v312 = vld [vmem:[%s287 + $0x48] sm:$0xff]
      %v313 = vld [vmem:[%s287 + $0x50] sm:$0xff]
      %v314 = vld [vmem:[%s287 + $0x58] sm:$0xff]
      %v315 = vld [vmem:[%s287 + $0x60] sm:$0xff]
      %v316 = vld [vmem:[%s287 + $0x68] sm:$0xff]
      %v317 = vld [vmem:[%s287 + $0x70] sm:$0xff]
      %v318 = vld [vmem:[%s287 + $0x78] sm:$0xff]
      %v319 = vld [vmem:[%s287 + $0x80] sm:$0xff]
      %v320 = vld [vmem:[%s287 + $0x88] sm:$0xff]
      %v321 = vld [vmem:[%s287 + $0x90] sm:$0xff]
      %v322 = vld [vmem:[%s287 + $0x98] sm:$0xff]
      %v323 = vld [vmem:[%s287 + $0xa0] sm:$0xff]
      %v324 = vld [vmem:[%s287 + $0xa8] sm:$0xff]
      %v325 = vld [vmem:[%s287 + $0xb0] sm:$0xff]
      %v326 = vld [vmem:[%s287 + $0xb8] sm:$0xff]
      %v327 = vld [vmem:[%s287 + $0xc0] sm:$0xff]
      %v328 = vld [vmem:[%s287 + $0xc8] sm:$0xff]
      %v329 = vld [vmem:[%s287 + $0xd0] sm:$0xff]
      %v330 = vld [vmem:[%s287 + $0xd8] sm:$0xff]
      %v331 = vld [vmem:[%s287 + $0xe0] sm:$0xff]
      %v332 = vld [vmem:[%s287 + $0xe8] sm:$0xff]
      %v333 = vld [vmem:[%s287 + $0xf0] sm:$0xff]
      %v334 = vld [vmem:[%s287 + $0xf8] sm:$0xff]
      %v335 = vld [vmem:[%s287 + $0x100] sm:$0xff]
      %v336 = vld [vmem:[%s287 + $0x108] sm:$0xff]
      %v337 = vld [vmem:[%s287 + $0x110] sm:$0xff]
      %v338 = vld [vmem:[%s287 + $0x118] sm:$0xff]
      %v339 = vld [vmem:[%s287 + $0x120] sm:$0x3]
      %v340 = vld [vmem:[%s3] sm:$0xff]
      %v341 = vld [vmem:[%s3 + $0x8] sm:$0xff]
      %v342 = vld [vmem:[%s3 + $0x10] sm:$0xff]
      %v343 = vld [vmem:[%s3 + $0x18] sm:$0xff]
      %v344 = vld [vmem:[%s3 + $0x20] sm:$0xff]
      %v345 = vld [vmem:[%s3 + $0x28] sm:$0xff]
      %v346 = vld [vmem:[%s3 + $0x30] sm:$0xff]
      %v347 = vld [vmem:[%s3 + $0x38] sm:$0xff]
      %v348 = vld [vmem:[%s3 + $0x40] sm:$0xff]
      %v349 = vld [vmem:[%s3 + $0x48] sm:$0xff]
      %v350 = vld [vmem:[%s3 + $0x50] sm:$0xff]
      %v351 = vld [vmem:[%s3 + $0x58] sm:$0xff]
      %v352 = vld [vmem:[%s3 + $0x60] sm:$0xff]
      %v353 = vld [vmem:[%s3 + $0x68] sm:$0xff]
      %v354 = vld [vmem:[%s3 + $0x70] sm:$0xff]
      %v355 = vld [vmem:[%s3 + $0x78] sm:$0xff]
      %v356 = vld [vmem:[%s3 + $0x80] sm:$0xff]
      %v357 = vld [vmem:[%s3 + $0x88] sm:$0xff]
      %v358 = vld [vmem:[%s3 + $0x90] sm:$0xff]
      %v359 = vld [vmem:[%s3 + $0x98] sm:$0xff]
      %v360 = vld [vmem:[%s3 + $0xa0] sm:$0xff]
      %v361 = vld [vmem:[%s3 + $0xa8] sm:$0xff]
      %v362 = vld [vmem:[%s3 + $0xb0] sm:$0xff]
      %v363 = vld [vmem:[%s3 + $0xb8] sm:$0xff]
      %v364 = vld [vmem:[%s3 + $0xc0] sm:$0xff]
      %v365 = vld [vmem:[%s3 + $0xc8] sm:$0xff]
      %v366 = vld [vmem:[%s3 + $0xd0] sm:$0xff]
      %v367 = vld [vmem:[%s3 + $0xd8] sm:$0xff]
      %v368 = vld [vmem:[%s3 + $0xe0] sm:$0xff]
      %v369 = vld [vmem:[%s3 + $0xe8] sm:$0xff]
      %v370 = vld [vmem:[%s3 + $0xf0] sm:$0xff]
      %v371 = vld [vmem:[%s3 + $0xf8] sm:$0xff]
      %v372 = vld [vmem:[%s4] sm:$0xff]
      %v373 = vld [vmem:[%s4 + $0x8] sm:$0xff]
      %v374 = vld [vmem:[%s4 + $0x10] sm:$0xff]
      %v375 = vld [vmem:[%s4 + $0x18] sm:$0xff]
      %v376 = vld [vmem:[%s4 + $0x20] sm:$0xff]
      %v377 = vld [vmem:[%s4 + $0x28] sm:$0xff]
      %v378 = vld [vmem:[%s4 + $0x30] sm:$0xff]
      %v379 = vld [vmem:[%s4 + $0x38] sm:$0xff]
      %v380 = vld [vmem:[%s4 + $0x40] sm:$0xff]
      %v381 = vld [vmem:[%s4 + $0x48] sm:$0xff]
      %v382 = vld [vmem:[%s4 + $0x50] sm:$0xff]
      %v383 = vld [vmem:[%s4 + $0x58] sm:$0xff]
      %v384 = vld [vmem:[%s4 + $0x60] sm:$0xff]
      %v385 = vld [vmem:[%s4 + $0x68] sm:$0xff]
      %v386 = vld [vmem:[%s4 + $0x70] sm:$0xff]
      %v387 = vld [vmem:[%s4 + $0x78] sm:$0xff]
      %v388 = vld [vmem:[%s4 + $0x80] sm:$0xff]
      %v389 = vld [vmem:[%s4 + $0x88] sm:$0xff]
      %v390 = vld [vmem:[%s4 + $0x90] sm:$0xff]
      %v391 = vld [vmem:[%s4 + $0x98] sm:$0xff]
      %v392 = vld [vmem:[%s4 + $0xa0] sm:$0xff]
      %v393 = vld [vmem:[%s4 + $0xa8] sm:$0xff]
      %v394 = vld [vmem:[%s4 + $0xb0] sm:$0xff]
      %v395 = vld [vmem:[%s4 + $0xb8] sm:$0xff]
      %v396 = vld [vmem:[%s4 + $0xc0] sm:$0xff]
      %v397 = vld [vmem:[%s4 + $0xc8] sm:$0xff]
      %v398 = vld [vmem:[%s4 + $0xd0] sm:$0xff]
      %v399 = vld [vmem:[%s4 + $0xd8] sm:$0xff]
      %v400 = vld [vmem:[%s4 + $0xe0] sm:$0xff]
      %v401 = vld [vmem:[%s4 + $0xe8] sm:$0xff]
      %v402 = vld [vmem:[%s4 + $0xf0] sm:$0xff]
      %v403 = vld [vmem:[%s4 + $0xf8] sm:$0xff]
      %405 = vset.pattern.permute.xlu0 0
      %406 = vperm.xlu0 %405, %v340
      %v407 = vpop.permute.xlu0 %406
      %410 = vset.pattern.permute.xlu0 0
      %411 = vperm.xlu0 %410, %v341
      %v412 = vpop.permute.xlu0 %411
      %415 = vset.pattern.permute.xlu0 0
      %416 = vperm.xlu0 %415, %v342
      %v417 = vpop.permute.xlu0 %416
      %420 = vset.pattern.permute.xlu0 0
      %421 = vperm.xlu0 %420, %v343
      %v422 = vpop.permute.xlu0 %421
      %425 = vset.pattern.permute.xlu0 0
      %426 = vperm.xlu0 %425, %v344
      %v427 = vpop.permute.xlu0 %426
      %430 = vset.pattern.permute.xlu0 0
      %431 = vperm.xlu0 %430, %v345
      %v432 = vpop.permute.xlu0 %431
      %435 = vset.pattern.permute.xlu0 0
      %436 = vperm.xlu0 %435, %v346
      %v437 = vpop.permute.xlu0 %436
      %440 = vset.pattern.permute.xlu0 0
      %441 = vperm.xlu0 %440, %v347
      %v442 = vpop.permute.xlu0 %441
      %445 = vset.pattern.permute.xlu0 0
      %446 = vperm.xlu0 %445, %v348
      %v447 = vpop.permute.xlu0 %446
      %450 = vset.pattern.permute.xlu0 0
      %451 = vperm.xlu0 %450, %v349
      %v452 = vpop.permute.xlu0 %451
      %455 = vset.pattern.permute.xlu0 0
      %456 = vperm.xlu0 %455, %v350
      %v457 = vpop.permute.xlu0 %456
      %460 = vset.pattern.permute.xlu0 0
      %461 = vperm.xlu0 %460, %v351
      %v462 = vpop.permute.xlu0 %461
      %465 = vset.pattern.permute.xlu0 0
      %466 = vperm.xlu0 %465, %v352
      %v467 = vpop.permute.xlu0 %466
      %470 = vset.pattern.permute.xlu0 0
      %471 = vperm.xlu0 %470, %v353
      %v472 = vpop.permute.xlu0 %471
      %475 = vset.pattern.permute.xlu0 0
      %476 = vperm.xlu0 %475, %v354
      %v477 = vpop.permute.xlu0 %476
      %480 = vset.pattern.permute.xlu0 0
      %481 = vperm.xlu0 %480, %v355
      %v482 = vpop.permute.xlu0 %481
      %485 = vset.pattern.permute.xlu0 0
      %486 = vperm.xlu0 %485, %v356
      %v487 = vpop.permute.xlu0 %486
      %490 = vset.pattern.permute.xlu0 0
      %491 = vperm.xlu0 %490, %v357
      %v492 = vpop.permute.xlu0 %491
      %495 = vset.pattern.permute.xlu0 0
      %496 = vperm.xlu0 %495, %v358
      %v497 = vpop.permute.xlu0 %496
      %500 = vset.pattern.permute.xlu0 0
      %501 = vperm.xlu0 %500, %v359
      %v502 = vpop.permute.xlu0 %501
      %505 = vset.pattern.permute.xlu0 0
      %506 = vperm.xlu0 %505, %v360
      %v507 = vpop.permute.xlu0 %506
      %510 = vset.pattern.permute.xlu0 0
      %511 = vperm.xlu0 %510, %v361
      %v512 = vpop.permute.xlu0 %511
      %515 = vset.pattern.permute.xlu0 0
      %516 = vperm.xlu0 %515, %v362
      %v517 = vpop.permute.xlu0 %516
      %520 = vset.pattern.permute.xlu0 0
      %521 = vperm.xlu0 %520, %v363
      %v522 = vpop.permute.xlu0 %521
      %525 = vset.pattern.permute.xlu0 0
      %526 = vperm.xlu0 %525, %v364
      %v527 = vpop.permute.xlu0 %526
      %530 = vset.pattern.permute.xlu0 0
      %531 = vperm.xlu0 %530, %v365
      %v532 = vpop.permute.xlu0 %531
      %535 = vset.pattern.permute.xlu0 0
      %536 = vperm.xlu0 %535, %v366
      %v537 = vpop.permute.xlu0 %536
      %540 = vset.pattern.permute.xlu0 0
      %541 = vperm.xlu0 %540, %v367
      %v542 = vpop.permute.xlu0 %541
      %545 = vset.pattern.permute.xlu0 0
      %546 = vperm.xlu0 %545, %v368
      %v547 = vpop.permute.xlu0 %546
      %550 = vset.pattern.permute.xlu0 0
      %551 = vperm.xlu0 %550, %v369
      %v552 = vpop.permute.xlu0 %551
      %555 = vset.pattern.permute.xlu0 0
      %556 = vperm.xlu0 %555, %v370
      %v557 = vpop.permute.xlu0 %556
      %560 = vset.pattern.permute.xlu0 0
      %561 = vperm.xlu0 %560, %v371
      %v562 = vpop.permute.xlu0 %561
      %v564 = vmul.f32 %v303, %v407
      %v565 = vmul.f32 %v304, %v412
      %v566 = vmul.f32 %v305, %v417
      %v567 = vmul.f32 %v306, %v422
      %v568 = vmul.f32 %v307, %v427
      %v569 = vmul.f32 %v308, %v432
      %v570 = vmul.f32 %v309, %v437
      %v571 = vmul.f32 %v310, %v442
      %v572 = vmul.f32 %v311, %v447
      %v573 = vmul.f32 %v312, %v452
      %v574 = vmul.f32 %v313, %v457
      %v575 = vmul.f32 %v314, %v462
      %v576 = vmul.f32 %v315, %v467
      %v577 = vmul.f32 %v316, %v472
      %v578 = vmul.f32 %v317, %v477
      %v579 = vmul.f32 %v318, %v482
      %v580 = vmul.f32 %v319, %v487
      %v581 = vmul.f32 %v320, %v492
      %v582 = vmul.f32 %v321, %v497
      %v583 = vmul.f32 %v322, %v502
      %v584 = vmul.f32 %v323, %v507
      %v585 = vmul.f32 %v324, %v512
      %v586 = vmul.f32 %v325, %v517
      %v587 = vmul.f32 %v326, %v522
      %v588 = vmul.f32 %v327, %v527
      %v589 = vmul.f32 %v328, %v532
      %v590 = vmul.f32 %v329, %v537
      %v591 = vmul.f32 %v330, %v542
      %v592 = vmul.f32 %v331, %v547
      %v593 = vmul.f32 %v332, %v552
      %v594 = vmul.f32 %v333, %v557
      %v595 = vmul.f32 %v334, %v562
      %v596 = vld [vmem:[%s1] sm:$0xf]
      %s597 = scalar_lea.vmem %s1, 4
      %v598 = vld [vmem:[%s597] sm:$0xf]
      %vm632 = vcmask 1046528
      %v633 = vrot.slane %v303, 1
      %v634 = vrot.slane %v304, 1
      %v635 = vsel %vm632, %v633, %v634
      %v636 = vrot.slane %v305, 1
      %v637 = vsel %vm632, %v634, %v636
      %v638 = vrot.slane %v306, 1
      %v639 = vsel %vm632, %v636, %v638
      %v640 = vrot.slane %v307, 1
      %v641 = vsel %vm632, %v638, %v640
      %v642 = vrot.slane %v308, 1
      %v643 = vsel %vm632, %v640, %v642
      %v644 = vrot.slane %v309, 1
      %v645 = vsel %vm632, %v642, %v644
      %v646 = vrot.slane %v310, 1
      %v647 = vsel %vm632, %v644, %v646
      %v648 = vrot.slane %v311, 1
      %v649 = vsel %vm632, %v646, %v648
      %v650 = vrot.slane %v312, 1
      %v651 = vsel %vm632, %v648, %v650
      %v652 = vrot.slane %v313, 1
      %v653 = vsel %vm632, %v650, %v652
      %v654 = vrot.slane %v314, 1
      %v655 = vsel %vm632, %v652, %v654
      %v656 = vrot.slane %v315, 1
      %v657 = vsel %vm632, %v654, %v656
      %v658 = vrot.slane %v316, 1
      %v659 = vsel %vm632, %v656, %v658
      %v660 = vrot.slane %v317, 1
      %v661 = vsel %vm632, %v658, %v660
      %v662 = vrot.slane %v318, 1
      %v663 = vsel %vm632, %v660, %v662
      %v664 = vrot.slane %v319, 1
      %v665 = vsel %vm632, %v662, %v664
      %v666 = vrot.slane %v320, 1
      %v667 = vsel %vm632, %v664, %v666
      %v668 = vrot.slane %v321, 1
      %v669 = vsel %vm632, %v666, %v668
      %v670 = vrot.slane %v322, 1
      %v671 = vsel %vm632, %v668, %v670
      %v672 = vrot.slane %v323, 1
      %v673 = vsel %vm632, %v670, %v672
      %v674 = vrot.slane %v324, 1
      %v675 = vsel %vm632, %v672, %v674
      %v676 = vrot.slane %v325, 1
      %v677 = vsel %vm632, %v674, %v676
      %v678 = vrot.slane %v326, 1
      %v679 = vsel %vm632, %v676, %v678
      %v680 = vrot.slane %v327, 1
      %v681 = vsel %vm632, %v678, %v680
      %v682 = vrot.slane %v328, 1
      %v683 = vsel %vm632, %v680, %v682
      %v684 = vrot.slane %v329, 1
      %v685 = vsel %vm632, %v682, %v684
      %v686 = vrot.slane %v330, 1
      %v687 = vsel %vm632, %v684, %v686
      %v688 = vrot.slane %v331, 1
      %v689 = vsel %vm632, %v686, %v688
      %v690 = vrot.slane %v332, 1
      %v691 = vsel %vm632, %v688, %v690
      %v692 = vrot.slane %v333, 1
      %v693 = vsel %vm632, %v690, %v692
      %v694 = vrot.slane %v334, 1
      %v695 = vsel %vm632, %v692, %v694
      %v696 = vrot.slane %v335, 1
      %v697 = vsel %vm632, %v694, %v696
      %vm698 = vcmask 31744
      %v699 = vsel %vm698, %v635, 0
      %v701 = vsel %vm698, %v637, 0
      %v703 = vsel %vm698, %v639, 0
      %v705 = vsel %vm698, %v641, 0
      %v707 = vsel %vm698, %v643, 0
      %v709 = vsel %vm698, %v645, 0
      %v711 = vsel %vm698, %v647, 0
      %v713 = vsel %vm698, %v649, 0
      %v715 = vsel %vm698, %v651, 0
      %v717 = vsel %vm698, %v653, 0
      %v719 = vsel %vm698, %v655, 0
      %v721 = vsel %vm698, %v657, 0
      %v723 = vsel %vm698, %v659, 0
      %v725 = vsel %vm698, %v661, 0
      %v727 = vsel %vm698, %v663, 0
      %v729 = vsel %vm698, %v665, 0
      %v731 = vsel %vm698, %v667, 0
      %v733 = vsel %vm698, %v669, 0
      %v735 = vsel %vm698, %v671, 0
      %v737 = vsel %vm698, %v673, 0
      %v739 = vsel %vm698, %v675, 0
      %v741 = vsel %vm698, %v677, 0
      %v743 = vsel %vm698, %v679, 0
      %v745 = vsel %vm698, %v681, 0
      %v747 = vsel %vm698, %v683, 0
      %v749 = vsel %vm698, %v685, 0
      %v751 = vsel %vm698, %v687, 0
      %v753 = vsel %vm698, %v689, 0
      %v755 = vsel %vm698, %v691, 0
      %v757 = vsel %vm698, %v693, 0
      %v759 = vsel %vm698, %v695, 0
      %v761 = vsel %vm698, %v697, 0
      %vm763 = vcmask 1043456
      %v765 = vsel %vm763, %v598, 0
      %767 = vmatprep.subr.mxu0 0.0
      %768 = vmatpush1.msra.mxu0 %v765
      %769 = vmatprep.subr.mxu0 0.0
      %770 = vmatpush1.msra.mxu0 0.0
      %771 = vmatprep.subr.mxu0 0.0
      %772 = vmatpush1.msra.mxu0 0.0
      %773 = vmatprep.subr.mxu0 0.0
      %774 = vmatpush1.msra.mxu0 0.0
      %775 = vmatprep.subr.mxu0 0.0
      %776 = vmatpush1.msra.mxu0 0.0
      %777 = vmatprep.subr.mxu0 0.0
      %778 = vmatpush1.msra.mxu0 0.0
      %779 = vmatprep.subr.mxu0 0.0
      %780 = vmatpush1.msra.mxu0 0.0
      %781 = vmatprep.subr.mxu0 0.0
      %782 = vmatpush1.msra.mxu0 0.0
      %783 = vmatprep.subr.mxu0 0.0
      %784 = vmatpush1.msra.mxu0 0.0
      %785 = vmatprep.subr.mxu0 0.0
      %786 = vmatpush1.msra.mxu0 0.0
      %787 = vmatprep.subr.mxu0 0.0
      %788 = vmatpush1.msra.mxu0 0.0
      %789 = vmatprep.subr.mxu0 0.0
      %790 = vmatpush1.msra.mxu0 0.0
      %791 = vmatprep.subr.mxu0 0.0
      %792 = vmatpush1.msra.mxu0 0.0
      %793 = vmatprep.subr.mxu0 0.0
      %794 = vmatpush1.msra.mxu0 0.0
      %795 = vmatprep.subr.mxu0 0.0
      %796 = vmatpush1.msra.mxu0 0.0
      %797 = vmatprep.subr.mxu0 0.0
      %798 = vmatpush1.msra.mxu0 0.0
      %799 = vmatprep.subr.mxu0 0.0
      %800 = vmatpush1.msra.mxu0 0.0
      %801 = vmatprep.subr.mxu0 0.0
      %802 = vmatpush1.msra.mxu0 0.0
      %803 = vmatprep.subr.mxu0 0.0
      %804 = vmatpush1.msra.mxu0 0.0
      %805 = vmatprep.subr.mxu0 0.0
      %806 = vmatpush1.msra.mxu0 0.0
      %807 = vmatprep.subr.mxu0 0.0
      %808 = vmatpush1.msra.mxu0 0.0
      %809 = vmatprep.subr.mxu0 0.0
      %810 = vmatpush1.msra.mxu0 0.0
      %811 = vmatprep.subr.mxu0 0.0
      %812 = vmatpush1.msra.mxu0 0.0
      %813 = vmatprep.subr.mxu0 0.0
      %814 = vmatpush1.msra.mxu0 0.0
      %815 = vmatprep.subr.mxu0 0.0
      %816 = vmatpush1.msra.mxu0 0.0
      %817 = vmatprep.subr.mxu0 0.0
      %818 = vmatpush1.msra.mxu0 0.0
      %819 = vmatprep.subr.mxu0 0.0
      %820 = vmatpush1.msra.mxu0 0.0
      %821 = vmatprep.subr.mxu0 0.0
      %822 = vmatpush1.msra.mxu0 0.0
      %823 = vmatprep.subr.mxu0 0.0
      %824 = vmatpush1.msra.mxu0 0.0
      %825 = vmatprep.subr.mxu0 0.0
      %826 = vmatpush1.msra.mxu0 0.0
      %827 = vmatprep.subr.mxu0 0.0
      %828 = vmatpush1.msra.mxu0 0.0
      %829 = vmatprep.subr.mxu0 0.0
      %830 = vmatpush1.msra.mxu0 0.0
      %831 = vmatprep.mubr.f32.mxu0 0.0
      %832 = vmatmul.mubr.f32.gmra.mrb[0].mxu0 %v699
      %v833 = vpop.f32.mrb[0].mxu0
      %v834 = vadd.f32 0.0, %v833
      %v835 = vpop.f32.mrb[0].mxu0
      %836 = vmatprep.mubr.f32.mxu0 0.0
      %837 = vmatmul.mubr.f32.gmra.mrb[0].mxu0 %v701
      %v838 = vpop.f32.mrb[0].mxu0
      %v839 = vadd.f32 0.0, %v838
      %v840 = vpop.f32.mrb[0].mxu0
      %841 = vmatprep.mubr.f32.mxu0 0.0
      %842 = vmatmul.mubr.f32.gmra.mrb[0].mxu0 %v703
      %v843 = vpop.f32.mrb[0].mxu0
      %v844 = vadd.f32 0.0, %v843
      %v845 = vpop.f32.mrb[0].mxu0
      %846 = vmatprep.mubr.f32.mxu0 0.0
      %847 = vmatmul.mubr.f32.gmra.mrb[0].mxu0 %v705
      %v848 = vpop.f32.mrb[0].mxu0
      %v849 = vadd.f32 0.0, %v848
      %v850 = vpop.f32.mrb[0].mxu0
      %851 = vmatprep.mubr.f32.mxu0 0.0
      %852 = vmatmul.mubr.f32.gmra.mrb[0].mxu0 %v707
      %v853 = vpop.f32.mrb[0].mxu0
      %v854 = vadd.f32 0.0, %v853
      %v855 = vpop.f32.mrb[0].mxu0
      %856 = vmatprep.mubr.f32.mxu0 0.0
      %857 = vmatmul.mubr.f32.gmra.mrb[0].mxu0 %v709
      %v858 = vpop.f32.mrb[0].mxu0
      %v859 = vadd.f32 0.0, %v858
      %v860 = vpop.f32.mrb[0].mxu0
      %861 = vmatprep.mubr.f32.mxu0 0.0
      %862 = vmatmul.mubr.f32.gmra.mrb[0].mxu0 %v711
      %v863 = vpop.f32.mrb[0].mxu0
      %v864 = vadd.f32 0.0, %v863
      %v865 = vpop.f32.mrb[0].mxu0
      %866 = vmatprep.mubr.f32.mxu0 0.0
      %867 = vmatmul.mubr.f32.gmra.mrb[0].mxu0 %v713
      %v868 = vpop.f32.mrb[0].mxu0
      %v869 = vadd.f32 0.0, %v868
      %v870 = vpop.f32.mrb[0].mxu0
      %871 = vmatprep.mubr.f32.mxu0 0.0
      %872 = vmatmul.mubr.f32.gmra.mrb[0].mxu0 %v715
      %v873 = vpop.f32.mrb[0].mxu0
      %v874 = vadd.f32 0.0, %v873
      %v875 = vpop.f32.mrb[0].mxu0
      %876 = vmatprep.mubr.f32.mxu0 0.0
      %877 = vmatmul.mubr.f32.gmra.mrb[0].mxu0 %v717
      %v878 = vpop.f32.mrb[0].mxu0
      %v879 = vadd.f32 0.0, %v878
      %v880 = vpop.f32.mrb[0].mxu0
      %881 = vmatprep.mubr.f32.mxu0 0.0
      %882 = vmatmul.mubr.f32.gmra.mrb[0].mxu0 %v719
      %v883 = vpop.f32.mrb[0].mxu0
      %v884 = vadd.f32 0.0, %v883
      %v885 = vpop.f32.mrb[0].mxu0
      %886 = vmatprep.mubr.f32.mxu0 0.0
      %887 = vmatmul.mubr.f32.gmra.mrb[0].mxu0 %v721
      %v888 = vpop.f32.mrb[0].mxu0
      %v889 = vadd.f32 0.0, %v888
      %v890 = vpop.f32.mrb[0].mxu0
      %891 = vmatprep.mubr.f32.mxu0 0.0
      %892 = vmatmul.mubr.f32.gmra.mrb[0].mxu0 %v723
      %v893 = vpop.f32.mrb[0].mxu0
      %v894 = vadd.f32 0.0, %v893
      %v895 = vpop.f32.mrb[0].mxu0
      %896 = vmatprep.mubr.f32.mxu0 0.0
      %897 = vmatmul.mubr.f32.gmra.mrb[0].mxu0 %v725
      %v898 = vpop.f32.mrb[0].mxu0
      %v899 = vadd.f32 0.0, %v898
      %v900 = vpop.f32.mrb[0].mxu0
      %901 = vmatprep.mubr.f32.mxu0 0.0
      %902 = vmatmul.mubr.f32.gmra.mrb[0].mxu0 %v727
      %v903 = vpop.f32.mrb[0].mxu0
      %v904 = vadd.f32 0.0, %v903
      %v905 = vpop.f32.mrb[0].mxu0
      %906 = vmatprep.mubr.f32.mxu0 0.0
      %907 = vmatmul.mubr.f32.gmra.mrb[0].mxu0 %v729
      %v908 = vpop.f32.mrb[0].mxu0
      %v909 = vadd.f32 0.0, %v908
      %v910 = vpop.f32.mrb[0].mxu0
      %911 = vmatprep.mubr.f32.mxu0 0.0
      %912 = vmatmul.mubr.f32.gmra.mrb[0].mxu0 %v731
      %v913 = vpop.f32.mrb[0].mxu0
      %v914 = vadd.f32 0.0, %v913
      %v915 = vpop.f32.mrb[0].mxu0
      %916 = vmatprep.mubr.f32.mxu0 0.0
      %917 = vmatmul.mubr.f32.gmra.mrb[0].mxu0 %v733
      %v918 = vpop.f32.mrb[0].mxu0
      %v919 = vadd.f32 0.0, %v918
      %v920 = vpop.f32.mrb[0].mxu0
      %921 = vmatprep.mubr.f32.mxu0 0.0
      %922 = vmatmul.mubr.f32.gmra.mrb[0].mxu0 %v735
      %v923 = vpop.f32.mrb[0].mxu0
      %v924 = vadd.f32 0.0, %v923
      %v925 = vpop.f32.mrb[0].mxu0
      %926 = vmatprep.mubr.f32.mxu0 0.0
      %927 = vmatmul.mubr.f32.gmra.mrb[0].mxu0 %v737
      %v928 = vpop.f32.mrb[0].mxu0
      %v929 = vadd.f32 0.0, %v928
      %v930 = vpop.f32.mrb[0].mxu0
      %931 = vmatprep.mubr.f32.mxu0 0.0
      %932 = vmatmul.mubr.f32.gmra.mrb[0].mxu0 %v739
      %v933 = vpop.f32.mrb[0].mxu0
      %v934 = vadd.f32 0.0, %v933
      %v935 = vpop.f32.mrb[0].mxu0
      %936 = vmatprep.mubr.f32.mxu0 0.0
      %937 = vmatmul.mubr.f32.gmra.mrb[0].mxu0 %v741
      %v938 = vpop.f32.mrb[0].mxu0
      %v939 = vadd.f32 0.0, %v938
      %v940 = vpop.f32.mrb[0].mxu0
      %941 = vmatprep.mubr.f32.mxu0 0.0
      %942 = vmatmul.mubr.f32.gmra.mrb[0].mxu0 %v743
      %v943 = vpop.f32.mrb[0].mxu0
      %v944 = vadd.f32 0.0, %v943
      %v945 = vpop.f32.mrb[0].mxu0
      %946 = vmatprep.mubr.f32.mxu0 0.0
      %947 = vmatmul.mubr.f32.gmra.mrb[0].mxu0 %v745
      %v948 = vpop.f32.mrb[0].mxu0
      %v949 = vadd.f32 0.0, %v948
      %v950 = vpop.f32.mrb[0].mxu0
      %951 = vmatprep.mubr.f32.mxu0 0.0
      %952 = vmatmul.mubr.f32.gmra.mrb[0].mxu0 %v747
      %v953 = vpop.f32.mrb[0].mxu0
      %v954 = vadd.f32 0.0, %v953
      %v955 = vpop.f32.mrb[0].mxu0
      %956 = vmatprep.mubr.f32.mxu0 0.0
      %957 = vmatmul.mubr.f32.gmra.mrb[0].mxu0 %v749
      %v958 = vpop.f32.mrb[0].mxu0
      %v959 = vadd.f32 0.0, %v958
      %v960 = vpop.f32.mrb[0].mxu0
      %961 = vmatprep.mubr.f32.mxu0 0.0
      %962 = vmatmul.mubr.f32.gmra.mrb[0].mxu0 %v751
      %v963 = vpop.f32.mrb[0].mxu0
      %v964 = vadd.f32 0.0, %v963
      %v965 = vpop.f32.mrb[0].mxu0
      %966 = vmatprep.mubr.f32.mxu0 0.0
      %967 = vmatmul.mubr.f32.gmra.mrb[0].mxu0 %v753
      %v968 = vpop.f32.mrb[0].mxu0
      %v969 = vadd.f32 0.0, %v968
      %v970 = vpop.f32.mrb[0].mxu0
      %971 = vmatprep.mubr.f32.mxu0 0.0
      %972 = vmatmul.mubr.f32.gmra.mrb[0].mxu0 %v755
      %v973 = vpop.f32.mrb[0].mxu0
      %v974 = vadd.f32 0.0, %v973
      %v975 = vpop.f32.mrb[0].mxu0
      %976 = vmatprep.mubr.f32.mxu0 0.0
      %977 = vmatmul.mubr.f32.gmra.mrb[0].mxu0 %v757
      %v978 = vpop.f32.mrb[0].mxu0
      %v979 = vadd.f32 0.0, %v978
      %v980 = vpop.f32.mrb[0].mxu0
      %981 = vmatprep.mubr.f32.mxu0 0.0
      %982 = vmatmul.mubr.f32.gmra.mrb[0].mxu0 %v759
      %v983 = vpop.f32.mrb[0].mxu0
      %v984 = vadd.f32 0.0, %v983
      %v985 = vpop.f32.mrb[0].mxu0
      %986 = vmatprep.mubr.f32.mxu0 0.0
      %987 = vmatmul.mubr.f32.gmra.mrb[0].mxu0 %v761
      %v988 = vpop.f32.mrb[0].mxu0
      %v989 = vadd.f32 0.0, %v988
      %v990 = vpop.f32.mrb[0].mxu0
      %991 = vdwg.mxu0
      %v993 = vsel %vm698, %v564, 0
      %v996 = vsel %vm698, %v565, 0
      %v999 = vsel %vm698, %v566, 0
      %v1002 = vsel %vm698, %v567, 0
      %v1005 = vsel %vm698, %v568, 0
      %v1008 = vsel %vm698, %v569, 0
      %v1011 = vsel %vm698, %v570, 0
      %v1014 = vsel %vm698, %v571, 0
      %v1017 = vsel %vm698, %v572, 0
      %v1020 = vsel %vm698, %v573, 0
      %v1023 = vsel %vm698, %v574, 0
      %v1026 = vsel %vm698, %v575, 0
      %v1029 = vsel %vm698, %v576, 0
      %v1032 = vsel %vm698, %v577, 0
      %v1035 = vsel %vm698, %v578, 0
      %v1038 = vsel %vm698, %v579, 0
      %v1041 = vsel %vm698, %v580, 0
      %v1044 = vsel %vm698, %v581, 0
      %v1047 = vsel %vm698, %v582, 0
      %v1050 = vsel %vm698, %v583, 0
      %v1053 = vsel %vm698, %v584, 0
      %v1056 = vsel %vm698, %v585, 0
      %v1059 = vsel %vm698, %v586, 0
      %v1062 = vsel %vm698, %v587, 0
      %v1065 = vsel %vm698, %v588, 0
      %v1068 = vsel %vm698, %v589, 0
      %v1071 = vsel %vm698, %v590, 0
      %v1074 = vsel %vm698, %v591, 0
      %v1077 = vsel %vm698, %v592, 0
      %v1080 = vsel %vm698, %v593, 0
      %v1083 = vsel %vm698, %v594, 0
      %v1086 = vsel %vm698, %v595, 0
      %v1089 = vsel %vm763, %v596, 0
      %1091 = vmatprep.subr.mxu0 0.0
      %1092 = vmatpush1.msra.mxu0 %v1089
      %1093 = vmatprep.subr.mxu0 0.0
      %1094 = vmatpush1.msra.mxu0 0.0
      %1095 = vmatprep.subr.mxu0 0.0
      %1096 = vmatpush1.msra.mxu0 0.0
      %1097 = vmatprep.subr.mxu0 0.0
      %1098 = vmatpush1.msra.mxu0 0.0
      %1099 = vmatprep.subr.mxu0 0.0
      %1100 = vmatpush1.msra.mxu0 0.0
      %1101 = vmatprep.subr.mxu0 0.0
      %1102 = vmatpush1.msra.mxu0 0.0
      %1103 = vmatprep.subr.mxu0 0.0
      %1104 = vmatpush1.msra.mxu0 0.0
      %1105 = vmatprep.subr.mxu0 0.0
      %1106 = vmatpush1.msra.mxu0 0.0
      %1107 = vmatprep.subr.mxu0 0.0
      %1108 = vmatpush1.msra.mxu0 0.0
      %1109 = vmatprep.subr.mxu0 0.0
      %1110 = vmatpush1.msra.mxu0 0.0
      %1111 = vmatprep.subr.mxu0 0.0
      %1112 = vmatpush1.msra.mxu0 0.0
      %1113 = vmatprep.subr.mxu0 0.0
      %1114 = vmatpush1.msra.mxu0 0.0
      %1115 = vmatprep.subr.mxu0 0.0
      %1116 = vmatpush1.msra.mxu0 0.0
      %1117 = vmatprep.subr.mxu0 0.0
      %1118 = vmatpush1.msra.mxu0 0.0
      %1119 = vmatprep.subr.mxu0 0.0
      %1120 = vmatpush1.msra.mxu0 0.0
      %1121 = vmatprep.subr.mxu0 0.0
      %1122 = vmatpush1.msra.mxu0 0.0
      %1123 = vmatprep.subr.mxu0 0.0
      %1124 = vmatpush1.msra.mxu0 0.0
      %1125 = vmatprep.subr.mxu0 0.0
      %1126 = vmatpush1.msra.mxu0 0.0
      %1127 = vmatprep.subr.mxu0 0.0
      %1128 = vmatpush1.msra.mxu0 0.0
      %1129 = vmatprep.subr.mxu0 0.0
      %1130 = vmatpush1.msra.mxu0 0.0
      %1131 = vmatprep.subr.mxu0 0.0
      %1132 = vmatpush1.msra.mxu0 0.0
      %1133 = vmatprep.subr.mxu0 0.0
      %1134 = vmatpush1.msra.mxu0 0.0
      %1135 = vmatprep.subr.mxu0 0.0
      %1136 = vmatpush1.msra.mxu0 0.0
      %1137 = vmatprep.subr.mxu0 0.0
      %1138 = vmatpush1.msra.mxu0 0.0
      %1139 = vmatprep.subr.mxu0 0.0
      %1140 = vmatpush1.msra.mxu0 0.0
      %1141 = vmatprep.subr.mxu0 0.0
      %1142 = vmatpush1.msra.mxu0 0.0
      %1143 = vmatprep.subr.mxu0 0.0
      %1144 = vmatpush1.msra.mxu0 0.0
      %1145 = vmatprep.subr.mxu0 0.0
      %1146 = vmatpush1.msra.mxu0 0.0
      %1147 = vmatprep.subr.mxu0 0.0
      %1148 = vmatpush1.msra.mxu0 0.0
      %1149 = vmatprep.subr.mxu0 0.0
      %1150 = vmatpush1.msra.mxu0 0.0
      %1151 = vmatprep.subr.mxu0 0.0
      %1152 = vmatpush1.msra.mxu0 0.0
      %1153 = vmatprep.subr.mxu0 0.0
      %1154 = vmatpush1.msra.mxu0 0.0
      %1155 = vmatprep.mubr.f32.mxu0 0.0
      %1156 = vmatmul.mubr.f32.gmra.mrb[0].mxu0 %v993
      %v1157 = vpop.f32.mrb[0].mxu0
      %v1158 = vadd.f32 %v834, %v1157
      %v1159 = vpop.f32.mrb[0].mxu0
      %1160 = vmatprep.mubr.f32.mxu0 0.0
      %1161 = vmatmul.mubr.f32.gmra.mrb[0].mxu0 %v996
      %v1162 = vpop.f32.mrb[0].mxu0
      %v1163 = vadd.f32 %v839, %v1162
      %v1164 = vpop.f32.mrb[0].mxu0
      %1165 = vmatprep.mubr.f32.mxu0 0.0
      %1166 = vmatmul.mubr.f32.gmra.mrb[0].mxu0 %v999
      %v1167 = vpop.f32.mrb[0].mxu0
      %v1168 = vadd.f32 %v844, %v1167
      %v1169 = vpop.f32.mrb[0].mxu0
      %1170 = vmatprep.mubr.f32.mxu0 0.0
      %1171 = vmatmul.mubr.f32.gmra.mrb[0].mxu0 %v1002
      %v1172 = vpop.f32.mrb[0].mxu0
      %v1173 = vadd.f32 %v849, %v1172
      %v1174 = vpop.f32.mrb[0].mxu0
      %1175 = vmatprep.mubr.f32.mxu0 0.0
      %1176 = vmatmul.mubr.f32.gmra.mrb[0].mxu0 %v1005
      %v1177 = vpop.f32.mrb[0].mxu0
      %v1178 = vadd.f32 %v854, %v1177
      %v1179 = vpop.f32.mrb[0].mxu0
      %1180 = vmatprep.mubr.f32.mxu0 0.0
      %1181 = vmatmul.mubr.f32.gmra.mrb[0].mxu0 %v1008
      %v1182 = vpop.f32.mrb[0].mxu0
      %v1183 = vadd.f32 %v859, %v1182
      %v1184 = vpop.f32.mrb[0].mxu0
      %1185 = vmatprep.mubr.f32.mxu0 0.0
      %1186 = vmatmul.mubr.f32.gmra.mrb[0].mxu0 %v1011
      %v1187 = vpop.f32.mrb[0].mxu0
      %v1188 = vadd.f32 %v864, %v1187
      %v1189 = vpop.f32.mrb[0].mxu0
      %1190 = vmatprep.mubr.f32.mxu0 0.0
      %1191 = vmatmul.mubr.f32.gmra.mrb[0].mxu0 %v1014
      %v1192 = vpop.f32.mrb[0].mxu0
      %v1193 = vadd.f32 %v869, %v1192
      %v1194 = vpop.f32.mrb[0].mxu0
      %1195 = vmatprep.mubr.f32.mxu0 0.0
      %1196 = vmatmul.mubr.f32.gmra.mrb[0].mxu0 %v1017
      %v1197 = vpop.f32.mrb[0].mxu0
      %v1198 = vadd.f32 %v874, %v1197
      %v1199 = vpop.f32.mrb[0].mxu0
      %1200 = vmatprep.mubr.f32.mxu0 0.0
      %1201 = vmatmul.mubr.f32.gmra.mrb[0].mxu0 %v1020
      %v1202 = vpop.f32.mrb[0].mxu0
      %v1203 = vadd.f32 %v879, %v1202
      %v1204 = vpop.f32.mrb[0].mxu0
      %1205 = vmatprep.mubr.f32.mxu0 0.0
      %1206 = vmatmul.mubr.f32.gmra.mrb[0].mxu0 %v1023
      %v1207 = vpop.f32.mrb[0].mxu0
      %v1208 = vadd.f32 %v884, %v1207
      %v1209 = vpop.f32.mrb[0].mxu0
      %1210 = vmatprep.mubr.f32.mxu0 0.0
      %1211 = vmatmul.mubr.f32.gmra.mrb[0].mxu0 %v1026
      %v1212 = vpop.f32.mrb[0].mxu0
      %v1213 = vadd.f32 %v889, %v1212
      %v1214 = vpop.f32.mrb[0].mxu0
      %1215 = vmatprep.mubr.f32.mxu0 0.0
      %1216 = vmatmul.mubr.f32.gmra.mrb[0].mxu0 %v1029
      %v1217 = vpop.f32.mrb[0].mxu0
      %v1218 = vadd.f32 %v894, %v1217
      %v1219 = vpop.f32.mrb[0].mxu0
      %1220 = vmatprep.mubr.f32.mxu0 0.0
      %1221 = vmatmul.mubr.f32.gmra.mrb[0].mxu0 %v1032
      %v1222 = vpop.f32.mrb[0].mxu0
      %v1223 = vadd.f32 %v899, %v1222
      %v1224 = vpop.f32.mrb[0].mxu0
      %1225 = vmatprep.mubr.f32.mxu0 0.0
      %1226 = vmatmul.mubr.f32.gmra.mrb[0].mxu0 %v1035
      %v1227 = vpop.f32.mrb[0].mxu0
      %v1228 = vadd.f32 %v904, %v1227
      %v1229 = vpop.f32.mrb[0].mxu0
      %1230 = vmatprep.mubr.f32.mxu0 0.0
      %1231 = vmatmul.mubr.f32.gmra.mrb[0].mxu0 %v1038
      %v1232 = vpop.f32.mrb[0].mxu0
      %v1233 = vadd.f32 %v909, %v1232
      %v1234 = vpop.f32.mrb[0].mxu0
      %1235 = vmatprep.mubr.f32.mxu0 0.0
      %1236 = vmatmul.mubr.f32.gmra.mrb[0].mxu0 %v1041
      %v1237 = vpop.f32.mrb[0].mxu0
      %v1238 = vadd.f32 %v914, %v1237
      %v1239 = vpop.f32.mrb[0].mxu0
      %1240 = vmatprep.mubr.f32.mxu0 0.0
      %1241 = vmatmul.mubr.f32.gmra.mrb[0].mxu0 %v1044
      %v1242 = vpop.f32.mrb[0].mxu0
      %v1243 = vadd.f32 %v919, %v1242
      %v1244 = vpop.f32.mrb[0].mxu0
      %1245 = vmatprep.mubr.f32.mxu0 0.0
      %1246 = vmatmul.mubr.f32.gmra.mrb[0].mxu0 %v1047
      %v1247 = vpop.f32.mrb[0].mxu0
      %v1248 = vadd.f32 %v924, %v1247
      %v1249 = vpop.f32.mrb[0].mxu0
      %1250 = vmatprep.mubr.f32.mxu0 0.0
      %1251 = vmatmul.mubr.f32.gmra.mrb[0].mxu0 %v1050
      %v1252 = vpop.f32.mrb[0].mxu0
      %v1253 = vadd.f32 %v929, %v1252
      %v1254 = vpop.f32.mrb[0].mxu0
      %1255 = vmatprep.mubr.f32.mxu0 0.0
      %1256 = vmatmul.mubr.f32.gmra.mrb[0].mxu0 %v1053
      %v1257 = vpop.f32.mrb[0].mxu0
      %v1258 = vadd.f32 %v934, %v1257
      %v1259 = vpop.f32.mrb[0].mxu0
      %1260 = vmatprep.mubr.f32.mxu0 0.0
      %1261 = vmatmul.mubr.f32.gmra.mrb[0].mxu0 %v1056
      %v1262 = vpop.f32.mrb[0].mxu0
      %v1263 = vadd.f32 %v939, %v1262
      %v1264 = vpop.f32.mrb[0].mxu0
      %1265 = vmatprep.mubr.f32.mxu0 0.0
      %1266 = vmatmul.mubr.f32.gmra.mrb[0].mxu0 %v1059
      %v1267 = vpop.f32.mrb[0].mxu0
      %v1268 = vadd.f32 %v944, %v1267
      %v1269 = vpop.f32.mrb[0].mxu0
      %1270 = vmatprep.mubr.f32.mxu0 0.0
      %1271 = vmatmul.mubr.f32.gmra.mrb[0].mxu0 %v1062
      %v1272 = vpop.f32.mrb[0].mxu0
      %v1273 = vadd.f32 %v949, %v1272
      %v1274 = vpop.f32.mrb[0].mxu0
      %1275 = vmatprep.mubr.f32.mxu0 0.0
      %1276 = vmatmul.mubr.f32.gmra.mrb[0].mxu0 %v1065
      %v1277 = vpop.f32.mrb[0].mxu0
      %v1278 = vadd.f32 %v954, %v1277
      %v1279 = vpop.f32.mrb[0].mxu0
      %1280 = vmatprep.mubr.f32.mxu0 0.0
      %1281 = vmatmul.mubr.f32.gmra.mrb[0].mxu0 %v1068
      %v1282 = vpop.f32.mrb[0].mxu0
      %v1283 = vadd.f32 %v959, %v1282
      %v1284 = vpop.f32.mrb[0].mxu0
      %1285 = vmatprep.mubr.f32.mxu0 0.0
      %1286 = vmatmul.mubr.f32.gmra.mrb[0].mxu0 %v1071
      %v1287 = vpop.f32.mrb[0].mxu0
      %v1288 = vadd.f32 %v964, %v1287
      %v1289 = vpop.f32.mrb[0].mxu0
      %1290 = vmatprep.mubr.f32.mxu0 0.0
      %1291 = vmatmul.mubr.f32.gmra.mrb[0].mxu0 %v1074
      %v1292 = vpop.f32.mrb[0].mxu0
      %v1293 = vadd.f32 %v969, %v1292
      %v1294 = vpop.f32.mrb[0].mxu0
      %1295 = vmatprep.mubr.f32.mxu0 0.0
      %1296 = vmatmul.mubr.f32.gmra.mrb[0].mxu0 %v1077
      %v1297 = vpop.f32.mrb[0].mxu0
      %v1298 = vadd.f32 %v974, %v1297
      %v1299 = vpop.f32.mrb[0].mxu0
      %1300 = vmatprep.mubr.f32.mxu0 0.0
      %1301 = vmatmul.mubr.f32.gmra.mrb[0].mxu0 %v1080
      %v1302 = vpop.f32.mrb[0].mxu0
      %v1303 = vadd.f32 %v979, %v1302
      %v1304 = vpop.f32.mrb[0].mxu0
      %1305 = vmatprep.mubr.f32.mxu0 0.0
      %1306 = vmatmul.mubr.f32.gmra.mrb[0].mxu0 %v1083
      %v1307 = vpop.f32.mrb[0].mxu0
      %v1308 = vadd.f32 %v984, %v1307
      %v1309 = vpop.f32.mrb[0].mxu0
      %1310 = vmatprep.mubr.f32.mxu0 0.0
      %1311 = vmatmul.mubr.f32.gmra.mrb[0].mxu0 %v1086
      %v1312 = vpop.f32.mrb[0].mxu0
      %v1313 = vadd.f32 %v989, %v1312
      %v1314 = vpop.f32.mrb[0].mxu0
      %1315 = vdwg.mxu0
      %1317 = vset.pattern.permute.xlu0 0
      %1318 = vperm.xlu0 %1317, %v372
      %v1319 = vpop.permute.xlu0 %1318
      %1321 = vset.pattern.permute.xlu0 0
      %1322 = vperm.xlu0 %1321, %v373
      %v1323 = vpop.permute.xlu0 %1322
      %1325 = vset.pattern.permute.xlu0 0
      %1326 = vperm.xlu0 %1325, %v374
      %v1327 = vpop.permute.xlu0 %1326
      %1329 = vset.pattern.permute.xlu0 0
      %1330 = vperm.xlu0 %1329, %v375
      %v1331 = vpop.permute.xlu0 %1330
      %1333 = vset.pattern.permute.xlu0 0
      %1334 = vperm.xlu0 %1333, %v376
      %v1335 = vpop.permute.xlu0 %1334
      %1337 = vset.pattern.permute.xlu0 0
      %1338 = vperm.xlu0 %1337, %v377
      %v1339 = vpop.permute.xlu0 %1338
      %1341 = vset.pattern.permute.xlu0 0
      %1342 = vperm.xlu0 %1341, %v378
      %v1343 = vpop.permute.xlu0 %1342
      %1345 = vset.pattern.permute.xlu0 0
      %1346 = vperm.xlu0 %1345, %v379
      %v1347 = vpop.permute.xlu0 %1346
      %1349 = vset.pattern.permute.xlu0 0
      %1350 = vperm.xlu0 %1349, %v380
      %v1351 = vpop.permute.xlu0 %1350
      %1353 = vset.pattern.permute.xlu0 0
      %1354 = vperm.xlu0 %1353, %v381
      %v1355 = vpop.permute.xlu0 %1354
      %1357 = vset.pattern.permute.xlu0 0
      %1358 = vperm.xlu0 %1357, %v382
      %v1359 = vpop.permute.xlu0 %1358
      %1361 = vset.pattern.permute.xlu0 0
      %1362 = vperm.xlu0 %1361, %v383
      %v1363 = vpop.permute.xlu0 %1362
      %1365 = vset.pattern.permute.xlu0 0
      %1366 = vperm.xlu0 %1365, %v384
      %v1367 = vpop.permute.xlu0 %1366
      %1369 = vset.pattern.permute.xlu0 0
      %1370 = vperm.xlu0 %1369, %v385
      %v1371 = vpop.permute.xlu0 %1370
      %1373 = vset.pattern.permute.xlu0 0
      %1374 = vperm.xlu0 %1373, %v386
      %v1375 = vpop.permute.xlu0 %1374
      %1377 = vset.pattern.permute.xlu0 0
      %1378 = vperm.xlu0 %1377, %v387
      %v1379 = vpop.permute.xlu0 %1378
      %1381 = vset.pattern.permute.xlu0 0
      %1382 = vperm.xlu0 %1381, %v388
      %v1383 = vpop.permute.xlu0 %1382
      %1385 = vset.pattern.permute.xlu0 0
      %1386 = vperm.xlu0 %1385, %v389
      %v1387 = vpop.permute.xlu0 %1386
      %1389 = vset.pattern.permute.xlu0 0
      %1390 = vperm.xlu0 %1389, %v390
      %v1391 = vpop.permute.xlu0 %1390
      %1393 = vset.pattern.permute.xlu0 0
      %1394 = vperm.xlu0 %1393, %v391
      %v1395 = vpop.permute.xlu0 %1394
      %1397 = vset.pattern.permute.xlu0 0
      %1398 = vperm.xlu0 %1397, %v392
      %v1399 = vpop.permute.xlu0 %1398
      %1401 = vset.pattern.permute.xlu0 0
      %1402 = vperm.xlu0 %1401, %v393
      %v1403 = vpop.permute.xlu0 %1402
      %1405 = vset.pattern.permute.xlu0 0
      %1406 = vperm.xlu0 %1405, %v394
      %v1407 = vpop.permute.xlu0 %1406
      %1409 = vset.pattern.permute.xlu0 0
      %1410 = vperm.xlu0 %1409, %v395
      %v1411 = vpop.permute.xlu0 %1410
      %1413 = vset.pattern.permute.xlu0 0
      %1414 = vperm.xlu0 %1413, %v396
      %v1415 = vpop.permute.xlu0 %1414
      %1417 = vset.pattern.permute.xlu0 0
      %1418 = vperm.xlu0 %1417, %v397
      %v1419 = vpop.permute.xlu0 %1418
      %1421 = vset.pattern.permute.xlu0 0
      %1422 = vperm.xlu0 %1421, %v398
      %v1423 = vpop.permute.xlu0 %1422
      %1425 = vset.pattern.permute.xlu0 0
      %1426 = vperm.xlu0 %1425, %v399
      %v1427 = vpop.permute.xlu0 %1426
      %1429 = vset.pattern.permute.xlu0 0
      %1430 = vperm.xlu0 %1429, %v400
      %v1431 = vpop.permute.xlu0 %1430
      %1433 = vset.pattern.permute.xlu0 0
      %1434 = vperm.xlu0 %1433, %v401
      %v1435 = vpop.permute.xlu0 %1434
      %1437 = vset.pattern.permute.xlu0 0
      %1438 = vperm.xlu0 %1437, %v402
      %v1439 = vpop.permute.xlu0 %1438
      %1441 = vset.pattern.permute.xlu0 0
      %1442 = vperm.xlu0 %1441, %v403
      %v1443 = vpop.permute.xlu0 %1442
      %vm1444 = vcmask 1041408
      %v1445 = vrot.slane %v1319, 6
      %v1446 = vrot.slane %v1323, 6
      %v1447 = vsel %vm1444, %v1445, %v1446
      %v1448 = vrot.slane %v1327, 6
      %v1449 = vsel %vm1444, %v1446, %v1448
      %v1450 = vrot.slane %v1331, 6
      %v1451 = vsel %vm1444, %v1448, %v1450
      %v1452 = vrot.slane %v1335, 6
      %v1453 = vsel %vm1444, %v1450, %v1452
      %v1454 = vrot.slane %v1339, 6
      %v1455 = vsel %vm1444, %v1452, %v1454
      %v1456 = vrot.slane %v1343, 6
      %v1457 = vsel %vm1444, %v1454, %v1456
      %v1458 = vrot.slane %v1347, 6
      %v1459 = vsel %vm1444, %v1456, %v1458
      %v1460 = vrot.slane %v1351, 6
      %v1461 = vsel %vm1444, %v1458, %v1460
      %v1462 = vrot.slane %v1355, 6
      %v1463 = vsel %vm1444, %v1460, %v1462
      %v1464 = vrot.slane %v1359, 6
      %v1465 = vsel %vm1444, %v1462, %v1464
      %v1466 = vrot.slane %v1363, 6
      %v1467 = vsel %vm1444, %v1464, %v1466
      %v1468 = vrot.slane %v1367, 6
      %v1469 = vsel %vm1444, %v1466, %v1468
      %v1470 = vrot.slane %v1371, 6
      %v1471 = vsel %vm1444, %v1468, %v1470
      %v1472 = vrot.slane %v1375, 6
      %v1473 = vsel %vm1444, %v1470, %v1472
      %v1474 = vrot.slane %v1379, 6
      %v1475 = vsel %vm1444, %v1472, %v1474
      %v1476 = vrot.slane %v1383, 6
      %v1477 = vsel %vm1444, %v1474, %v1476
      %v1478 = vrot.slane %v1387, 6
      %v1479 = vsel %vm1444, %v1476, %v1478
      %v1480 = vrot.slane %v1391, 6
      %v1481 = vsel %vm1444, %v1478, %v1480
      %v1482 = vrot.slane %v1395, 6
      %v1483 = vsel %vm1444, %v1480, %v1482
      %v1484 = vrot.slane %v1399, 6
      %v1485 = vsel %vm1444, %v1482, %v1484
      %v1486 = vrot.slane %v1403, 6
      %v1487 = vsel %vm1444, %v1484, %v1486
      %v1488 = vrot.slane %v1407, 6
      %v1489 = vsel %vm1444, %v1486, %v1488
      %v1490 = vrot.slane %v1411, 6
      %v1491 = vsel %vm1444, %v1488, %v1490
      %v1492 = vrot.slane %v1415, 6
      %v1493 = vsel %vm1444, %v1490, %v1492
      %v1494 = vrot.slane %v1419, 6
      %v1495 = vsel %vm1444, %v1492, %v1494
      %v1496 = vrot.slane %v1423, 6
      %v1497 = vsel %vm1444, %v1494, %v1496
      %v1498 = vrot.slane %v1427, 6
      %v1499 = vsel %vm1444, %v1496, %v1498
      %v1500 = vrot.slane %v1431, 6
      %v1501 = vsel %vm1444, %v1498, %v1500
      %v1502 = vrot.slane %v1435, 6
      %v1503 = vsel %vm1444, %v1500, %v1502
      %v1504 = vrot.slane %v1439, 6
      %v1505 = vsel %vm1444, %v1502, %v1504
      %v1506 = vrot.slane %v1443, 6
      %v1507 = vsel %vm1444, %v1504, %v1506
      %v1541 = vmul.f32 %v303, %v1445
      %v1542 = vmul.f32 %v304, %v1447
      %v1543 = vmul.f32 %v305, %v1449
      %v1544 = vmul.f32 %v306, %v1451
      %v1545 = vmul.f32 %v307, %v1453
      %v1546 = vmul.f32 %v308, %v1455
      %v1547 = vmul.f32 %v309, %v1457
      %v1548 = vmul.f32 %v310, %v1459
      %v1549 = vmul.f32 %v311, %v1461
      %v1550 = vmul.f32 %v312, %v1463
      %v1551 = vmul.f32 %v313, %v1465
      %v1552 = vmul.f32 %v314, %v1467
      %v1553 = vmul.f32 %v315, %v1469
      %v1554 = vmul.f32 %v316, %v1471
      %v1555 = vmul.f32 %v317, %v1473
      %v1556 = vmul.f32 %v318, %v1475
      %v1557 = vmul.f32 %v319, %v1477
      %v1558 = vmul.f32 %v320, %v1479
      %v1559 = vmul.f32 %v321, %v1481
      %v1560 = vmul.f32 %v322, %v1483
      %v1561 = vmul.f32 %v323, %v1485
      %v1562 = vmul.f32 %v324, %v1487
      %v1563 = vmul.f32 %v325, %v1489
      %v1564 = vmul.f32 %v326, %v1491
      %v1565 = vmul.f32 %v327, %v1493
      %v1566 = vmul.f32 %v328, %v1495
      %v1567 = vmul.f32 %v329, %v1497
      %v1568 = vmul.f32 %v330, %v1499
      %v1569 = vmul.f32 %v331, %v1501
      %v1570 = vmul.f32 %v332, %v1503
      %v1571 = vmul.f32 %v333, %v1505
      %v1572 = vmul.f32 %v334, %v1507
      %v1573 = vmul.f32 %v335, %v1506
      %s1574 = scalar_lea.vmem %s1, 8
      %v1575 = vld [vmem:[%s1574] sm:$0xf]
      %vm1609 = vcmask 1045504
      %v1610 = vrot.slane %v1541, 2
      %v1611 = vrot.slane %v1542, 2
      %v1612 = vsel %vm1609, %v1610, %v1611
      %v1613 = vrot.slane %v1543, 2
      %v1614 = vsel %vm1609, %v1611, %v1613
      %v1615 = vrot.slane %v1544, 2
      %v1616 = vsel %vm1609, %v1613, %v1615
      %v1617 = vrot.slane %v1545, 2
      %v1618 = vsel %vm1609, %v1615, %v1617
      %v1619 = vrot.slane %v1546, 2
      %v1620 = vsel %vm1609, %v1617, %v1619
      %v1621 = vrot.slane %v1547, 2
      %v1622 = vsel %vm1609, %v1619, %v1621
      %v1623 = vrot.slane %v1548, 2
      %v1624 = vsel %vm1609, %v1621, %v1623
      %v1625 = vrot.slane %v1549, 2
      %v1626 = vsel %vm1609, %v1623, %v1625
      %v1627 = vrot.slane %v1550, 2
      %v1628 = vsel %vm1609, %v1625, %v1627
      %v1629 = vrot.slane %v1551, 2
      %v1630 = vsel %vm1609, %v1627, %v1629
      %v1631 = vrot.slane %v1552, 2
      %v1632 = vsel %vm1609, %v1629, %v1631
      %v1633 = vrot.slane %v1553, 2
      %v1634 = vsel %vm1609, %v1631, %v1633
      %v1635 = vrot.slane %v1554, 2
      %v1636 = vsel %vm1609, %v1633, %v1635
      %v1637 = vrot.slane %v1555, 2
      %v1638 = vsel %vm1609, %v1635, %v1637
      %v1639 = vrot.slane %v1556, 2
      %v1640 = vsel %vm1609, %v1637, %v1639
      %v1641 = vrot.slane %v1557, 2
      %v1642 = vsel %vm1609, %v1639, %v1641
      %v1643 = vrot.slane %v1558, 2
      %v1644 = vsel %vm1609, %v1641, %v1643
      %v1645 = vrot.slane %v1559, 2
      %v1646 = vsel %vm1609, %v1643, %v1645
      %v1647 = vrot.slane %v1560, 2
      %v1648 = vsel %vm1609, %v1645, %v1647
      %v1649 = vrot.slane %v1561, 2
      %v1650 = vsel %vm1609, %v1647, %v1649
      %v1651 = vrot.slane %v1562, 2
      %v1652 = vsel %vm1609, %v1649, %v1651
      %v1653 = vrot.slane %v1563, 2
      %v1654 = vsel %vm1609, %v1651, %v1653
      %v1655 = vrot.slane %v1564, 2
      %v1656 = vsel %vm1609, %v1653, %v1655
      %v1657 = vrot.slane %v1565, 2
      %v1658 = vsel %vm1609, %v1655, %v1657
      %v1659 = vrot.slane %v1566, 2
      %v1660 = vsel %vm1609, %v1657, %v1659
      %v1661 = vrot.slane %v1567, 2
      %v1662 = vsel %vm1609, %v1659, %v1661
      %v1663 = vrot.slane %v1568, 2
      %v1664 = vsel %vm1609, %v1661, %v1663
      %v1665 = vrot.slane %v1569, 2
      %v1666 = vsel %vm1609, %v1663, %v1665
      %v1667 = vrot.slane %v1570, 2
      %v1668 = vsel %vm1609, %v1665, %v1667
      %v1669 = vrot.slane %v1571, 2
      %v1670 = vsel %vm1609, %v1667, %v1669
      %v1671 = vrot.slane %v1572, 2
      %v1672 = vsel %vm1609, %v1669, %v1671
      %v1673 = vrot.slane %v1573, 2
      %v1674 = vsel %vm1609, %v1671, %v1673
      %v1675 = vsel %vm698, %v1612, 0
      %v1677 = vsel %vm698, %v1614, 0
      %v1679 = vsel %vm698, %v1616, 0
      %v1681 = vsel %vm698, %v1618, 0
      %v1683 = vsel %vm698, %v1620, 0
      %v1685 = vsel %vm698, %v1622, 0
      %v1687 = vsel %vm698, %v1624, 0
      %v1689 = vsel %vm698, %v1626, 0
      %v1691 = vsel %vm698, %v1628, 0
      %v1693 = vsel %vm698, %v1630, 0
      %v1695 = vsel %vm698, %v1632, 0
      %v1697 = vsel %vm698, %v1634, 0
      %v1699 = vsel %vm698, %v1636, 0
      %v1701 = vsel %vm698, %v1638, 0
      %v1703 = vsel %vm698, %v1640, 0
      %v1705 = vsel %vm698, %v1642, 0
      %v1707 = vsel %vm698, %v1644, 0
      %v1709 = vsel %vm698, %v1646, 0
      %v1711 = vsel %vm698, %v1648, 0
      %v1713 = vsel %vm698, %v1650, 0
      %v1715 = vsel %vm698, %v1652, 0
      %v1717 = vsel %vm698, %v1654, 0
      %v1719 = vsel %vm698, %v1656, 0
      %v1721 = vsel %vm698, %v1658, 0
      %v1723 = vsel %vm698, %v1660, 0
      %v1725 = vsel %vm698, %v1662, 0
      %v1727 = vsel %vm698, %v1664, 0
      %v1729 = vsel %vm698, %v1666, 0
      %v1731 = vsel %vm698, %v1668, 0
      %v1733 = vsel %vm698, %v1670, 0
      %v1735 = vsel %vm698, %v1672, 0
      %v1737 = vsel %vm698, %v1674, 0
      %v1740 = vsel %vm763, %v1575, 0
      %1742 = vmatprep.subr.mxu0 0.0
      %1743 = vmatpush1.msra.mxu0 %v1740
      %1744 = vmatprep.subr.mxu0 0.0
      %1745 = vmatpush1.msra.mxu0 0.0
      %1746 = vmatprep.subr.mxu0 0.0
      %1747 = vmatpush1.msra.mxu0 0.0
      %1748 = vmatprep.subr.mxu0 0.0
      %1749 = vmatpush1.msra.mxu0 0.0
      %1750 = vmatprep.subr.mxu0 0.0
      %1751 = vmatpush1.msra.mxu0 0.0
      %1752 = vmatprep.subr.mxu0 0.0
      %1753 = vmatpush1.msra.mxu0 0.0
      %1754 = vmatprep.subr.mxu0 0.0
      %1755 = vmatpush1.msra.mxu0 0.0
      %1756 = vmatprep.subr.mxu0 0.0
      %1757 = vmatpush1.msra.mxu0 0.0
      %1758 = vmatprep.subr.mxu0 0.0
      %1759 = vmatpush1.msra.mxu0 0.0
      %1760 = vmatprep.subr.mxu0 0.0
      %1761 = vmatpush1.msra.mxu0 0.0
      %1762 = vmatprep.subr.mxu0 0.0
      %1763 = vmatpush1.msra.mxu0 0.0
      %1764 = vmatprep.subr.mxu0 0.0
      %1765 = vmatpush1.msra.mxu0 0.0
      %1766 = vmatprep.subr.mxu0 0.0
      %1767 = vmatpush1.msra.mxu0 0.0
      %1768 = vmatprep.subr.mxu0 0.0
      %1769 = vmatpush1.msra.mxu0 0.0
      %1770 = vmatprep.subr.mxu0 0.0
      %1771 = vmatpush1.msra.mxu0 0.0
      %1772 = vmatprep.subr.mxu0 0.0
      %1773 = vmatpush1.msra.mxu0 0.0
      %1774 = vmatprep.subr.mxu0 0.0
      %1775 = vmatpush1.msra.mxu0 0.0
      %1776 = vmatprep.subr.mxu0 0.0
      %1777 = vmatpush1.msra.mxu0 0.0
      %1778 = vmatprep.subr.mxu0 0.0
      %1779 = vmatpush1.msra.mxu0 0.0
      %1780 = vmatprep.subr.mxu0 0.0
      %1781 = vmatpush1.msra.mxu0 0.0
      %1782 = vmatprep.subr.mxu0 0.0
      %1783 = vmatpush1.msra.mxu0 0.0
      %1784 = vmatprep.subr.mxu0 0.0
      %1785 = vmatpush1.msra.mxu0 0.0
      %1786 = vmatprep.subr.mxu0 0.0
      %1787 = vmatpush1.msra.mxu0 0.0
      %1788 = vmatprep.subr.mxu0 0.0
      %1789 = vmatpush1.msra.mxu0 0.0
      %1790 = vmatprep.subr.mxu0 0.0
      %1791 = vmatpush1.msra.mxu0 0.0
      %1792 = vmatprep.subr.mxu0 0.0
      %1793 = vmatpush1.msra.mxu0 0.0
      %1794 = vmatprep.subr.mxu0 0.0
      %1795 = vmatpush1.msra.mxu0 0.0
      %1796 = vmatprep.subr.mxu0 0.0
      %1797 = vmatpush1.msra.mxu0 0.0
      %1798 = vmatprep.subr.mxu0 0.0
      %1799 = vmatpush1.msra.mxu0 0.0
      %1800 = vmatprep.subr.mxu0 0.0
      %1801 = vmatpush1.msra.mxu0 0.0
      %1802 = vmatprep.subr.mxu0 0.0
      %1803 = vmatpush1.msra.mxu0 0.0
      %1804 = vmatprep.subr.mxu0 0.0
      %1805 = vmatpush1.msra.mxu0 0.0
      %1806 = vmatprep.mubr.f32.mxu0 0.0
      %1807 = vmatmul.mubr.f32.gmra.mrb[0].mxu0 %v1675
      %v1808 = vpop.f32.mrb[0].mxu0
      %v1809 = vadd.f32 0.0, %v1808
      %v1810 = vpop.f32.mrb[0].mxu0
      %1811 = vmatprep.mubr.f32.mxu0 0.0
      %1812 = vmatmul.mubr.f32.gmra.mrb[0].mxu0 %v1677
      %v1813 = vpop.f32.mrb[0].mxu0
      %v1814 = vadd.f32 0.0, %v1813
      %v1815 = vpop.f32.mrb[0].mxu0
      %1816 = vmatprep.mubr.f32.mxu0 0.0
      %1817 = vmatmul.mubr.f32.gmra.mrb[0].mxu0 %v1679
      %v1818 = vpop.f32.mrb[0].mxu0
      %v1819 = vadd.f32 0.0, %v1818
      %v1820 = vpop.f32.mrb[0].mxu0
      %1821 = vmatprep.mubr.f32.mxu0 0.0
      %1822 = vmatmul.mubr.f32.gmra.mrb[0].mxu0 %v1681
      %v1823 = vpop.f32.mrb[0].mxu0
      %v1824 = vadd.f32 0.0, %v1823
      %v1825 = vpop.f32.mrb[0].mxu0
      %1826 = vmatprep.mubr.f32.mxu0 0.0
      %1827 = vmatmul.mubr.f32.gmra.mrb[0].mxu0 %v1683
      %v1828 = vpop.f32.mrb[0].mxu0
      %v1829 = vadd.f32 0.0, %v1828
      %v1830 = vpop.f32.mrb[0].mxu0
      %1831 = vmatprep.mubr.f32.mxu0 0.0
      %1832 = vmatmul.mubr.f32.gmra.mrb[0].mxu0 %v1685
      %v1833 = vpop.f32.mrb[0].mxu0
      %v1834 = vadd.f32 0.0, %v1833
      %v1835 = vpop.f32.mrb[0].mxu0
      %1836 = vmatprep.mubr.f32.mxu0 0.0
      %1837 = vmatmul.mubr.f32.gmra.mrb[0].mxu0 %v1687
      %v1838 = vpop.f32.mrb[0].mxu0
      %v1839 = vadd.f32 0.0, %v1838
      %v1840 = vpop.f32.mrb[0].mxu0
      %1841 = vmatprep.mubr.f32.mxu0 0.0
      %1842 = vmatmul.mubr.f32.gmra.mrb[0].mxu0 %v1689
      %v1843 = vpop.f32.mrb[0].mxu0
      %v1844 = vadd.f32 0.0, %v1843
      %v1845 = vpop.f32.mrb[0].mxu0
      %1846 = vmatprep.mubr.f32.mxu0 0.0
      %1847 = vmatmul.mubr.f32.gmra.mrb[0].mxu0 %v1691
      %v1848 = vpop.f32.mrb[0].mxu0
      %v1849 = vadd.f32 0.0, %v1848
      %v1850 = vpop.f32.mrb[0].mxu0
      %1851 = vmatprep.mubr.f32.mxu0 0.0
      %1852 = vmatmul.mubr.f32.gmra.mrb[0].mxu0 %v1693
      %v1853 = vpop.f32.mrb[0].mxu0
      %v1854 = vadd.f32 0.0, %v1853
      %v1855 = vpop.f32.mrb[0].mxu0
      %1856 = vmatprep.mubr.f32.mxu0 0.0
      %1857 = vmatmul.mubr.f32.gmra.mrb[0].mxu0 %v1695
      %v1858 = vpop.f32.mrb[0].mxu0
      %v1859 = vadd.f32 0.0, %v1858
      %v1860 = vpop.f32.mrb[0].mxu0
      %1861 = vmatprep.mubr.f32.mxu0 0.0
      %1862 = vmatmul.mubr.f32.gmra.mrb[0].mxu0 %v1697
      %v1863 = vpop.f32.mrb[0].mxu0
      %v1864 = vadd.f32 0.0, %v1863
      %v1865 = vpop.f32.mrb[0].mxu0
      %1866 = vmatprep.mubr.f32.mxu0 0.0
      %1867 = vmatmul.mubr.f32.gmra.mrb[0].mxu0 %v1699
      %v1868 = vpop.f32.mrb[0].mxu0
      %v1869 = vadd.f32 0.0, %v1868
      %v1870 = vpop.f32.mrb[0].mxu0
      %1871 = vmatprep.mubr.f32.mxu0 0.0
      %1872 = vmatmul.mubr.f32.gmra.mrb[0].mxu0 %v1701
      %v1873 = vpop.f32.mrb[0].mxu0
      %v1874 = vadd.f32 0.0, %v1873
      %v1875 = vpop.f32.mrb[0].mxu0
      %1876 = vmatprep.mubr.f32.mxu0 0.0
      %1877 = vmatmul.mubr.f32.gmra.mrb[0].mxu0 %v1703
      %v1878 = vpop.f32.mrb[0].mxu0
      %v1879 = vadd.f32 0.0, %v1878
      %v1880 = vpop.f32.mrb[0].mxu0
      %1881 = vmatprep.mubr.f32.mxu0 0.0
      %1882 = vmatmul.mubr.f32.gmra.mrb[0].mxu0 %v1705
      %v1883 = vpop.f32.mrb[0].mxu0
      %v1884 = vadd.f32 0.0, %v1883
      %v1885 = vpop.f32.mrb[0].mxu0
      %1886 = vmatprep.mubr.f32.mxu0 0.0
      %1887 = vmatmul.mubr.f32.gmra.mrb[0].mxu0 %v1707
      %v1888 = vpop.f32.mrb[0].mxu0
      %v1889 = vadd.f32 0.0, %v1888
      %v1890 = vpop.f32.mrb[0].mxu0
      %1891 = vmatprep.mubr.f32.mxu0 0.0
      %1892 = vmatmul.mubr.f32.gmra.mrb[0].mxu0 %v1709
      %v1893 = vpop.f32.mrb[0].mxu0
      %v1894 = vadd.f32 0.0, %v1893
      %v1895 = vpop.f32.mrb[0].mxu0
      %1896 = vmatprep.mubr.f32.mxu0 0.0
      %1897 = vmatmul.mubr.f32.gmra.mrb[0].mxu0 %v1711
      %v1898 = vpop.f32.mrb[0].mxu0
      %v1899 = vadd.f32 0.0, %v1898
      %v1900 = vpop.f32.mrb[0].mxu0
      %1901 = vmatprep.mubr.f32.mxu0 0.0
      %1902 = vmatmul.mubr.f32.gmra.mrb[0].mxu0 %v1713
      %v1903 = vpop.f32.mrb[0].mxu0
      %v1904 = vadd.f32 0.0, %v1903
      %v1905 = vpop.f32.mrb[0].mxu0
      %1906 = vmatprep.mubr.f32.mxu0 0.0
      %1907 = vmatmul.mubr.f32.gmra.mrb[0].mxu0 %v1715
      %v1908 = vpop.f32.mrb[0].mxu0
      %v1909 = vadd.f32 0.0, %v1908
      %v1910 = vpop.f32.mrb[0].mxu0
      %1911 = vmatprep.mubr.f32.mxu0 0.0
      %1912 = vmatmul.mubr.f32.gmra.mrb[0].mxu0 %v1717
      %v1913 = vpop.f32.mrb[0].mxu0
      %v1914 = vadd.f32 0.0, %v1913
      %v1915 = vpop.f32.mrb[0].mxu0
      %1916 = vmatprep.mubr.f32.mxu0 0.0
      %1917 = vmatmul.mubr.f32.gmra.mrb[0].mxu0 %v1719
      %v1918 = vpop.f32.mrb[0].mxu0
      %v1919 = vadd.f32 0.0, %v1918
      %v1920 = vpop.f32.mrb[0].mxu0
      %1921 = vmatprep.mubr.f32.mxu0 0.0
      %1922 = vmatmul.mubr.f32.gmra.mrb[0].mxu0 %v1721
      %v1923 = vpop.f32.mrb[0].mxu0
      %v1924 = vadd.f32 0.0, %v1923
      %v1925 = vpop.f32.mrb[0].mxu0
      %1926 = vmatprep.mubr.f32.mxu0 0.0
      %1927 = vmatmul.mubr.f32.gmra.mrb[0].mxu0 %v1723
      %v1928 = vpop.f32.mrb[0].mxu0
      %v1929 = vadd.f32 0.0, %v1928
      %v1930 = vpop.f32.mrb[0].mxu0
      %1931 = vmatprep.mubr.f32.mxu0 0.0
      %1932 = vmatmul.mubr.f32.gmra.mrb[0].mxu0 %v1725
      %v1933 = vpop.f32.mrb[0].mxu0
      %v1934 = vadd.f32 0.0, %v1933
      %v1935 = vpop.f32.mrb[0].mxu0
      %1936 = vmatprep.mubr.f32.mxu0 0.0
      %1937 = vmatmul.mubr.f32.gmra.mrb[0].mxu0 %v1727
      %v1938 = vpop.f32.mrb[0].mxu0
      %v1939 = vadd.f32 0.0, %v1938
      %v1940 = vpop.f32.mrb[0].mxu0
      %1941 = vmatprep.mubr.f32.mxu0 0.0
      %1942 = vmatmul.mubr.f32.gmra.mrb[0].mxu0 %v1729
      %v1943 = vpop.f32.mrb[0].mxu0
      %v1944 = vadd.f32 0.0, %v1943
      %v1945 = vpop.f32.mrb[0].mxu0
      %1946 = vmatprep.mubr.f32.mxu0 0.0
      %1947 = vmatmul.mubr.f32.gmra.mrb[0].mxu0 %v1731
      %v1948 = vpop.f32.mrb[0].mxu0
      %v1949 = vadd.f32 0.0, %v1948
      %v1950 = vpop.f32.mrb[0].mxu0
      %1951 = vmatprep.mubr.f32.mxu0 0.0
      %1952 = vmatmul.mubr.f32.gmra.mrb[0].mxu0 %v1733
      %v1953 = vpop.f32.mrb[0].mxu0
      %v1954 = vadd.f32 0.0, %v1953
      %v1955 = vpop.f32.mrb[0].mxu0
      %1956 = vmatprep.mubr.f32.mxu0 0.0
      %1957 = vmatmul.mubr.f32.gmra.mrb[0].mxu0 %v1735
      %v1958 = vpop.f32.mrb[0].mxu0
      %v1959 = vadd.f32 0.0, %v1958
      %v1960 = vpop.f32.mrb[0].mxu0
      %1961 = vmatprep.mubr.f32.mxu0 0.0
      %1962 = vmatmul.mubr.f32.gmra.mrb[0].mxu0 %v1737
      %v1963 = vpop.f32.mrb[0].mxu0
      %v1964 = vadd.f32 0.0, %v1963
      %v1965 = vpop.f32.mrb[0].mxu0
      %1966 = vdwg.mxu0
      %v1967 = vadd.f32 %v1158, %v1809
      %v1968 = vadd.f32 %v1163, %v1814
      %v1969 = vadd.f32 %v1168, %v1819
      %v1970 = vadd.f32 %v1173, %v1824
      %v1971 = vadd.f32 %v1178, %v1829
      %v1972 = vadd.f32 %v1183, %v1834
      %v1973 = vadd.f32 %v1188, %v1839
      %v1974 = vadd.f32 %v1193, %v1844
      %v1975 = vadd.f32 %v1198, %v1849
      %v1976 = vadd.f32 %v1203, %v1854
      %v1977 = vadd.f32 %v1208, %v1859
      %v1978 = vadd.f32 %v1213, %v1864
      %v1979 = vadd.f32 %v1218, %v1869
      %v1980 = vadd.f32 %v1223, %v1874
      %v1981 = vadd.f32 %v1228, %v1879
      %v1982 = vadd.f32 %v1233, %v1884
      %v1983 = vadd.f32 %v1238, %v1889
      %v1984 = vadd.f32 %v1243, %v1894
      %v1985 = vadd.f32 %v1248, %v1899
      %v1986 = vadd.f32 %v1253, %v1904
      %v1987 = vadd.f32 %v1258, %v1909
      %v1988 = vadd.f32 %v1263, %v1914
      %v1989 = vadd.f32 %v1268, %v1919
      %v1990 = vadd.f32 %v1273, %v1924
      %v1991 = vadd.f32 %v1278, %v1929
      %v1992 = vadd.f32 %v1283, %v1934
      %v1993 = vadd.f32 %v1288, %v1939
      %v1994 = vadd.f32 %v1293, %v1944
      %v1995 = vadd.f32 %v1298, %v1949
      %v1996 = vadd.f32 %v1303, %v1954
      %v1997 = vadd.f32 %v1308, %v1959
      %v1998 = vadd.f32 %v1313, %v1964
      %v1999 = vmul.f32 %v305, %v407
      %v2000 = vmul.f32 %v306, %v412
      %v2001 = vmul.f32 %v307, %v417
      %v2002 = vmul.f32 %v308, %v422
      %v2003 = vmul.f32 %v309, %v427
      %v2004 = vmul.f32 %v310, %v432
      %v2005 = vmul.f32 %v311, %v437
      %v2006 = vmul.f32 %v312, %v442
      %v2007 = vmul.f32 %v313, %v447
      %v2008 = vmul.f32 %v314, %v452
      %v2009 = vmul.f32 %v315, %v457
      %v2010 = vmul.f32 %v316, %v462
      %v2011 = vmul.f32 %v317, %v467
      %v2012 = vmul.f32 %v318, %v472
      %v2013 = vmul.f32 %v319, %v477
      %v2014 = vmul.f32 %v320, %v482
      %v2015 = vmul.f32 %v321, %v487
      %v2016 = vmul.f32 %v322, %v492
      %v2017 = vmul.f32 %v323, %v497
      %v2018 = vmul.f32 %v324, %v502
      %v2019 = vmul.f32 %v325, %v507
      %v2020 = vmul.f32 %v326, %v512
      %v2021 = vmul.f32 %v327, %v517
      %v2022 = vmul.f32 %v328, %v522
      %v2023 = vmul.f32 %v329, %v527
      %v2024 = vmul.f32 %v330, %v532
      %v2025 = vmul.f32 %v331, %v537
      %v2026 = vmul.f32 %v332, %v542
      %v2027 = vmul.f32 %v333, %v547
      %v2028 = vmul.f32 %v334, %v552
      %v2029 = vmul.f32 %v335, %v557
      %v2030 = vmul.f32 %v336, %v562
      %s2031 = scalar_lea.vmem %s1, 12
      %v2032 = vld [vmem:[%s2031] sm:$0xf]
      %v2034 = vsel %vm698, %v1999, 0
      %v2037 = vsel %vm698, %v2000, 0
      %v2040 = vsel %vm698, %v2001, 0
      %v2043 = vsel %vm698, %v2002, 0
      %v2046 = vsel %vm698, %v2003, 0
      %v2049 = vsel %vm698, %v2004, 0
      %v2052 = vsel %vm698, %v2005, 0
      %v2055 = vsel %vm698, %v2006, 0
      %v2058 = vsel %vm698, %v2007, 0
      %v2061 = vsel %vm698, %v2008, 0
      %v2064 = vsel %vm698, %v2009, 0
      %v2067 = vsel %vm698, %v2010, 0
      %v2070 = vsel %vm698, %v2011, 0
      %v2073 = vsel %vm698, %v2012, 0
      %v2076 = vsel %vm698, %v2013, 0
      %v2079 = vsel %vm698, %v2014, 0
      %v2082 = vsel %vm698, %v2015, 0
      %v2085 = vsel %vm698, %v2016, 0
      %v2088 = vsel %vm698, %v2017, 0
      %v2091 = vsel %vm698, %v2018, 0
      %v2094 = vsel %vm698, %v2019, 0
      %v2097 = vsel %vm698, %v2020, 0
      %v2100 = vsel %vm698, %v2021, 0
      %v2103 = vsel %vm698, %v2022, 0
      %v2106 = vsel %vm698, %v2023, 0
      %v2109 = vsel %vm698, %v2024, 0
      %v2112 = vsel %vm698, %v2025, 0
      %v2115 = vsel %vm698, %v2026, 0
      %v2118 = vsel %vm698, %v2027, 0
      %v2121 = vsel %vm698, %v2028, 0
      %v2124 = vsel %vm698, %v2029, 0
      %v2127 = vsel %vm698, %v2030, 0
      %v2130 = vsel %vm763, %v2032, 0
      %2132 = vmatprep.subr.mxu0 0.0
      %2133 = vmatpush1.msra.mxu0 %v2130
      %2134 = vmatprep.subr.mxu0 0.0
      %2135 = vmatpush1.msra.mxu0 0.0
      %2136 = vmatprep.subr.mxu0 0.0
      %2137 = vmatpush1.msra.mxu0 0.0
      %2138 = vmatprep.subr.mxu0 0.0
      %2139 = vmatpush1.msra.mxu0 0.0
      %2140 = vmatprep.subr.mxu0 0.0
      %2141 = vmatpush1.msra.mxu0 0.0
      %2142 = vmatprep.subr.mxu0 0.0
      %2143 = vmatpush1.msra.mxu0 0.0
      %2144 = vmatprep.subr.mxu0 0.0
      %2145 = vmatpush1.msra.mxu0 0.0
      %2146 = vmatprep.subr.mxu0 0.0
      %2147 = vmatpush1.msra.mxu0 0.0
      %2148 = vmatprep.subr.mxu0 0.0
      %2149 = vmatpush1.msra.mxu0 0.0
      %2150 = vmatprep.subr.mxu0 0.0
      %2151 = vmatpush1.msra.mxu0 0.0
      %2152 = vmatprep.subr.mxu0 0.0
      %2153 = vmatpush1.msra.mxu0 0.0
      %2154 = vmatprep.subr.mxu0 0.0
      %2155 = vmatpush1.msra.mxu0 0.0
      %2156 = vmatprep.subr.mxu0 0.0
      %2157 = vmatpush1.msra.mxu0 0.0
      %2158 = vmatprep.subr.mxu0 0.0
      %2159 = vmatpush1.msra.mxu0 0.0
      %2160 = vmatprep.subr.mxu0 0.0
      %2161 = vmatpush1.msra.mxu0 0.0
      %2162 = vmatprep.subr.mxu0 0.0
      %2163 = vmatpush1.msra.mxu0 0.0
      %2164 = vmatprep.subr.mxu0 0.0
      %2165 = vmatpush1.msra.mxu0 0.0
      %2166 = vmatprep.subr.mxu0 0.0
      %2167 = vmatpush1.msra.mxu0 0.0
      %2168 = vmatprep.subr.mxu0 0.0
      %2169 = vmatpush1.msra.mxu0 0.0
      %2170 = vmatprep.subr.mxu0 0.0
      %2171 = vmatpush1.msra.mxu0 0.0
      %2172 = vmatprep.subr.mxu0 0.0
      %2173 = vmatpush1.msra.mxu0 0.0
      %2174 = vmatprep.subr.mxu0 0.0
      %2175 = vmatpush1.msra.mxu0 0.0
      %2176 = vmatprep.subr.mxu0 0.0
      %2177 = vmatpush1.msra.mxu0 0.0
      %2178 = vmatprep.subr.mxu0 0.0
      %2179 = vmatpush1.msra.mxu0 0.0
      %2180 = vmatprep.subr.mxu0 0.0
      %2181 = vmatpush1.msra.mxu0 0.0
      %2182 = vmatprep.subr.mxu0 0.0
      %2183 = vmatpush1.msra.mxu0 0.0
      %2184 = vmatprep.subr.mxu0 0.0
      %2185 = vmatpush1.msra.mxu0 0.0
      %2186 = vmatprep.subr.mxu0 0.0
      %2187 = vmatpush1.msra.mxu0 0.0
      %2188 = vmatprep.subr.mxu0 0.0
      %2189 = vmatpush1.msra.mxu0 0.0
      %2190 = vmatprep.subr.mxu0 0.0
      %2191 = vmatpush1.msra.mxu0 0.0
      %2192 = vmatprep.subr.mxu0 0.0
      %2193 = vmatpush1.msra.mxu0 0.0
      %2194 = vmatprep.subr.mxu0 0.0
      %2195 = vmatpush1.msra.mxu0 0.0
      %2196 = vmatprep.mubr.f32.mxu0 0.0
      %2197 = vmatmul.mubr.f32.gmra.mrb[0].mxu0 %v2034
      %v2198 = vpop.f32.mrb[0].mxu0
      %v2199 = vadd.f32 0.0, %v2198
      %v2200 = vpop.f32.mrb[0].mxu0
      %2201 = vmatprep.mubr.f32.mxu0 0.0
      %2202 = vmatmul.mubr.f32.gmra.mrb[0].mxu0 %v2037
      %v2203 = vpop.f32.mrb[0].mxu0
      %v2204 = vadd.f32 0.0, %v2203
      %v2205 = vpop.f32.mrb[0].mxu0
      %2206 = vmatprep.mubr.f32.mxu0 0.0
      %2207 = vmatmul.mubr.f32.gmra.mrb[0].mxu0 %v2040
      %v2208 = vpop.f32.mrb[0].mxu0
      %v2209 = vadd.f32 0.0, %v2208
      %v2210 = vpop.f32.mrb[0].mxu0
      %2211 = vmatprep.mubr.f32.mxu0 0.0
      %2212 = vmatmul.mubr.f32.gmra.mrb[0].mxu0 %v2043
      %v2213 = vpop.f32.mrb[0].mxu0
      %v2214 = vadd.f32 0.0, %v2213
      %v2215 = vpop.f32.mrb[0].mxu0
      %2216 = vmatprep.mubr.f32.mxu0 0.0
      %2217 = vmatmul.mubr.f32.gmra.mrb[0].mxu0 %v2046
      %v2218 = vpop.f32.mrb[0].mxu0
      %v2219 = vadd.f32 0.0, %v2218
      %v2220 = vpop.f32.mrb[0].mxu0
      %2221 = vmatprep.mubr.f32.mxu0 0.0
      %2222 = vmatmul.mubr.f32.gmra.mrb[0].mxu0 %v2049
      %v2223 = vpop.f32.mrb[0].mxu0
      %v2224 = vadd.f32 0.0, %v2223
      %v2225 = vpop.f32.mrb[0].mxu0
      %2226 = vmatprep.mubr.f32.mxu0 0.0
      %2227 = vmatmul.mubr.f32.gmra.mrb[0].mxu0 %v2052
      %v2228 = vpop.f32.mrb[0].mxu0
      %v2229 = vadd.f32 0.0, %v2228
      %v2230 = vpop.f32.mrb[0].mxu0
      %2231 = vmatprep.mubr.f32.mxu0 0.0
      %2232 = vmatmul.mubr.f32.gmra.mrb[0].mxu0 %v2055
      %v2233 = vpop.f32.mrb[0].mxu0
      %v2234 = vadd.f32 0.0, %v2233
      %v2235 = vpop.f32.mrb[0].mxu0
      %2236 = vmatprep.mubr.f32.mxu0 0.0
      %2237 = vmatmul.mubr.f32.gmra.mrb[0].mxu0 %v2058
      %v2238 = vpop.f32.mrb[0].mxu0
      %v2239 = vadd.f32 0.0, %v2238
      %v2240 = vpop.f32.mrb[0].mxu0
      %2241 = vmatprep.mubr.f32.mxu0 0.0
      %2242 = vmatmul.mubr.f32.gmra.mrb[0].mxu0 %v2061
      %v2243 = vpop.f32.mrb[0].mxu0
      %v2244 = vadd.f32 0.0, %v2243
      %v2245 = vpop.f32.mrb[0].mxu0
      %2246 = vmatprep.mubr.f32.mxu0 0.0
      %2247 = vmatmul.mubr.f32.gmra.mrb[0].mxu0 %v2064
      %v2248 = vpop.f32.mrb[0].mxu0
      %v2249 = vadd.f32 0.0, %v2248
      %v2250 = vpop.f32.mrb[0].mxu0
      %2251 = vmatprep.mubr.f32.mxu0 0.0
      %2252 = vmatmul.mubr.f32.gmra.mrb[0].mxu0 %v2067
      %v2253 = vpop.f32.mrb[0].mxu0
      %v2254 = vadd.f32 0.0, %v2253
      %v2255 = vpop.f32.mrb[0].mxu0
      %2256 = vmatprep.mubr.f32.mxu0 0.0
      %2257 = vmatmul.mubr.f32.gmra.mrb[0].mxu0 %v2070
      %v2258 = vpop.f32.mrb[0].mxu0
      %v2259 = vadd.f32 0.0, %v2258
      %v2260 = vpop.f32.mrb[0].mxu0
      %2261 = vmatprep.mubr.f32.mxu0 0.0
      %2262 = vmatmul.mubr.f32.gmra.mrb[0].mxu0 %v2073
      %v2263 = vpop.f32.mrb[0].mxu0
      %v2264 = vadd.f32 0.0, %v2263
      %v2265 = vpop.f32.mrb[0].mxu0
      %2266 = vmatprep.mubr.f32.mxu0 0.0
      %2267 = vmatmul.mubr.f32.gmra.mrb[0].mxu0 %v2076
      %v2268 = vpop.f32.mrb[0].mxu0
      %v2269 = vadd.f32 0.0, %v2268
      %v2270 = vpop.f32.mrb[0].mxu0
      %2271 = vmatprep.mubr.f32.mxu0 0.0
      %2272 = vmatmul.mubr.f32.gmra.mrb[0].mxu0 %v2079
      %v2273 = vpop.f32.mrb[0].mxu0
      %v2274 = vadd.f32 0.0, %v2273
      %v2275 = vpop.f32.mrb[0].mxu0
      %2276 = vmatprep.mubr.f32.mxu0 0.0
      %2277 = vmatmul.mubr.f32.gmra.mrb[0].mxu0 %v2082
      %v2278 = vpop.f32.mrb[0].mxu0
      %v2279 = vadd.f32 0.0, %v2278
      %v2280 = vpop.f32.mrb[0].mxu0
      %2281 = vmatprep.mubr.f32.mxu0 0.0
      %2282 = vmatmul.mubr.f32.gmra.mrb[0].mxu0 %v2085
      %v2283 = vpop.f32.mrb[0].mxu0
      %v2284 = vadd.f32 0.0, %v2283
      %v2285 = vpop.f32.mrb[0].mxu0
      %2286 = vmatprep.mubr.f32.mxu0 0.0
      %2287 = vmatmul.mubr.f32.gmra.mrb[0].mxu0 %v2088
      %v2288 = vpop.f32.mrb[0].mxu0
      %v2289 = vadd.f32 0.0, %v2288
      %v2290 = vpop.f32.mrb[0].mxu0
      %2291 = vmatprep.mubr.f32.mxu0 0.0
      %2292 = vmatmul.mubr.f32.gmra.mrb[0].mxu0 %v2091
      %v2293 = vpop.f32.mrb[0].mxu0
      %v2294 = vadd.f32 0.0, %v2293
      %v2295 = vpop.f32.mrb[0].mxu0
      %2296 = vmatprep.mubr.f32.mxu0 0.0
      %2297 = vmatmul.mubr.f32.gmra.mrb[0].mxu0 %v2094
      %v2298 = vpop.f32.mrb[0].mxu0
      %v2299 = vadd.f32 0.0, %v2298
      %v2300 = vpop.f32.mrb[0].mxu0
      %2301 = vmatprep.mubr.f32.mxu0 0.0
      %2302 = vmatmul.mubr.f32.gmra.mrb[0].mxu0 %v2097
      %v2303 = vpop.f32.mrb[0].mxu0
      %v2304 = vadd.f32 0.0, %v2303
      %v2305 = vpop.f32.mrb[0].mxu0
      %2306 = vmatprep.mubr.f32.mxu0 0.0
      %2307 = vmatmul.mubr.f32.gmra.mrb[0].mxu0 %v2100
      %v2308 = vpop.f32.mrb[0].mxu0
      %v2309 = vadd.f32 0.0, %v2308
      %v2310 = vpop.f32.mrb[0].mxu0
      %2311 = vmatprep.mubr.f32.mxu0 0.0
      %2312 = vmatmul.mubr.f32.gmra.mrb[0].mxu0 %v2103
      %v2313 = vpop.f32.mrb[0].mxu0
      %v2314 = vadd.f32 0.0, %v2313
      %v2315 = vpop.f32.mrb[0].mxu0
      %2316 = vmatprep.mubr.f32.mxu0 0.0
      %2317 = vmatmul.mubr.f32.gmra.mrb[0].mxu0 %v2106
      %v2318 = vpop.f32.mrb[0].mxu0
      %v2319 = vadd.f32 0.0, %v2318
      %v2320 = vpop.f32.mrb[0].mxu0
      %2321 = vmatprep.mubr.f32.mxu0 0.0
      %2322 = vmatmul.mubr.f32.gmra.mrb[0].mxu0 %v2109
      %v2323 = vpop.f32.mrb[0].mxu0
      %v2324 = vadd.f32 0.0, %v2323
      %v2325 = vpop.f32.mrb[0].mxu0
      %2326 = vmatprep.mubr.f32.mxu0 0.0
      %2327 = vmatmul.mubr.f32.gmra.mrb[0].mxu0 %v2112
      %v2328 = vpop.f32.mrb[0].mxu0
      %v2329 = vadd.f32 0.0, %v2328
      %v2330 = vpop.f32.mrb[0].mxu0
      %2331 = vmatprep.mubr.f32.mxu0 0.0
      %2332 = vmatmul.mubr.f32.gmra.mrb[0].mxu0 %v2115
      %v2333 = vpop.f32.mrb[0].mxu0
      %v2334 = vadd.f32 0.0, %v2333
      %v2335 = vpop.f32.mrb[0].mxu0
      %2336 = vmatprep.mubr.f32.mxu0 0.0
      %2337 = vmatmul.mubr.f32.gmra.mrb[0].mxu0 %v2118
      %v2338 = vpop.f32.mrb[0].mxu0
      %v2339 = vadd.f32 0.0, %v2338
      %v2340 = vpop.f32.mrb[0].mxu0
      %2341 = vmatprep.mubr.f32.mxu0 0.0
      %2342 = vmatmul.mubr.f32.gmra.mrb[0].mxu0 %v2121
      %v2343 = vpop.f32.mrb[0].mxu0
      %v2344 = vadd.f32 0.0, %v2343
      %v2345 = vpop.f32.mrb[0].mxu0
      %2346 = vmatprep.mubr.f32.mxu0 0.0
      %2347 = vmatmul.mubr.f32.gmra.mrb[0].mxu0 %v2124
      %v2348 = vpop.f32.mrb[0].mxu0
      %v2349 = vadd.f32 0.0, %v2348
      %v2350 = vpop.f32.mrb[0].mxu0
      %2351 = vmatprep.mubr.f32.mxu0 0.0
      %2352 = vmatmul.mubr.f32.gmra.mrb[0].mxu0 %v2127
      %v2353 = vpop.f32.mrb[0].mxu0
      %v2354 = vadd.f32 0.0, %v2353
      %v2355 = vpop.f32.mrb[0].mxu0
      %2356 = vdwg.mxu0
      %v2357 = vadd.f32 %v1967, %v2199
      %v2358 = vadd.f32 %v1968, %v2204
      %v2359 = vadd.f32 %v1969, %v2209
      %v2360 = vadd.f32 %v1970, %v2214
      %v2361 = vadd.f32 %v1971, %v2219
      %v2362 = vadd.f32 %v1972, %v2224
      %v2363 = vadd.f32 %v1973, %v2229
      %v2364 = vadd.f32 %v1974, %v2234
      %v2365 = vadd.f32 %v1975, %v2239
      %v2366 = vadd.f32 %v1976, %v2244
      %v2367 = vadd.f32 %v1977, %v2249
      %v2368 = vadd.f32 %v1978, %v2254
      %v2369 = vadd.f32 %v1979, %v2259
      %v2370 = vadd.f32 %v1980, %v2264
      %v2371 = vadd.f32 %v1981, %v2269
      %v2372 = vadd.f32 %v1982, %v2274
      %v2373 = vadd.f32 %v1983, %v2279
      %v2374 = vadd.f32 %v1984, %v2284
      %v2375 = vadd.f32 %v1985, %v2289
      %v2376 = vadd.f32 %v1986, %v2294
      %v2377 = vadd.f32 %v1987, %v2299
      %v2378 = vadd.f32 %v1988, %v2304
      %v2379 = vadd.f32 %v1989, %v2309
      %v2380 = vadd.f32 %v1990, %v2314
      %v2381 = vadd.f32 %v1991, %v2319
      %v2382 = vadd.f32 %v1992, %v2324
      %v2383 = vadd.f32 %v1993, %v2329
      %v2384 = vadd.f32 %v1994, %v2334
      %v2385 = vadd.f32 %v1995, %v2339
      %v2386 = vadd.f32 %v1996, %v2344
      %v2387 = vadd.f32 %v1997, %v2349
      %v2388 = vadd.f32 %v1998, %v2354
      %s2389 = scalar_lea.vmem %s1, 16
      %v2390 = vld [vmem:[%s2389] sm:$0xf]
      %v2393 = vrot.slane %v336, 1
      %v2394 = vsel %vm632, %v696, %v2393
      %v2395 = vrot.slane %v337, 1
      %v2396 = vsel %vm632, %v2393, %v2395
      %v2397 = vsel %vm698, %v2394, 0
      %v2399 = vsel %vm698, %v2396, 0
      %v2402 = vsel %vm763, %v2390, 0
      %2404 = vmatprep.subr.mxu0 0.0
      %2405 = vmatpush1.msra.mxu0 %v2402
      %2406 = vmatprep.subr.mxu0 0.0
      %2407 = vmatpush1.msra.mxu0 0.0
      %2408 = vmatprep.subr.mxu0 0.0
      %2409 = vmatpush1.msra.mxu0 0.0
      %2410 = vmatprep.subr.mxu0 0.0
      %2411 = vmatpush1.msra.mxu0 0.0
      %2412 = vmatprep.subr.mxu0 0.0
      %2413 = vmatpush1.msra.mxu0 0.0
      %2414 = vmatprep.subr.mxu0 0.0
      %2415 = vmatpush1.msra.mxu0 0.0
      %2416 = vmatprep.subr.mxu0 0.0
      %2417 = vmatpush1.msra.mxu0 0.0
      %2418 = vmatprep.subr.mxu0 0.0
      %2419 = vmatpush1.msra.mxu0 0.0
      %2420 = vmatprep.subr.mxu0 0.0
      %2421 = vmatpush1.msra.mxu0 0.0
      %2422 = vmatprep.subr.mxu0 0.0
      %2423 = vmatpush1.msra.mxu0 0.0
      %2424 = vmatprep.subr.mxu0 0.0
      %2425 = vmatpush1.msra.mxu0 0.0
      %2426 = vmatprep.subr.mxu0 0.0
      %2427 = vmatpush1.msra.mxu0 0.0
      %2428 = vmatprep.subr.mxu0 0.0
      %2429 = vmatpush1.msra.mxu0 0.0
      %2430 = vmatprep.subr.mxu0 0.0
      %2431 = vmatpush1.msra.mxu0 0.0
      %2432 = vmatprep.subr.mxu0 0.0
      %2433 = vmatpush1.msra.mxu0 0.0
      %2434 = vmatprep.subr.mxu0 0.0
      %2435 = vmatpush1.msra.mxu0 0.0
      %2436 = vmatprep.subr.mxu0 0.0
      %2437 = vmatpush1.msra.mxu0 0.0
      %2438 = vmatprep.subr.mxu0 0.0
      %2439 = vmatpush1.msra.mxu0 0.0
      %2440 = vmatprep.subr.mxu0 0.0
      %2441 = vmatpush1.msra.mxu0 0.0
      %2442 = vmatprep.subr.mxu0 0.0
      %2443 = vmatpush1.msra.mxu0 0.0
      %2444 = vmatprep.subr.mxu0 0.0
      %2445 = vmatpush1.msra.mxu0 0.0
      %2446 = vmatprep.subr.mxu0 0.0
      %2447 = vmatpush1.msra.mxu0 0.0
      %2448 = vmatprep.subr.mxu0 0.0
      %2449 = vmatpush1.msra.mxu0 0.0
      %2450 = vmatprep.subr.mxu0 0.0
      %2451 = vmatpush1.msra.mxu0 0.0
      %2452 = vmatprep.subr.mxu0 0.0
      %2453 = vmatpush1.msra.mxu0 0.0
      %2454 = vmatprep.subr.mxu0 0.0
      %2455 = vmatpush1.msra.mxu0 0.0
      %2456 = vmatprep.subr.mxu0 0.0
      %2457 = vmatpush1.msra.mxu0 0.0
      %2458 = vmatprep.subr.mxu0 0.0
      %2459 = vmatpush1.msra.mxu0 0.0
      %2460 = vmatprep.subr.mxu0 0.0
      %2461 = vmatpush1.msra.mxu0 0.0
      %2462 = vmatprep.subr.mxu0 0.0
      %2463 = vmatpush1.msra.mxu0 0.0
      %2464 = vmatprep.subr.mxu0 0.0
      %2465 = vmatpush1.msra.mxu0 0.0
      %2466 = vmatprep.subr.mxu0 0.0
      %2467 = vmatpush1.msra.mxu0 0.0
      %2468 = vmatprep.mubr.f32.mxu0 0.0
      %2469 = vmatmul.mubr.f32.gmra.mrb[0].mxu0 %v703
      %v2470 = vpop.f32.mrb[0].mxu0
      %v2471 = vadd.f32 0.0, %v2470
      %v2472 = vpop.f32.mrb[0].mxu0
      %2473 = vmatprep.mubr.f32.mxu0 0.0
      %2474 = vmatmul.mubr.f32.gmra.mrb[0].mxu0 %v705
      %v2475 = vpop.f32.mrb[0].mxu0
      %v2476 = vadd.f32 0.0, %v2475
      %v2477 = vpop.f32.mrb[0].mxu0
      %2478 = vmatprep.mubr.f32.mxu0 0.0
      %2479 = vmatmul.mubr.f32.gmra.mrb[0].mxu0 %v707
      %v2480 = vpop.f32.mrb[0].mxu0
      %v2481 = vadd.f32 0.0, %v2480
      %v2482 = vpop.f32.mrb[0].mxu0
      %2483 = vmatprep.mubr.f32.mxu0 0.0
      %2484 = vmatmul.mubr.f32.gmra.mrb[0].mxu0 %v709
      %v2485 = vpop.f32.mrb[0].mxu0
      %v2486 = vadd.f32 0.0, %v2485
      %v2487 = vpop.f32.mrb[0].mxu0
      %2488 = vmatprep.mubr.f32.mxu0 0.0
      %2489 = vmatmul.mubr.f32.gmra.mrb[0].mxu0 %v711
      %v2490 = vpop.f32.mrb[0].mxu0
      %v2491 = vadd.f32 0.0, %v2490
      %v2492 = vpop.f32.mrb[0].mxu0
      %2493 = vmatprep.mubr.f32.mxu0 0.0
      %2494 = vmatmul.mubr.f32.gmra.mrb[0].mxu0 %v713
      %v2495 = vpop.f32.mrb[0].mxu0
      %v2496 = vadd.f32 0.0, %v2495
      %v2497 = vpop.f32.mrb[0].mxu0
      %2498 = vmatprep.mubr.f32.mxu0 0.0
      %2499 = vmatmul.mubr.f32.gmra.mrb[0].mxu0 %v715
      %v2500 = vpop.f32.mrb[0].mxu0
      %v2501 = vadd.f32 0.0, %v2500
      %v2502 = vpop.f32.mrb[0].mxu0
      %2503 = vmatprep.mubr.f32.mxu0 0.0
      %2504 = vmatmul.mubr.f32.gmra.mrb[0].mxu0 %v717
      %v2505 = vpop.f32.mrb[0].mxu0
      %v2506 = vadd.f32 0.0, %v2505
      %v2507 = vpop.f32.mrb[0].mxu0
      %2508 = vmatprep.mubr.f32.mxu0 0.0
      %2509 = vmatmul.mubr.f32.gmra.mrb[0].mxu0 %v719
      %v2510 = vpop.f32.mrb[0].mxu0
      %v2511 = vadd.f32 0.0, %v2510
      %v2512 = vpop.f32.mrb[0].mxu0
      %2513 = vmatprep.mubr.f32.mxu0 0.0
      %2514 = vmatmul.mubr.f32.gmra.mrb[0].mxu0 %v721
      %v2515 = vpop.f32.mrb[0].mxu0
      %v2516 = vadd.f32 0.0, %v2515
      %v2517 = vpop.f32.mrb[0].mxu0
      %2518 = vmatprep.mubr.f32.mxu0 0.0
      %2519 = vmatmul.mubr.f32.gmra.mrb[0].mxu0 %v723
      %v2520 = vpop.f32.mrb[0].mxu0
      %v2521 = vadd.f32 0.0, %v2520
      %v2522 = vpop.f32.mrb[0].mxu0
      %2523 = vmatprep.mubr.f32.mxu0 0.0
      %2524 = vmatmul.mubr.f32.gmra.mrb[0].mxu0 %v725
      %v2525 = vpop.f32.mrb[0].mxu0
      %v2526 = vadd.f32 0.0, %v2525
      %v2527 = vpop.f32.mrb[0].mxu0
      %2528 = vmatprep.mubr.f32.mxu0 0.0
      %2529 = vmatmul.mubr.f32.gmra.mrb[0].mxu0 %v727
      %v2530 = vpop.f32.mrb[0].mxu0
      %v2531 = vadd.f32 0.0, %v2530
      %v2532 = vpop.f32.mrb[0].mxu0
      %2533 = vmatprep.mubr.f32.mxu0 0.0
      %2534 = vmatmul.mubr.f32.gmra.mrb[0].mxu0 %v729
      %v2535 = vpop.f32.mrb[0].mxu0
      %v2536 = vadd.f32 0.0, %v2535
      %v2537 = vpop.f32.mrb[0].mxu0
      %2538 = vmatprep.mubr.f32.mxu0 0.0
      %2539 = vmatmul.mubr.f32.gmra.mrb[0].mxu0 %v731
      %v2540 = vpop.f32.mrb[0].mxu0
      %v2541 = vadd.f32 0.0, %v2540
      %v2542 = vpop.f32.mrb[0].mxu0
      %2543 = vmatprep.mubr.f32.mxu0 0.0
      %2544 = vmatmul.mubr.f32.gmra.mrb[0].mxu0 %v733
      %v2545 = vpop.f32.mrb[0].mxu0
      %v2546 = vadd.f32 0.0, %v2545
      %v2547 = vpop.f32.mrb[0].mxu0
      %2548 = vmatprep.mubr.f32.mxu0 0.0
      %2549 = vmatmul.mubr.f32.gmra.mrb[0].mxu0 %v735
      %v2550 = vpop.f32.mrb[0].mxu0
      %v2551 = vadd.f32 0.0, %v2550
      %v2552 = vpop.f32.mrb[0].mxu0
      %2553 = vmatprep.mubr.f32.mxu0 0.0
      %2554 = vmatmul.mubr.f32.gmra.mrb[0].mxu0 %v737
      %v2555 = vpop.f32.mrb[0].mxu0
      %v2556 = vadd.f32 0.0, %v2555
      %v2557 = vpop.f32.mrb[0].mxu0
      %2558 = vmatprep.mubr.f32.mxu0 0.0
      %2559 = vmatmul.mubr.f32.gmra.mrb[0].mxu0 %v739
      %v2560 = vpop.f32.mrb[0].mxu0
      %v2561 = vadd.f32 0.0, %v2560
      %v2562 = vpop.f32.mrb[0].mxu0
      %2563 = vmatprep.mubr.f32.mxu0 0.0
      %2564 = vmatmul.mubr.f32.gmra.mrb[0].mxu0 %v741
      %v2565 = vpop.f32.mrb[0].mxu0
      %v2566 = vadd.f32 0.0, %v2565
      %v2567 = vpop.f32.mrb[0].mxu0
      %2568 = vmatprep.mubr.f32.mxu0 0.0
      %2569 = vmatmul.mubr.f32.gmra.mrb[0].mxu0 %v743
      %v2570 = vpop.f32.mrb[0].mxu0
      %v2571 = vadd.f32 0.0, %v2570
      %v2572 = vpop.f32.mrb[0].mxu0
      %2573 = vmatprep.mubr.f32.mxu0 0.0
      %2574 = vmatmul.mubr.f32.gmra.mrb[0].mxu0 %v745
      %v2575 = vpop.f32.mrb[0].mxu0
      %v2576 = vadd.f32 0.0, %v2575
      %v2577 = vpop.f32.mrb[0].mxu0
      %2578 = vmatprep.mubr.f32.mxu0 0.0
      %2579 = vmatmul.mubr.f32.gmra.mrb[0].mxu0 %v747
      %v2580 = vpop.f32.mrb[0].mxu0
      %v2581 = vadd.f32 0.0, %v2580
      %v2582 = vpop.f32.mrb[0].mxu0
      %2583 = vmatprep.mubr.f32.mxu0 0.0
      %2584 = vmatmul.mubr.f32.gmra.mrb[0].mxu0 %v749
      %v2585 = vpop.f32.mrb[0].mxu0
      %v2586 = vadd.f32 0.0, %v2585
      %v2587 = vpop.f32.mrb[0].mxu0
      %2588 = vmatprep.mubr.f32.mxu0 0.0
      %2589 = vmatmul.mubr.f32.gmra.mrb[0].mxu0 %v751
      %v2590 = vpop.f32.mrb[0].mxu0
      %v2591 = vadd.f32 0.0, %v2590
      %v2592 = vpop.f32.mrb[0].mxu0
      %2593 = vmatprep.mubr.f32.mxu0 0.0
      %2594 = vmatmul.mubr.f32.gmra.mrb[0].mxu0 %v753
      %v2595 = vpop.f32.mrb[0].mxu0
      %v2596 = vadd.f32 0.0, %v2595
      %v2597 = vpop.f32.mrb[0].mxu0
      %2598 = vmatprep.mubr.f32.mxu0 0.0
      %2599 = vmatmul.mubr.f32.gmra.mrb[0].mxu0 %v755
      %v2600 = vpop.f32.mrb[0].mxu0
      %v2601 = vadd.f32 0.0, %v2600
      %v2602 = vpop.f32.mrb[0].mxu0
      %2603 = vmatprep.mubr.f32.mxu0 0.0
      %2604 = vmatmul.mubr.f32.gmra.mrb[0].mxu0 %v757
      %v2605 = vpop.f32.mrb[0].mxu0
      %v2606 = vadd.f32 0.0, %v2605
      %v2607 = vpop.f32.mrb[0].mxu0
      %2608 = vmatprep.mubr.f32.mxu0 0.0
      %2609 = vmatmul.mubr.f32.gmra.mrb[0].mxu0 %v759
      %v2610 = vpop.f32.mrb[0].mxu0
      %v2611 = vadd.f32 0.0, %v2610
      %v2612 = vpop.f32.mrb[0].mxu0
      %2613 = vmatprep.mubr.f32.mxu0 0.0
      %2614 = vmatmul.mubr.f32.gmra.mrb[0].mxu0 %v761
      %v2615 = vpop.f32.mrb[0].mxu0
      %v2616 = vadd.f32 0.0, %v2615
      %v2617 = vpop.f32.mrb[0].mxu0
      %2618 = vmatprep.mubr.f32.mxu0 0.0
      %2619 = vmatmul.mubr.f32.gmra.mrb[0].mxu0 %v2397
      %v2620 = vpop.f32.mrb[0].mxu0
      %v2621 = vadd.f32 0.0, %v2620
      %v2622 = vpop.f32.mrb[0].mxu0
      %2623 = vmatprep.mubr.f32.mxu0 0.0
      %2624 = vmatmul.mubr.f32.gmra.mrb[0].mxu0 %v2399
      %v2625 = vpop.f32.mrb[0].mxu0
      %v2626 = vadd.f32 0.0, %v2625
      %v2627 = vpop.f32.mrb[0].mxu0
      %2628 = vdwg.mxu0
      %v2629 = vadd.f32 %v2357, %v2471
      %v2630 = vadd.f32 %v2358, %v2476
      %v2631 = vadd.f32 %v2359, %v2481
      %v2632 = vadd.f32 %v2360, %v2486
      %v2633 = vadd.f32 %v2361, %v2491
      %v2634 = vadd.f32 %v2362, %v2496
      %v2635 = vadd.f32 %v2363, %v2501
      %v2636 = vadd.f32 %v2364, %v2506
      %v2637 = vadd.f32 %v2365, %v2511
      %v2638 = vadd.f32 %v2366, %v2516
      %v2639 = vadd.f32 %v2367, %v2521
      %v2640 = vadd.f32 %v2368, %v2526
      %v2641 = vadd.f32 %v2369, %v2531
      %v2642 = vadd.f32 %v2370, %v2536
      %v2643 = vadd.f32 %v2371, %v2541
      %v2644 = vadd.f32 %v2372, %v2546
      %v2645 = vadd.f32 %v2373, %v2551
      %v2646 = vadd.f32 %v2374, %v2556
      %v2647 = vadd.f32 %v2375, %v2561
      %v2648 = vadd.f32 %v2376, %v2566
      %v2649 = vadd.f32 %v2377, %v2571
      %v2650 = vadd.f32 %v2378, %v2576
      %v2651 = vadd.f32 %v2379, %v2581
      %v2652 = vadd.f32 %v2380, %v2586
      %v2653 = vadd.f32 %v2381, %v2591
      %v2654 = vadd.f32 %v2382, %v2596
      %v2655 = vadd.f32 %v2383, %v2601
      %v2656 = vadd.f32 %v2384, %v2606
      %v2657 = vadd.f32 %v2385, %v2611
      %v2658 = vadd.f32 %v2386, %v2616
      %v2659 = vadd.f32 %v2387, %v2621
      %v2660 = vadd.f32 %v2388, %v2626
      %v2661 = vmul.f32 %v305, %v1445
      %v2662 = vmul.f32 %v306, %v1447
      %v2663 = vmul.f32 %v307, %v1449
      %v2664 = vmul.f32 %v308, %v1451
      %v2665 = vmul.f32 %v309, %v1453
      %v2666 = vmul.f32 %v310, %v1455
      %v2667 = vmul.f32 %v311, %v1457
      %v2668 = vmul.f32 %v312, %v1459
      %v2669 = vmul.f32 %v313, %v1461
      %v2670 = vmul.f32 %v314, %v1463
      %v2671 = vmul.f32 %v315, %v1465
      %v2672 = vmul.f32 %v316, %v1467
      %v2673 = vmul.f32 %v317, %v1469
      %v2674 = vmul.f32 %v318, %v1471
      %v2675 = vmul.f32 %v319, %v1473
      %v2676 = vmul.f32 %v320, %v1475
      %v2677 = vmul.f32 %v321, %v1477
      %v2678 = vmul.f32 %v322, %v1479
      %v2679 = vmul.f32 %v323, %v1481
      %v2680 = vmul.f32 %v324, %v1483
      %v2681 = vmul.f32 %v325, %v1485
      %v2682 = vmul.f32 %v326, %v1487
      %v2683 = vmul.f32 %v327, %v1489
      %v2684 = vmul.f32 %v328, %v1491
      %v2685 = vmul.f32 %v329, %v1493
      %v2686 = vmul.f32 %v330, %v1495
      %v2687 = vmul.f32 %v331, %v1497
      %v2688 = vmul.f32 %v332, %v1499
      %v2689 = vmul.f32 %v333, %v1501
      %v2690 = vmul.f32 %v334, %v1503
      %v2691 = vmul.f32 %v335, %v1505
      %v2692 = vmul.f32 %v336, %v1507
      %v2693 = vmul.f32 %v337, %v1506
      %s2694 = scalar_lea.vmem %s1, 20
      %v2695 = vld [vmem:[%s2694] sm:$0xf]
      %v2729 = vrot.slane %v2661, 2
      %v2730 = vrot.slane %v2662, 2
      %v2731 = vsel %vm1609, %v2729, %v2730
      %v2732 = vrot.slane %v2663, 2
      %v2733 = vsel %vm1609, %v2730, %v2732
      %v2734 = vrot.slane %v2664, 2
      %v2735 = vsel %vm1609, %v2732, %v2734
      %v2736 = vrot.slane %v2665, 2
      %v2737 = vsel %vm1609, %v2734, %v2736
      %v2738 = vrot.slane %v2666, 2
      %v2739 = vsel %vm1609, %v2736, %v2738
      %v2740 = vrot.slane %v2667, 2
      %v2741 = vsel %vm1609, %v2738, %v2740
      %v2742 = vrot.slane %v2668, 2
      %v2743 = vsel %vm1609, %v2740, %v2742
      %v2744 = vrot.slane %v2669, 2
      %v2745 = vsel %vm1609, %v2742, %v2744
      %v2746 = vrot.slane %v2670, 2
      %v2747 = vsel %vm1609, %v2744, %v2746
      %v2748 = vrot.slane %v2671, 2
      %v2749 = vsel %vm1609, %v2746, %v2748
      %v2750 = vrot.slane %v2672, 2
      %v2751 = vsel %vm1609, %v2748, %v2750
      %v2752 = vrot.slane %v2673, 2
      %v2753 = vsel %vm1609, %v2750, %v2752
      %v2754 = vrot.slane %v2674, 2
      %v2755 = vsel %vm1609, %v2752, %v2754
      %v2756 = vrot.slane %v2675, 2
      %v2757 = vsel %vm1609, %v2754, %v2756
      %v2758 = vrot.slane %v2676, 2
      %v2759 = vsel %vm1609, %v2756, %v2758
      %v2760 = vrot.slane %v2677, 2
      %v2761 = vsel %vm1609, %v2758, %v2760
      %v2762 = vrot.slane %v2678, 2
      %v2763 = vsel %vm1609, %v2760, %v2762
      %v2764 = vrot.slane %v2679, 2
      %v2765 = vsel %vm1609, %v2762, %v2764
      %v2766 = vrot.slane %v2680, 2
      %v2767 = vsel %vm1609, %v2764, %v2766
      %v2768 = vrot.slane %v2681, 2
      %v2769 = vsel %vm1609, %v2766, %v2768
      %v2770 = vrot.slane %v2682, 2
      %v2771 = vsel %vm1609, %v2768, %v2770
      %v2772 = vrot.slane %v2683, 2
      %v2773 = vsel %vm1609, %v2770, %v2772
      %v2774 = vrot.slane %v2684, 2
      %v2775 = vsel %vm1609, %v2772, %v2774
      %v2776 = vrot.slane %v2685, 2
      %v2777 = vsel %vm1609, %v2774, %v2776
      %v2778 = vrot.slane %v2686, 2
      %v2779 = vsel %vm1609, %v2776, %v2778
      %v2780 = vrot.slane %v2687, 2
      %v2781 = vsel %vm1609, %v2778, %v2780
      %v2782 = vrot.slane %v2688, 2
      %v2783 = vsel %vm1609, %v2780, %v2782
      %v2784 = vrot.slane %v2689, 2
      %v2785 = vsel %vm1609, %v2782, %v2784
      %v2786 = vrot.slane %v2690, 2
      %v2787 = vsel %vm1609, %v2784, %v2786
      %v2788 = vrot.slane %v2691, 2
      %v2789 = vsel %vm1609, %v2786, %v2788
      %v2790 = vrot.slane %v2692, 2
      %v2791 = vsel %vm1609, %v2788, %v2790
      %v2792 = vrot.slane %v2693, 2
      %v2793 = vsel %vm1609, %v2790, %v2792
      %v2794 = vsel %vm698, %v2731, 0
      %v2796 = vsel %vm698, %v2733, 0
      %v2798 = vsel %vm698, %v2735, 0
      %v2800 = vsel %vm698, %v2737, 0
      %v2802 = vsel %vm698, %v2739, 0
      %v2804 = vsel %vm698, %v2741, 0
      %v2806 = vsel %vm698, %v2743, 0
      %v2808 = vsel %vm698, %v2745, 0
      %v2810 = vsel %vm698, %v2747, 0
      %v2812 = vsel %vm698, %v2749, 0
      %v2814 = vsel %vm698, %v2751, 0
      %v2816 = vsel %vm698, %v2753, 0
      %v2818 = vsel %vm698, %v2755, 0
      %v2820 = vsel %vm698, %v2757, 0
      %v2822 = vsel %vm698, %v2759, 0
      %v2824 = vsel %vm698, %v2761, 0
      %v2826 = vsel %vm698, %v2763, 0
      %v2828 = vsel %vm698, %v2765, 0
      %v2830 = vsel %vm698, %v2767, 0
      %v2832 = vsel %vm698, %v2769, 0
      %v2834 = vsel %vm698, %v2771, 0
      %v2836 = vsel %vm698, %v2773, 0
      %v2838 = vsel %vm698, %v2775, 0
      %v2840 = vsel %vm698, %v2777, 0
      %v2842 = vsel %vm698, %v2779, 0
      %v2844 = vsel %vm698, %v2781, 0
      %v2846 = vsel %vm698, %v2783, 0
      %v2848 = vsel %vm698, %v2785, 0
      %v2850 = vsel %vm698, %v2787, 0
      %v2852 = vsel %vm698, %v2789, 0
      %v2854 = vsel %vm698, %v2791, 0
      %v2856 = vsel %vm698, %v2793, 0
      %v2859 = vsel %vm763, %v2695, 0
      %2861 = vmatprep.subr.mxu0 0.0
      %2862 = vmatpush1.msra.mxu0 %v2859
      %2863 = vmatprep.subr.mxu0 0.0
      %2864 = vmatpush1.msra.mxu0 0.0
      %2865 = vmatprep.subr.mxu0 0.0
      %2866 = vmatpush1.msra.mxu0 0.0
      %2867 = vmatprep.subr.mxu0 0.0
      %2868 = vmatpush1.msra.mxu0 0.0
      %2869 = vmatprep.subr.mxu0 0.0
      %2870 = vmatpush1.msra.mxu0 0.0
      %2871 = vmatprep.subr.mxu0 0.0
      %2872 = vmatpush1.msra.mxu0 0.0
      %2873 = vmatprep.subr.mxu0 0.0
      %2874 = vmatpush1.msra.mxu0 0.0
      %2875 = vmatprep.subr.mxu0 0.0
      %2876 = vmatpush1.msra.mxu0 0.0
      %2877 = vmatprep.subr.mxu0 0.0
      %2878 = vmatpush1.msra.mxu0 0.0
      %2879 = vmatprep.subr.mxu0 0.0
      %2880 = vmatpush1.msra.mxu0 0.0
      %2881 = vmatprep.subr.mxu0 0.0
      %2882 = vmatpush1.msra.mxu0 0.0
      %2883 = vmatprep.subr.mxu0 0.0
      %2884 = vmatpush1.msra.mxu0 0.0
      %2885 = vmatprep.subr.mxu0 0.0
      %2886 = vmatpush1.msra.mxu0 0.0
      %2887 = vmatprep.subr.mxu0 0.0
      %2888 = vmatpush1.msra.mxu0 0.0
      %2889 = vmatprep.subr.mxu0 0.0
      %2890 = vmatpush1.msra.mxu0 0.0
      %2891 = vmatprep.subr.mxu0 0.0
      %2892 = vmatpush1.msra.mxu0 0.0
      %2893 = vmatprep.subr.mxu0 0.0
      %2894 = vmatpush1.msra.mxu0 0.0
      %2895 = vmatprep.subr.mxu0 0.0
      %2896 = vmatpush1.msra.mxu0 0.0
      %2897 = vmatprep.subr.mxu0 0.0
      %2898 = vmatpush1.msra.mxu0 0.0
      %2899 = vmatprep.subr.mxu0 0.0
      %2900 = vmatpush1.msra.mxu0 0.0
      %2901 = vmatprep.subr.mxu0 0.0
      %2902 = vmatpush1.msra.mxu0 0.0
      %2903 = vmatprep.subr.mxu0 0.0
      %2904 = vmatpush1.msra.mxu0 0.0
      %2905 = vmatprep.subr.mxu0 0.0
      %2906 = vmatpush1.msra.mxu0 0.0
      %2907 = vmatprep.subr.mxu0 0.0
      %2908 = vmatpush1.msra.mxu0 0.0
      %2909 = vmatprep.subr.mxu0 0.0
      %2910 = vmatpush1.msra.mxu0 0.0
      %2911 = vmatprep.subr.mxu0 0.0
      %2912 = vmatpush1.msra.mxu0 0.0
      %2913 = vmatprep.subr.mxu0 0.0
      %2914 = vmatpush1.msra.mxu0 0.0
      %2915 = vmatprep.subr.mxu0 0.0
      %2916 = vmatpush1.msra.mxu0 0.0
      %2917 = vmatprep.subr.mxu0 0.0
      %2918 = vmatpush1.msra.mxu0 0.0
      %2919 = vmatprep.subr.mxu0 0.0
      %2920 = vmatpush1.msra.mxu0 0.0
      %2921 = vmatprep.subr.mxu0 0.0
      %2922 = vmatpush1.msra.mxu0 0.0
      %2923 = vmatprep.subr.mxu0 0.0
      %2924 = vmatpush1.msra.mxu0 0.0
      %2925 = vmatprep.mubr.f32.mxu0 0.0
      %2926 = vmatmul.mubr.f32.gmra.mrb[0].mxu0 %v2794
      %v2927 = vpop.f32.mrb[0].mxu0
      %v2928 = vadd.f32 0.0, %v2927
      %v2929 = vpop.f32.mrb[0].mxu0
      %2930 = vmatprep.mubr.f32.mxu0 0.0
      %2931 = vmatmul.mubr.f32.gmra.mrb[0].mxu0 %v2796
      %v2932 = vpop.f32.mrb[0].mxu0
      %v2933 = vadd.f32 0.0, %v2932
      %v2934 = vpop.f32.mrb[0].mxu0
      %2935 = vmatprep.mubr.f32.mxu0 0.0
      %2936 = vmatmul.mubr.f32.gmra.mrb[0].mxu0 %v2798
      %v2937 = vpop.f32.mrb[0].mxu0
      %v2938 = vadd.f32 0.0, %v2937
      %v2939 = vpop.f32.mrb[0].mxu0
      %2940 = vmatprep.mubr.f32.mxu0 0.0
      %2941 = vmatmul.mubr.f32.gmra.mrb[0].mxu0 %v2800
      %v2942 = vpop.f32.mrb[0].mxu0
      %v2943 = vadd.f32 0.0, %v2942
      %v2944 = vpop.f32.mrb[0].mxu0
      %2945 = vmatprep.mubr.f32.mxu0 0.0
      %2946 = vmatmul.mubr.f32.gmra.mrb[0].mxu0 %v2802
      %v2947 = vpop.f32.mrb[0].mxu0
      %v2948 = vadd.f32 0.0, %v2947
      %v2949 = vpop.f32.mrb[0].mxu0
      %2950 = vmatprep.mubr.f32.mxu0 0.0
      %2951 = vmatmul.mubr.f32.gmra.mrb[0].mxu0 %v2804
      %v2952 = vpop.f32.mrb[0].mxu0
      %v2953 = vadd.f32 0.0, %v2952
      %v2954 = vpop.f32.mrb[0].mxu0
      %2955 = vmatprep.mubr.f32.mxu0 0.0
      %2956 = vmatmul.mubr.f32.gmra.mrb[0].mxu0 %v2806
      %v2957 = vpop.f32.mrb[0].mxu0
      %v2958 = vadd.f32 0.0, %v2957
      %v2959 = vpop.f32.mrb[0].mxu0
      %2960 = vmatprep.mubr.f32.mxu0 0.0
      %2961 = vmatmul.mubr.f32.gmra.mrb[0].mxu0 %v2808
      %v2962 = vpop.f32.mrb[0].mxu0
      %v2963 = vadd.f32 0.0, %v2962
      %v2964 = vpop.f32.mrb[0].mxu0
      %2965 = vmatprep.mubr.f32.mxu0 0.0
      %2966 = vmatmul.mubr.f32.gmra.mrb[0].mxu0 %v2810
      %v2967 = vpop.f32.mrb[0].mxu0
      %v2968 = vadd.f32 0.0, %v2967
      %v2969 = vpop.f32.mrb[0].mxu0
      %2970 = vmatprep.mubr.f32.mxu0 0.0
      %2971 = vmatmul.mubr.f32.gmra.mrb[0].mxu0 %v2812
      %v2972 = vpop.f32.mrb[0].mxu0
      %v2973 = vadd.f32 0.0, %v2972
      %v2974 = vpop.f32.mrb[0].mxu0
      %2975 = vmatprep.mubr.f32.mxu0 0.0
      %2976 = vmatmul.mubr.f32.gmra.mrb[0].mxu0 %v2814
      %v2977 = vpop.f32.mrb[0].mxu0
      %v2978 = vadd.f32 0.0, %v2977
      %v2979 = vpop.f32.mrb[0].mxu0
      %2980 = vmatprep.mubr.f32.mxu0 0.0
      %2981 = vmatmul.mubr.f32.gmra.mrb[0].mxu0 %v2816
      %v2982 = vpop.f32.mrb[0].mxu0
      %v2983 = vadd.f32 0.0, %v2982
      %v2984 = vpop.f32.mrb[0].mxu0
      %2985 = vmatprep.mubr.f32.mxu0 0.0
      %2986 = vmatmul.mubr.f32.gmra.mrb[0].mxu0 %v2818
      %v2987 = vpop.f32.mrb[0].mxu0
      %v2988 = vadd.f32 0.0, %v2987
      %v2989 = vpop.f32.mrb[0].mxu0
      %2990 = vmatprep.mubr.f32.mxu0 0.0
      %2991 = vmatmul.mubr.f32.gmra.mrb[0].mxu0 %v2820
      %v2992 = vpop.f32.mrb[0].mxu0
      %v2993 = vadd.f32 0.0, %v2992
      %v2994 = vpop.f32.mrb[0].mxu0
      %2995 = vmatprep.mubr.f32.mxu0 0.0
      %2996 = vmatmul.mubr.f32.gmra.mrb[0].mxu0 %v2822
      %v2997 = vpop.f32.mrb[0].mxu0
      %v2998 = vadd.f32 0.0, %v2997
      %v2999 = vpop.f32.mrb[0].mxu0
      %3000 = vmatprep.mubr.f32.mxu0 0.0
      %3001 = vmatmul.mubr.f32.gmra.mrb[0].mxu0 %v2824
      %v3002 = vpop.f32.mrb[0].mxu0
      %v3003 = vadd.f32 0.0, %v3002
      %v3004 = vpop.f32.mrb[0].mxu0
      %3005 = vmatprep.mubr.f32.mxu0 0.0
      %3006 = vmatmul.mubr.f32.gmra.mrb[0].mxu0 %v2826
      %v3007 = vpop.f32.mrb[0].mxu0
      %v3008 = vadd.f32 0.0, %v3007
      %v3009 = vpop.f32.mrb[0].mxu0
      %3010 = vmatprep.mubr.f32.mxu0 0.0
      %3011 = vmatmul.mubr.f32.gmra.mrb[0].mxu0 %v2828
      %v3012 = vpop.f32.mrb[0].mxu0
      %v3013 = vadd.f32 0.0, %v3012
      %v3014 = vpop.f32.mrb[0].mxu0
      %3015 = vmatprep.mubr.f32.mxu0 0.0
      %3016 = vmatmul.mubr.f32.gmra.mrb[0].mxu0 %v2830
      %v3017 = vpop.f32.mrb[0].mxu0
      %v3018 = vadd.f32 0.0, %v3017
      %v3019 = vpop.f32.mrb[0].mxu0
      %3020 = vmatprep.mubr.f32.mxu0 0.0
      %3021 = vmatmul.mubr.f32.gmra.mrb[0].mxu0 %v2832
      %v3022 = vpop.f32.mrb[0].mxu0
      %v3023 = vadd.f32 0.0, %v3022
      %v3024 = vpop.f32.mrb[0].mxu0
      %3025 = vmatprep.mubr.f32.mxu0 0.0
      %3026 = vmatmul.mubr.f32.gmra.mrb[0].mxu0 %v2834
      %v3027 = vpop.f32.mrb[0].mxu0
      %v3028 = vadd.f32 0.0, %v3027
      %v3029 = vpop.f32.mrb[0].mxu0
      %3030 = vmatprep.mubr.f32.mxu0 0.0
      %3031 = vmatmul.mubr.f32.gmra.mrb[0].mxu0 %v2836
      %v3032 = vpop.f32.mrb[0].mxu0
      %v3033 = vadd.f32 0.0, %v3032
      %v3034 = vpop.f32.mrb[0].mxu0
      %3035 = vmatprep.mubr.f32.mxu0 0.0
      %3036 = vmatmul.mubr.f32.gmra.mrb[0].mxu0 %v2838
      %v3037 = vpop.f32.mrb[0].mxu0
      %v3038 = vadd.f32 0.0, %v3037
      %v3039 = vpop.f32.mrb[0].mxu0
      %3040 = vmatprep.mubr.f32.mxu0 0.0
      %3041 = vmatmul.mubr.f32.gmra.mrb[0].mxu0 %v2840
      %v3042 = vpop.f32.mrb[0].mxu0
      %v3043 = vadd.f32 0.0, %v3042
      %v3044 = vpop.f32.mrb[0].mxu0
      %3045 = vmatprep.mubr.f32.mxu0 0.0
      %3046 = vmatmul.mubr.f32.gmra.mrb[0].mxu0 %v2842
      %v3047 = vpop.f32.mrb[0].mxu0
      %v3048 = vadd.f32 0.0, %v3047
      %v3049 = vpop.f32.mrb[0].mxu0
      %3050 = vmatprep.mubr.f32.mxu0 0.0
      %3051 = vmatmul.mubr.f32.gmra.mrb[0].mxu0 %v2844
      %v3052 = vpop.f32.mrb[0].mxu0
      %v3053 = vadd.f32 0.0, %v3052
      %v3054 = vpop.f32.mrb[0].mxu0
      %3055 = vmatprep.mubr.f32.mxu0 0.0
      %3056 = vmatmul.mubr.f32.gmra.mrb[0].mxu0 %v2846
      %v3057 = vpop.f32.mrb[0].mxu0
      %v3058 = vadd.f32 0.0, %v3057
      %v3059 = vpop.f32.mrb[0].mxu0
      %3060 = vmatprep.mubr.f32.mxu0 0.0
      %3061 = vmatmul.mubr.f32.gmra.mrb[0].mxu0 %v2848
      %v3062 = vpop.f32.mrb[0].mxu0
      %v3063 = vadd.f32 0.0, %v3062
      %v3064 = vpop.f32.mrb[0].mxu0
      %3065 = vmatprep.mubr.f32.mxu0 0.0
      %3066 = vmatmul.mubr.f32.gmra.mrb[0].mxu0 %v2850
      %v3067 = vpop.f32.mrb[0].mxu0
      %v3068 = vadd.f32 0.0, %v3067
      %v3069 = vpop.f32.mrb[0].mxu0
      %3070 = vmatprep.mubr.f32.mxu0 0.0
      %3071 = vmatmul.mubr.f32.gmra.mrb[0].mxu0 %v2852
      %v3072 = vpop.f32.mrb[0].mxu0
      %v3073 = vadd.f32 0.0, %v3072
      %v3074 = vpop.f32.mrb[0].mxu0
      %3075 = vmatprep.mubr.f32.mxu0 0.0
      %3076 = vmatmul.mubr.f32.gmra.mrb[0].mxu0 %v2854
      %v3077 = vpop.f32.mrb[0].mxu0
      %v3078 = vadd.f32 0.0, %v3077
      %v3079 = vpop.f32.mrb[0].mxu0
      %3080 = vmatprep.mubr.f32.mxu0 0.0
      %3081 = vmatmul.mubr.f32.gmra.mrb[0].mxu0 %v2856
      %v3082 = vpop.f32.mrb[0].mxu0
      %v3083 = vadd.f32 0.0, %v3082
      %v3084 = vpop.f32.mrb[0].mxu0
      %3085 = vdwg.mxu0
      %v3086 = vadd.f32 %v2629, %v2928
      %v3087 = vadd.f32 %v2630, %v2933
      %v3088 = vadd.f32 %v2631, %v2938
      %v3089 = vadd.f32 %v2632, %v2943
      %v3090 = vadd.f32 %v2633, %v2948
      %v3091 = vadd.f32 %v2634, %v2953
      %v3092 = vadd.f32 %v2635, %v2958
      %v3093 = vadd.f32 %v2636, %v2963
      %v3094 = vadd.f32 %v2637, %v2968
      %v3095 = vadd.f32 %v2638, %v2973
      %v3096 = vadd.f32 %v2639, %v2978
      %v3097 = vadd.f32 %v2640, %v2983
      %v3098 = vadd.f32 %v2641, %v2988
      %v3099 = vadd.f32 %v2642, %v2993
      %v3100 = vadd.f32 %v2643, %v2998
      %v3101 = vadd.f32 %v2644, %v3003
      %v3102 = vadd.f32 %v2645, %v3008
      %v3103 = vadd.f32 %v2646, %v3013
      %v3104 = vadd.f32 %v2647, %v3018
      %v3105 = vadd.f32 %v2648, %v3023
      %v3106 = vadd.f32 %v2649, %v3028
      %v3107 = vadd.f32 %v2650, %v3033
      %v3108 = vadd.f32 %v2651, %v3038
      %v3109 = vadd.f32 %v2652, %v3043
      %v3110 = vadd.f32 %v2653, %v3048
      %v3111 = vadd.f32 %v2654, %v3053
      %v3112 = vadd.f32 %v2655, %v3058
      %v3113 = vadd.f32 %v2656, %v3063
      %v3114 = vadd.f32 %v2657, %v3068
      %v3115 = vadd.f32 %v2658, %v3073
      %v3116 = vadd.f32 %v2659, %v3078
      %v3117 = vadd.f32 %v2660, %v3083
      %v3118 = vmul.f32 %v307, %v407
      %v3119 = vmul.f32 %v308, %v412
      %v3120 = vmul.f32 %v309, %v417
      %v3121 = vmul.f32 %v310, %v422
      %v3122 = vmul.f32 %v311, %v427
      %v3123 = vmul.f32 %v312, %v432
      %v3124 = vmul.f32 %v313, %v437
      %v3125 = vmul.f32 %v314, %v442
      %v3126 = vmul.f32 %v315, %v447
      %v3127 = vmul.f32 %v316, %v452
      %v3128 = vmul.f32 %v317, %v457
      %v3129 = vmul.f32 %v318, %v462
      %v3130 = vmul.f32 %v319, %v467
      %v3131 = vmul.f32 %v320, %v472
      %v3132 = vmul.f32 %v321, %v477
      %v3133 = vmul.f32 %v322, %v482
      %v3134 = vmul.f32 %v323, %v487
      %v3135 = vmul.f32 %v324, %v492
      %v3136 = vmul.f32 %v325, %v497
      %v3137 = vmul.f32 %v326, %v502
      %v3138 = vmul.f32 %v327, %v507
      %v3139 = vmul.f32 %v328, %v512
      %v3140 = vmul.f32 %v329, %v517
      %v3141 = vmul.f32 %v330, %v522
      %v3142 = vmul.f32 %v331, %v527
      %v3143 = vmul.f32 %v332, %v532
      %v3144 = vmul.f32 %v333, %v537
      %v3145 = vmul.f32 %v334, %v542
      %v3146 = vmul.f32 %v335, %v547
      %v3147 = vmul.f32 %v336, %v552
      %v3148 = vmul.f32 %v337, %v557
      %v3149 = vmul.f32 %v338, %v562
      %s3150 = scalar_lea.vmem %s1, 24
      %v3151 = vld [vmem:[%s3150] sm:$0xf]
      %v3153 = vsel %vm698, %v3118, 0
      %v3156 = vsel %vm698, %v3119, 0
      %v3159 = vsel %vm698, %v3120, 0
      %v3162 = vsel %vm698, %v3121, 0
      %v3165 = vsel %vm698, %v3122, 0
      %v3168 = vsel %vm698, %v3123, 0
      %v3171 = vsel %vm698, %v3124, 0
      %v3174 = vsel %vm698, %v3125, 0
      %v3177 = vsel %vm698, %v3126, 0
      %v3180 = vsel %vm698, %v3127, 0
      %v3183 = vsel %vm698, %v3128, 0
      %v3186 = vsel %vm698, %v3129, 0
      %v3189 = vsel %vm698, %v3130, 0
      %v3192 = vsel %vm698, %v3131, 0
      %v3195 = vsel %vm698, %v3132, 0
      %v3198 = vsel %vm698, %v3133, 0
      %v3201 = vsel %vm698, %v3134, 0
      %v3204 = vsel %vm698, %v3135, 0
      %v3207 = vsel %vm698, %v3136, 0
      %v3210 = vsel %vm698, %v3137, 0
      %v3213 = vsel %vm698, %v3138, 0
      %v3216 = vsel %vm698, %v3139, 0
      %v3219 = vsel %vm698, %v3140, 0
      %v3222 = vsel %vm698, %v3141, 0
      %v3225 = vsel %vm698, %v3142, 0
      %v3228 = vsel %vm698, %v3143, 0
      %v3231 = vsel %vm698, %v3144, 0
      %v3234 = vsel %vm698, %v3145, 0
      %v3237 = vsel %vm698, %v3146, 0
      %v3240 = vsel %vm698, %v3147, 0
      %v3243 = vsel %vm698, %v3148, 0
      %v3246 = vsel %vm698, %v3149, 0
      %v3249 = vsel %vm763, %v3151, 0
      %3251 = vmatprep.subr.mxu0 0.0
      %3252 = vmatpush1.msra.mxu0 %v3249
      %3253 = vmatprep.subr.mxu0 0.0
      %3254 = vmatpush1.msra.mxu0 0.0
      %3255 = vmatprep.subr.mxu0 0.0
      %3256 = vmatpush1.msra.mxu0 0.0
      %3257 = vmatprep.subr.mxu0 0.0
      %3258 = vmatpush1.msra.mxu0 0.0
      %3259 = vmatprep.subr.mxu0 0.0
      %3260 = vmatpush1.msra.mxu0 0.0
      %3261 = vmatprep.subr.mxu0 0.0
      %3262 = vmatpush1.msra.mxu0 0.0
      %3263 = vmatprep.subr.mxu0 0.0
      %3264 = vmatpush1.msra.mxu0 0.0
      %3265 = vmatprep.subr.mxu0 0.0
      %3266 = vmatpush1.msra.mxu0 0.0
      %3267 = vmatprep.subr.mxu0 0.0
      %3268 = vmatpush1.msra.mxu0 0.0
      %3269 = vmatprep.subr.mxu0 0.0
      %3270 = vmatpush1.msra.mxu0 0.0
      %3271 = vmatprep.subr.mxu0 0.0
      %3272 = vmatpush1.msra.mxu0 0.0
      %3273 = vmatprep.subr.mxu0 0.0
      %3274 = vmatpush1.msra.mxu0 0.0
      %3275 = vmatprep.subr.mxu0 0.0
      %3276 = vmatpush1.msra.mxu0 0.0
      %3277 = vmatprep.subr.mxu0 0.0
      %3278 = vmatpush1.msra.mxu0 0.0
      %3279 = vmatprep.subr.mxu0 0.0
      %3280 = vmatpush1.msra.mxu0 0.0
      %3281 = vmatprep.subr.mxu0 0.0
      %3282 = vmatpush1.msra.mxu0 0.0
      %3283 = vmatprep.subr.mxu0 0.0
      %3284 = vmatpush1.msra.mxu0 0.0
      %3285 = vmatprep.subr.mxu0 0.0
      %3286 = vmatpush1.msra.mxu0 0.0
      %3287 = vmatprep.subr.mxu0 0.0
      %3288 = vmatpush1.msra.mxu0 0.0
      %3289 = vmatprep.subr.mxu0 0.0
      %3290 = vmatpush1.msra.mxu0 0.0
      %3291 = vmatprep.subr.mxu0 0.0
      %3292 = vmatpush1.msra.mxu0 0.0
      %3293 = vmatprep.subr.mxu0 0.0
      %3294 = vmatpush1.msra.mxu0 0.0
      %3295 = vmatprep.subr.mxu0 0.0
      %3296 = vmatpush1.msra.mxu0 0.0
      %3297 = vmatprep.subr.mxu0 0.0
      %3298 = vmatpush1.msra.mxu0 0.0
      %3299 = vmatprep.subr.mxu0 0.0
      %3300 = vmatpush1.msra.mxu0 0.0
      %3301 = vmatprep.subr.mxu0 0.0
      %3302 = vmatpush1.msra.mxu0 0.0
      %3303 = vmatprep.subr.mxu0 0.0
      %3304 = vmatpush1.msra.mxu0 0.0
      %3305 = vmatprep.subr.mxu0 0.0
      %3306 = vmatpush1.msra.mxu0 0.0
      %3307 = vmatprep.subr.mxu0 0.0
      %3308 = vmatpush1.msra.mxu0 0.0
      %3309 = vmatprep.subr.mxu0 0.0
      %3310 = vmatpush1.msra.mxu0 0.0
      %3311 = vmatprep.subr.mxu0 0.0
      %3312 = vmatpush1.msra.mxu0 0.0
      %3313 = vmatprep.subr.mxu0 0.0
      %3314 = vmatpush1.msra.mxu0 0.0
      %3315 = vmatprep.mubr.f32.mxu0 0.0
      %3316 = vmatmul.mubr.f32.gmra.mrb[0].mxu0 %v3153
      %v3317 = vpop.f32.mrb[0].mxu0
      %v3318 = vadd.f32 0.0, %v3317
      %v3319 = vpop.f32.mrb[0].mxu0
      %3320 = vmatprep.mubr.f32.mxu0 0.0
      %3321 = vmatmul.mubr.f32.gmra.mrb[0].mxu0 %v3156
      %v3322 = vpop.f32.mrb[0].mxu0
      %v3323 = vadd.f32 0.0, %v3322
      %v3324 = vpop.f32.mrb[0].mxu0
      %3325 = vmatprep.mubr.f32.mxu0 0.0
      %3326 = vmatmul.mubr.f32.gmra.mrb[0].mxu0 %v3159
      %v3327 = vpop.f32.mrb[0].mxu0
      %v3328 = vadd.f32 0.0, %v3327
      %v3329 = vpop.f32.mrb[0].mxu0
      %3330 = vmatprep.mubr.f32.mxu0 0.0
      %3331 = vmatmul.mubr.f32.gmra.mrb[0].mxu0 %v3162
      %v3332 = vpop.f32.mrb[0].mxu0
      %v3333 = vadd.f32 0.0, %v3332
      %v3334 = vpop.f32.mrb[0].mxu0
      %3335 = vmatprep.mubr.f32.mxu0 0.0
      %3336 = vmatmul.mubr.f32.gmra.mrb[0].mxu0 %v3165
      %v3337 = vpop.f32.mrb[0].mxu0
      %v3338 = vadd.f32 0.0, %v3337
      %v3339 = vpop.f32.mrb[0].mxu0
      %3340 = vmatprep.mubr.f32.mxu0 0.0
      %3341 = vmatmul.mubr.f32.gmra.mrb[0].mxu0 %v3168
      %v3342 = vpop.f32.mrb[0].mxu0
      %v3343 = vadd.f32 0.0, %v3342
      %v3344 = vpop.f32.mrb[0].mxu0
      %3345 = vmatprep.mubr.f32.mxu0 0.0
      %3346 = vmatmul.mubr.f32.gmra.mrb[0].mxu0 %v3171
      %v3347 = vpop.f32.mrb[0].mxu0
      %v3348 = vadd.f32 0.0, %v3347
      %v3349 = vpop.f32.mrb[0].mxu0
      %3350 = vmatprep.mubr.f32.mxu0 0.0
      %3351 = vmatmul.mubr.f32.gmra.mrb[0].mxu0 %v3174
      %v3352 = vpop.f32.mrb[0].mxu0
      %v3353 = vadd.f32 0.0, %v3352
      %v3354 = vpop.f32.mrb[0].mxu0
      %3355 = vmatprep.mubr.f32.mxu0 0.0
      %3356 = vmatmul.mubr.f32.gmra.mrb[0].mxu0 %v3177
      %v3357 = vpop.f32.mrb[0].mxu0
      %v3358 = vadd.f32 0.0, %v3357
      %v3359 = vpop.f32.mrb[0].mxu0
      %3360 = vmatprep.mubr.f32.mxu0 0.0
      %3361 = vmatmul.mubr.f32.gmra.mrb[0].mxu0 %v3180
      %v3362 = vpop.f32.mrb[0].mxu0
      %v3363 = vadd.f32 0.0, %v3362
      %v3364 = vpop.f32.mrb[0].mxu0
      %3365 = vmatprep.mubr.f32.mxu0 0.0
      %3366 = vmatmul.mubr.f32.gmra.mrb[0].mxu0 %v3183
      %v3367 = vpop.f32.mrb[0].mxu0
      %v3368 = vadd.f32 0.0, %v3367
      %v3369 = vpop.f32.mrb[0].mxu0
      %3370 = vmatprep.mubr.f32.mxu0 0.0
      %3371 = vmatmul.mubr.f32.gmra.mrb[0].mxu0 %v3186
      %v3372 = vpop.f32.mrb[0].mxu0
      %v3373 = vadd.f32 0.0, %v3372
      %v3374 = vpop.f32.mrb[0].mxu0
      %3375 = vmatprep.mubr.f32.mxu0 0.0
      %3376 = vmatmul.mubr.f32.gmra.mrb[0].mxu0 %v3189
      %v3377 = vpop.f32.mrb[0].mxu0
      %v3378 = vadd.f32 0.0, %v3377
      %v3379 = vpop.f32.mrb[0].mxu0
      %3380 = vmatprep.mubr.f32.mxu0 0.0
      %3381 = vmatmul.mubr.f32.gmra.mrb[0].mxu0 %v3192
      %v3382 = vpop.f32.mrb[0].mxu0
      %v3383 = vadd.f32 0.0, %v3382
      %v3384 = vpop.f32.mrb[0].mxu0
      %3385 = vmatprep.mubr.f32.mxu0 0.0
      %3386 = vmatmul.mubr.f32.gmra.mrb[0].mxu0 %v3195
      %v3387 = vpop.f32.mrb[0].mxu0
      %v3388 = vadd.f32 0.0, %v3387
      %v3389 = vpop.f32.mrb[0].mxu0
      %3390 = vmatprep.mubr.f32.mxu0 0.0
      %3391 = vmatmul.mubr.f32.gmra.mrb[0].mxu0 %v3198
      %v3392 = vpop.f32.mrb[0].mxu0
      %v3393 = vadd.f32 0.0, %v3392
      %v3394 = vpop.f32.mrb[0].mxu0
      %3395 = vmatprep.mubr.f32.mxu0 0.0
      %3396 = vmatmul.mubr.f32.gmra.mrb[0].mxu0 %v3201
      %v3397 = vpop.f32.mrb[0].mxu0
      %v3398 = vadd.f32 0.0, %v3397
      %v3399 = vpop.f32.mrb[0].mxu0
      %3400 = vmatprep.mubr.f32.mxu0 0.0
      %3401 = vmatmul.mubr.f32.gmra.mrb[0].mxu0 %v3204
      %v3402 = vpop.f32.mrb[0].mxu0
      %v3403 = vadd.f32 0.0, %v3402
      %v3404 = vpop.f32.mrb[0].mxu0
      %3405 = vmatprep.mubr.f32.mxu0 0.0
      %3406 = vmatmul.mubr.f32.gmra.mrb[0].mxu0 %v3207
      %v3407 = vpop.f32.mrb[0].mxu0
      %v3408 = vadd.f32 0.0, %v3407
      %v3409 = vpop.f32.mrb[0].mxu0
      %3410 = vmatprep.mubr.f32.mxu0 0.0
      %3411 = vmatmul.mubr.f32.gmra.mrb[0].mxu0 %v3210
      %v3412 = vpop.f32.mrb[0].mxu0
      %v3413 = vadd.f32 0.0, %v3412
      %v3414 = vpop.f32.mrb[0].mxu0
      %3415 = vmatprep.mubr.f32.mxu0 0.0
      %3416 = vmatmul.mubr.f32.gmra.mrb[0].mxu0 %v3213
      %v3417 = vpop.f32.mrb[0].mxu0
      %v3418 = vadd.f32 0.0, %v3417
      %v3419 = vpop.f32.mrb[0].mxu0
      %3420 = vmatprep.mubr.f32.mxu0 0.0
      %3421 = vmatmul.mubr.f32.gmra.mrb[0].mxu0 %v3216
      %v3422 = vpop.f32.mrb[0].mxu0
      %v3423 = vadd.f32 0.0, %v3422
      %v3424 = vpop.f32.mrb[0].mxu0
      %3425 = vmatprep.mubr.f32.mxu0 0.0
      %3426 = vmatmul.mubr.f32.gmra.mrb[0].mxu0 %v3219
      %v3427 = vpop.f32.mrb[0].mxu0
      %v3428 = vadd.f32 0.0, %v3427
      %v3429 = vpop.f32.mrb[0].mxu0
      %3430 = vmatprep.mubr.f32.mxu0 0.0
      %3431 = vmatmul.mubr.f32.gmra.mrb[0].mxu0 %v3222
      %v3432 = vpop.f32.mrb[0].mxu0
      %v3433 = vadd.f32 0.0, %v3432
      %v3434 = vpop.f32.mrb[0].mxu0
      %3435 = vmatprep.mubr.f32.mxu0 0.0
      %3436 = vmatmul.mubr.f32.gmra.mrb[0].mxu0 %v3225
      %v3437 = vpop.f32.mrb[0].mxu0
      %v3438 = vadd.f32 0.0, %v3437
      %v3439 = vpop.f32.mrb[0].mxu0
      %3440 = vmatprep.mubr.f32.mxu0 0.0
      %3441 = vmatmul.mubr.f32.gmra.mrb[0].mxu0 %v3228
      %v3442 = vpop.f32.mrb[0].mxu0
      %v3443 = vadd.f32 0.0, %v3442
      %v3444 = vpop.f32.mrb[0].mxu0
      %3445 = vmatprep.mubr.f32.mxu0 0.0
      %3446 = vmatmul.mubr.f32.gmra.mrb[0].mxu0 %v3231
      %v3447 = vpop.f32.mrb[0].mxu0
      %v3448 = vadd.f32 0.0, %v3447
      %v3449 = vpop.f32.mrb[0].mxu0
      %3450 = vmatprep.mubr.f32.mxu0 0.0
      %3451 = vmatmul.mubr.f32.gmra.mrb[0].mxu0 %v3234
      %v3452 = vpop.f32.mrb[0].mxu0
      %v3453 = vadd.f32 0.0, %v3452
      %v3454 = vpop.f32.mrb[0].mxu0
      %3455 = vmatprep.mubr.f32.mxu0 0.0
      %3456 = vmatmul.mubr.f32.gmra.mrb[0].mxu0 %v3237
      %v3457 = vpop.f32.mrb[0].mxu0
      %v3458 = vadd.f32 0.0, %v3457
      %v3459 = vpop.f32.mrb[0].mxu0
      %3460 = vmatprep.mubr.f32.mxu0 0.0
      %3461 = vmatmul.mubr.f32.gmra.mrb[0].mxu0 %v3240
      %v3462 = vpop.f32.mrb[0].mxu0
      %v3463 = vadd.f32 0.0, %v3462
      %v3464 = vpop.f32.mrb[0].mxu0
      %3465 = vmatprep.mubr.f32.mxu0 0.0
      %3466 = vmatmul.mubr.f32.gmra.mrb[0].mxu0 %v3243
      %v3467 = vpop.f32.mrb[0].mxu0
      %v3468 = vadd.f32 0.0, %v3467
      %v3469 = vpop.f32.mrb[0].mxu0
      %3470 = vmatprep.mubr.f32.mxu0 0.0
      %3471 = vmatmul.mubr.f32.gmra.mrb[0].mxu0 %v3246
      %v3472 = vpop.f32.mrb[0].mxu0
      %v3473 = vadd.f32 0.0, %v3472
      %v3474 = vpop.f32.mrb[0].mxu0
      %3475 = vdwg.mxu0
      %v3476 = vadd.f32 %v3086, %v3318
      %v3477 = vadd.f32 %v3087, %v3323
      %v3478 = vadd.f32 %v3088, %v3328
      %v3479 = vadd.f32 %v3089, %v3333
      %v3480 = vadd.f32 %v3090, %v3338
      %v3481 = vadd.f32 %v3091, %v3343
      %v3482 = vadd.f32 %v3092, %v3348
      %v3483 = vadd.f32 %v3093, %v3353
      %v3484 = vadd.f32 %v3094, %v3358
      %v3485 = vadd.f32 %v3095, %v3363
      %v3486 = vadd.f32 %v3096, %v3368
      %v3487 = vadd.f32 %v3097, %v3373
      %v3488 = vadd.f32 %v3098, %v3378
      %v3489 = vadd.f32 %v3099, %v3383
      %v3490 = vadd.f32 %v3100, %v3388
      %v3491 = vadd.f32 %v3101, %v3393
      %v3492 = vadd.f32 %v3102, %v3398
      %v3493 = vadd.f32 %v3103, %v3403
      %v3494 = vadd.f32 %v3104, %v3408
      %v3495 = vadd.f32 %v3105, %v3413
      %v3496 = vadd.f32 %v3106, %v3418
      %v3497 = vadd.f32 %v3107, %v3423
      %v3498 = vadd.f32 %v3108, %v3428
      %v3499 = vadd.f32 %v3109, %v3433
      %v3500 = vadd.f32 %v3110, %v3438
      %v3501 = vadd.f32 %v3111, %v3443
      %v3502 = vadd.f32 %v3112, %v3448
      %v3503 = vadd.f32 %v3113, %v3453
      %v3504 = vadd.f32 %v3114, %v3458
      %v3505 = vadd.f32 %v3115, %v3463
      %v3506 = vadd.f32 %v3116, %v3468
      %v3507 = vadd.f32 %v3117, %v3473
      %s3508 = scalar_lea.vmem %s1, 28
      %v3509 = vld [vmem:[%s3508] sm:$0xf]
      %v3512 = vrot.slane %v338, 1
      %v3513 = vsel %vm632, %v2395, %v3512
      %v3514 = vrot.slane %v339, 1
      %v3515 = vsel %vm632, %v3512, %v3514
      %v3516 = vsel %vm698, %v3513, 0
      %v3518 = vsel %vm698, %v3515, 0
      %v3521 = vsel %vm763, %v3509, 0
      %3523 = vmatprep.subr.mxu0 0.0
      %3524 = vmatpush1.msra.mxu0 %v3521
      %3525 = vmatprep.subr.mxu0 0.0
      %3526 = vmatpush1.msra.mxu0 0.0
      %3527 = vmatprep.subr.mxu0 0.0
      %3528 = vmatpush1.msra.mxu0 0.0
      %3529 = vmatprep.subr.mxu0 0.0
      %3530 = vmatpush1.msra.mxu0 0.0
      %3531 = vmatprep.subr.mxu0 0.0
      %3532 = vmatpush1.msra.mxu0 0.0
      %3533 = vmatprep.subr.mxu0 0.0
      %3534 = vmatpush1.msra.mxu0 0.0
      %3535 = vmatprep.subr.mxu0 0.0
      %3536 = vmatpush1.msra.mxu0 0.0
      %3537 = vmatprep.subr.mxu0 0.0
      %3538 = vmatpush1.msra.mxu0 0.0
      %3539 = vmatprep.subr.mxu0 0.0
      %3540 = vmatpush1.msra.mxu0 0.0
      %3541 = vmatprep.subr.mxu0 0.0
      %3542 = vmatpush1.msra.mxu0 0.0
      %3543 = vmatprep.subr.mxu0 0.0
      %3544 = vmatpush1.msra.mxu0 0.0
      %3545 = vmatprep.subr.mxu0 0.0
      %3546 = vmatpush1.msra.mxu0 0.0
      %3547 = vmatprep.subr.mxu0 0.0
      %3548 = vmatpush1.msra.mxu0 0.0
      %3549 = vmatprep.subr.mxu0 0.0
      %3550 = vmatpush1.msra.mxu0 0.0
      %3551 = vmatprep.subr.mxu0 0.0
      %3552 = vmatpush1.msra.mxu0 0.0
      %3553 = vmatprep.subr.mxu0 0.0
      %3554 = vmatpush1.msra.mxu0 0.0
      %3555 = vmatprep.subr.mxu0 0.0
      %3556 = vmatpush1.msra.mxu0 0.0
      %3557 = vmatprep.subr.mxu0 0.0
      %3558 = vmatpush1.msra.mxu0 0.0
      %3559 = vmatprep.subr.mxu0 0.0
      %3560 = vmatpush1.msra.mxu0 0.0
      %3561 = vmatprep.subr.mxu0 0.0
      %3562 = vmatpush1.msra.mxu0 0.0
      %3563 = vmatprep.subr.mxu0 0.0
      %3564 = vmatpush1.msra.mxu0 0.0
      %3565 = vmatprep.subr.mxu0 0.0
      %3566 = vmatpush1.msra.mxu0 0.0
      %3567 = vmatprep.subr.mxu0 0.0
      %3568 = vmatpush1.msra.mxu0 0.0
      %3569 = vmatprep.subr.mxu0 0.0
      %3570 = vmatpush1.msra.mxu0 0.0
      %3571 = vmatprep.subr.mxu0 0.0
      %3572 = vmatpush1.msra.mxu0 0.0
      %3573 = vmatprep.subr.mxu0 0.0
      %3574 = vmatpush1.msra.mxu0 0.0
      %3575 = vmatprep.subr.mxu0 0.0
      %3576 = vmatpush1.msra.mxu0 0.0
      %3577 = vmatprep.subr.mxu0 0.0
      %3578 = vmatpush1.msra.mxu0 0.0
      %3579 = vmatprep.subr.mxu0 0.0
      %3580 = vmatpush1.msra.mxu0 0.0
      %3581 = vmatprep.subr.mxu0 0.0
      %3582 = vmatpush1.msra.mxu0 0.0
      %3583 = vmatprep.subr.mxu0 0.0
      %3584 = vmatpush1.msra.mxu0 0.0
      %3585 = vmatprep.subr.mxu0 0.0
      %3586 = vmatpush1.msra.mxu0 0.0
      %3587 = vmatprep.mubr.f32.mxu0 0.0
      %3588 = vmatmul.mubr.f32.gmra.mrb[0].mxu0 %v707
      %v3589 = vpop.f32.mrb[0].mxu0
      %v3590 = vadd.f32 0.0, %v3589
      %v3591 = vpop.f32.mrb[0].mxu0
      %3592 = vmatprep.mubr.f32.mxu0 0.0
      %3593 = vmatmul.mubr.f32.gmra.mrb[0].mxu0 %v709
      %v3594 = vpop.f32.mrb[0].mxu0
      %v3595 = vadd.f32 0.0, %v3594
      %v3596 = vpop.f32.mrb[0].mxu0
      %3597 = vmatprep.mubr.f32.mxu0 0.0
      %3598 = vmatmul.mubr.f32.gmra.mrb[0].mxu0 %v711
      %v3599 = vpop.f32.mrb[0].mxu0
      %v3600 = vadd.f32 0.0, %v3599
      %v3601 = vpop.f32.mrb[0].mxu0
      %3602 = vmatprep.mubr.f32.mxu0 0.0
      %3603 = vmatmul.mubr.f32.gmra.mrb[0].mxu0 %v713
      %v3604 = vpop.f32.mrb[0].mxu0
      %v3605 = vadd.f32 0.0, %v3604
      %v3606 = vpop.f32.mrb[0].mxu0
      %3607 = vmatprep.mubr.f32.mxu0 0.0
      %3608 = vmatmul.mubr.f32.gmra.mrb[0].mxu0 %v715
      %v3609 = vpop.f32.mrb[0].mxu0
      %v3610 = vadd.f32 0.0, %v3609
      %v3611 = vpop.f32.mrb[0].mxu0
      %3612 = vmatprep.mubr.f32.mxu0 0.0
      %3613 = vmatmul.mubr.f32.gmra.mrb[0].mxu0 %v717
      %v3614 = vpop.f32.mrb[0].mxu0
      %v3615 = vadd.f32 0.0, %v3614
      %v3616 = vpop.f32.mrb[0].mxu0
      %3617 = vmatprep.mubr.f32.mxu0 0.0
      %3618 = vmatmul.mubr.f32.gmra.mrb[0].mxu0 %v719
      %v3619 = vpop.f32.mrb[0].mxu0
      %v3620 = vadd.f32 0.0, %v3619
      %v3621 = vpop.f32.mrb[0].mxu0
      %3622 = vmatprep.mubr.f32.mxu0 0.0
      %3623 = vmatmul.mubr.f32.gmra.mrb[0].mxu0 %v721
      %v3624 = vpop.f32.mrb[0].mxu0
      %v3625 = vadd.f32 0.0, %v3624
      %v3626 = vpop.f32.mrb[0].mxu0
      %3627 = vmatprep.mubr.f32.mxu0 0.0
      %3628 = vmatmul.mubr.f32.gmra.mrb[0].mxu0 %v723
      %v3629 = vpop.f32.mrb[0].mxu0
      %v3630 = vadd.f32 0.0, %v3629
      %v3631 = vpop.f32.mrb[0].mxu0
      %3632 = vmatprep.mubr.f32.mxu0 0.0
      %3633 = vmatmul.mubr.f32.gmra.mrb[0].mxu0 %v725
      %v3634 = vpop.f32.mrb[0].mxu0
      %v3635 = vadd.f32 0.0, %v3634
      %v3636 = vpop.f32.mrb[0].mxu0
      %3637 = vmatprep.mubr.f32.mxu0 0.0
      %3638 = vmatmul.mubr.f32.gmra.mrb[0].mxu0 %v727
      %v3639 = vpop.f32.mrb[0].mxu0
      %v3640 = vadd.f32 0.0, %v3639
      %v3641 = vpop.f32.mrb[0].mxu0
      %3642 = vmatprep.mubr.f32.mxu0 0.0
      %3643 = vmatmul.mubr.f32.gmra.mrb[0].mxu0 %v729
      %v3644 = vpop.f32.mrb[0].mxu0
      %v3645 = vadd.f32 0.0, %v3644
      %v3646 = vpop.f32.mrb[0].mxu0
      %3647 = vmatprep.mubr.f32.mxu0 0.0
      %3648 = vmatmul.mubr.f32.gmra.mrb[0].mxu0 %v731
      %v3649 = vpop.f32.mrb[0].mxu0
      %v3650 = vadd.f32 0.0, %v3649
      %v3651 = vpop.f32.mrb[0].mxu0
      %3652 = vmatprep.mubr.f32.mxu0 0.0
      %3653 = vmatmul.mubr.f32.gmra.mrb[0].mxu0 %v733
      %v3654 = vpop.f32.mrb[0].mxu0
      %v3655 = vadd.f32 0.0, %v3654
      %v3656 = vpop.f32.mrb[0].mxu0
      %3657 = vmatprep.mubr.f32.mxu0 0.0
      %3658 = vmatmul.mubr.f32.gmra.mrb[0].mxu0 %v735
      %v3659 = vpop.f32.mrb[0].mxu0
      %v3660 = vadd.f32 0.0, %v3659
      %v3661 = vpop.f32.mrb[0].mxu0
      %3662 = vmatprep.mubr.f32.mxu0 0.0
      %3663 = vmatmul.mubr.f32.gmra.mrb[0].mxu0 %v737
      %v3664 = vpop.f32.mrb[0].mxu0
      %v3665 = vadd.f32 0.0, %v3664
      %v3666 = vpop.f32.mrb[0].mxu0
      %3667 = vmatprep.mubr.f32.mxu0 0.0
      %3668 = vmatmul.mubr.f32.gmra.mrb[0].mxu0 %v739
      %v3669 = vpop.f32.mrb[0].mxu0
      %v3670 = vadd.f32 0.0, %v3669
      %v3671 = vpop.f32.mrb[0].mxu0
      %3672 = vmatprep.mubr.f32.mxu0 0.0
      %3673 = vmatmul.mubr.f32.gmra.mrb[0].mxu0 %v741
      %v3674 = vpop.f32.mrb[0].mxu0
      %v3675 = vadd.f32 0.0, %v3674
      %v3676 = vpop.f32.mrb[0].mxu0
      %3677 = vmatprep.mubr.f32.mxu0 0.0
      %3678 = vmatmul.mubr.f32.gmra.mrb[0].mxu0 %v743
      %v3679 = vpop.f32.mrb[0].mxu0
      %v3680 = vadd.f32 0.0, %v3679
      %v3681 = vpop.f32.mrb[0].mxu0
      %3682 = vmatprep.mubr.f32.mxu0 0.0
      %3683 = vmatmul.mubr.f32.gmra.mrb[0].mxu0 %v745
      %v3684 = vpop.f32.mrb[0].mxu0
      %v3685 = vadd.f32 0.0, %v3684
      %v3686 = vpop.f32.mrb[0].mxu0
      %3687 = vmatprep.mubr.f32.mxu0 0.0
      %3688 = vmatmul.mubr.f32.gmra.mrb[0].mxu0 %v747
      %v3689 = vpop.f32.mrb[0].mxu0
      %v3690 = vadd.f32 0.0, %v3689
      %v3691 = vpop.f32.mrb[0].mxu0
      %3692 = vmatprep.mubr.f32.mxu0 0.0
      %3693 = vmatmul.mubr.f32.gmra.mrb[0].mxu0 %v749
      %v3694 = vpop.f32.mrb[0].mxu0
      %v3695 = vadd.f32 0.0, %v3694
      %v3696 = vpop.f32.mrb[0].mxu0
      %3697 = vmatprep.mubr.f32.mxu0 0.0
      %3698 = vmatmul.mubr.f32.gmra.mrb[0].mxu0 %v751
      %v3699 = vpop.f32.mrb[0].mxu0
      %v3700 = vadd.f32 0.0, %v3699
      %v3701 = vpop.f32.mrb[0].mxu0
      %3702 = vmatprep.mubr.f32.mxu0 0.0
      %3703 = vmatmul.mubr.f32.gmra.mrb[0].mxu0 %v753
      %v3704 = vpop.f32.mrb[0].mxu0
      %v3705 = vadd.f32 0.0, %v3704
      %v3706 = vpop.f32.mrb[0].mxu0
      %3707 = vmatprep.mubr.f32.mxu0 0.0
      %3708 = vmatmul.mubr.f32.gmra.mrb[0].mxu0 %v755
      %v3709 = vpop.f32.mrb[0].mxu0
      %v3710 = vadd.f32 0.0, %v3709
      %v3711 = vpop.f32.mrb[0].mxu0
      %3712 = vmatprep.mubr.f32.mxu0 0.0
      %3713 = vmatmul.mubr.f32.gmra.mrb[0].mxu0 %v757
      %v3714 = vpop.f32.mrb[0].mxu0
      %v3715 = vadd.f32 0.0, %v3714
      %v3716 = vpop.f32.mrb[0].mxu0
      %3717 = vmatprep.mubr.f32.mxu0 0.0
      %3718 = vmatmul.mubr.f32.gmra.mrb[0].mxu0 %v759
      %v3719 = vpop.f32.mrb[0].mxu0
      %v3720 = vadd.f32 0.0, %v3719
      %v3721 = vpop.f32.mrb[0].mxu0
      %3722 = vmatprep.mubr.f32.mxu0 0.0
      %3723 = vmatmul.mubr.f32.gmra.mrb[0].mxu0 %v761
      %v3724 = vpop.f32.mrb[0].mxu0
      %v3725 = vadd.f32 0.0, %v3724
      %v3726 = vpop.f32.mrb[0].mxu0
      %3727 = vmatprep.mubr.f32.mxu0 0.0
      %3728 = vmatmul.mubr.f32.gmra.mrb[0].mxu0 %v2397
      %v3729 = vpop.f32.mrb[0].mxu0
      %v3730 = vadd.f32 0.0, %v3729
      %v3731 = vpop.f32.mrb[0].mxu0
      %3732 = vmatprep.mubr.f32.mxu0 0.0
      %3733 = vmatmul.mubr.f32.gmra.mrb[0].mxu0 %v2399
      %v3734 = vpop.f32.mrb[0].mxu0
      %v3735 = vadd.f32 0.0, %v3734
      %v3736 = vpop.f32.mrb[0].mxu0
      %3737 = vmatprep.mubr.f32.mxu0 0.0
      %3738 = vmatmul.mubr.f32.gmra.mrb[0].mxu0 %v3516
      %v3739 = vpop.f32.mrb[0].mxu0
      %v3740 = vadd.f32 0.0, %v3739
      %v3741 = vpop.f32.mrb[0].mxu0
      %3742 = vmatprep.mubr.f32.mxu0 0.0
      %3743 = vmatmul.mubr.f32.gmra.mrb[0].mxu0 %v3518
      %v3744 = vpop.f32.mrb[0].mxu0
      %v3745 = vadd.f32 0.0, %v3744
      %v3746 = vpop.f32.mrb[0].mxu0
      %3747 = vdwg.mxu0
      %v3748 = vadd.f32 %v3476, %v3590
      %v3749 = vadd.f32 %v3477, %v3595
      %v3750 = vadd.f32 %v3478, %v3600
      %v3751 = vadd.f32 %v3479, %v3605
      %v3752 = vadd.f32 %v3480, %v3610
      %v3753 = vadd.f32 %v3481, %v3615
      %v3754 = vadd.f32 %v3482, %v3620
      %v3755 = vadd.f32 %v3483, %v3625
      %v3756 = vadd.f32 %v3484, %v3630
      %v3757 = vadd.f32 %v3485, %v3635
      %v3758 = vadd.f32 %v3486, %v3640
      %v3759 = vadd.f32 %v3487, %v3645
      %v3760 = vadd.f32 %v3488, %v3650
      %v3761 = vadd.f32 %v3489, %v3655
      %v3762 = vadd.f32 %v3490, %v3660
      %v3763 = vadd.f32 %v3491, %v3665
      %v3764 = vadd.f32 %v3492, %v3670
      %v3765 = vadd.f32 %v3493, %v3675
      %v3766 = vadd.f32 %v3494, %v3680
      %v3767 = vadd.f32 %v3495, %v3685
      %v3768 = vadd.f32 %v3496, %v3690
      %v3769 = vadd.f32 %v3497, %v3695
      %v3770 = vadd.f32 %v3498, %v3700
      %v3771 = vadd.f32 %v3499, %v3705
      %v3772 = vadd.f32 %v3500, %v3710
      %v3773 = vadd.f32 %v3501, %v3715
      %v3774 = vadd.f32 %v3502, %v3720
      %v3775 = vadd.f32 %v3503, %v3725
      %v3776 = vadd.f32 %v3504, %v3730
      %v3777 = vadd.f32 %v3505, %v3735
      %v3778 = vadd.f32 %v3506, %v3740
      %v3779 = vadd.f32 %v3507, %v3745
      %v3780 = vmul.f32 %v307, %v1445
      %v3781 = vmul.f32 %v308, %v1447
      %v3782 = vmul.f32 %v309, %v1449
      %v3783 = vmul.f32 %v310, %v1451
      %v3784 = vmul.f32 %v311, %v1453
      %v3785 = vmul.f32 %v312, %v1455
      %v3786 = vmul.f32 %v313, %v1457
      %v3787 = vmul.f32 %v314, %v1459
      %v3788 = vmul.f32 %v315, %v1461
      %v3789 = vmul.f32 %v316, %v1463
      %v3790 = vmul.f32 %v317, %v1465
      %v3791 = vmul.f32 %v318, %v1467
      %v3792 = vmul.f32 %v319, %v1469
      %v3793 = vmul.f32 %v320, %v1471
      %v3794 = vmul.f32 %v321, %v1473
      %v3795 = vmul.f32 %v322, %v1475
      %v3796 = vmul.f32 %v323, %v1477
      %v3797 = vmul.f32 %v324, %v1479
      %v3798 = vmul.f32 %v325, %v1481
      %v3799 = vmul.f32 %v326, %v1483
      %v3800 = vmul.f32 %v327, %v1485
      %v3801 = vmul.f32 %v328, %v1487
      %v3802 = vmul.f32 %v329, %v1489
      %v3803 = vmul.f32 %v330, %v1491
      %v3804 = vmul.f32 %v331, %v1493
      %v3805 = vmul.f32 %v332, %v1495
      %v3806 = vmul.f32 %v333, %v1497
      %v3807 = vmul.f32 %v334, %v1499
      %v3808 = vmul.f32 %v335, %v1501
      %v3809 = vmul.f32 %v336, %v1503
      %v3810 = vmul.f32 %v337, %v1505
      %v3811 = vmul.f32 %v338, %v1507
      %v3812 = vmul.f32 %v339, %v1506
      %s3813 = scalar_lea.vmem %s1, 32
      %v3814 = vld [vmem:[%s3813] sm:$0xf]
      %v3848 = vrot.slane %v3780, 2
      %v3849 = vrot.slane %v3781, 2
      %v3850 = vsel %vm1609, %v3848, %v3849
      %v3851 = vrot.slane %v3782, 2
      %v3852 = vsel %vm1609, %v3849, %v3851
      %v3853 = vrot.slane %v3783, 2
      %v3854 = vsel %vm1609, %v3851, %v3853
      %v3855 = vrot.slane %v3784, 2
      %v3856 = vsel %vm1609, %v3853, %v3855
      %v3857 = vrot.slane %v3785, 2
      %v3858 = vsel %vm1609, %v3855, %v3857
      %v3859 = vrot.slane %v3786, 2
      %v3860 = vsel %vm1609, %v3857, %v3859
      %v3861 = vrot.slane %v3787, 2
      %v3862 = vsel %vm1609, %v3859, %v3861
      %v3863 = vrot.slane %v3788, 2
      %v3864 = vsel %vm1609, %v3861, %v3863
      %v3865 = vrot.slane %v3789, 2
      %v3866 = vsel %vm1609, %v3863, %v3865
      %v3867 = vrot.slane %v3790, 2
      %v3868 = vsel %vm1609, %v3865, %v3867
      %v3869 = vrot.slane %v3791, 2
      %v3870 = vsel %vm1609, %v3867, %v3869
      %v3871 = vrot.slane %v3792, 2
      %v3872 = vsel %vm1609, %v3869, %v3871
      %v3873 = vrot.slane %v3793, 2
      %v3874 = vsel %vm1609, %v3871, %v3873
      %v3875 = vrot.slane %v3794, 2
      %v3876 = vsel %vm1609, %v3873, %v3875
      %v3877 = vrot.slane %v3795, 2
      %v3878 = vsel %vm1609, %v3875, %v3877
      %v3879 = vrot.slane %v3796, 2
      %v3880 = vsel %vm1609, %v3877, %v3879
      %v3881 = vrot.slane %v3797, 2
      %v3882 = vsel %vm1609, %v3879, %v3881
      %v3883 = vrot.slane %v3798, 2
      %v3884 = vsel %vm1609, %v3881, %v3883
      %v3885 = vrot.slane %v3799, 2
      %v3886 = vsel %vm1609, %v3883, %v3885
      %v3887 = vrot.slane %v3800, 2
      %v3888 = vsel %vm1609, %v3885, %v3887
      %v3889 = vrot.slane %v3801, 2
      %v3890 = vsel %vm1609, %v3887, %v3889
      %v3891 = vrot.slane %v3802, 2
      %v3892 = vsel %vm1609, %v3889, %v3891
      %v3893 = vrot.slane %v3803, 2
      %v3894 = vsel %vm1609, %v3891, %v3893
      %v3895 = vrot.slane %v3804, 2
      %v3896 = vsel %vm1609, %v3893, %v3895
      %v3897 = vrot.slane %v3805, 2
      %v3898 = vsel %vm1609, %v3895, %v3897
      %v3899 = vrot.slane %v3806, 2
      %v3900 = vsel %vm1609, %v3897, %v3899
      %v3901 = vrot.slane %v3807, 2
      %v3902 = vsel %vm1609, %v3899, %v3901
      %v3903 = vrot.slane %v3808, 2
      %v3904 = vsel %vm1609, %v3901, %v3903
      %v3905 = vrot.slane %v3809, 2
      %v3906 = vsel %vm1609, %v3903, %v3905
      %v3907 = vrot.slane %v3810, 2
      %v3908 = vsel %vm1609, %v3905, %v3907
      %v3909 = vrot.slane %v3811, 2
      %v3910 = vsel %vm1609, %v3907, %v3909
      %v3911 = vrot.slane %v3812, 2
      %v3912 = vsel %vm1609, %v3909, %v3911
      %v3913 = vsel %vm698, %v3850, 0
      %v3915 = vsel %vm698, %v3852, 0
      %v3917 = vsel %vm698, %v3854, 0
      %v3919 = vsel %vm698, %v3856, 0
      %v3921 = vsel %vm698, %v3858, 0
      %v3923 = vsel %vm698, %v3860, 0
      %v3925 = vsel %vm698, %v3862, 0
      %v3927 = vsel %vm698, %v3864, 0
      %v3929 = vsel %vm698, %v3866, 0
      %v3931 = vsel %vm698, %v3868, 0
      %v3933 = vsel %vm698, %v3870, 0
      %v3935 = vsel %vm698, %v3872, 0
      %v3937 = vsel %vm698, %v3874, 0
      %v3939 = vsel %vm698, %v3876, 0
      %v3941 = vsel %vm698, %v3878, 0
      %v3943 = vsel %vm698, %v3880, 0
      %v3945 = vsel %vm698, %v3882, 0
      %v3947 = vsel %vm698, %v3884, 0
      %v3949 = vsel %vm698, %v3886, 0
      %v3951 = vsel %vm698, %v3888, 0
      %v3953 = vsel %vm698, %v3890, 0
      %v3955 = vsel %vm698, %v3892, 0
      %v3957 = vsel %vm698, %v3894, 0
      %v3959 = vsel %vm698, %v3896, 0
      %v3961 = vsel %vm698, %v3898, 0
      %v3963 = vsel %vm698, %v3900, 0
      %v3965 = vsel %vm698, %v3902, 0
      %v3967 = vsel %vm698, %v3904, 0
      %v3969 = vsel %vm698, %v3906, 0
      %v3971 = vsel %vm698, %v3908, 0
      %v3973 = vsel %vm698, %v3910, 0
      %v3975 = vsel %vm698, %v3912, 0
      %v3978 = vsel %vm763, %v3814, 0
      %3980 = vmatprep.subr.mxu0 0.0
      %3981 = vmatpush1.msra.mxu0 %v3978
      %3982 = vmatprep.subr.mxu0 0.0
      %3983 = vmatpush1.msra.mxu0 0.0
      %3984 = vmatprep.subr.mxu0 0.0
      %3985 = vmatpush1.msra.mxu0 0.0
      %3986 = vmatprep.subr.mxu0 0.0
      %3987 = vmatpush1.msra.mxu0 0.0
      %3988 = vmatprep.subr.mxu0 0.0
      %3989 = vmatpush1.msra.mxu0 0.0
      %3990 = vmatprep.subr.mxu0 0.0
      %3991 = vmatpush1.msra.mxu0 0.0
      %3992 = vmatprep.subr.mxu0 0.0
      %3993 = vmatpush1.msra.mxu0 0.0
      %3994 = vmatprep.subr.mxu0 0.0
      %3995 = vmatpush1.msra.mxu0 0.0
      %3996 = vmatprep.subr.mxu0 0.0
      %3997 = vmatpush1.msra.mxu0 0.0
      %3998 = vmatprep.subr.mxu0 0.0
      %3999 = vmatpush1.msra.mxu0 0.0
      %4000 = vmatprep.subr.mxu0 0.0
      %4001 = vmatpush1.msra.mxu0 0.0
      %4002 = vmatprep.subr.mxu0 0.0
      %4003 = vmatpush1.msra.mxu0 0.0
      %4004 = vmatprep.subr.mxu0 0.0
      %4005 = vmatpush1.msra.mxu0 0.0
      %4006 = vmatprep.subr.mxu0 0.0
      %4007 = vmatpush1.msra.mxu0 0.0
      %4008 = vmatprep.subr.mxu0 0.0
      %4009 = vmatpush1.msra.mxu0 0.0
      %4010 = vmatprep.subr.mxu0 0.0
      %4011 = vmatpush1.msra.mxu0 0.0
      %4012 = vmatprep.subr.mxu0 0.0
      %4013 = vmatpush1.msra.mxu0 0.0
      %4014 = vmatprep.subr.mxu0 0.0
      %4015 = vmatpush1.msra.mxu0 0.0
      %4016 = vmatprep.subr.mxu0 0.0
      %4017 = vmatpush1.msra.mxu0 0.0
      %4018 = vmatprep.subr.mxu0 0.0
      %4019 = vmatpush1.msra.mxu0 0.0
      %4020 = vmatprep.subr.mxu0 0.0
      %4021 = vmatpush1.msra.mxu0 0.0
      %4022 = vmatprep.subr.mxu0 0.0
      %4023 = vmatpush1.msra.mxu0 0.0
      %4024 = vmatprep.subr.mxu0 0.0
      %4025 = vmatpush1.msra.mxu0 0.0
      %4026 = vmatprep.subr.mxu0 0.0
      %4027 = vmatpush1.msra.mxu0 0.0
      %4028 = vmatprep.subr.mxu0 0.0
      %4029 = vmatpush1.msra.mxu0 0.0
      %4030 = vmatprep.subr.mxu0 0.0
      %4031 = vmatpush1.msra.mxu0 0.0
      %4032 = vmatprep.subr.mxu0 0.0
      %4033 = vmatpush1.msra.mxu0 0.0
      %4034 = vmatprep.subr.mxu0 0.0
      %4035 = vmatpush1.msra.mxu0 0.0
      %4036 = vmatprep.subr.mxu0 0.0
      %4037 = vmatpush1.msra.mxu0 0.0
      %4038 = vmatprep.subr.mxu0 0.0
      %4039 = vmatpush1.msra.mxu0 0.0
      %4040 = vmatprep.subr.mxu0 0.0
      %4041 = vmatpush1.msra.mxu0 0.0
      %4042 = vmatprep.subr.mxu0 0.0
      %4043 = vmatpush1.msra.mxu0 0.0
      %4044 = vmatprep.mubr.f32.mxu0 0.0
      %4045 = vmatmul.mubr.f32.gmra.mrb[0].mxu0 %v3913
      %v4046 = vpop.f32.mrb[0].mxu0
      %v4047 = vadd.f32 0.0, %v4046
      %v4048 = vpop.f32.mrb[0].mxu0
      %4049 = vmatprep.mubr.f32.mxu0 0.0
      %4050 = vmatmul.mubr.f32.gmra.mrb[0].mxu0 %v3915
      %v4051 = vpop.f32.mrb[0].mxu0
      %v4052 = vadd.f32 0.0, %v4051
      %v4053 = vpop.f32.mrb[0].mxu0
      %4054 = vmatprep.mubr.f32.mxu0 0.0
      %4055 = vmatmul.mubr.f32.gmra.mrb[0].mxu0 %v3917
      %v4056 = vpop.f32.mrb[0].mxu0
      %v4057 = vadd.f32 0.0, %v4056
      %v4058 = vpop.f32.mrb[0].mxu0
      %4059 = vmatprep.mubr.f32.mxu0 0.0
      %4060 = vmatmul.mubr.f32.gmra.mrb[0].mxu0 %v3919
      %v4061 = vpop.f32.mrb[0].mxu0
      %v4062 = vadd.f32 0.0, %v4061
      %v4063 = vpop.f32.mrb[0].mxu0
      %4064 = vmatprep.mubr.f32.mxu0 0.0
      %4065 = vmatmul.mubr.f32.gmra.mrb[0].mxu0 %v3921
      %v4066 = vpop.f32.mrb[0].mxu0
      %v4067 = vadd.f32 0.0, %v4066
      %v4068 = vpop.f32.mrb[0].mxu0
      %4069 = vmatprep.mubr.f32.mxu0 0.0
      %4070 = vmatmul.mubr.f32.gmra.mrb[0].mxu0 %v3923
      %v4071 = vpop.f32.mrb[0].mxu0
      %v4072 = vadd.f32 0.0, %v4071
      %v4073 = vpop.f32.mrb[0].mxu0
      %4074 = vmatprep.mubr.f32.mxu0 0.0
      %4075 = vmatmul.mubr.f32.gmra.mrb[0].mxu0 %v3925
      %v4076 = vpop.f32.mrb[0].mxu0
      %v4077 = vadd.f32 0.0, %v4076
      %v4078 = vpop.f32.mrb[0].mxu0
      %4079 = vmatprep.mubr.f32.mxu0 0.0
      %4080 = vmatmul.mubr.f32.gmra.mrb[0].mxu0 %v3927
      %v4081 = vpop.f32.mrb[0].mxu0
      %v4082 = vadd.f32 0.0, %v4081
      %v4083 = vpop.f32.mrb[0].mxu0
      %4084 = vmatprep.mubr.f32.mxu0 0.0
      %4085 = vmatmul.mubr.f32.gmra.mrb[0].mxu0 %v3929
      %v4086 = vpop.f32.mrb[0].mxu0
      %v4087 = vadd.f32 0.0, %v4086
      %v4088 = vpop.f32.mrb[0].mxu0
      %4089 = vmatprep.mubr.f32.mxu0 0.0
      %4090 = vmatmul.mubr.f32.gmra.mrb[0].mxu0 %v3931
      %v4091 = vpop.f32.mrb[0].mxu0
      %v4092 = vadd.f32 0.0, %v4091
      %v4093 = vpop.f32.mrb[0].mxu0
      %4094 = vmatprep.mubr.f32.mxu0 0.0
      %4095 = vmatmul.mubr.f32.gmra.mrb[0].mxu0 %v3933
      %v4096 = vpop.f32.mrb[0].mxu0
      %v4097 = vadd.f32 0.0, %v4096
      %v4098 = vpop.f32.mrb[0].mxu0
      %4099 = vmatprep.mubr.f32.mxu0 0.0
      %4100 = vmatmul.mubr.f32.gmra.mrb[0].mxu0 %v3935
      %v4101 = vpop.f32.mrb[0].mxu0
      %v4102 = vadd.f32 0.0, %v4101
      %v4103 = vpop.f32.mrb[0].mxu0
      %4104 = vmatprep.mubr.f32.mxu0 0.0
      %4105 = vmatmul.mubr.f32.gmra.mrb[0].mxu0 %v3937
      %v4106 = vpop.f32.mrb[0].mxu0
      %v4107 = vadd.f32 0.0, %v4106
      %v4108 = vpop.f32.mrb[0].mxu0
      %4109 = vmatprep.mubr.f32.mxu0 0.0
      %4110 = vmatmul.mubr.f32.gmra.mrb[0].mxu0 %v3939
      %v4111 = vpop.f32.mrb[0].mxu0
      %v4112 = vadd.f32 0.0, %v4111
      %v4113 = vpop.f32.mrb[0].mxu0
      %4114 = vmatprep.mubr.f32.mxu0 0.0
      %4115 = vmatmul.mubr.f32.gmra.mrb[0].mxu0 %v3941
      %v4116 = vpop.f32.mrb[0].mxu0
      %v4117 = vadd.f32 0.0, %v4116
      %v4118 = vpop.f32.mrb[0].mxu0
      %4119 = vmatprep.mubr.f32.mxu0 0.0
      %4120 = vmatmul.mubr.f32.gmra.mrb[0].mxu0 %v3943
      %v4121 = vpop.f32.mrb[0].mxu0
      %v4122 = vadd.f32 0.0, %v4121
      %v4123 = vpop.f32.mrb[0].mxu0
      %4124 = vmatprep.mubr.f32.mxu0 0.0
      %4125 = vmatmul.mubr.f32.gmra.mrb[0].mxu0 %v3945
      %v4126 = vpop.f32.mrb[0].mxu0
      %v4127 = vadd.f32 0.0, %v4126
      %v4128 = vpop.f32.mrb[0].mxu0
      %4129 = vmatprep.mubr.f32.mxu0 0.0
      %4130 = vmatmul.mubr.f32.gmra.mrb[0].mxu0 %v3947
      %v4131 = vpop.f32.mrb[0].mxu0
      %v4132 = vadd.f32 0.0, %v4131
      %v4133 = vpop.f32.mrb[0].mxu0
      %4134 = vmatprep.mubr.f32.mxu0 0.0
      %4135 = vmatmul.mubr.f32.gmra.mrb[0].mxu0 %v3949
      %v4136 = vpop.f32.mrb[0].mxu0
      %v4137 = vadd.f32 0.0, %v4136
      %v4138 = vpop.f32.mrb[0].mxu0
      %4139 = vmatprep.mubr.f32.mxu0 0.0
      %4140 = vmatmul.mubr.f32.gmra.mrb[0].mxu0 %v3951
      %v4141 = vpop.f32.mrb[0].mxu0
      %v4142 = vadd.f32 0.0, %v4141
      %v4143 = vpop.f32.mrb[0].mxu0
      %4144 = vmatprep.mubr.f32.mxu0 0.0
      %4145 = vmatmul.mubr.f32.gmra.mrb[0].mxu0 %v3953
      %v4146 = vpop.f32.mrb[0].mxu0
      %v4147 = vadd.f32 0.0, %v4146
      %v4148 = vpop.f32.mrb[0].mxu0
      %4149 = vmatprep.mubr.f32.mxu0 0.0
      %4150 = vmatmul.mubr.f32.gmra.mrb[0].mxu0 %v3955
      %v4151 = vpop.f32.mrb[0].mxu0
      %v4152 = vadd.f32 0.0, %v4151
      %v4153 = vpop.f32.mrb[0].mxu0
      %4154 = vmatprep.mubr.f32.mxu0 0.0
      %4155 = vmatmul.mubr.f32.gmra.mrb[0].mxu0 %v3957
      %v4156 = vpop.f32.mrb[0].mxu0
      %v4157 = vadd.f32 0.0, %v4156
      %v4158 = vpop.f32.mrb[0].mxu0
      %4159 = vmatprep.mubr.f32.mxu0 0.0
      %4160 = vmatmul.mubr.f32.gmra.mrb[0].mxu0 %v3959
      %v4161 = vpop.f32.mrb[0].mxu0
      %v4162 = vadd.f32 0.0, %v4161
      %v4163 = vpop.f32.mrb[0].mxu0
      %4164 = vmatprep.mubr.f32.mxu0 0.0
      %4165 = vmatmul.mubr.f32.gmra.mrb[0].mxu0 %v3961
      %v4166 = vpop.f32.mrb[0].mxu0
      %v4167 = vadd.f32 0.0, %v4166
      %v4168 = vpop.f32.mrb[0].mxu0
      %4169 = vmatprep.mubr.f32.mxu0 0.0
      %4170 = vmatmul.mubr.f32.gmra.mrb[0].mxu0 %v3963
      %v4171 = vpop.f32.mrb[0].mxu0
      %v4172 = vadd.f32 0.0, %v4171
      %v4173 = vpop.f32.mrb[0].mxu0
      %4174 = vmatprep.mubr.f32.mxu0 0.0
      %4175 = vmatmul.mubr.f32.gmra.mrb[0].mxu0 %v3965
      %v4176 = vpop.f32.mrb[0].mxu0
      %v4177 = vadd.f32 0.0, %v4176
      %v4178 = vpop.f32.mrb[0].mxu0
      %4179 = vmatprep.mubr.f32.mxu0 0.0
      %4180 = vmatmul.mubr.f32.gmra.mrb[0].mxu0 %v3967
      %v4181 = vpop.f32.mrb[0].mxu0
      %v4182 = vadd.f32 0.0, %v4181
      %v4183 = vpop.f32.mrb[0].mxu0
      %4184 = vmatprep.mubr.f32.mxu0 0.0
      %4185 = vmatmul.mubr.f32.gmra.mrb[0].mxu0 %v3969
      %v4186 = vpop.f32.mrb[0].mxu0
      %v4187 = vadd.f32 0.0, %v4186
      %v4188 = vpop.f32.mrb[0].mxu0
      %4189 = vmatprep.mubr.f32.mxu0 0.0
      %4190 = vmatmul.mubr.f32.gmra.mrb[0].mxu0 %v3971
      %v4191 = vpop.f32.mrb[0].mxu0
      %v4192 = vadd.f32 0.0, %v4191
      %v4193 = vpop.f32.mrb[0].mxu0
      %4194 = vmatprep.mubr.f32.mxu0 0.0
      %4195 = vmatmul.mubr.f32.gmra.mrb[0].mxu0 %v3973
      %v4196 = vpop.f32.mrb[0].mxu0
      %v4197 = vadd.f32 0.0, %v4196
      %v4198 = vpop.f32.mrb[0].mxu0
      %4199 = vmatprep.mubr.f32.mxu0 0.0
      %4200 = vmatmul.mubr.f32.gmra.mrb[0].mxu0 %v3975
      %v4201 = vpop.f32.mrb[0].mxu0
      %v4202 = vadd.f32 0.0, %v4201
      %v4203 = vpop.f32.mrb[0].mxu0
      %4204 = vdwg.mxu0
      %v4205 = vadd.f32 %v3748, %v4047
      %v4206 = vadd.f32 %v3749, %v4052
      %v4207 = vadd.f32 %v3750, %v4057
      %v4208 = vadd.f32 %v3751, %v4062
      %v4209 = vadd.f32 %v3752, %v4067
      %v4210 = vadd.f32 %v3753, %v4072
      %v4211 = vadd.f32 %v3754, %v4077
      %v4212 = vadd.f32 %v3755, %v4082
      %v4213 = vadd.f32 %v3756, %v4087
      %v4214 = vadd.f32 %v3757, %v4092
      %v4215 = vadd.f32 %v3758, %v4097
      %v4216 = vadd.f32 %v3759, %v4102
      %v4217 = vadd.f32 %v3760, %v4107
      %v4218 = vadd.f32 %v3761, %v4112
      %v4219 = vadd.f32 %v3762, %v4117
      %v4220 = vadd.f32 %v3763, %v4122
      %v4221 = vadd.f32 %v3764, %v4127
      %v4222 = vadd.f32 %v3765, %v4132
      %v4223 = vadd.f32 %v3766, %v4137
      %v4224 = vadd.f32 %v3767, %v4142
      %v4225 = vadd.f32 %v3768, %v4147
      %v4226 = vadd.f32 %v3769, %v4152
      %v4227 = vadd.f32 %v3770, %v4157
      %v4228 = vadd.f32 %v3771, %v4162
      %v4229 = vadd.f32 %v3772, %v4167
      %v4230 = vadd.f32 %v3773, %v4172
      %v4231 = vadd.f32 %v3774, %v4177
      %v4232 = vadd.f32 %v3775, %v4182
      %v4233 = vadd.f32 %v3776, %v4187
      %v4234 = vadd.f32 %v3777, %v4192
      %v4235 = vadd.f32 %v3778, %v4197
      %v4236 = vadd.f32 %v3779, %v4202
      %v4237 = vld [vmem:[%s2] sm:$0xf]
      %v4239 = vsel %vm763, %v4237, 0
      %4241 = vmatprep.subr.mxu0 0.0
      %4242 = vmatpush1.msra.mxu0 %v4239
      %4243 = vmatprep.subr.mxu0 0.0
      %4244 = vmatpush1.msra.mxu0 0.0
      %4245 = vmatprep.subr.mxu0 0.0
      %4246 = vmatpush1.msra.mxu0 0.0
      %4247 = vmatprep.subr.mxu0 0.0
      %4248 = vmatpush1.msra.mxu0 0.0
      %4249 = vmatprep.subr.mxu0 0.0
      %4250 = vmatpush1.msra.mxu0 0.0
      %4251 = vmatprep.subr.mxu0 0.0
      %4252 = vmatpush1.msra.mxu0 0.0
      %4253 = vmatprep.subr.mxu0 0.0
      %4254 = vmatpush1.msra.mxu0 0.0
      %4255 = vmatprep.subr.mxu0 0.0
      %4256 = vmatpush1.msra.mxu0 0.0
      %4257 = vmatprep.subr.mxu0 0.0
      %4258 = vmatpush1.msra.mxu0 0.0
      %4259 = vmatprep.subr.mxu0 0.0
      %4260 = vmatpush1.msra.mxu0 0.0
      %4261 = vmatprep.subr.mxu0 0.0
      %4262 = vmatpush1.msra.mxu0 0.0
      %4263 = vmatprep.subr.mxu0 0.0
      %4264 = vmatpush1.msra.mxu0 0.0
      %4265 = vmatprep.subr.mxu0 0.0
      %4266 = vmatpush1.msra.mxu0 0.0
      %4267 = vmatprep.subr.mxu0 0.0
      %4268 = vmatpush1.msra.mxu0 0.0
      %4269 = vmatprep.subr.mxu0 0.0
      %4270 = vmatpush1.msra.mxu0 0.0
      %4271 = vmatprep.subr.mxu0 0.0
      %4272 = vmatpush1.msra.mxu0 0.0
      %4273 = vmatprep.subr.mxu0 0.0
      %4274 = vmatpush1.msra.mxu0 0.0
      %4275 = vmatprep.subr.mxu0 0.0
      %4276 = vmatpush1.msra.mxu0 0.0
      %4277 = vmatprep.subr.mxu0 0.0
      %4278 = vmatpush1.msra.mxu0 0.0
      %4279 = vmatprep.subr.mxu0 0.0
      %4280 = vmatpush1.msra.mxu0 0.0
      %4281 = vmatprep.subr.mxu0 0.0
      %4282 = vmatpush1.msra.mxu0 0.0
      %4283 = vmatprep.subr.mxu0 0.0
      %4284 = vmatpush1.msra.mxu0 0.0
      %4285 = vmatprep.subr.mxu0 0.0
      %4286 = vmatpush1.msra.mxu0 0.0
      %4287 = vmatprep.subr.mxu0 0.0
      %4288 = vmatpush1.msra.mxu0 0.0
      %4289 = vmatprep.subr.mxu0 0.0
      %4290 = vmatpush1.msra.mxu0 0.0
      %4291 = vmatprep.subr.mxu0 0.0
      %4292 = vmatpush1.msra.mxu0 0.0
      %4293 = vmatprep.subr.mxu0 0.0
      %4294 = vmatpush1.msra.mxu0 0.0
      %4295 = vmatprep.subr.mxu0 0.0
      %4296 = vmatpush1.msra.mxu0 0.0
      %4297 = vmatprep.subr.mxu0 0.0
      %4298 = vmatpush1.msra.mxu0 0.0
      %4299 = vmatprep.subr.mxu0 0.0
      %4300 = vmatpush1.msra.mxu0 0.0
      %4301 = vmatprep.subr.mxu0 0.0
      %4302 = vmatpush1.msra.mxu0 0.0
      %4303 = vmatprep.subr.mxu0 0.0
      %4304 = vmatpush1.msra.mxu0 0.0
      %4305 = vmatprep.mubr.f32.mxu0 0.0
      %4306 = vmatmul.mubr.f32.gmra.mrb[0].mxu0 %v703
      %v4307 = vpop.f32.mrb[0].mxu0
      %v4308 = vadd.f32 0.0, %v4307
      %v4309 = vpop.f32.mrb[0].mxu0
      %4310 = vmatprep.mubr.f32.mxu0 0.0
      %4311 = vmatmul.mubr.f32.gmra.mrb[0].mxu0 %v705
      %v4312 = vpop.f32.mrb[0].mxu0
      %v4313 = vadd.f32 0.0, %v4312
      %v4314 = vpop.f32.mrb[0].mxu0
      %4315 = vmatprep.mubr.f32.mxu0 0.0
      %4316 = vmatmul.mubr.f32.gmra.mrb[0].mxu0 %v707
      %v4317 = vpop.f32.mrb[0].mxu0
      %v4318 = vadd.f32 0.0, %v4317
      %v4319 = vpop.f32.mrb[0].mxu0
      %4320 = vmatprep.mubr.f32.mxu0 0.0
      %4321 = vmatmul.mubr.f32.gmra.mrb[0].mxu0 %v709
      %v4322 = vpop.f32.mrb[0].mxu0
      %v4323 = vadd.f32 0.0, %v4322
      %v4324 = vpop.f32.mrb[0].mxu0
      %4325 = vmatprep.mubr.f32.mxu0 0.0
      %4326 = vmatmul.mubr.f32.gmra.mrb[0].mxu0 %v711
      %v4327 = vpop.f32.mrb[0].mxu0
      %v4328 = vadd.f32 0.0, %v4327
      %v4329 = vpop.f32.mrb[0].mxu0
      %4330 = vmatprep.mubr.f32.mxu0 0.0
      %4331 = vmatmul.mubr.f32.gmra.mrb[0].mxu0 %v713
      %v4332 = vpop.f32.mrb[0].mxu0
      %v4333 = vadd.f32 0.0, %v4332
      %v4334 = vpop.f32.mrb[0].mxu0
      %4335 = vmatprep.mubr.f32.mxu0 0.0
      %4336 = vmatmul.mubr.f32.gmra.mrb[0].mxu0 %v715
      %v4337 = vpop.f32.mrb[0].mxu0
      %v4338 = vadd.f32 0.0, %v4337
      %v4339 = vpop.f32.mrb[0].mxu0
      %4340 = vmatprep.mubr.f32.mxu0 0.0
      %4341 = vmatmul.mubr.f32.gmra.mrb[0].mxu0 %v717
      %v4342 = vpop.f32.mrb[0].mxu0
      %v4343 = vadd.f32 0.0, %v4342
      %v4344 = vpop.f32.mrb[0].mxu0
      %4345 = vmatprep.mubr.f32.mxu0 0.0
      %4346 = vmatmul.mubr.f32.gmra.mrb[0].mxu0 %v719
      %v4347 = vpop.f32.mrb[0].mxu0
      %v4348 = vadd.f32 0.0, %v4347
      %v4349 = vpop.f32.mrb[0].mxu0
      %4350 = vmatprep.mubr.f32.mxu0 0.0
      %4351 = vmatmul.mubr.f32.gmra.mrb[0].mxu0 %v721
      %v4352 = vpop.f32.mrb[0].mxu0
      %v4353 = vadd.f32 0.0, %v4352
      %v4354 = vpop.f32.mrb[0].mxu0
      %4355 = vmatprep.mubr.f32.mxu0 0.0
      %4356 = vmatmul.mubr.f32.gmra.mrb[0].mxu0 %v723
      %v4357 = vpop.f32.mrb[0].mxu0
      %v4358 = vadd.f32 0.0, %v4357
      %v4359 = vpop.f32.mrb[0].mxu0
      %4360 = vmatprep.mubr.f32.mxu0 0.0
      %4361 = vmatmul.mubr.f32.gmra.mrb[0].mxu0 %v725
      %v4362 = vpop.f32.mrb[0].mxu0
      %v4363 = vadd.f32 0.0, %v4362
      %v4364 = vpop.f32.mrb[0].mxu0
      %4365 = vmatprep.mubr.f32.mxu0 0.0
      %4366 = vmatmul.mubr.f32.gmra.mrb[0].mxu0 %v727
      %v4367 = vpop.f32.mrb[0].mxu0
      %v4368 = vadd.f32 0.0, %v4367
      %v4369 = vpop.f32.mrb[0].mxu0
      %4370 = vmatprep.mubr.f32.mxu0 0.0
      %4371 = vmatmul.mubr.f32.gmra.mrb[0].mxu0 %v729
      %v4372 = vpop.f32.mrb[0].mxu0
      %v4373 = vadd.f32 0.0, %v4372
      %v4374 = vpop.f32.mrb[0].mxu0
      %4375 = vmatprep.mubr.f32.mxu0 0.0
      %4376 = vmatmul.mubr.f32.gmra.mrb[0].mxu0 %v731
      %v4377 = vpop.f32.mrb[0].mxu0
      %v4378 = vadd.f32 0.0, %v4377
      %v4379 = vpop.f32.mrb[0].mxu0
      %4380 = vmatprep.mubr.f32.mxu0 0.0
      %4381 = vmatmul.mubr.f32.gmra.mrb[0].mxu0 %v733
      %v4382 = vpop.f32.mrb[0].mxu0
      %v4383 = vadd.f32 0.0, %v4382
      %v4384 = vpop.f32.mrb[0].mxu0
      %4385 = vmatprep.mubr.f32.mxu0 0.0
      %4386 = vmatmul.mubr.f32.gmra.mrb[0].mxu0 %v735
      %v4387 = vpop.f32.mrb[0].mxu0
      %v4388 = vadd.f32 0.0, %v4387
      %v4389 = vpop.f32.mrb[0].mxu0
      %4390 = vmatprep.mubr.f32.mxu0 0.0
      %4391 = vmatmul.mubr.f32.gmra.mrb[0].mxu0 %v737
      %v4392 = vpop.f32.mrb[0].mxu0
      %v4393 = vadd.f32 0.0, %v4392
      %v4394 = vpop.f32.mrb[0].mxu0
      %4395 = vmatprep.mubr.f32.mxu0 0.0
      %4396 = vmatmul.mubr.f32.gmra.mrb[0].mxu0 %v739
      %v4397 = vpop.f32.mrb[0].mxu0
      %v4398 = vadd.f32 0.0, %v4397
      %v4399 = vpop.f32.mrb[0].mxu0
      %4400 = vmatprep.mubr.f32.mxu0 0.0
      %4401 = vmatmul.mubr.f32.gmra.mrb[0].mxu0 %v741
      %v4402 = vpop.f32.mrb[0].mxu0
      %v4403 = vadd.f32 0.0, %v4402
      %v4404 = vpop.f32.mrb[0].mxu0
      %4405 = vmatprep.mubr.f32.mxu0 0.0
      %4406 = vmatmul.mubr.f32.gmra.mrb[0].mxu0 %v743
      %v4407 = vpop.f32.mrb[0].mxu0
      %v4408 = vadd.f32 0.0, %v4407
      %v4409 = vpop.f32.mrb[0].mxu0
      %4410 = vmatprep.mubr.f32.mxu0 0.0
      %4411 = vmatmul.mubr.f32.gmra.mrb[0].mxu0 %v745
      %v4412 = vpop.f32.mrb[0].mxu0
      %v4413 = vadd.f32 0.0, %v4412
      %v4414 = vpop.f32.mrb[0].mxu0
      %4415 = vmatprep.mubr.f32.mxu0 0.0
      %4416 = vmatmul.mubr.f32.gmra.mrb[0].mxu0 %v747
      %v4417 = vpop.f32.mrb[0].mxu0
      %v4418 = vadd.f32 0.0, %v4417
      %v4419 = vpop.f32.mrb[0].mxu0
      %4420 = vmatprep.mubr.f32.mxu0 0.0
      %4421 = vmatmul.mubr.f32.gmra.mrb[0].mxu0 %v749
      %v4422 = vpop.f32.mrb[0].mxu0
      %v4423 = vadd.f32 0.0, %v4422
      %v4424 = vpop.f32.mrb[0].mxu0
      %4425 = vmatprep.mubr.f32.mxu0 0.0
      %4426 = vmatmul.mubr.f32.gmra.mrb[0].mxu0 %v751
      %v4427 = vpop.f32.mrb[0].mxu0
      %v4428 = vadd.f32 0.0, %v4427
      %v4429 = vpop.f32.mrb[0].mxu0
      %4430 = vmatprep.mubr.f32.mxu0 0.0
      %4431 = vmatmul.mubr.f32.gmra.mrb[0].mxu0 %v753
      %v4432 = vpop.f32.mrb[0].mxu0
      %v4433 = vadd.f32 0.0, %v4432
      %v4434 = vpop.f32.mrb[0].mxu0
      %4435 = vmatprep.mubr.f32.mxu0 0.0
      %4436 = vmatmul.mubr.f32.gmra.mrb[0].mxu0 %v755
      %v4437 = vpop.f32.mrb[0].mxu0
      %v4438 = vadd.f32 0.0, %v4437
      %v4439 = vpop.f32.mrb[0].mxu0
      %4440 = vmatprep.mubr.f32.mxu0 0.0
      %4441 = vmatmul.mubr.f32.gmra.mrb[0].mxu0 %v757
      %v4442 = vpop.f32.mrb[0].mxu0
      %v4443 = vadd.f32 0.0, %v4442
      %v4444 = vpop.f32.mrb[0].mxu0
      %4445 = vmatprep.mubr.f32.mxu0 0.0
      %4446 = vmatmul.mubr.f32.gmra.mrb[0].mxu0 %v759
      %v4447 = vpop.f32.mrb[0].mxu0
      %v4448 = vadd.f32 0.0, %v4447
      %v4449 = vpop.f32.mrb[0].mxu0
      %4450 = vmatprep.mubr.f32.mxu0 0.0
      %4451 = vmatmul.mubr.f32.gmra.mrb[0].mxu0 %v761
      %v4452 = vpop.f32.mrb[0].mxu0
      %v4453 = vadd.f32 0.0, %v4452
      %v4454 = vpop.f32.mrb[0].mxu0
      %4455 = vmatprep.mubr.f32.mxu0 0.0
      %4456 = vmatmul.mubr.f32.gmra.mrb[0].mxu0 %v2397
      %v4457 = vpop.f32.mrb[0].mxu0
      %v4458 = vadd.f32 0.0, %v4457
      %v4459 = vpop.f32.mrb[0].mxu0
      %4460 = vmatprep.mubr.f32.mxu0 0.0
      %4461 = vmatmul.mubr.f32.gmra.mrb[0].mxu0 %v2399
      %v4462 = vpop.f32.mrb[0].mxu0
      %v4463 = vadd.f32 0.0, %v4462
      %v4464 = vpop.f32.mrb[0].mxu0
      %4465 = vdwg.mxu0
      %4466 = vst [vmem:[%s292] sm:$0xff] 0.0
      %4467 = vst [vmem:[%s292 + $0x8] sm:$0xff] 0.0
      %4468 = vst [vmem:[%s292 + $0x10] sm:$0x1] 0.0
      %4469 = vst [vmem:[%s292 + $0x111] sm:$0xff] 0.0
      %4470 = vst [vmem:[%s292 + $0x119] sm:$0xff] 0.0
      %4471 = vst [vmem:[%s292 + $0x121] sm:$0x1] 0.0
      %4472 = vst [vmem:[%s292 + $0x11] sm:$0xff] %v4205
      %4473 = vst [vmem:[%s292 + $0x19] sm:$0xff] %v4206
      %4474 = vst [vmem:[%s292 + $0x21] sm:$0xff] %v4207
      %4475 = vst [vmem:[%s292 + $0x29] sm:$0xff] %v4208
      %4476 = vst [vmem:[%s292 + $0x31] sm:$0xff] %v4209
      %4477 = vst [vmem:[%s292 + $0x39] sm:$0xff] %v4210
      %4478 = vst [vmem:[%s292 + $0x41] sm:$0xff] %v4211
      %4479 = vst [vmem:[%s292 + $0x49] sm:$0xff] %v4212
      %4480 = vst [vmem:[%s292 + $0x51] sm:$0xff] %v4213
      %4481 = vst [vmem:[%s292 + $0x59] sm:$0xff] %v4214
      %4482 = vst [vmem:[%s292 + $0x61] sm:$0xff] %v4215
      %4483 = vst [vmem:[%s292 + $0x69] sm:$0xff] %v4216
      %4484 = vst [vmem:[%s292 + $0x71] sm:$0xff] %v4217
      %4485 = vst [vmem:[%s292 + $0x79] sm:$0xff] %v4218
      %4486 = vst [vmem:[%s292 + $0x81] sm:$0xff] %v4219
      %4487 = vst [vmem:[%s292 + $0x89] sm:$0xff] %v4220
      %4488 = vst [vmem:[%s292 + $0x91] sm:$0xff] %v4221
      %4489 = vst [vmem:[%s292 + $0x99] sm:$0xff] %v4222
      %4490 = vst [vmem:[%s292 + $0xa1] sm:$0xff] %v4223
      %4491 = vst [vmem:[%s292 + $0xa9] sm:$0xff] %v4224
      %4492 = vst [vmem:[%s292 + $0xb1] sm:$0xff] %v4225
      %4493 = vst [vmem:[%s292 + $0xb9] sm:$0xff] %v4226
      %4494 = vst [vmem:[%s292 + $0xc1] sm:$0xff] %v4227
      %4495 = vst [vmem:[%s292 + $0xc9] sm:$0xff] %v4228
      %4496 = vst [vmem:[%s292 + $0xd1] sm:$0xff] %v4229
      %4497 = vst [vmem:[%s292 + $0xd9] sm:$0xff] %v4230
      %4498 = vst [vmem:[%s292 + $0xe1] sm:$0xff] %v4231
      %4499 = vst [vmem:[%s292 + $0xe9] sm:$0xff] %v4232
      %4500 = vst [vmem:[%s292 + $0xf1] sm:$0xff] %v4233
      %4501 = vst [vmem:[%s292 + $0xf9] sm:$0xff] %v4234
      %4502 = vst [vmem:[%s292 + $0x101] sm:$0xff] %v4235
      %4503 = vst [vmem:[%s292 + $0x109] sm:$0xff] %v4236
      %4504 = vst [vmem:[%s297] sm:$0xff] %v4308
      %4505 = vst [vmem:[%s297 + $0x8] sm:$0xff] %v4313
      %4506 = vst [vmem:[%s297 + $0x10] sm:$0xff] %v4318
      %4507 = vst [vmem:[%s297 + $0x18] sm:$0xff] %v4323
      %4508 = vst [vmem:[%s297 + $0x20] sm:$0xff] %v4328
      %4509 = vst [vmem:[%s297 + $0x28] sm:$0xff] %v4333
      %4510 = vst [vmem:[%s297 + $0x30] sm:$0xff] %v4338
      %4511 = vst [vmem:[%s297 + $0x38] sm:$0xff] %v4343
      %4512 = vst [vmem:[%s297 + $0x40] sm:$0xff] %v4348
      %4513 = vst [vmem:[%s297 + $0x48] sm:$0xff] %v4353
      %4514 = vst [vmem:[%s297 + $0x50] sm:$0xff] %v4358
      %4515 = vst [vmem:[%s297 + $0x58] sm:$0xff] %v4363
      %4516 = vst [vmem:[%s297 + $0x60] sm:$0xff] %v4368
      %4517 = vst [vmem:[%s297 + $0x68] sm:$0xff] %v4373
      %4518 = vst [vmem:[%s297 + $0x70] sm:$0xff] %v4378
      %4519 = vst [vmem:[%s297 + $0x78] sm:$0xff] %v4383
      %4520 = vst [vmem:[%s297 + $0x80] sm:$0xff] %v4388
      %4521 = vst [vmem:[%s297 + $0x88] sm:$0xff] %v4393
      %4522 = vst [vmem:[%s297 + $0x90] sm:$0xff] %v4398
      %4523 = vst [vmem:[%s297 + $0x98] sm:$0xff] %v4403
      %4524 = vst [vmem:[%s297 + $0xa0] sm:$0xff] %v4408
      %4525 = vst [vmem:[%s297 + $0xa8] sm:$0xff] %v4413
      %4526 = vst [vmem:[%s297 + $0xb0] sm:$0xff] %v4418
      %4527 = vst [vmem:[%s297 + $0xb8] sm:$0xff] %v4423
      %4528 = vst [vmem:[%s297 + $0xc0] sm:$0xff] %v4428
      %4529 = vst [vmem:[%s297 + $0xc8] sm:$0xff] %v4433
      %4530 = vst [vmem:[%s297 + $0xd0] sm:$0xff] %v4438
      %4531 = vst [vmem:[%s297 + $0xd8] sm:$0xff] %v4443
      %4532 = vst [vmem:[%s297 + $0xe0] sm:$0xff] %v4448
      %4533 = vst [vmem:[%s297 + $0xe8] sm:$0xff] %v4453
      %4534 = vst [vmem:[%s297 + $0xf0] sm:$0xff] %v4458
      %4535 = vst [vmem:[%s297 + $0xf8] sm:$0xff] %v4463
      %v4536 = vadd.f32 %v4205, %v4206
      %v4537 = vadd.f32 %v4536, %v4207
      %v4538 = vadd.f32 %v4537, %v4208
      %v4539 = vadd.f32 %v4538, %v4209
      %v4540 = vadd.f32 %v4539, %v4210
      %v4541 = vadd.f32 %v4540, %v4211
      %v4542 = vadd.f32 %v4541, %v4212
      %v4543 = vadd.f32 %v4542, %v4213
      %v4544 = vadd.f32 %v4543, %v4214
      %v4545 = vadd.f32 %v4544, %v4215
      %v4546 = vadd.f32 %v4545, %v4216
      %v4547 = vadd.f32 %v4546, %v4217
      %v4548 = vadd.f32 %v4547, %v4218
      %v4549 = vadd.f32 %v4548, %v4219
      %v4550 = vadd.f32 %v4549, %v4220
      %v4551 = vadd.f32 %v4550, %v4221
      %v4552 = vadd.f32 %v4551, %v4222
      %v4553 = vadd.f32 %v4552, %v4223
      %v4554 = vadd.f32 %v4553, %v4224
      %v4555 = vadd.f32 %v4554, %v4225
      %v4556 = vadd.f32 %v4555, %v4226
      %v4557 = vadd.f32 %v4556, %v4227
      %v4558 = vadd.f32 %v4557, %v4228
      %v4559 = vadd.f32 %v4558, %v4229
      %v4560 = vadd.f32 %v4559, %v4230
      %v4561 = vadd.f32 %v4560, %v4231
      %v4562 = vadd.f32 %v4561, %v4232
      %v4563 = vadd.f32 %v4562, %v4233
      %v4564 = vadd.f32 %v4563, %v4234
      %v4565 = vadd.f32 %v4564, %v4235
      %v4566 = vadd.f32 %v4565, %v4236
      %v4567 = vrot.slane %v4566, 4
      %v4568 = vadd.f32 %v4566, %v4567
      %v4569 = vrot.slane %v4568, 2
      %v4570 = vadd.f32 %v4568, %v4569
      %v4571 = vrot.slane %v4570, 1
      %v4572 = vadd.f32 %v4570, %v4571
      %4573 = vst [vmem:[%s302] sm:$0x1] %v4572
      %v4574 = vmul.f32 %v4205, %v4205
      %v4575 = vmul.f32 %v4206, %v4206
      %v4576 = vmul.f32 %v4207, %v4207
      %v4577 = vmul.f32 %v4208, %v4208
      %v4578 = vmul.f32 %v4209, %v4209
      %v4579 = vmul.f32 %v4210, %v4210
      %v4580 = vmul.f32 %v4211, %v4211
      %v4581 = vmul.f32 %v4212, %v4212
      %v4582 = vmul.f32 %v4213, %v4213
      %v4583 = vmul.f32 %v4214, %v4214
      %v4584 = vmul.f32 %v4215, %v4215
      %v4585 = vmul.f32 %v4216, %v4216
      %v4586 = vmul.f32 %v4217, %v4217
      %v4587 = vmul.f32 %v4218, %v4218
      %v4588 = vmul.f32 %v4219, %v4219
      %v4589 = vmul.f32 %v4220, %v4220
      %v4590 = vmul.f32 %v4221, %v4221
      %v4591 = vmul.f32 %v4222, %v4222
      %v4592 = vmul.f32 %v4223, %v4223
      %v4593 = vmul.f32 %v4224, %v4224
      %v4594 = vmul.f32 %v4225, %v4225
      %v4595 = vmul.f32 %v4226, %v4226
      %v4596 = vmul.f32 %v4227, %v4227
      %v4597 = vmul.f32 %v4228, %v4228
      %v4598 = vmul.f32 %v4229, %v4229
      %v4599 = vmul.f32 %v4230, %v4230
      %v4600 = vmul.f32 %v4231, %v4231
      %v4601 = vmul.f32 %v4232, %v4232
      %v4602 = vmul.f32 %v4233, %v4233
      %v4603 = vmul.f32 %v4234, %v4234
      %v4604 = vmul.f32 %v4235, %v4235
      %v4605 = vmul.f32 %v4236, %v4236
      %v4606 = vadd.f32 %v4574, %v4575
      %v4607 = vadd.f32 %v4606, %v4576
      %v4608 = vadd.f32 %v4607, %v4577
      %v4609 = vadd.f32 %v4608, %v4578
      %v4610 = vadd.f32 %v4609, %v4579
      %v4611 = vadd.f32 %v4610, %v4580
      %v4612 = vadd.f32 %v4611, %v4581
      %v4613 = vadd.f32 %v4612, %v4582
      %v4614 = vadd.f32 %v4613, %v4583
      %v4615 = vadd.f32 %v4614, %v4584
      %v4616 = vadd.f32 %v4615, %v4585
      %v4617 = vadd.f32 %v4616, %v4586
      %v4618 = vadd.f32 %v4617, %v4587
      %v4619 = vadd.f32 %v4618, %v4588
      %v4620 = vadd.f32 %v4619, %v4589
      %v4621 = vadd.f32 %v4620, %v4590
      %v4622 = vadd.f32 %v4621, %v4591
      %v4623 = vadd.f32 %v4622, %v4592
      %v4624 = vadd.f32 %v4623, %v4593
      %v4625 = vadd.f32 %v4624, %v4594
      %v4626 = vadd.f32 %v4625, %v4595
      %v4627 = vadd.f32 %v4626, %v4596
      %v4628 = vadd.f32 %v4627, %v4597
      %v4629 = vadd.f32 %v4628, %v4598
      %v4630 = vadd.f32 %v4629, %v4599
      %v4631 = vadd.f32 %v4630, %v4600
      %v4632 = vadd.f32 %v4631, %v4601
      %v4633 = vadd.f32 %v4632, %v4602
      %v4634 = vadd.f32 %v4633, %v4603
      %v4635 = vadd.f32 %v4634, %v4604
      %v4636 = vadd.f32 %v4635, %v4605
      %v4637 = vrot.slane %v4636, 4
      %v4638 = vadd.f32 %v4636, %v4637
      %v4639 = vrot.slane %v4638, 2
      %v4640 = vadd.f32 %v4638, %v4639
      %v4641 = vrot.slane %v4640, 1
      %v4642 = vadd.f32 %v4640, %v4641
      %4643 = vst [vmem:[%s302 + $0x1] sm:$0x1] %v4642
      %v4644 = vadd.f32 %v4308, %v4313
      %v4645 = vadd.f32 %v4644, %v4318
      %v4646 = vadd.f32 %v4645, %v4323
      %v4647 = vadd.f32 %v4646, %v4328
      %v4648 = vadd.f32 %v4647, %v4333
      %v4649 = vadd.f32 %v4648, %v4338
      %v4650 = vadd.f32 %v4649, %v4343
      %v4651 = vadd.f32 %v4650, %v4348
      %v4652 = vadd.f32 %v4651, %v4353
      %v4653 = vadd.f32 %v4652, %v4358
      %v4654 = vadd.f32 %v4653, %v4363
      %v4655 = vadd.f32 %v4654, %v4368
      %v4656 = vadd.f32 %v4655, %v4373
      %v4657 = vadd.f32 %v4656, %v4378
      %v4658 = vadd.f32 %v4657, %v4383
      %v4659 = vadd.f32 %v4658, %v4388
      %v4660 = vadd.f32 %v4659, %v4393
      %v4661 = vadd.f32 %v4660, %v4398
      %v4662 = vadd.f32 %v4661, %v4403
      %v4663 = vadd.f32 %v4662, %v4408
      %v4664 = vadd.f32 %v4663, %v4413
      %v4665 = vadd.f32 %v4664, %v4418
      %v4666 = vadd.f32 %v4665, %v4423
      %v4667 = vadd.f32 %v4666, %v4428
      %v4668 = vadd.f32 %v4667, %v4433
      %v4669 = vadd.f32 %v4668, %v4438
      %v4670 = vadd.f32 %v4669, %v4443
      %v4671 = vadd.f32 %v4670, %v4448
      %v4672 = vadd.f32 %v4671, %v4453
      %v4673 = vadd.f32 %v4672, %v4458
      %v4674 = vadd.f32 %v4673, %v4463
      %v4675 = vrot.slane %v4674, 4
      %v4676 = vadd.f32 %v4674, %v4675
      %v4677 = vrot.slane %v4676, 2
      %v4678 = vadd.f32 %v4676, %v4677
      %v4679 = vrot.slane %v4678, 1
      %v4680 = vadd.f32 %v4678, %v4679
      %4681 = vst [vmem:[%s302 + $0x2] sm:$0x1] %v4680
      %v4682 = vmul.f32 %v4308, %v4308
      %v4683 = vmul.f32 %v4313, %v4313
      %v4684 = vmul.f32 %v4318, %v4318
      %v4685 = vmul.f32 %v4323, %v4323
      %v4686 = vmul.f32 %v4328, %v4328
      %v4687 = vmul.f32 %v4333, %v4333
      %v4688 = vmul.f32 %v4338, %v4338
      %v4689 = vmul.f32 %v4343, %v4343
      %v4690 = vmul.f32 %v4348, %v4348
      %v4691 = vmul.f32 %v4353, %v4353
      %v4692 = vmul.f32 %v4358, %v4358
      %v4693 = vmul.f32 %v4363, %v4363
      %v4694 = vmul.f32 %v4368, %v4368
      %v4695 = vmul.f32 %v4373, %v4373
      %v4696 = vmul.f32 %v4378, %v4378
      %v4697 = vmul.f32 %v4383, %v4383
      %v4698 = vmul.f32 %v4388, %v4388
      %v4699 = vmul.f32 %v4393, %v4393
      %v4700 = vmul.f32 %v4398, %v4398
      %v4701 = vmul.f32 %v4403, %v4403
      %v4702 = vmul.f32 %v4408, %v4408
      %v4703 = vmul.f32 %v4413, %v4413
      %v4704 = vmul.f32 %v4418, %v4418
      %v4705 = vmul.f32 %v4423, %v4423
      %v4706 = vmul.f32 %v4428, %v4428
      %v4707 = vmul.f32 %v4433, %v4433
      %v4708 = vmul.f32 %v4438, %v4438
      %v4709 = vmul.f32 %v4443, %v4443
      %v4710 = vmul.f32 %v4448, %v4448
      %v4711 = vmul.f32 %v4453, %v4453
      %v4712 = vmul.f32 %v4458, %v4458
      %v4713 = vmul.f32 %v4463, %v4463
      %v4714 = vadd.f32 %v4682, %v4683
      %v4715 = vadd.f32 %v4714, %v4684
      %v4716 = vadd.f32 %v4715, %v4685
      %v4717 = vadd.f32 %v4716, %v4686
      %v4718 = vadd.f32 %v4717, %v4687
      %v4719 = vadd.f32 %v4718, %v4688
      %v4720 = vadd.f32 %v4719, %v4689
      %v4721 = vadd.f32 %v4720, %v4690
      %v4722 = vadd.f32 %v4721, %v4691
      %v4723 = vadd.f32 %v4722, %v4692
      %v4724 = vadd.f32 %v4723, %v4693
      %v4725 = vadd.f32 %v4724, %v4694
      %v4726 = vadd.f32 %v4725, %v4695
      %v4727 = vadd.f32 %v4726, %v4696
      %v4728 = vadd.f32 %v4727, %v4697
      %v4729 = vadd.f32 %v4728, %v4698
      %v4730 = vadd.f32 %v4729, %v4699
      %v4731 = vadd.f32 %v4730, %v4700
      %v4732 = vadd.f32 %v4731, %v4701
      %v4733 = vadd.f32 %v4732, %v4702
      %v4734 = vadd.f32 %v4733, %v4703
      %v4735 = vadd.f32 %v4734, %v4704
      %v4736 = vadd.f32 %v4735, %v4705
      %v4737 = vadd.f32 %v4736, %v4706
      %v4738 = vadd.f32 %v4737, %v4707
      %v4739 = vadd.f32 %v4738, %v4708
      %v4740 = vadd.f32 %v4739, %v4709
      %v4741 = vadd.f32 %v4740, %v4710
      %v4742 = vadd.f32 %v4741, %v4711
      %v4743 = vadd.f32 %v4742, %v4712
      %v4744 = vadd.f32 %v4743, %v4713
      %v4745 = vrot.slane %v4744, 4
      %v4746 = vadd.f32 %v4744, %v4745
      %v4747 = vrot.slane %v4746, 2
      %v4748 = vadd.f32 %v4746, %v4747
      %v4749 = vrot.slane %v4748, 1
      %v4750 = vadd.f32 %v4748, %v4749
      %4751 = vst [vmem:[%s302 + $0x3] sm:$0x1] %v4750
      %p4752 = scmp.lt.s32.totalorder %s19, 1
      %s4753 = scalar_select %p4752, %s19, 1
      %s4754 = smul.addr %s4753, 37
      %s4755 = smul.addr %s4754, 8
      %s4756 = scalar_lea.vmem %s5, %s4755
      %s4757 = smul.u32 32, %s19
      %p4758 = scmp.lt.s32.totalorder %s4757, 63
      %s4759 = scalar_select %p4758, %s4757, 63
      %s4760 = smul.addr %s4759, 8
      %s4761 = scalar_lea.vmem %s6, %s4760
      %p4762 = scmp.lt.s32.totalorder %s19, 1
      %s4763 = scalar_select %p4762, %s19, 1
      %s4764 = smul.addr %s4763, 4
      %s4765 = scalar_lea.vmem %s7, %s4764
      // Predicated region
      $region41: #{res_block_forward.3} parent=39 // pred_check
        %p4766 = pneg %p147
      $region42: #{res_block_forward.3} parent=39 // pred_check_branch
        %4768 = sbr.rel (%p4766) target = $region44
      $region43: #{res_block_forward.3} parent=39 // pred_region
        _
      $region44: #{res_block_forward.3} parent=39 // pred_fallthru
        _
      // Predicated region
      $region45: #{res_block_forward.3} parent=39 // pred_check
        %p4769 = pneg %p173
      $region46: #{res_block_forward.3} parent=39 // pred_check_branch
        %4771 = sbr.rel (%p4769) target = $region48
      $region47: #{res_block_forward.3} parent=39 // pred_region
        %s4772 = smul.u32 32, %s19
      $region48: #{res_block_forward.3} parent=39 // pred_fallthru
        _
      // Predicated region
      $region49: #{res_block_forward.3} parent=39 // pred_check
        %p4773 = pneg %p199
      $region50: #{res_block_forward.3} parent=39 // pred_check_branch
        %4775 = sbr.rel (%p4773) target = $region52
      $region51: #{res_block_forward.3} parent=39 // pred_region
        _
      $region52: #{res_block_forward.3} parent=39 // pred_fallthru
        _
    $region40: #{res_block_forward.3} parent=5 // pred_fallthru
      _
    %p4776 = scmp.le.s32.totalorder 2, %s14
    // Predicated region
    $region53: #{res_block_forward.3} parent=5 // pred_check
      %p4777 = pneg %p4776
    $region54: #{res_block_forward.3} parent=5 // pred_check_branch
      %4779 = sbr.rel (%p4777) target = $region56
    $region55: #{res_block_forward.3} parent=5 // pred_region
      %s4780 = ssub.s32 %s14, 2
      // Predicated region
      $region57: #{res_block_forward.3} parent=55 // pred_check
        %p4781 = pneg %p153
      $region58: #{res_block_forward.3} parent=55 // pred_check_branch
        %4783 = sbr.rel (%p4781) target = $region60
      $region59: #{res_block_forward.3} parent=55 // pred_region
        %p4784 = scmp.lt.s32.totalorder %s20, 1
        %s4785 = scalar_select %p4784, %s20, 1
        %s4786 = smul.addr %s4785, 37
        %s4787 = smul.addr %s4786, 8
        %s4788 = scalar_lea.vmem %s5, %s4787
      $region60: #{res_block_forward.3} parent=55 // pred_fallthru
        _
      // Predicated region
      $region61: #{res_block_forward.3} parent=55 // pred_check
        %p4789 = pneg %p179
      $region62: #{res_block_forward.3} parent=55 // pred_check_branch
        %4791 = sbr.rel (%p4789) target = $region64
      $region63: #{res_block_forward.3} parent=55 // pred_region
        %s4792 = smul.u32 32, %s20
        %p4793 = scmp.lt.s32.totalorder %s4792, 63
        %s4794 = scalar_select %p4793, %s4792, 63
        %s4795 = smul.addr %s4794, 8
        %s4796 = scalar_lea.vmem %s6, %s4795
      $region64: #{res_block_forward.3} parent=55 // pred_fallthru
        _
      // Predicated region
      $region65: #{res_block_forward.3} parent=55 // pred_check
        %p4797 = pneg %p205
      $region66: #{res_block_forward.3} parent=55 // pred_check_branch
        %4799 = sbr.rel (%p4797) target = $region68
      $region67: #{res_block_forward.3} parent=55 // pred_region
        %p4800 = scmp.lt.s32.totalorder %s20, 1
        %s4801 = scalar_select %p4800, %s20, 1
        %s4802 = smul.addr %s4801, 4
        %s4803 = scalar_lea.vmem %s7, %s4802
      $region68: #{res_block_forward.3} parent=55 // pred_fallthru
        _
    $region56: #{res_block_forward.3} parent=5 // pred_fallthru
      _
  $region6: #{res_block_forward.3} parent=0 // loop_footer
    %s18 = sadd.s32 1, %s14
  $region7: #{res_block_forward.3} parent=0 // loop_footer_branch
    %13 = sbr.rel target = $region3
  $region8: #{res_block_forward.3} parent=0 // loop_exit
    _

// kernel: res_block_forward.4
$region0: #{res_block_forward.4}
  #allocation0 [shape = 'u32[]', space=smem, size = 0x4, offset = 0x4, fixed_abs, tag = 'smem constant byte address 0x4 - core index']
  #allocation1 [shape = 'u32[144,128]{1,0:T(1,128)}', space=vmem, size = 0x12000, scoped, tag = 'internal scratch']
  #allocation2 [shape = 'f32[290,128]{1,0:T(8,128)}', space=vmem, size = 0x25000, scoped, tag = 'scratch operand']
  %s0 = inlined_call_operand.vmem [shape: f32[2,290,128], index: 0, kind: input, shape index: {}]
  %s1 = inlined_call_operand.vmem [shape: f32[9,128,128], index: 1, kind: input, shape index: {}]
  %s2 = inlined_call_operand.vmem [shape: f32[1,128], index: 2, kind: input, shape index: {}]
  %s3 = inlined_call_operand.vmem [shape: f32[1,128], index: 3, kind: input, shape index: {}]
  %s4 = inlined_call_operand.vmem [shape: f32[290,1], index: 4, kind: input, shape index: {}]
  %s5 = inlined_call_operand.vmem [shape: f32[256,1], index: 5, kind: input, shape index: {}]
  %s6 = inlined_call_operand.vmem [shape: f32[256,1], index: 6, kind: input, shape index: {}]
  %s7 = inlined_call_operand.vmem [shape: f32[512,128], index: 7, kind: output, shape index: {0}]
  %s8 = inlined_call_operand.vmem [shape: f32[2,2,128], index: 8, kind: output, shape index: {1}]
  %9 = xla_tuple %s7, %s8
  %s10 = sld [smem:[#allocation0]]
  $region69: #{res_block_forward.4} parent=0
    _
  %s12 = ssub.s32 1, %s10
  %s13 = scalar_select 0, %s12, %s10
  loop: start=0, step=1, limit=4
  $region2: #{res_block_forward.4} parent=0 // loop_pre_header
    _
  $region3: #{res_block_forward.4} parent=0 // loop_header
    %s15 = sphi 0, %s19
    %p16 = scmp.ge.s32.totalorder %s15, 4
    %s25 = sphi 0, %s27
    %s28 = sphi 0, %s25
    %s29 = sphi 0, %s28
    %s45 = sphi 0, %s29
    %s49 = sphi 0, %s49
    %s51 = sphi 0, %s49
    %s52 = sphi 0, %s51
    %s66 = sphi 0, %s52
    %s70 = sphi 0, %s70
    %s72 = sphi 0, %s70
    %s73 = sphi 0, %s72
    %s87 = sphi 0, %s73
    %s91 = sphi 0, %s91
    %s93 = sphi 0, %s91
    %s94 = sphi 0, %s93
    %s108 = sphi 0, %s94
    %s112 = sphi 0, %s112
    %s114 = sphi 0, %s112
    %s115 = sphi 0, %s114
    %s129 = sphi 0, %s115
    %s133 = sphi 0, %s133
    %s135 = sphi 0, %s133
    %s136 = sphi 0, %s135
    %s150 = sphi 0, %s136
    %s154 = sphi 0, %s154
    %s156 = sphi 0, %s154
    %s157 = sphi 0, %s156
    %s171 = sphi 0, %s157
    %s177 = sphi 0, %s179
    %s180 = sphi 0, %s177
    %s181 = sphi 0, %s180
    %s197 = sphi 0, %s181
    %s203 = sphi 0, %s205
    %s206 = sphi 0, %s203
    %s207 = sphi 0, %s206
    %s223 = sphi 0, %s207
  $region4: #{res_block_forward.4} parent=0 // loop_header_branch
    %18 = sbr.rel (%p16) target = $region8
  $region5: #{res_block_forward.4} parent=0 // loop_body
    %s20 = ssub.s32 %s15, 1
    %s21 = ssub.s32 %s15, 2
    %s22 = sadd.s32 %s15, 1
    %s23 = ssub.s32 %s15, %s22
    %p24 = scmp.eq.s32.totalorder %s23, 0
    %s26 = sadd.s32 %s25, 1
    %s27 = scalar_select %p24, %s25, %s26
    %p30 = pneg %p24
    %p31 = scmp.eq.s32.totalorder %s15, 1
    %p32 = por %p30, %p31
    %p33 = scmp.ne.s32.totalorder %s25, %s28
    %p34 = scmp.eq.s32.totalorder %s15, 0
    %p35 = por %p33, %p34
    %p36 = scmp.ne.s32.totalorder %s25, %s28
    %p37 = scmp.eq.s32.totalorder %s20, 1
    %p38 = por %p36, %p37
    %p39 = scmp.ne.s32.totalorder %s28, %s29
    %p40 = scmp.eq.s32.totalorder %s20, 0
    %p41 = por %p39, %p40
    %p42 = scmp.ne.s32.totalorder %s28, %s29
    %p43 = scmp.eq.s32.totalorder %s21, 1
    %p44 = por %p42, %p43
    %p46 = scmp.ne.s32.totalorder %s29, %s45
    %p47 = scmp.eq.s32.totalorder %s21, 0
    %p48 = por %p46, %p47
    %s50 = sadd.s32 %s49, 1
    %p53 = scmp.eq.s32.totalorder %s15, 1
    %p54 = scmp.ne.s32.totalorder %s49, %s51
    %p55 = scmp.eq.s32.totalorder %s15, 0
    %p56 = por %p54, %p55
    %p57 = scmp.ne.s32.totalorder %s49, %s51
    %p58 = scmp.eq.s32.totalorder %s20, 1
    %p59 = por %p57, %p58
    %p60 = scmp.ne.s32.totalorder %s51, %s52
    %p61 = scmp.eq.s32.totalorder %s20, 0
    %p62 = por %p60, %p61
    %p63 = scmp.ne.s32.totalorder %s51, %s52
    %p64 = scmp.eq.s32.totalorder %s21, 1
    %p65 = por %p63, %p64
    %p67 = scmp.ne.s32.totalorder %s52, %s66
    %p68 = scmp.eq.s32.totalorder %s21, 0
    %p69 = por %p67, %p68
    %s71 = sadd.s32 %s70, 1
    %p74 = scmp.eq.s32.totalorder %s15, 1
    %p75 = scmp.ne.s32.totalorder %s70, %s72
    %p76 = scmp.eq.s32.totalorder %s15, 0
    %p77 = por %p75, %p76
    %p78 = scmp.ne.s32.totalorder %s70, %s72
    %p79 = scmp.eq.s32.totalorder %s20, 1
    %p80 = por %p78, %p79
    %p81 = scmp.ne.s32.totalorder %s72, %s73
    %p82 = scmp.eq.s32.totalorder %s20, 0
    %p83 = por %p81, %p82
    %p84 = scmp.ne.s32.totalorder %s72, %s73
    %p85 = scmp.eq.s32.totalorder %s21, 1
    %p86 = por %p84, %p85
    %p88 = scmp.ne.s32.totalorder %s73, %s87
    %p89 = scmp.eq.s32.totalorder %s21, 0
    %p90 = por %p88, %p89
    %s92 = sadd.s32 %s91, 1
    %p95 = scmp.eq.s32.totalorder %s15, 1
    %p96 = scmp.ne.s32.totalorder %s91, %s93
    %p97 = scmp.eq.s32.totalorder %s15, 0
    %p98 = por %p96, %p97
    %p99 = scmp.ne.s32.totalorder %s91, %s93
    %p100 = scmp.eq.s32.totalorder %s20, 1
    %p101 = por %p99, %p100
    %p102 = scmp.ne.s32.totalorder %s93, %s94
    %p103 = scmp.eq.s32.totalorder %s20, 0
    %p104 = por %p102, %p103
    %p105 = scmp.ne.s32.totalorder %s93, %s94
    %p106 = scmp.eq.s32.totalorder %s21, 1
    %p107 = por %p105, %p106
    %p109 = scmp.ne.s32.totalorder %s94, %s108
    %p110 = scmp.eq.s32.totalorder %s21, 0
    %p111 = por %p109, %p110
    %s113 = sadd.s32 %s112, 1
    %p116 = scmp.eq.s32.totalorder %s15, 1
    %p117 = scmp.ne.s32.totalorder %s112, %s114
    %p118 = scmp.eq.s32.totalorder %s15, 0
    %p119 = por %p117, %p118
    %p120 = scmp.ne.s32.totalorder %s112, %s114
    %p121 = scmp.eq.s32.totalorder %s20, 1
    %p122 = por %p120, %p121
    %p123 = scmp.ne.s32.totalorder %s114, %s115
    %p124 = scmp.eq.s32.totalorder %s20, 0
    %p125 = por %p123, %p124
    %p126 = scmp.ne.s32.totalorder %s114, %s115
    %p127 = scmp.eq.s32.totalorder %s21, 1
    %p128 = por %p126, %p127
    %p130 = scmp.ne.s32.totalorder %s115, %s129
    %p131 = scmp.eq.s32.totalorder %s21, 0
    %p132 = por %p130, %p131
    %s134 = sadd.s32 %s133, 1
    %p137 = scmp.eq.s32.totalorder %s15, 1
    %p138 = scmp.ne.s32.totalorder %s133, %s135
    %p139 = scmp.eq.s32.totalorder %s15, 0
    %p140 = por %p138, %p139
    %p141 = scmp.ne.s32.totalorder %s133, %s135
    %p142 = scmp.eq.s32.totalorder %s20, 1
    %p143 = por %p141, %p142
    %p144 = scmp.ne.s32.totalorder %s135, %s136
    %p145 = scmp.eq.s32.totalorder %s20, 0
    %p146 = por %p144, %p145
    %p147 = scmp.ne.s32.totalorder %s135, %s136
    %p148 = scmp.eq.s32.totalorder %s21, 1
    %p149 = por %p147, %p148
    %p151 = scmp.ne.s32.totalorder %s136, %s150
    %p152 = scmp.eq.s32.totalorder %s21, 0
    %p153 = por %p151, %p152
    %s155 = sadd.s32 %s154, 1
    %p158 = scmp.eq.s32.totalorder %s15, 1
    %p159 = scmp.ne.s32.totalorder %s154, %s156
    %p160 = scmp.eq.s32.totalorder %s15, 0
    %p161 = por %p159, %p160
    %p162 = scmp.ne.s32.totalorder %s154, %s156
    %p163 = scmp.eq.s32.totalorder %s20, 1
    %p164 = por %p162, %p163
    %p165 = scmp.ne.s32.totalorder %s156, %s157
    %p166 = scmp.eq.s32.totalorder %s20, 0
    %p167 = por %p165, %p166
    %p168 = scmp.ne.s32.totalorder %s156, %s157
    %p169 = scmp.eq.s32.totalorder %s21, 1
    %p170 = por %p168, %p169
    %p172 = scmp.ne.s32.totalorder %s157, %s171
    %p173 = scmp.eq.s32.totalorder %s21, 0
    %p174 = por %p172, %p173
    %s175 = ssub.s32 %s15, %s22
    %p176 = scmp.eq.s32.totalorder %s175, 0
    %s178 = sadd.s32 %s177, 1
    %s179 = scalar_select %p176, %s177, %s178
    %p182 = pneg %p176
    %p183 = scmp.eq.s32.totalorder %s15, 1
    %p184 = por %p182, %p183
    %p185 = scmp.ne.s32.totalorder %s177, %s180
    %p186 = scmp.eq.s32.totalorder %s15, 0
    %p187 = por %p185, %p186
    %p188 = scmp.ne.s32.totalorder %s177, %s180
    %p189 = scmp.eq.s32.totalorder %s20, 1
    %p190 = por %p188, %p189
    %p191 = scmp.ne.s32.totalorder %s180, %s181
    %p192 = scmp.eq.s32.totalorder %s20, 0
    %p193 = por %p191, %p192
    %p194 = scmp.ne.s32.totalorder %s180, %s181
    %p195 = scmp.eq.s32.totalorder %s21, 1
    %p196 = por %p194, %p195
    %p198 = scmp.ne.s32.totalorder %s181, %s197
    %p199 = scmp.eq.s32.totalorder %s21, 0
    %p200 = por %p198, %p199
    %s201 = ssub.s32 %s15, %s22
    %p202 = scmp.eq.s32.totalorder %s201, 0
    %s204 = sadd.s32 %s203, 1
    %s205 = scalar_select %p202, %s203, %s204
    %p208 = pneg %p202
    %p209 = scmp.eq.s32.totalorder %s15, 1
    %p210 = por %p208, %p209
    %p211 = scmp.ne.s32.totalorder %s203, %s206
    %p212 = scmp.eq.s32.totalorder %s15, 0
    %p213 = por %p211, %p212
    %p214 = scmp.ne.s32.totalorder %s203, %s206
    %p215 = scmp.eq.s32.totalorder %s20, 1
    %p216 = por %p214, %p215
    %p217 = scmp.ne.s32.totalorder %s206, %s207
    %p218 = scmp.eq.s32.totalorder %s20, 0
    %p219 = por %p217, %p218
    %p220 = scmp.ne.s32.totalorder %s206, %s207
    %p221 = scmp.eq.s32.totalorder %s21, 1
    %p222 = por %p220, %p221
    %p224 = scmp.ne.s32.totalorder %s207, %s223
    %p225 = scmp.eq.s32.totalorder %s21, 0
    %p226 = por %p224, %p225
    %p227 = scmp.le.s32.totalorder 1, %s15
    %p228 = scmp.lt.s32.totalorder %s15, 3
    %p229 = pnand %p227, %p228
    %p230 = pneg %p229
    // Predicated region
    $region9: #{res_block_forward.4} parent=5 // pred_check
      _
    $region10: #{res_block_forward.4} parent=5 // pred_check_branch
      %232 = sbr.rel (%p229) target = $region12
    $region11: #{res_block_forward.4} parent=5 // pred_region
      %s233 = ssub.s32 %s15, 1
      // Predicated region
      $region13: #{res_block_forward.4} parent=11 // pred_check
        %p234 = pneg %p62
      $region14: #{res_block_forward.4} parent=11 // pred_check_branch
        %236 = sbr.rel (%p234) target = $region16
      $region15: #{res_block_forward.4} parent=11 // pred_region
        _
      $region16: #{res_block_forward.4} parent=11 // pred_fallthru
        _
      // Predicated region
      $region17: #{res_block_forward.4} parent=11 // pred_check
        %p237 = pneg %p83
      $region18: #{res_block_forward.4} parent=11 // pred_check_branch
        %239 = sbr.rel (%p237) target = $region20
      $region19: #{res_block_forward.4} parent=11 // pred_region
        _
      $region20: #{res_block_forward.4} parent=11 // pred_fallthru
        _
      // Predicated region
      $region21: #{res_block_forward.4} parent=11 // pred_check
        %p240 = pneg %p104
      $region22: #{res_block_forward.4} parent=11 // pred_check_branch
        %242 = sbr.rel (%p240) target = $region24
      $region23: #{res_block_forward.4} parent=11 // pred_region
        _
      $region24: #{res_block_forward.4} parent=11 // pred_fallthru
        _
      // Predicated region
      $region25: #{res_block_forward.4} parent=11 // pred_check
        %p243 = pneg %p125
      $region26: #{res_block_forward.4} parent=11 // pred_check_branch
        %245 = sbr.rel (%p243) target = $region28
      $region27: #{res_block_forward.4} parent=11 // pred_region
        _
      $region28: #{res_block_forward.4} parent=11 // pred_fallthru
        _
      // Predicated region
      $region29: #{res_block_forward.4} parent=11 // pred_check
        %p246 = pneg %p146
      $region30: #{res_block_forward.4} parent=11 // pred_check_branch
        %248 = sbr.rel (%p246) target = $region32
      $region31: #{res_block_forward.4} parent=11 // pred_region
        _
      $region32: #{res_block_forward.4} parent=11 // pred_fallthru
        _
      // Predicated region
      $region33: #{res_block_forward.4} parent=11 // pred_check
        %p249 = pneg %p167
      $region34: #{res_block_forward.4} parent=11 // pred_check_branch
        %251 = sbr.rel (%p249) target = $region36
      $region35: #{res_block_forward.4} parent=11 // pred_region
        _
      $region36: #{res_block_forward.4} parent=11 // pred_fallthru
        _
    $region12: #{res_block_forward.4} parent=5 // pred_fallthru
      _
    %p252 = scmp.lt.s32.totalorder %s15, 2
    // Predicated region
    $region37: #{res_block_forward.4} parent=5 // pred_check
      %p253 = pneg %p252
    $region38: #{res_block_forward.4} parent=5 // pred_check_branch
      %255 = sbr.rel (%p253) target = $region40
    $region39: #{res_block_forward.4} parent=5 // pred_region
      // Predicated region
      $region41: #{res_block_forward.4} parent=39 // pred_check
        %p256 = pneg %p35
      $region42: #{res_block_forward.4} parent=39 // pred_check_branch
        %258 = sbr.rel (%p256) target = $region44
      $region43: #{res_block_forward.4} parent=39 // pred_region
        %p259 = scmp.lt.s32.totalorder %s15, 1
        %s260 = scalar_select %p259, %s15, 1
        %s261 = smul.addr %s260, 37
        %s262 = smul.addr %s261, 8
        %s263 = scalar_lea.vmem %s0, %s262
      $region44: #{res_block_forward.4} parent=39 // pred_fallthru
        _
    $region40: #{res_block_forward.4} parent=5 // pred_fallthru
      _
    %p264 = scmp.le.s32.totalorder 1, %s15
    %p265 = scmp.lt.s32.totalorder %s15, 3
    %p266 = pnand %p264, %p265
    %p267 = pneg %p266
    // Predicated region
    $region45: #{res_block_forward.4} parent=5 // pred_check
      _
    $region46: #{res_block_forward.4} parent=5 // pred_check_branch
      %269 = sbr.rel (%p266) target = $region48
    $region47: #{res_block_forward.4} parent=5 // pred_region
      %s270 = ssub.s32 %s15, 1
      %p271 = scmp.lt.s32.totalorder %s20, 1
      %s272 = scalar_select %p271, %s20, 1
      %s273 = smul.addr %s272, 37
      %s274 = smul.addr %s273, 8
      %s275 = scalar_lea.vmem %s0, %s274
      %p276 = pneg %p41
      %p277 = pneg %p38
      %p278 = pneg %p62
      %p279 = pneg %p59
      %p280 = pneg %p83
      %p281 = pneg %p80
      %p282 = pneg %p104
      %p283 = pneg %p101
      %p284 = pneg %p125
      %p285 = pneg %p122
      %p286 = pneg %p146
      %p287 = pneg %p143
      %p288 = pneg %p167
      %p289 = pneg %p164
      %p290 = pneg %p193
      %p291 = pneg %p190
      %s292 = smul.u32 32, %s20
      %p293 = scmp.lt.s32.totalorder %s292, 63
      %s294 = scalar_select %p293, %s292, 63
      %s295 = smul.addr %s294, 8
      %s296 = scalar_lea.vmem %s7, %s295
      %p297 = pneg %p219
      %p298 = pneg %p216
      %p299 = scmp.lt.s32.totalorder %s20, 1
      %s300 = scalar_select %p299, %s20, 1
      %s301 = smul.addr %s300, 2
      %s302 = scalar_lea.vmem %s8, %s301
      %p303 = scmp.lt.s32.totalorder %s20, 1
      %s304 = scalar_select %p303, %s20, 1
      %s305 = smul.addr %s304, 37
      %s306 = smul.addr %s305, 8
      %s307 = scalar_lea.vmem %s0, %s306
      %s308 = smul.u32 32, %s20
      %p309 = scmp.lt.s32.totalorder %s308, 63
      %s310 = scalar_select %p309, %s308, 63
      %s311 = smul.addr %s310, 8
      %s312 = scalar_lea.vmem %s7, %s311
      %s313 = smul.u32 32, %s20
      %p314 = scmp.lt.s32.totalorder %s20, 1
      %s315 = scalar_select %p314, %s20, 1
      %s316 = smul.addr %s315, 2
      %s317 = scalar_lea.vmem %s8, %s316
      %v318 = vld [vmem:[%s307] sm:$0xff]
      %v319 = vld [vmem:[%s307 + $0x8] sm:$0xff]
      %v320 = vld [vmem:[%s307 + $0x10] sm:$0xff]
      %v321 = vld [vmem:[%s307 + $0x18] sm:$0xff]
      %v322 = vld [vmem:[%s307 + $0x20] sm:$0xff]
      %v323 = vld [vmem:[%s307 + $0x28] sm:$0xff]
      %v324 = vld [vmem:[%s307 + $0x30] sm:$0xff]
      %v325 = vld [vmem:[%s307 + $0x38] sm:$0xff]
      %v326 = vld [vmem:[%s307 + $0x40] sm:$0xff]
      %v327 = vld [vmem:[%s307 + $0x48] sm:$0xff]
      %v328 = vld [vmem:[%s307 + $0x50] sm:$0xff]
      %v329 = vld [vmem:[%s307 + $0x58] sm:$0xff]
      %v330 = vld [vmem:[%s307 + $0x60] sm:$0xff]
      %v331 = vld [vmem:[%s307 + $0x68] sm:$0xff]
      %v332 = vld [vmem:[%s307 + $0x70] sm:$0xff]
      %v333 = vld [vmem:[%s307 + $0x78] sm:$0xff]
      %v334 = vld [vmem:[%s307 + $0x80] sm:$0xff]
      %v335 = vld [vmem:[%s307 + $0x88] sm:$0xff]
      %v336 = vld [vmem:[%s307 + $0x90] sm:$0xff]
      %v337 = vld [vmem:[%s307 + $0x98] sm:$0xff]
      %v338 = vld [vmem:[%s307 + $0xa0] sm:$0xff]
      %v339 = vld [vmem:[%s307 + $0xa8] sm:$0xff]
      %v340 = vld [vmem:[%s307 + $0xb0] sm:$0xff]
      %v341 = vld [vmem:[%s307 + $0xb8] sm:$0xff]
      %v342 = vld [vmem:[%s307 + $0xc0] sm:$0xff]
      %v343 = vld [vmem:[%s307 + $0xc8] sm:$0xff]
      %v344 = vld [vmem:[%s307 + $0xd0] sm:$0xff]
      %v345 = vld [vmem:[%s307 + $0xd8] sm:$0xff]
      %v346 = vld [vmem:[%s307 + $0xe0] sm:$0xff]
      %v347 = vld [vmem:[%s307 + $0xe8] sm:$0xff]
      %v348 = vld [vmem:[%s307 + $0xf0] sm:$0xff]
      %v349 = vld [vmem:[%s307 + $0xf8] sm:$0xff]
      %v350 = vld [vmem:[%s307 + $0x100] sm:$0xff]
      %v351 = vld [vmem:[%s307 + $0x108] sm:$0xff]
      %v352 = vld [vmem:[%s307 + $0x110] sm:$0xff]
      %v353 = vld [vmem:[%s307 + $0x118] sm:$0xff]
      %v354 = vld [vmem:[%s307 + $0x120] sm:$0x3]
      %v355 = vld [vmem:[%s2] sm:$0x1]
      %v357 = vlaneseq
      %v358 = vshrl.u32 %v357, 7
      %v359 = vsub.s32 0, %v358
      %v360 = vrot.slane %v355, %v359
      %v362 = vmul.f32 %v318, %v360
      %v363 = vmul.f32 %v319, %v360
      %v364 = vmul.f32 %v320, %v360
      %v365 = vmul.f32 %v321, %v360
      %v366 = vmul.f32 %v322, %v360
      %v367 = vmul.f32 %v323, %v360
      %v368 = vmul.f32 %v324, %v360
      %v369 = vmul.f32 %v325, %v360
      %v370 = vmul.f32 %v326, %v360
      %v371 = vmul.f32 %v327, %v360
      %v372 = vmul.f32 %v328, %v360
      %v373 = vmul.f32 %v329, %v360
      %v374 = vmul.f32 %v330, %v360
      %v375 = vmul.f32 %v331, %v360
      %v376 = vmul.f32 %v332, %v360
      %v377 = vmul.f32 %v333, %v360
      %v378 = vmul.f32 %v334, %v360
      %v379 = vmul.f32 %v335, %v360
      %v380 = vmul.f32 %v336, %v360
      %v381 = vmul.f32 %v337, %v360
      %v382 = vmul.f32 %v338, %v360
      %v383 = vmul.f32 %v339, %v360
      %v384 = vmul.f32 %v340, %v360
      %v385 = vmul.f32 %v341, %v360
      %v386 = vmul.f32 %v342, %v360
      %v387 = vmul.f32 %v343, %v360
      %v388 = vmul.f32 %v344, %v360
      %v389 = vmul.f32 %v345, %v360
      %v390 = vmul.f32 %v346, %v360
      %v391 = vmul.f32 %v347, %v360
      %v392 = vmul.f32 %v348, %v360
      %v393 = vmul.f32 %v349, %v360
      %v394 = vmul.f32 %v350, %v360
      %v395 = vmul.f32 %v351, %v360
      %v396 = vmul.f32 %v352, %v360
      %v397 = vmul.f32 %v353, %v360
      %v398 = vmul.f32 %v354, %v360
      %v399 = vld [vmem:[%s3] sm:$0x1]
      %v401 = vlaneseq
      %v402 = vshrl.u32 %v401, 7
      %v403 = vsub.s32 0, %v402
      %v404 = vrot.slane %v399, %v403
      %v406 = vadd.f32 %v362, %v404
      %v407 = vadd.f32 %v363, %v404
      %v408 = vadd.f32 %v364, %v404
      %v409 = vadd.f32 %v365, %v404
      %v410 = vadd.f32 %v366, %v404
      %v411 = vadd.f32 %v367, %v404
      %v412 = vadd.f32 %v368, %v404
      %v413 = vadd.f32 %v369, %v404
      %v414 = vadd.f32 %v370, %v404
      %v415 = vadd.f32 %v371, %v404
      %v416 = vadd.f32 %v372, %v404
      %v417 = vadd.f32 %v373, %v404
      %v418 = vadd.f32 %v374, %v404
      %v419 = vadd.f32 %v375, %v404
      %v420 = vadd.f32 %v376, %v404
      %v421 = vadd.f32 %v377, %v404
      %v422 = vadd.f32 %v378, %v404
      %v423 = vadd.f32 %v379, %v404
      %v424 = vadd.f32 %v380, %v404
      %v425 = vadd.f32 %v381, %v404
      %v426 = vadd.f32 %v382, %v404
      %v427 = vadd.f32 %v383, %v404
      %v428 = vadd.f32 %v384, %v404
      %v429 = vadd.f32 %v385, %v404
      %v430 = vadd.f32 %v386, %v404
      %v431 = vadd.f32 %v387, %v404
      %v432 = vadd.f32 %v388, %v404
      %v433 = vadd.f32 %v389, %v404
      %v434 = vadd.f32 %v390, %v404
      %v435 = vadd.f32 %v391, %v404
      %v436 = vadd.f32 %v392, %v404
      %v437 = vadd.f32 %v393, %v404
      %v438 = vadd.f32 %v394, %v404
      %v439 = vadd.f32 %v395, %v404
      %v440 = vadd.f32 %v396, %v404
      %v441 = vadd.f32 %v397, %v404
      %v442 = vadd.f32 %v398, %v404
      %v443 = vmax.f32 %v406, 0.0
      %v444 = vmax.f32 %v407, 0.0
      %v445 = vmax.f32 %v408, 0.0
      %v446 = vmax.f32 %v409, 0.0
      %v447 = vmax.f32 %v410, 0.0
      %v448 = vmax.f32 %v411, 0.0
      %v449 = vmax.f32 %v412, 0.0
      %v450 = vmax.f32 %v413, 0.0
      %v451 = vmax.f32 %v414, 0.0
      %v452 = vmax.f32 %v415, 0.0
      %v453 = vmax.f32 %v416, 0.0
      %v454 = vmax.f32 %v417, 0.0
      %v455 = vmax.f32 %v418, 0.0
      %v456 = vmax.f32 %v419, 0.0
      %v457 = vmax.f32 %v420, 0.0
      %v458 = vmax.f32 %v421, 0.0
      %v459 = vmax.f32 %v422, 0.0
      %v460 = vmax.f32 %v423, 0.0
      %v461 = vmax.f32 %v424, 0.0
      %v462 = vmax.f32 %v425, 0.0
      %v463 = vmax.f32 %v426, 0.0
      %v464 = vmax.f32 %v427, 0.0
      %v465 = vmax.f32 %v428, 0.0
      %v466 = vmax.f32 %v429, 0.0
      %v467 = vmax.f32 %v430, 0.0
      %v468 = vmax.f32 %v431, 0.0
      %v469 = vmax.f32 %v432, 0.0
      %v470 = vmax.f32 %v433, 0.0
      %v471 = vmax.f32 %v434, 0.0
      %v472 = vmax.f32 %v435, 0.0
      %v473 = vmax.f32 %v436, 0.0
      %v474 = vmax.f32 %v437, 0.0
      %v475 = vmax.f32 %v438, 0.0
      %v476 = vmax.f32 %v439, 0.0
      %v477 = vmax.f32 %v440, 0.0
      %v478 = vmax.f32 %v441, 0.0
      %v479 = vmax.f32 %v442, 0.0
      %v480 = vld [vmem:[%s4] sm:$0xff]
      %v481 = vld [vmem:[%s4 + $0x8] sm:$0xff]
      %v482 = vld [vmem:[%s4 + $0x10] sm:$0xff]
      %v483 = vld [vmem:[%s4 + $0x18] sm:$0xff]
      %v484 = vld [vmem:[%s4 + $0x20] sm:$0xff]
      %v485 = vld [vmem:[%s4 + $0x28] sm:$0xff]
      %v486 = vld [vmem:[%s4 + $0x30] sm:$0xff]
      %v487 = vld [vmem:[%s4 + $0x38] sm:$0xff]
      %v488 = vld [vmem:[%s4 + $0x40] sm:$0xff]
      %v489 = vld [vmem:[%s4 + $0x48] sm:$0xff]
      %v490 = vld [vmem:[%s4 + $0x50] sm:$0xff]
      %v491 = vld [vmem:[%s4 + $0x58] sm:$0xff]
      %v492 = vld [vmem:[%s4 + $0x60] sm:$0xff]
      %v493 = vld [vmem:[%s4 + $0x68] sm:$0xff]
      %v494 = vld [vmem:[%s4 + $0x70] sm:$0xff]
      %v495 = vld [vmem:[%s4 + $0x78] sm:$0xff]
      %v496 = vld [vmem:[%s4 + $0x80] sm:$0xff]
      %v497 = vld [vmem:[%s4 + $0x88] sm:$0xff]
      %v498 = vld [vmem:[%s4 + $0x90] sm:$0xff]
      %v499 = vld [vmem:[%s4 + $0x98] sm:$0xff]
      %v500 = vld [vmem:[%s4 + $0xa0] sm:$0xff]
      %v501 = vld [vmem:[%s4 + $0xa8] sm:$0xff]
      %v502 = vld [vmem:[%s4 + $0xb0] sm:$0xff]
      %v503 = vld [vmem:[%s4 + $0xb8] sm:$0xff]
      %v504 = vld [vmem:[%s4 + $0xc0] sm:$0xff]
      %v505 = vld [vmem:[%s4 + $0xc8] sm:$0xff]
      %v506 = vld [vmem:[%s4 + $0xd0] sm:$0xff]
      %v507 = vld [vmem:[%s4 + $0xd8] sm:$0xff]
      %v508 = vld [vmem:[%s4 + $0xe0] sm:$0xff]
      %v509 = vld [vmem:[%s4 + $0xe8] sm:$0xff]
      %v510 = vld [vmem:[%s4 + $0xf0] sm:$0xff]
      %v511 = vld [vmem:[%s4 + $0xf8] sm:$0xff]
      %v512 = vld [vmem:[%s4 + $0x100] sm:$0xff]
      %v513 = vld [vmem:[%s4 + $0x108] sm:$0xff]
      %v514 = vld [vmem:[%s4 + $0x110] sm:$0xff]
      %v515 = vld [vmem:[%s4 + $0x118] sm:$0xff]
      %v516 = vld [vmem:[%s4 + $0x120] sm:$0x3]
      %518 = vset.pattern.permute.xlu0 0
      %519 = vperm.xlu0 %518, %v480
      %v520 = vpop.permute.xlu0 %519
      %523 = vset.pattern.permute.xlu0 0
      %524 = vperm.xlu0 %523, %v481
      %v525 = vpop.permute.xlu0 %524
      %528 = vset.pattern.permute.xlu0 0
      %529 = vperm.xlu0 %528, %v482
      %v530 = vpop.permute.xlu0 %529
      %533 = vset.pattern.permute.xlu0 0
      %534 = vperm.xlu0 %533, %v483
      %v535 = vpop.permute.xlu0 %534
      %538 = vset.pattern.permute.xlu0 0
      %539 = vperm.xlu0 %538, %v484
      %v540 = vpop.permute.xlu0 %539
      %543 = vset.pattern.permute.xlu0 0
      %544 = vperm.xlu0 %543, %v485
      %v545 = vpop.permute.xlu0 %544
      %548 = vset.pattern.permute.xlu0 0
      %549 = vperm.xlu0 %548, %v486
      %v550 = vpop.permute.xlu0 %549
      %553 = vset.pattern.permute.xlu0 0
      %554 = vperm.xlu0 %553, %v487
      %v555 = vpop.permute.xlu0 %554
      %558 = vset.pattern.permute.xlu0 0
      %559 = vperm.xlu0 %558, %v488
      %v560 = vpop.permute.xlu0 %559
      %563 = vset.pattern.permute.xlu0 0
      %564 = vperm.xlu0 %563, %v489
      %v565 = vpop.permute.xlu0 %564
      %568 = vset.pattern.permute.xlu0 0
      %569 = vperm.xlu0 %568, %v490
      %v570 = vpop.permute.xlu0 %569
      %573 = vset.pattern.permute.xlu0 0
      %574 = vperm.xlu0 %573, %v491
      %v575 = vpop.permute.xlu0 %574
      %578 = vset.pattern.permute.xlu0 0
      %579 = vperm.xlu0 %578, %v492
      %v580 = vpop.permute.xlu0 %579
      %583 = vset.pattern.permute.xlu0 0
      %584 = vperm.xlu0 %583, %v493
      %v585 = vpop.permute.xlu0 %584
      %588 = vset.pattern.permute.xlu0 0
      %589 = vperm.xlu0 %588, %v494
      %v590 = vpop.permute.xlu0 %589
      %593 = vset.pattern.permute.xlu0 0
      %594 = vperm.xlu0 %593, %v495
      %v595 = vpop.permute.xlu0 %594
      %598 = vset.pattern.permute.xlu0 0
      %599 = vperm.xlu0 %598, %v496
      %v600 = vpop.permute.xlu0 %599
      %603 = vset.pattern.permute.xlu0 0
      %604 = vperm.xlu0 %603, %v497
      %v605 = vpop.permute.xlu0 %604
      %608 = vset.pattern.permute.xlu0 0
      %609 = vperm.xlu0 %608, %v498
      %v610 = vpop.permute.xlu0 %609
      %613 = vset.pattern.permute.xlu0 0
      %614 = vperm.xlu0 %613, %v499
      %v615 = vpop.permute.xlu0 %614
      %618 = vset.pattern.permute.xlu0 0
      %619 = vperm.xlu0 %618, %v500
      %v620 = vpop.permute.xlu0 %619
      %623 = vset.pattern.permute.xlu0 0
      %624 = vperm.xlu0 %623, %v501
      %v625 = vpop.permute.xlu0 %624
      %628 = vset.pattern.permute.xlu0 0
      %629 = vperm.xlu0 %628, %v502
      %v630 = vpop.permute.xlu0 %629
      %633 = vset.pattern.permute.xlu0 0
      %634 = vperm.xlu0 %633, %v503
      %v635 = vpop.permute.xlu0 %634
      %638 = vset.pattern.permute.xlu0 0
      %639 = vperm.xlu0 %638, %v504
      %v640 = vpop.permute.xlu0 %639
      %643 = vset.pattern.permute.xlu0 0
      %644 = vperm.xlu0 %643, %v505
      %v645 = vpop.permute.xlu0 %644
      %648 = vset.pattern.permute.xlu0 0
      %649 = vperm.xlu0 %648, %v506
      %v650 = vpop.permute.xlu0 %649
      %653 = vset.pattern.permute.xlu0 0
      %654 = vperm.xlu0 %653, %v507
      %v655 = vpop.permute.xlu0 %654
      %658 = vset.pattern.permute.xlu0 0
      %659 = vperm.xlu0 %658, %v508
      %v660 = vpop.permute.xlu0 %659
      %663 = vset.pattern.permute.xlu0 0
      %664 = vperm.xlu0 %663, %v509
      %v665 = vpop.permute.xlu0 %664
      %668 = vset.pattern.permute.xlu0 0
      %669 = vperm.xlu0 %668, %v510
      %v670 = vpop.permute.xlu0 %669
      %673 = vset.pattern.permute.xlu0 0
      %674 = vperm.xlu0 %673, %v511
      %v675 = vpop.permute.xlu0 %674
      %678 = vset.pattern.permute.xlu0 0
      %679 = vperm.xlu0 %678, %v512
      %v680 = vpop.permute.xlu0 %679
      %683 = vset.pattern.permute.xlu0 0
      %684 = vperm.xlu0 %683, %v513
      %v685 = vpop.permute.xlu0 %684
      %688 = vset.pattern.permute.xlu0 0
      %689 = vperm.xlu0 %688, %v514
      %v690 = vpop.permute.xlu0 %689
      %693 = vset.pattern.permute.xlu0 0
      %694 = vperm.xlu0 %693, %v515
      %v695 = vpop.permute.xlu0 %694
      %698 = vset.pattern.permute.xlu0 0
      %699 = vperm.xlu0 %698, %v516
      %v700 = vpop.permute.xlu0 %699
      %v702 = vmul.f32 %v443, %v520
      %v703 = vmul.f32 %v444, %v525
      %v704 = vmul.f32 %v445, %v530
      %v705 = vmul.f32 %v446, %v535
      %v706 = vmul.f32 %v447, %v540
      %v707 = vmul.f32 %v448, %v545
      %v708 = vmul.f32 %v449, %v550
      %v709 = vmul.f32 %v450, %v555
      %v710 = vmul.f32 %v451, %v560
      %v711 = vmul.f32 %v452, %v565
      %v712 = vmul.f32 %v453, %v570
      %v713 = vmul.f32 %v454, %v575
      %v714 = vmul.f32 %v455, %v580
      %v715 = vmul.f32 %v456, %v585
      %v716 = vmul.f32 %v457, %v590
      %v717 = vmul.f32 %v458, %v595
      %v718 = vmul.f32 %v459, %v600
      %v719 = vmul.f32 %v460, %v605
      %v720 = vmul.f32 %v461, %v610
      %v721 = vmul.f32 %v462, %v615
      %v722 = vmul.f32 %v463, %v620
      %v723 = vmul.f32 %v464, %v625
      %v724 = vmul.f32 %v465, %v630
      %v725 = vmul.f32 %v466, %v635
      %v726 = vmul.f32 %v467, %v640
      %v727 = vmul.f32 %v468, %v645
      %v728 = vmul.f32 %v469, %v650
      %v729 = vmul.f32 %v470, %v655
      %v730 = vmul.f32 %v471, %v660
      %v731 = vmul.f32 %v472, %v665
      %v732 = vmul.f32 %v473, %v670
      %v733 = vmul.f32 %v474, %v675
      %v734 = vmul.f32 %v475, %v680
      %v735 = vmul.f32 %v476, %v685
      %v736 = vmul.f32 %v477, %v690
      %v737 = vmul.f32 %v478, %v695
      %v738 = vmul.f32 %v479, %v700
      %739 = vst [vmem:[#allocation2] sm:$0xff] %v702
      %740 = vst [vmem:[#allocation2 + $0x8] sm:$0xff] %v703
      %741 = vst [vmem:[#allocation2 + $0x10] sm:$0xff] %v704
      %742 = vst [vmem:[#allocation2 + $0x18] sm:$0xff] %v705
      %743 = vst [vmem:[#allocation2 + $0x20] sm:$0xff] %v706
      %744 = vst [vmem:[#allocation2 + $0x28] sm:$0xff] %v707
      %745 = vst [vmem:[#allocation2 + $0x30] sm:$0xff] %v708
      %746 = vst [vmem:[#allocation2 + $0x38] sm:$0xff] %v709
      %747 = vst [vmem:[#allocation2 + $0x40] sm:$0xff] %v710
      %748 = vst [vmem:[#allocation2 + $0x48] sm:$0xff] %v711
      %749 = vst [vmem:[#allocation2 + $0x50] sm:$0xff] %v712
      %750 = vst [vmem:[#allocation2 + $0x58] sm:$0xff] %v713
      %751 = vst [vmem:[#allocation2 + $0x60] sm:$0xff] %v714
      %752 = vst [vmem:[#allocation2 + $0x68] sm:$0xff] %v715
      %753 = vst [vmem:[#allocation2 + $0x70] sm:$0xff] %v716
      %754 = vst [vmem:[#allocation2 + $0x78] sm:$0xff] %v717
      %755 = vst [vmem:[#allocation2 + $0x80] sm:$0xff] %v718
      %756 = vst [vmem:[#allocation2 + $0x88] sm:$0xff] %v719
      %757 = vst [vmem:[#allocation2 + $0x90] sm:$0xff] %v720
      %758 = vst [vmem:[#allocation2 + $0x98] sm:$0xff] %v721
      %759 = vst [vmem:[#allocation2 + $0xa0] sm:$0xff] %v722
      %760 = vst [vmem:[#allocation2 + $0xa8] sm:$0xff] %v723
      %761 = vst [vmem:[#allocation2 + $0xb0] sm:$0xff] %v724
      %762 = vst [vmem:[#allocation2 + $0xb8] sm:$0xff] %v725
      %763 = vst [vmem:[#allocation2 + $0xc0] sm:$0xff] %v726
      %764 = vst [vmem:[#allocation2 + $0xc8] sm:$0xff] %v727
      %765 = vst [vmem:[#allocation2 + $0xd0] sm:$0xff] %v728
      %766 = vst [vmem:[#allocation2 + $0xd8] sm:$0xff] %v729
      %767 = vst [vmem:[#allocation2 + $0xe0] sm:$0xff] %v730
      %768 = vst [vmem:[#allocation2 + $0xe8] sm:$0xff] %v731
      %769 = vst [vmem:[#allocation2 + $0xf0] sm:$0xff] %v732
      %770 = vst [vmem:[#allocation2 + $0xf8] sm:$0xff] %v733
      %771 = vst [vmem:[#allocation2 + $0x100] sm:$0xff] %v734
      %772 = vst [vmem:[#allocation2 + $0x108] sm:$0xff] %v735
      %773 = vst [vmem:[#allocation2 + $0x110] sm:$0xff] %v736
      %774 = vst [vmem:[#allocation2 + $0x118] sm:$0xff] %v737
      %775 = vst [vmem:[#allocation2 + $0x120] sm:$0x3] %v738
      %v776 = vld [vmem:[%s5] sm:$0xff]
      %v777 = vld [vmem:[%s5 + $0x8] sm:$0xff]
      %v778 = vld [vmem:[%s5 + $0x10] sm:$0xff]
      %v779 = vld [vmem:[%s5 + $0x18] sm:$0xff]
      %v780 = vld [vmem:[%s5 + $0x20] sm:$0xff]
      %v781 = vld [vmem:[%s5 + $0x28] sm:$0xff]
      %v782 = vld [vmem:[%s5 + $0x30] sm:$0xff]
      %v783 = vld [vmem:[%s5 + $0x38] sm:$0xff]
      %v784 = vld [vmem:[%s5 + $0x40] sm:$0xff]
      %v785 = vld [vmem:[%s5 + $0x48] sm:$0xff]
      %v786 = vld [vmem:[%s5 + $0x50] sm:$0xff]
      %v787 = vld [vmem:[%s5 + $0x58] sm:$0xff]
      %v788 = vld [vmem:[%s5 + $0x60] sm:$0xff]
      %v789 = vld [vmem:[%s5 + $0x68] sm:$0xff]
      %v790 = vld [vmem:[%s5 + $0x70] sm:$0xff]
      %v791 = vld [vmem:[%s5 + $0x78] sm:$0xff]
      %v792 = vld [vmem:[%s5 + $0x80] sm:$0xff]
      %v793 = vld [vmem:[%s5 + $0x88] sm:$0xff]
      %v794 = vld [vmem:[%s5 + $0x90] sm:$0xff]
      %v795 = vld [vmem:[%s5 + $0x98] sm:$0xff]
      %v796 = vld [vmem:[%s5 + $0xa0] sm:$0xff]
      %v797 = vld [vmem:[%s5 + $0xa8] sm:$0xff]
      %v798 = vld [vmem:[%s5 + $0xb0] sm:$0xff]
      %v799 = vld [vmem:[%s5 + $0xb8] sm:$0xff]
      %v800 = vld [vmem:[%s5 + $0xc0] sm:$0xff]
      %v801 = vld [vmem:[%s5 + $0xc8] sm:$0xff]
      %v802 = vld [vmem:[%s5 + $0xd0] sm:$0xff]
      %v803 = vld [vmem:[%s5 + $0xd8] sm:$0xff]
      %v804 = vld [vmem:[%s5 + $0xe0] sm:$0xff]
      %v805 = vld [vmem:[%s5 + $0xe8] sm:$0xff]
      %v806 = vld [vmem:[%s5 + $0xf0] sm:$0xff]
      %v807 = vld [vmem:[%s5 + $0xf8] sm:$0xff]
      %v808 = vld [vmem:[%s6] sm:$0xff]
      %v809 = vld [vmem:[%s6 + $0x8] sm:$0xff]
      %v810 = vld [vmem:[%s6 + $0x10] sm:$0xff]
      %v811 = vld [vmem:[%s6 + $0x18] sm:$0xff]
      %v812 = vld [vmem:[%s6 + $0x20] sm:$0xff]
      %v813 = vld [vmem:[%s6 + $0x28] sm:$0xff]
      %v814 = vld [vmem:[%s6 + $0x30] sm:$0xff]
      %v815 = vld [vmem:[%s6 + $0x38] sm:$0xff]
      %v816 = vld [vmem:[%s6 + $0x40] sm:$0xff]
      %v817 = vld [vmem:[%s6 + $0x48] sm:$0xff]
      %v818 = vld [vmem:[%s6 + $0x50] sm:$0xff]
      %v819 = vld [vmem:[%s6 + $0x58] sm:$0xff]
      %v820 = vld [vmem:[%s6 + $0x60] sm:$0xff]
      %v821 = vld [vmem:[%s6 + $0x68] sm:$0xff]
      %v822 = vld [vmem:[%s6 + $0x70] sm:$0xff]
      %v823 = vld [vmem:[%s6 + $0x78] sm:$0xff]
      %v824 = vld [vmem:[%s6 + $0x80] sm:$0xff]
      %v825 = vld [vmem:[%s6 + $0x88] sm:$0xff]
      %v826 = vld [vmem:[%s6 + $0x90] sm:$0xff]
      %v827 = vld [vmem:[%s6 + $0x98] sm:$0xff]
      %v828 = vld [vmem:[%s6 + $0xa0] sm:$0xff]
      %v829 = vld [vmem:[%s6 + $0xa8] sm:$0xff]
      %v830 = vld [vmem:[%s6 + $0xb0] sm:$0xff]
      %v831 = vld [vmem:[%s6 + $0xb8] sm:$0xff]
      %v832 = vld [vmem:[%s6 + $0xc0] sm:$0xff]
      %v833 = vld [vmem:[%s6 + $0xc8] sm:$0xff]
      %v834 = vld [vmem:[%s6 + $0xd0] sm:$0xff]
      %v835 = vld [vmem:[%s6 + $0xd8] sm:$0xff]
      %v836 = vld [vmem:[%s6 + $0xe0] sm:$0xff]
      %v837 = vld [vmem:[%s6 + $0xe8] sm:$0xff]
      %v838 = vld [vmem:[%s6 + $0xf0] sm:$0xff]
      %v839 = vld [vmem:[%s6 + $0xf8] sm:$0xff]
      %v840 = vld [vmem:[#allocation2] sm:$0xff]
      %v841 = vld [vmem:[#allocation2 + $0x8] sm:$0xff]
      %v842 = vld [vmem:[#allocation2 + $0x10] sm:$0xff]
      %v843 = vld [vmem:[#allocation2 + $0x18] sm:$0xff]
      %v844 = vld [vmem:[#allocation2 + $0x20] sm:$0xff]
      %v845 = vld [vmem:[#allocation2 + $0x28] sm:$0xff]
      %v846 = vld [vmem:[#allocation2 + $0x30] sm:$0xff]
      %v847 = vld [vmem:[#allocation2 + $0x38] sm:$0xff]
      %v848 = vld [vmem:[#allocation2 + $0x40] sm:$0xff]
      %v849 = vld [vmem:[#allocation2 + $0x48] sm:$0xff]
      %v850 = vld [vmem:[#allocation2 + $0x50] sm:$0xff]
      %v851 = vld [vmem:[#allocation2 + $0x58] sm:$0xff]
      %v852 = vld [vmem:[#allocation2 + $0x60] sm:$0xff]
      %v853 = vld [vmem:[#allocation2 + $0x68] sm:$0xff]
      %v854 = vld [vmem:[#allocation2 + $0x70] sm:$0xff]
      %v855 = vld [vmem:[#allocation2 + $0x78] sm:$0xff]
      %v856 = vld [vmem:[#allocation2 + $0x80] sm:$0xff]
      %v857 = vld [vmem:[#allocation2 + $0x88] sm:$0xff]
      %v858 = vld [vmem:[#allocation2 + $0x90] sm:$0xff]
      %v859 = vld [vmem:[#allocation2 + $0x98] sm:$0xff]
      %v860 = vld [vmem:[#allocation2 + $0xa0] sm:$0xff]
      %v861 = vld [vmem:[#allocation2 + $0xa8] sm:$0xff]
      %v862 = vld [vmem:[#allocation2 + $0xb0] sm:$0xff]
      %v863 = vld [vmem:[#allocation2 + $0xb8] sm:$0xff]
      %v864 = vld [vmem:[#allocation2 + $0xc0] sm:$0xff]
      %v865 = vld [vmem:[#allocation2 + $0xc8] sm:$0xff]
      %v866 = vld [vmem:[#allocation2 + $0xd0] sm:$0xff]
      %v867 = vld [vmem:[#allocation2 + $0xd8] sm:$0xff]
      %v868 = vld [vmem:[#allocation2 + $0xe0] sm:$0xff]
      %v869 = vld [vmem:[#allocation2 + $0xe8] sm:$0xff]
      %v870 = vld [vmem:[#allocation2 + $0xf0] sm:$0xff]
      %v871 = vld [vmem:[#allocation2 + $0xf8] sm:$0xff]
      %873 = vset.pattern.permute.xlu0 0
      %874 = vperm.xlu0 %873, %v776
      %v875 = vpop.permute.xlu0 %874
      %878 = vset.pattern.permute.xlu0 0
      %879 = vperm.xlu0 %878, %v777
      %v880 = vpop.permute.xlu0 %879
      %883 = vset.pattern.permute.xlu0 0
      %884 = vperm.xlu0 %883, %v778
      %v885 = vpop.permute.xlu0 %884
      %888 = vset.pattern.permute.xlu0 0
      %889 = vperm.xlu0 %888, %v779
      %v890 = vpop.permute.xlu0 %889
      %893 = vset.pattern.permute.xlu0 0
      %894 = vperm.xlu0 %893, %v780
      %v895 = vpop.permute.xlu0 %894
      %898 = vset.pattern.permute.xlu0 0
      %899 = vperm.xlu0 %898, %v781
      %v900 = vpop.permute.xlu0 %899
      %903 = vset.pattern.permute.xlu0 0
      %904 = vperm.xlu0 %903, %v782
      %v905 = vpop.permute.xlu0 %904
      %908 = vset.pattern.permute.xlu0 0
      %909 = vperm.xlu0 %908, %v783
      %v910 = vpop.permute.xlu0 %909
      %913 = vset.pattern.permute.xlu0 0
      %914 = vperm.xlu0 %913, %v784
      %v915 = vpop.permute.xlu0 %914
      %918 = vset.pattern.permute.xlu0 0
      %919 = vperm.xlu0 %918, %v785
      %v920 = vpop.permute.xlu0 %919
      %923 = vset.pattern.permute.xlu0 0
      %924 = vperm.xlu0 %923, %v786
      %v925 = vpop.permute.xlu0 %924
      %928 = vset.pattern.permute.xlu0 0
      %929 = vperm.xlu0 %928, %v787
      %v930 = vpop.permute.xlu0 %929
      %933 = vset.pattern.permute.xlu0 0
      %934 = vperm.xlu0 %933, %v788
      %v935 = vpop.permute.xlu0 %934
      %938 = vset.pattern.permute.xlu0 0
      %939 = vperm.xlu0 %938, %v789
      %v940 = vpop.permute.xlu0 %939
      %943 = vset.pattern.permute.xlu0 0
      %944 = vperm.xlu0 %943, %v790
      %v945 = vpop.permute.xlu0 %944
      %948 = vset.pattern.permute.xlu0 0
      %949 = vperm.xlu0 %948, %v791
      %v950 = vpop.permute.xlu0 %949
      %953 = vset.pattern.permute.xlu0 0
      %954 = vperm.xlu0 %953, %v792
      %v955 = vpop.permute.xlu0 %954
      %958 = vset.pattern.permute.xlu0 0
      %959 = vperm.xlu0 %958, %v793
      %v960 = vpop.permute.xlu0 %959
      %963 = vset.pattern.permute.xlu0 0
      %964 = vperm.xlu0 %963, %v794
      %v965 = vpop.permute.xlu0 %964
      %968 = vset.pattern.permute.xlu0 0
      %969 = vperm.xlu0 %968, %v795
      %v970 = vpop.permute.xlu0 %969
      %973 = vset.pattern.permute.xlu0 0
      %974 = vperm.xlu0 %973, %v796
      %v975 = vpop.permute.xlu0 %974
      %978 = vset.pattern.permute.xlu0 0
      %979 = vperm.xlu0 %978, %v797
      %v980 = vpop.permute.xlu0 %979
      %983 = vset.pattern.permute.xlu0 0
      %984 = vperm.xlu0 %983, %v798
      %v985 = vpop.permute.xlu0 %984
      %988 = vset.pattern.permute.xlu0 0
      %989 = vperm.xlu0 %988, %v799
      %v990 = vpop.permute.xlu0 %989
      %993 = vset.pattern.permute.xlu0 0
      %994 = vperm.xlu0 %993, %v800
      %v995 = vpop.permute.xlu0 %994
      %998 = vset.pattern.permute.xlu0 0
      %999 = vperm.xlu0 %998, %v801
      %v1000 = vpop.permute.xlu0 %999
      %1003 = vset.pattern.permute.xlu0 0
      %1004 = vperm.xlu0 %1003, %v802
      %v1005 = vpop.permute.xlu0 %1004
      %1008 = vset.pattern.permute.xlu0 0
      %1009 = vperm.xlu0 %1008, %v803
      %v1010 = vpop.permute.xlu0 %1009
      %1013 = vset.pattern.permute.xlu0 0
      %1014 = vperm.xlu0 %1013, %v804
      %v1015 = vpop.permute.xlu0 %1014
      %1018 = vset.pattern.permute.xlu0 0
      %1019 = vperm.xlu0 %1018, %v805
      %v1020 = vpop.permute.xlu0 %1019
      %1023 = vset.pattern.permute.xlu0 0
      %1024 = vperm.xlu0 %1023, %v806
      %v1025 = vpop.permute.xlu0 %1024
      %1028 = vset.pattern.permute.xlu0 0
      %1029 = vperm.xlu0 %1028, %v807
      %v1030 = vpop.permute.xlu0 %1029
      %v1032 = vmul.f32 %v840, %v875
      %v1033 = vmul.f32 %v841, %v880
      %v1034 = vmul.f32 %v842, %v885
      %v1035 = vmul.f32 %v843, %v890
      %v1036 = vmul.f32 %v844, %v895
      %v1037 = vmul.f32 %v845, %v900
      %v1038 = vmul.f32 %v846, %v905
      %v1039 = vmul.f32 %v847, %v910
      %v1040 = vmul.f32 %v848, %v915
      %v1041 = vmul.f32 %v849, %v920
      %v1042 = vmul.f32 %v850, %v925
      %v1043 = vmul.f32 %v851, %v930
      %v1044 = vmul.f32 %v852, %v935
      %v1045 = vmul.f32 %v853, %v940
      %v1046 = vmul.f32 %v854, %v945
      %v1047 = vmul.f32 %v855, %v950
      %v1048 = vmul.f32 %v856, %v955
      %v1049 = vmul.f32 %v857, %v960
      %v1050 = vmul.f32 %v858, %v965
      %v1051 = vmul.f32 %v859, %v970
      %v1052 = vmul.f32 %v860, %v975
      %v1053 = vmul.f32 %v861, %v980
      %v1054 = vmul.f32 %v862, %v985
      %v1055 = vmul.f32 %v863, %v990
      %v1056 = vmul.f32 %v864, %v995
      %v1057 = vmul.f32 %v865, %v1000
      %v1058 = vmul.f32 %v866, %v1005
      %v1059 = vmul.f32 %v867, %v1010
      %v1060 = vmul.f32 %v868, %v1015
      %v1061 = vmul.f32 %v869, %v1020
      %v1062 = vmul.f32 %v870, %v1025
      %v1063 = vmul.f32 %v871, %v1030
      %v1064 = vld [vmem:[%s1] sm:$0xff]
      %v1065 = vld [vmem:[%s1 + $0x8] sm:$0xff]
      %v1066 = vld [vmem:[%s1 + $0x10] sm:$0xff]
      %v1067 = vld [vmem:[%s1 + $0x18] sm:$0xff]
      %v1068 = vld [vmem:[%s1 + $0x20] sm:$0xff]
      %v1069 = vld [vmem:[%s1 + $0x28] sm:$0xff]
      %v1070 = vld [vmem:[%s1 + $0x30] sm:$0xff]
      %v1071 = vld [vmem:[%s1 + $0x38] sm:$0xff]
      %v1072 = vld [vmem:[%s1 + $0x40] sm:$0xff]
      %v1073 = vld [vmem:[%s1 + $0x48] sm:$0xff]
      %v1074 = vld [vmem:[%s1 + $0x50] sm:$0xff]
      %v1075 = vld [vmem:[%s1 + $0x58] sm:$0xff]
      %v1076 = vld [vmem:[%s1 + $0x60] sm:$0xff]
      %v1077 = vld [vmem:[%s1 + $0x68] sm:$0xff]
      %v1078 = vld [vmem:[%s1 + $0x70] sm:$0xff]
      %v1079 = vld [vmem:[%s1 + $0x78] sm:$0xff]
      %v1080 = vld [vmem:[#allocation2 + $0x1] sm:$0xff]
      %v1081 = vld [vmem:[#allocation2 + $0x9] sm:$0xff]
      %v1082 = vld [vmem:[#allocation2 + $0x11] sm:$0xff]
      %v1083 = vld [vmem:[#allocation2 + $0x19] sm:$0xff]
      %v1084 = vld [vmem:[#allocation2 + $0x21] sm:$0xff]
      %v1085 = vld [vmem:[#allocation2 + $0x29] sm:$0xff]
      %v1086 = vld [vmem:[#allocation2 + $0x31] sm:$0xff]
      %v1087 = vld [vmem:[#allocation2 + $0x39] sm:$0xff]
      %v1088 = vld [vmem:[#allocation2 + $0x41] sm:$0xff]
      %v1089 = vld [vmem:[#allocation2 + $0x49] sm:$0xff]
      %v1090 = vld [vmem:[#allocation2 + $0x51] sm:$0xff]
      %v1091 = vld [vmem:[#allocation2 + $0x59] sm:$0xff]
      %v1092 = vld [vmem:[#allocation2 + $0x61] sm:$0xff]
      %v1093 = vld [vmem:[#allocation2 + $0x69] sm:$0xff]
      %v1094 = vld [vmem:[#allocation2 + $0x71] sm:$0xff]
      %v1095 = vld [vmem:[#allocation2 + $0x79] sm:$0xff]
      %v1096 = vld [vmem:[#allocation2 + $0x81] sm:$0xff]
      %v1097 = vld [vmem:[#allocation2 + $0x89] sm:$0xff]
      %v1098 = vld [vmem:[#allocation2 + $0x91] sm:$0xff]
      %v1099 = vld [vmem:[#allocation2 + $0x99] sm:$0xff]
      %v1100 = vld [vmem:[#allocation2 + $0xa1] sm:$0xff]
      %v1101 = vld [vmem:[#allocation2 + $0xa9] sm:$0xff]
      %v1102 = vld [vmem:[#allocation2 + $0xb1] sm:$0xff]
      %v1103 = vld [vmem:[#allocation2 + $0xb9] sm:$0xff]
      %v1104 = vld [vmem:[#allocation2 + $0xc1] sm:$0xff]
      %v1105 = vld [vmem:[#allocation2 + $0xc9] sm:$0xff]
      %v1106 = vld [vmem:[#allocation2 + $0xd1] sm:$0xff]
      %v1107 = vld [vmem:[#allocation2 + $0xd9] sm:$0xff]
      %v1108 = vld [vmem:[#allocation2 + $0xe1] sm:$0xff]
      %v1109 = vld [vmem:[#allocation2 + $0xe9] sm:$0xff]
      %v1110 = vld [vmem:[#allocation2 + $0xf1] sm:$0xff]
      %v1111 = vld [vmem:[#allocation2 + $0xf9] sm:$0xff]
      %s1112 = scalar_lea.vmem %s1, 128
      %v1113 = vld [vmem:[%s1112] sm:$0xff]
      %v1114 = vld [vmem:[%s1112 + $0x8] sm:$0xff]
      %v1115 = vld [vmem:[%s1112 + $0x10] sm:$0xff]
      %v1116 = vld [vmem:[%s1112 + $0x18] sm:$0xff]
      %v1117 = vld [vmem:[%s1112 + $0x20] sm:$0xff]
      %v1118 = vld [vmem:[%s1112 + $0x28] sm:$0xff]
      %v1119 = vld [vmem:[%s1112 + $0x30] sm:$0xff]
      %v1120 = vld [vmem:[%s1112 + $0x38] sm:$0xff]
      %v1121 = vld [vmem:[%s1112 + $0x40] sm:$0xff]
      %v1122 = vld [vmem:[%s1112 + $0x48] sm:$0xff]
      %v1123 = vld [vmem:[%s1112 + $0x50] sm:$0xff]
      %v1124 = vld [vmem:[%s1112 + $0x58] sm:$0xff]
      %v1125 = vld [vmem:[%s1112 + $0x60] sm:$0xff]
      %v1126 = vld [vmem:[%s1112 + $0x68] sm:$0xff]
      %v1127 = vld [vmem:[%s1112 + $0x70] sm:$0xff]
      %v1128 = vld [vmem:[%s1112 + $0x78] sm:$0xff]
      %1129 = vmatprep.subr.mxu0 0.0
      %1130 = vmatpush1.msra.mxu0 %v1113
      %1131 = vmatprep.subr.mxu0 0.0
      %1132 = vmatpush1.msra.mxu0 %v1114
      %1133 = vmatprep.subr.mxu0 0.0
      %1134 = vmatpush1.msra.mxu0 %v1115
      %1135 = vmatprep.subr.mxu0 0.0
      %1136 = vmatpush1.msra.mxu0 %v1116
      %1137 = vmatprep.subr.mxu0 0.0
      %1138 = vmatpush1.msra.mxu0 %v1117
      %1139 = vmatprep.subr.mxu0 0.0
      %1140 = vmatpush1.msra.mxu0 %v1118
      %1141 = vmatprep.subr.mxu0 0.0
      %1142 = vmatpush1.msra.mxu0 %v1119
      %1143 = vmatprep.subr.mxu0 0.0
      %1144 = vmatpush1.msra.mxu0 %v1120
      %1145 = vmatprep.subr.mxu0 0.0
      %1146 = vmatpush1.msra.mxu0 %v1121
      %1147 = vmatprep.subr.mxu0 0.0
      %1148 = vmatpush1.msra.mxu0 %v1122
      %1149 = vmatprep.subr.mxu0 0.0
      %1150 = vmatpush1.msra.mxu0 %v1123
      %1151 = vmatprep.subr.mxu0 0.0
      %1152 = vmatpush1.msra.mxu0 %v1124
      %1153 = vmatprep.subr.mxu0 0.0
      %1154 = vmatpush1.msra.mxu0 %v1125
      %1155 = vmatprep.subr.mxu0 0.0
      %1156 = vmatpush1.msra.mxu0 %v1126
      %1157 = vmatprep.subr.mxu0 0.0
      %1158 = vmatpush1.msra.mxu0 %v1127
      %1159 = vmatprep.subr.mxu0 0.0
      %1160 = vmatpush1.msra.mxu0 %v1128
      %1161 = vmatprep.subr.mxu0 0.0
      %1162 = vmatpush1.msra.mxu0 0.0
      %1163 = vmatprep.subr.mxu0 0.0
      %1164 = vmatpush1.msra.mxu0 0.0
      %1165 = vmatprep.subr.mxu0 0.0
      %1166 = vmatpush1.msra.mxu0 0.0
      %1167 = vmatprep.subr.mxu0 0.0
      %1168 = vmatpush1.msra.mxu0 0.0
      %1169 = vmatprep.subr.mxu0 0.0
      %1170 = vmatpush1.msra.mxu0 0.0
      %1171 = vmatprep.subr.mxu0 0.0
      %1172 = vmatpush1.msra.mxu0 0.0
      %1173 = vmatprep.subr.mxu0 0.0
      %1174 = vmatpush1.msra.mxu0 0.0
      %1175 = vmatprep.subr.mxu0 0.0
      %1176 = vmatpush1.msra.mxu0 0.0
      %1177 = vmatprep.subr.mxu0 0.0
      %1178 = vmatpush1.msra.mxu0 0.0
      %1179 = vmatprep.subr.mxu0 0.0
      %1180 = vmatpush1.msra.mxu0 0.0
      %1181 = vmatprep.subr.mxu0 0.0
      %1182 = vmatpush1.msra.mxu0 0.0
      %1183 = vmatprep.subr.mxu0 0.0
      %1184 = vmatpush1.msra.mxu0 0.0
      %1185 = vmatprep.subr.mxu0 0.0
      %1186 = vmatpush1.msra.mxu0 0.0
      %1187 = vmatprep.subr.mxu0 0.0
      %1188 = vmatpush1.msra.mxu0 0.0
      %1189 = vmatprep.subr.mxu0 0.0
      %1190 = vmatpush1.msra.mxu0 0.0
      %1191 = vmatprep.subr.mxu0 0.0
      %1192 = vmatpush1.msra.mxu0 0.0
      %1193 = vmatprep.mubr.f32.mxu0 0.0
      %1194 = vmatmul.mubr.f32.gmra.mrb[0].mxu0 %v1080
      %v1195 = vpop.f32.mrb[0].mxu0
      %v1196 = vadd.f32 0.0, %v1195
      %v1197 = vpop.f32.mrb[0].mxu0
      %1198 = vmatprep.mubr.f32.mxu0 0.0
      %1199 = vmatmul.mubr.f32.gmra.mrb[0].mxu0 %v1081
      %v1200 = vpop.f32.mrb[0].mxu0
      %v1201 = vadd.f32 0.0, %v1200
      %v1202 = vpop.f32.mrb[0].mxu0
      %1203 = vmatprep.mubr.f32.mxu0 0.0
      %1204 = vmatmul.mubr.f32.gmra.mrb[0].mxu0 %v1082
      %v1205 = vpop.f32.mrb[0].mxu0
      %v1206 = vadd.f32 0.0, %v1205
      %v1207 = vpop.f32.mrb[0].mxu0
      %1208 = vmatprep.mubr.f32.mxu0 0.0
      %1209 = vmatmul.mubr.f32.gmra.mrb[0].mxu0 %v1083
      %v1210 = vpop.f32.mrb[0].mxu0
      %v1211 = vadd.f32 0.0, %v1210
      %v1212 = vpop.f32.mrb[0].mxu0
      %1213 = vmatprep.mubr.f32.mxu0 0.0
      %1214 = vmatmul.mubr.f32.gmra.mrb[0].mxu0 %v1084
      %v1215 = vpop.f32.mrb[0].mxu0
      %v1216 = vadd.f32 0.0, %v1215
      %v1217 = vpop.f32.mrb[0].mxu0
      %1218 = vmatprep.mubr.f32.mxu0 0.0
      %1219 = vmatmul.mubr.f32.gmra.mrb[0].mxu0 %v1085
      %v1220 = vpop.f32.mrb[0].mxu0
      %v1221 = vadd.f32 0.0, %v1220
      %v1222 = vpop.f32.mrb[0].mxu0
      %1223 = vmatprep.mubr.f32.mxu0 0.0
      %1224 = vmatmul.mubr.f32.gmra.mrb[0].mxu0 %v1086
      %v1225 = vpop.f32.mrb[0].mxu0
      %v1226 = vadd.f32 0.0, %v1225
      %v1227 = vpop.f32.mrb[0].mxu0
      %1228 = vmatprep.mubr.f32.mxu0 0.0
      %1229 = vmatmul.mubr.f32.gmra.mrb[0].mxu0 %v1087
      %v1230 = vpop.f32.mrb[0].mxu0
      %v1231 = vadd.f32 0.0, %v1230
      %v1232 = vpop.f32.mrb[0].mxu0
      %1233 = vmatprep.mubr.f32.mxu0 0.0
      %1234 = vmatmul.mubr.f32.gmra.mrb[0].mxu0 %v1088
      %v1235 = vpop.f32.mrb[0].mxu0
      %v1236 = vadd.f32 0.0, %v1235
      %v1237 = vpop.f32.mrb[0].mxu0
      %1238 = vmatprep.mubr.f32.mxu0 0.0
      %1239 = vmatmul.mubr.f32.gmra.mrb[0].mxu0 %v1089
      %v1240 = vpop.f32.mrb[0].mxu0
      %v1241 = vadd.f32 0.0, %v1240
      %v1242 = vpop.f32.mrb[0].mxu0
      %1243 = vmatprep.mubr.f32.mxu0 0.0
      %1244 = vmatmul.mubr.f32.gmra.mrb[0].mxu0 %v1090
      %v1245 = vpop.f32.mrb[0].mxu0
      %v1246 = vadd.f32 0.0, %v1245
      %v1247 = vpop.f32.mrb[0].mxu0
      %1248 = vmatprep.mubr.f32.mxu0 0.0
      %1249 = vmatmul.mubr.f32.gmra.mrb[0].mxu0 %v1091
      %v1250 = vpop.f32.mrb[0].mxu0
      %v1251 = vadd.f32 0.0, %v1250
      %v1252 = vpop.f32.mrb[0].mxu0
      %1253 = vmatprep.mubr.f32.mxu0 0.0
      %1254 = vmatmul.mubr.f32.gmra.mrb[0].mxu0 %v1092
      %v1255 = vpop.f32.mrb[0].mxu0
      %v1256 = vadd.f32 0.0, %v1255
      %v1257 = vpop.f32.mrb[0].mxu0
      %1258 = vmatprep.mubr.f32.mxu0 0.0
      %1259 = vmatmul.mubr.f32.gmra.mrb[0].mxu0 %v1093
      %v1260 = vpop.f32.mrb[0].mxu0
      %v1261 = vadd.f32 0.0, %v1260
      %v1262 = vpop.f32.mrb[0].mxu0
      %1263 = vmatprep.mubr.f32.mxu0 0.0
      %1264 = vmatmul.mubr.f32.gmra.mrb[0].mxu0 %v1094
      %v1265 = vpop.f32.mrb[0].mxu0
      %v1266 = vadd.f32 0.0, %v1265
      %v1267 = vpop.f32.mrb[0].mxu0
      %1268 = vmatprep.mubr.f32.mxu0 0.0
      %1269 = vmatmul.mubr.f32.gmra.mrb[0].mxu0 %v1095
      %v1270 = vpop.f32.mrb[0].mxu0
      %v1271 = vadd.f32 0.0, %v1270
      %v1272 = vpop.f32.mrb[0].mxu0
      %1273 = vmatprep.mubr.f32.mxu0 0.0
      %1274 = vmatmul.mubr.f32.gmra.mrb[0].mxu0 %v1096
      %v1275 = vpop.f32.mrb[0].mxu0
      %v1276 = vadd.f32 0.0, %v1275
      %v1277 = vpop.f32.mrb[0].mxu0
      %1278 = vmatprep.mubr.f32.mxu0 0.0
      %1279 = vmatmul.mubr.f32.gmra.mrb[0].mxu0 %v1097
      %v1280 = vpop.f32.mrb[0].mxu0
      %v1281 = vadd.f32 0.0, %v1280
      %v1282 = vpop.f32.mrb[0].mxu0
      %1283 = vmatprep.mubr.f32.mxu0 0.0
      %1284 = vmatmul.mubr.f32.gmra.mrb[0].mxu0 %v1098
      %v1285 = vpop.f32.mrb[0].mxu0
      %v1286 = vadd.f32 0.0, %v1285
      %v1287 = vpop.f32.mrb[0].mxu0
      %1288 = vmatprep.mubr.f32.mxu0 0.0
      %1289 = vmatmul.mubr.f32.gmra.mrb[0].mxu0 %v1099
      %v1290 = vpop.f32.mrb[0].mxu0
      %v1291 = vadd.f32 0.0, %v1290
      %v1292 = vpop.f32.mrb[0].mxu0
      %1293 = vmatprep.mubr.f32.mxu0 0.0
      %1294 = vmatmul.mubr.f32.gmra.mrb[0].mxu0 %v1100
      %v1295 = vpop.f32.mrb[0].mxu0
      %v1296 = vadd.f32 0.0, %v1295
      %v1297 = vpop.f32.mrb[0].mxu0
      %1298 = vmatprep.mubr.f32.mxu0 0.0
      %1299 = vmatmul.mubr.f32.gmra.mrb[0].mxu0 %v1101
      %v1300 = vpop.f32.mrb[0].mxu0
      %v1301 = vadd.f32 0.0, %v1300
      %v1302 = vpop.f32.mrb[0].mxu0
      %1303 = vmatprep.mubr.f32.mxu0 0.0
      %1304 = vmatmul.mubr.f32.gmra.mrb[0].mxu0 %v1102
      %v1305 = vpop.f32.mrb[0].mxu0
      %v1306 = vadd.f32 0.0, %v1305
      %v1307 = vpop.f32.mrb[0].mxu0
      %1308 = vmatprep.mubr.f32.mxu0 0.0
      %1309 = vmatmul.mubr.f32.gmra.mrb[0].mxu0 %v1103
      %v1310 = vpop.f32.mrb[0].mxu0
      %v1311 = vadd.f32 0.0, %v1310
      %v1312 = vpop.f32.mrb[0].mxu0
      %1313 = vmatprep.mubr.f32.mxu0 0.0
      %1314 = vmatmul.mubr.f32.gmra.mrb[0].mxu0 %v1104
      %v1315 = vpop.f32.mrb[0].mxu0
      %v1316 = vadd.f32 0.0, %v1315
      %v1317 = vpop.f32.mrb[0].mxu0
      %1318 = vmatprep.mubr.f32.mxu0 0.0
      %1319 = vmatmul.mubr.f32.gmra.mrb[0].mxu0 %v1105
      %v1320 = vpop.f32.mrb[0].mxu0
      %v1321 = vadd.f32 0.0, %v1320
      %v1322 = vpop.f32.mrb[0].mxu0
      %1323 = vmatprep.mubr.f32.mxu0 0.0
      %1324 = vmatmul.mubr.f32.gmra.mrb[0].mxu0 %v1106
      %v1325 = vpop.f32.mrb[0].mxu0
      %v1326 = vadd.f32 0.0, %v1325
      %v1327 = vpop.f32.mrb[0].mxu0
      %1328 = vmatprep.mubr.f32.mxu0 0.0
      %1329 = vmatmul.mubr.f32.gmra.mrb[0].mxu0 %v1107
      %v1330 = vpop.f32.mrb[0].mxu0
      %v1331 = vadd.f32 0.0, %v1330
      %v1332 = vpop.f32.mrb[0].mxu0
      %1333 = vmatprep.mubr.f32.mxu0 0.0
      %1334 = vmatmul.mubr.f32.gmra.mrb[0].mxu0 %v1108
      %v1335 = vpop.f32.mrb[0].mxu0
      %v1336 = vadd.f32 0.0, %v1335
      %v1337 = vpop.f32.mrb[0].mxu0
      %1338 = vmatprep.mubr.f32.mxu0 0.0
      %1339 = vmatmul.mubr.f32.gmra.mrb[0].mxu0 %v1109
      %v1340 = vpop.f32.mrb[0].mxu0
      %v1341 = vadd.f32 0.0, %v1340
      %v1342 = vpop.f32.mrb[0].mxu0
      %1343 = vmatprep.mubr.f32.mxu0 0.0
      %1344 = vmatmul.mubr.f32.gmra.mrb[0].mxu0 %v1110
      %v1345 = vpop.f32.mrb[0].mxu0
      %v1346 = vadd.f32 0.0, %v1345
      %v1347 = vpop.f32.mrb[0].mxu0
      %1348 = vmatprep.mubr.f32.mxu0 0.0
      %1349 = vmatmul.mubr.f32.gmra.mrb[0].mxu0 %v1111
      %v1350 = vpop.f32.mrb[0].mxu0
      %v1351 = vadd.f32 0.0, %v1350
      %v1352 = vpop.f32.mrb[0].mxu0
      %1353 = vdwg.mxu0
      %1354 = vmatprep.subr.mxu0 0.0
      %1355 = vmatpush1.msra.mxu0 %v1064
      %1356 = vmatprep.subr.mxu0 0.0
      %1357 = vmatpush1.msra.mxu0 %v1065
      %1358 = vmatprep.subr.mxu0 0.0
      %1359 = vmatpush1.msra.mxu0 %v1066
      %1360 = vmatprep.subr.mxu0 0.0
      %1361 = vmatpush1.msra.mxu0 %v1067
      %1362 = vmatprep.subr.mxu0 0.0
      %1363 = vmatpush1.msra.mxu0 %v1068
      %1364 = vmatprep.subr.mxu0 0.0
      %1365 = vmatpush1.msra.mxu0 %v1069
      %1366 = vmatprep.subr.mxu0 0.0
      %1367 = vmatpush1.msra.mxu0 %v1070
      %1368 = vmatprep.subr.mxu0 0.0
      %1369 = vmatpush1.msra.mxu0 %v1071
      %1370 = vmatprep.subr.mxu0 0.0
      %1371 = vmatpush1.msra.mxu0 %v1072
      %1372 = vmatprep.subr.mxu0 0.0
      %1373 = vmatpush1.msra.mxu0 %v1073
      %1374 = vmatprep.subr.mxu0 0.0
      %1375 = vmatpush1.msra.mxu0 %v1074
      %1376 = vmatprep.subr.mxu0 0.0
      %1377 = vmatpush1.msra.mxu0 %v1075
      %1378 = vmatprep.subr.mxu0 0.0
      %1379 = vmatpush1.msra.mxu0 %v1076
      %1380 = vmatprep.subr.mxu0 0.0
      %1381 = vmatpush1.msra.mxu0 %v1077
      %1382 = vmatprep.subr.mxu0 0.0
      %1383 = vmatpush1.msra.mxu0 %v1078
      %1384 = vmatprep.subr.mxu0 0.0
      %1385 = vmatpush1.msra.mxu0 %v1079
      %1386 = vmatprep.subr.mxu0 0.0
      %1387 = vmatpush1.msra.mxu0 0.0
      %1388 = vmatprep.subr.mxu0 0.0
      %1389 = vmatpush1.msra.mxu0 0.0
      %1390 = vmatprep.subr.mxu0 0.0
      %1391 = vmatpush1.msra.mxu0 0.0
      %1392 = vmatprep.subr.mxu0 0.0
      %1393 = vmatpush1.msra.mxu0 0.0
      %1394 = vmatprep.subr.mxu0 0.0
      %1395 = vmatpush1.msra.mxu0 0.0
      %1396 = vmatprep.subr.mxu0 0.0
      %1397 = vmatpush1.msra.mxu0 0.0
      %1398 = vmatprep.subr.mxu0 0.0
      %1399 = vmatpush1.msra.mxu0 0.0
      %1400 = vmatprep.subr.mxu0 0.0
      %1401 = vmatpush1.msra.mxu0 0.0
      %1402 = vmatprep.subr.mxu0 0.0
      %1403 = vmatpush1.msra.mxu0 0.0
      %1404 = vmatprep.subr.mxu0 0.0
      %1405 = vmatpush1.msra.mxu0 0.0
      %1406 = vmatprep.subr.mxu0 0.0
      %1407 = vmatpush1.msra.mxu0 0.0
      %1408 = vmatprep.subr.mxu0 0.0
      %1409 = vmatpush1.msra.mxu0 0.0
      %1410 = vmatprep.subr.mxu0 0.0
      %1411 = vmatpush1.msra.mxu0 0.0
      %1412 = vmatprep.subr.mxu0 0.0
      %1413 = vmatpush1.msra.mxu0 0.0
      %1414 = vmatprep.subr.mxu0 0.0
      %1415 = vmatpush1.msra.mxu0 0.0
      %1416 = vmatprep.subr.mxu0 0.0
      %1417 = vmatpush1.msra.mxu0 0.0
      %1418 = vmatprep.mubr.f32.mxu0 0.0
      %1419 = vmatmul.mubr.f32.gmra.mrb[0].mxu0 %v1032
      %v1420 = vpop.f32.mrb[0].mxu0
      %v1421 = vadd.f32 %v1196, %v1420
      %v1422 = vpop.f32.mrb[0].mxu0
      %1423 = vmatprep.mubr.f32.mxu0 0.0
      %1424 = vmatmul.mubr.f32.gmra.mrb[0].mxu0 %v1033
      %v1425 = vpop.f32.mrb[0].mxu0
      %v1426 = vadd.f32 %v1201, %v1425
      %v1427 = vpop.f32.mrb[0].mxu0
      %1428 = vmatprep.mubr.f32.mxu0 0.0
      %1429 = vmatmul.mubr.f32.gmra.mrb[0].mxu0 %v1034
      %v1430 = vpop.f32.mrb[0].mxu0
      %v1431 = vadd.f32 %v1206, %v1430
      %v1432 = vpop.f32.mrb[0].mxu0
      %1433 = vmatprep.mubr.f32.mxu0 0.0
      %1434 = vmatmul.mubr.f32.gmra.mrb[0].mxu0 %v1035
      %v1435 = vpop.f32.mrb[0].mxu0
      %v1436 = vadd.f32 %v1211, %v1435
      %v1437 = vpop.f32.mrb[0].mxu0
      %1438 = vmatprep.mubr.f32.mxu0 0.0
      %1439 = vmatmul.mubr.f32.gmra.mrb[0].mxu0 %v1036
      %v1440 = vpop.f32.mrb[0].mxu0
      %v1441 = vadd.f32 %v1216, %v1440
      %v1442 = vpop.f32.mrb[0].mxu0
      %1443 = vmatprep.mubr.f32.mxu0 0.0
      %1444 = vmatmul.mubr.f32.gmra.mrb[0].mxu0 %v1037
      %v1445 = vpop.f32.mrb[0].mxu0
      %v1446 = vadd.f32 %v1221, %v1445
      %v1447 = vpop.f32.mrb[0].mxu0
      %1448 = vmatprep.mubr.f32.mxu0 0.0
      %1449 = vmatmul.mubr.f32.gmra.mrb[0].mxu0 %v1038
      %v1450 = vpop.f32.mrb[0].mxu0
      %v1451 = vadd.f32 %v1226, %v1450
      %v1452 = vpop.f32.mrb[0].mxu0
      %1453 = vmatprep.mubr.f32.mxu0 0.0
      %1454 = vmatmul.mubr.f32.gmra.mrb[0].mxu0 %v1039
      %v1455 = vpop.f32.mrb[0].mxu0
      %v1456 = vadd.f32 %v1231, %v1455
      %v1457 = vpop.f32.mrb[0].mxu0
      %1458 = vmatprep.mubr.f32.mxu0 0.0
      %1459 = vmatmul.mubr.f32.gmra.mrb[0].mxu0 %v1040
      %v1460 = vpop.f32.mrb[0].mxu0
      %v1461 = vadd.f32 %v1236, %v1460
      %v1462 = vpop.f32.mrb[0].mxu0
      %1463 = vmatprep.mubr.f32.mxu0 0.0
      %1464 = vmatmul.mubr.f32.gmra.mrb[0].mxu0 %v1041
      %v1465 = vpop.f32.mrb[0].mxu0
      %v1466 = vadd.f32 %v1241, %v1465
      %v1467 = vpop.f32.mrb[0].mxu0
      %1468 = vmatprep.mubr.f32.mxu0 0.0
      %1469 = vmatmul.mubr.f32.gmra.mrb[0].mxu0 %v1042
      %v1470 = vpop.f32.mrb[0].mxu0
      %v1471 = vadd.f32 %v1246, %v1470
      %v1472 = vpop.f32.mrb[0].mxu0
      %1473 = vmatprep.mubr.f32.mxu0 0.0
      %1474 = vmatmul.mubr.f32.gmra.mrb[0].mxu0 %v1043
      %v1475 = vpop.f32.mrb[0].mxu0
      %v1476 = vadd.f32 %v1251, %v1475
      %v1477 = vpop.f32.mrb[0].mxu0
      %1478 = vmatprep.mubr.f32.mxu0 0.0
      %1479 = vmatmul.mubr.f32.gmra.mrb[0].mxu0 %v1044
      %v1480 = vpop.f32.mrb[0].mxu0
      %v1481 = vadd.f32 %v1256, %v1480
      %v1482 = vpop.f32.mrb[0].mxu0
      %1483 = vmatprep.mubr.f32.mxu0 0.0
      %1484 = vmatmul.mubr.f32.gmra.mrb[0].mxu0 %v1045
      %v1485 = vpop.f32.mrb[0].mxu0
      %v1486 = vadd.f32 %v1261, %v1485
      %v1487 = vpop.f32.mrb[0].mxu0
      %1488 = vmatprep.mubr.f32.mxu0 0.0
      %1489 = vmatmul.mubr.f32.gmra.mrb[0].mxu0 %v1046
      %v1490 = vpop.f32.mrb[0].mxu0
      %v1491 = vadd.f32 %v1266, %v1490
      %v1492 = vpop.f32.mrb[0].mxu0
      %1493 = vmatprep.mubr.f32.mxu0 0.0
      %1494 = vmatmul.mubr.f32.gmra.mrb[0].mxu0 %v1047
      %v1495 = vpop.f32.mrb[0].mxu0
      %v1496 = vadd.f32 %v1271, %v1495
      %v1497 = vpop.f32.mrb[0].mxu0
      %1498 = vmatprep.mubr.f32.mxu0 0.0
      %1499 = vmatmul.mubr.f32.gmra.mrb[0].mxu0 %v1048
      %v1500 = vpop.f32.mrb[0].mxu0
      %v1501 = vadd.f32 %v1276, %v1500
      %v1502 = vpop.f32.mrb[0].mxu0
      %1503 = vmatprep.mubr.f32.mxu0 0.0
      %1504 = vmatmul.mubr.f32.gmra.mrb[0].mxu0 %v1049
      %v1505 = vpop.f32.mrb[0].mxu0
      %v1506 = vadd.f32 %v1281, %v1505
      %v1507 = vpop.f32.mrb[0].mxu0
      %1508 = vmatprep.mubr.f32.mxu0 0.0
      %1509 = vmatmul.mubr.f32.gmra.mrb[0].mxu0 %v1050
      %v1510 = vpop.f32.mrb[0].mxu0
      %v1511 = vadd.f32 %v1286, %v1510
      %v1512 = vpop.f32.mrb[0].mxu0
      %1513 = vmatprep.mubr.f32.mxu0 0.0
      %1514 = vmatmul.mubr.f32.gmra.mrb[0].mxu0 %v1051
      %v1515 = vpop.f32.mrb[0].mxu0
      %v1516 = vadd.f32 %v1291, %v1515
      %v1517 = vpop.f32.mrb[0].mxu0
      %1518 = vmatprep.mubr.f32.mxu0 0.0
      %1519 = vmatmul.mubr.f32.gmra.mrb[0].mxu0 %v1052
      %v1520 = vpop.f32.mrb[0].mxu0
      %v1521 = vadd.f32 %v1296, %v1520
      %v1522 = vpop.f32.mrb[0].mxu0
      %1523 = vmatprep.mubr.f32.mxu0 0.0
      %1524 = vmatmul.mubr.f32.gmra.mrb[0].mxu0 %v1053
      %v1525 = vpop.f32.mrb[0].mxu0
      %v1526 = vadd.f32 %v1301, %v1525
      %v1527 = vpop.f32.mrb[0].mxu0
      %1528 = vmatprep.mubr.f32.mxu0 0.0
      %1529 = vmatmul.mubr.f32.gmra.mrb[0].mxu0 %v1054
      %v1530 = vpop.f32.mrb[0].mxu0
      %v1531 = vadd.f32 %v1306, %v1530
      %v1532 = vpop.f32.mrb[0].mxu0
      %1533 = vmatprep.mubr.f32.mxu0 0.0
      %1534 = vmatmul.mubr.f32.gmra.mrb[0].mxu0 %v1055
      %v1535 = vpop.f32.mrb[0].mxu0
      %v1536 = vadd.f32 %v1311, %v1535
      %v1537 = vpop.f32.mrb[0].mxu0
      %1538 = vmatprep.mubr.f32.mxu0 0.0
      %1539 = vmatmul.mubr.f32.gmra.mrb[0].mxu0 %v1056
      %v1540 = vpop.f32.mrb[0].mxu0
      %v1541 = vadd.f32 %v1316, %v1540
      %v1542 = vpop.f32.mrb[0].mxu0
      %1543 = vmatprep.mubr.f32.mxu0 0.0
      %1544 = vmatmul.mubr.f32.gmra.mrb[0].mxu0 %v1057
      %v1545 = vpop.f32.mrb[0].mxu0
      %v1546 = vadd.f32 %v1321, %v1545
      %v1547 = vpop.f32.mrb[0].mxu0
      %1548 = vmatprep.mubr.f32.mxu0 0.0
      %1549 = vmatmul.mubr.f32.gmra.mrb[0].mxu0 %v1058
      %v1550 = vpop.f32.mrb[0].mxu0
      %v1551 = vadd.f32 %v1326, %v1550
      %v1552 = vpop.f32.mrb[0].mxu0
      %1553 = vmatprep.mubr.f32.mxu0 0.0
      %1554 = vmatmul.mubr.f32.gmra.mrb[0].mxu0 %v1059
      %v1555 = vpop.f32.mrb[0].mxu0
      %v1556 = vadd.f32 %v1331, %v1555
      %v1557 = vpop.f32.mrb[0].mxu0
      %1558 = vmatprep.mubr.f32.mxu0 0.0
      %1559 = vmatmul.mubr.f32.gmra.mrb[0].mxu0 %v1060
      %v1560 = vpop.f32.mrb[0].mxu0
      %v1561 = vadd.f32 %v1336, %v1560
      %v1562 = vpop.f32.mrb[0].mxu0
      %1563 = vmatprep.mubr.f32.mxu0 0.0
      %1564 = vmatmul.mubr.f32.gmra.mrb[0].mxu0 %v1061
      %v1565 = vpop.f32.mrb[0].mxu0
      %v1566 = vadd.f32 %v1341, %v1565
      %v1567 = vpop.f32.mrb[0].mxu0
      %1568 = vmatprep.mubr.f32.mxu0 0.0
      %1569 = vmatmul.mubr.f32.gmra.mrb[0].mxu0 %v1062
      %v1570 = vpop.f32.mrb[0].mxu0
      %v1571 = vadd.f32 %v1346, %v1570
      %v1572 = vpop.f32.mrb[0].mxu0
      %1573 = vmatprep.mubr.f32.mxu0 0.0
      %1574 = vmatmul.mubr.f32.gmra.mrb[0].mxu0 %v1063
      %v1575 = vpop.f32.mrb[0].mxu0
      %v1576 = vadd.f32 %v1351, %v1575
      %v1577 = vpop.f32.mrb[0].mxu0
      %1578 = vdwg.mxu0
      %v1579 = vld [vmem:[#allocation2 + $0x2] sm:$0xff]
      %v1580 = vld [vmem:[#allocation2 + $0xa] sm:$0xff]
      %v1581 = vld [vmem:[#allocation2 + $0x12] sm:$0xff]
      %v1582 = vld [vmem:[#allocation2 + $0x1a] sm:$0xff]
      %v1583 = vld [vmem:[#allocation2 + $0x22] sm:$0xff]
      %v1584 = vld [vmem:[#allocation2 + $0x2a] sm:$0xff]
      %v1585 = vld [vmem:[#allocation2 + $0x32] sm:$0xff]
      %v1586 = vld [vmem:[#allocation2 + $0x3a] sm:$0xff]
      %v1587 = vld [vmem:[#allocation2 + $0x42] sm:$0xff]
      %v1588 = vld [vmem:[#allocation2 + $0x4a] sm:$0xff]
      %v1589 = vld [vmem:[#allocation2 + $0x52] sm:$0xff]
      %v1590 = vld [vmem:[#allocation2 + $0x5a] sm:$0xff]
      %v1591 = vld [vmem:[#allocation2 + $0x62] sm:$0xff]
      %v1592 = vld [vmem:[#allocation2 + $0x6a] sm:$0xff]
      %v1593 = vld [vmem:[#allocation2 + $0x72] sm:$0xff]
      %v1594 = vld [vmem:[#allocation2 + $0x7a] sm:$0xff]
      %v1595 = vld [vmem:[#allocation2 + $0x82] sm:$0xff]
      %v1596 = vld [vmem:[#allocation2 + $0x8a] sm:$0xff]
      %v1597 = vld [vmem:[#allocation2 + $0x92] sm:$0xff]
      %v1598 = vld [vmem:[#allocation2 + $0x9a] sm:$0xff]
      %v1599 = vld [vmem:[#allocation2 + $0xa2] sm:$0xff]
      %v1600 = vld [vmem:[#allocation2 + $0xaa] sm:$0xff]
      %v1601 = vld [vmem:[#allocation2 + $0xb2] sm:$0xff]
      %v1602 = vld [vmem:[#allocation2 + $0xba] sm:$0xff]
      %v1603 = vld [vmem:[#allocation2 + $0xc2] sm:$0xff]
      %v1604 = vld [vmem:[#allocation2 + $0xca] sm:$0xff]
      %v1605 = vld [vmem:[#allocation2 + $0xd2] sm:$0xff]
      %v1606 = vld [vmem:[#allocation2 + $0xda] sm:$0xff]
      %v1607 = vld [vmem:[#allocation2 + $0xe2] sm:$0xff]
      %v1608 = vld [vmem:[#allocation2 + $0xea] sm:$0xff]
      %v1609 = vld [vmem:[#allocation2 + $0xf2] sm:$0xff]
      %v1610 = vld [vmem:[#allocation2 + $0xfa] sm:$0xff]
      %1612 = vset.pattern.permute.xlu0 0
      %1613 = vperm.xlu0 %1612, %v808
      %v1614 = vpop.permute.xlu0 %1613
      %1617 = vset.pattern.permute.xlu0 0
      %1618 = vperm.xlu0 %1617, %v809
      %v1619 = vpop.permute.xlu0 %1618
      %1622 = vset.pattern.permute.xlu0 0
      %1623 = vperm.xlu0 %1622, %v810
      %v1624 = vpop.permute.xlu0 %1623
      %1627 = vset.pattern.permute.xlu0 0
      %1628 = vperm.xlu0 %1627, %v811
      %v1629 = vpop.permute.xlu0 %1628
      %1632 = vset.pattern.permute.xlu0 0
      %1633 = vperm.xlu0 %1632, %v812
      %v1634 = vpop.permute.xlu0 %1633
      %1637 = vset.pattern.permute.xlu0 0
      %1638 = vperm.xlu0 %1637, %v813
      %v1639 = vpop.permute.xlu0 %1638
      %1642 = vset.pattern.permute.xlu0 0
      %1643 = vperm.xlu0 %1642, %v814
      %v1644 = vpop.permute.xlu0 %1643
      %1647 = vset.pattern.permute.xlu0 0
      %1648 = vperm.xlu0 %1647, %v815
      %v1649 = vpop.permute.xlu0 %1648
      %1652 = vset.pattern.permute.xlu0 0
      %1653 = vperm.xlu0 %1652, %v816
      %v1654 = vpop.permute.xlu0 %1653
      %1657 = vset.pattern.permute.xlu0 0
      %1658 = vperm.xlu0 %1657, %v817
      %v1659 = vpop.permute.xlu0 %1658
      %1662 = vset.pattern.permute.xlu0 0
      %1663 = vperm.xlu0 %1662, %v818
      %v1664 = vpop.permute.xlu0 %1663
      %1667 = vset.pattern.permute.xlu0 0
      %1668 = vperm.xlu0 %1667, %v819
      %v1669 = vpop.permute.xlu0 %1668
      %1672 = vset.pattern.permute.xlu0 0
      %1673 = vperm.xlu0 %1672, %v820
      %v1674 = vpop.permute.xlu0 %1673
      %1677 = vset.pattern.permute.xlu0 0
      %1678 = vperm.xlu0 %1677, %v821
      %v1679 = vpop.permute.xlu0 %1678
      %1682 = vset.pattern.permute.xlu0 0
      %1683 = vperm.xlu0 %1682, %v822
      %v1684 = vpop.permute.xlu0 %1683
      %1687 = vset.pattern.permute.xlu0 0
      %1688 = vperm.xlu0 %1687, %v823
      %v1689 = vpop.permute.xlu0 %1688
      %1692 = vset.pattern.permute.xlu0 0
      %1693 = vperm.xlu0 %1692, %v824
      %v1694 = vpop.permute.xlu0 %1693
      %1697 = vset.pattern.permute.xlu0 0
      %1698 = vperm.xlu0 %1697, %v825
      %v1699 = vpop.permute.xlu0 %1698
      %1702 = vset.pattern.permute.xlu0 0
      %1703 = vperm.xlu0 %1702, %v826
      %v1704 = vpop.permute.xlu0 %1703
      %1707 = vset.pattern.permute.xlu0 0
      %1708 = vperm.xlu0 %1707, %v827
      %v1709 = vpop.permute.xlu0 %1708
      %1712 = vset.pattern.permute.xlu0 0
      %1713 = vperm.xlu0 %1712, %v828
      %v1714 = vpop.permute.xlu0 %1713
      %1717 = vset.pattern.permute.xlu0 0
      %1718 = vperm.xlu0 %1717, %v829
      %v1719 = vpop.permute.xlu0 %1718
      %1722 = vset.pattern.permute.xlu0 0
      %1723 = vperm.xlu0 %1722, %v830
      %v1724 = vpop.permute.xlu0 %1723
      %1727 = vset.pattern.permute.xlu0 0
      %1728 = vperm.xlu0 %1727, %v831
      %v1729 = vpop.permute.xlu0 %1728
      %1732 = vset.pattern.permute.xlu0 0
      %1733 = vperm.xlu0 %1732, %v832
      %v1734 = vpop.permute.xlu0 %1733
      %1737 = vset.pattern.permute.xlu0 0
      %1738 = vperm.xlu0 %1737, %v833
      %v1739 = vpop.permute.xlu0 %1738
      %1742 = vset.pattern.permute.xlu0 0
      %1743 = vperm.xlu0 %1742, %v834
      %v1744 = vpop.permute.xlu0 %1743
      %1747 = vset.pattern.permute.xlu0 0
      %1748 = vperm.xlu0 %1747, %v835
      %v1749 = vpop.permute.xlu0 %1748
      %1752 = vset.pattern.permute.xlu0 0
      %1753 = vperm.xlu0 %1752, %v836
      %v1754 = vpop.permute.xlu0 %1753
      %1757 = vset.pattern.permute.xlu0 0
      %1758 = vperm.xlu0 %1757, %v837
      %v1759 = vpop.permute.xlu0 %1758
      %1762 = vset.pattern.permute.xlu0 0
      %1763 = vperm.xlu0 %1762, %v838
      %v1764 = vpop.permute.xlu0 %1763
      %1767 = vset.pattern.permute.xlu0 0
      %1768 = vperm.xlu0 %1767, %v839
      %v1769 = vpop.permute.xlu0 %1768
      %v1771 = vmul.f32 %v1579, %v1614
      %v1772 = vmul.f32 %v1580, %v1619
      %v1773 = vmul.f32 %v1581, %v1624
      %v1774 = vmul.f32 %v1582, %v1629
      %v1775 = vmul.f32 %v1583, %v1634
      %v1776 = vmul.f32 %v1584, %v1639
      %v1777 = vmul.f32 %v1585, %v1644
      %v1778 = vmul.f32 %v1586, %v1649
      %v1779 = vmul.f32 %v1587, %v1654
      %v1780 = vmul.f32 %v1588, %v1659
      %v1781 = vmul.f32 %v1589, %v1664
      %v1782 = vmul.f32 %v1590, %v1669
      %v1783 = vmul.f32 %v1591, %v1674
      %v1784 = vmul.f32 %v1592, %v1679
      %v1785 = vmul.f32 %v1593, %v1684
      %v1786 = vmul.f32 %v1594, %v1689
      %v1787 = vmul.f32 %v1595, %v1694
      %v1788 = vmul.f32 %v1596, %v1699
      %v1789 = vmul.f32 %v1597, %v1704
      %v1790 = vmul.f32 %v1598, %v1709
      %v1791 = vmul.f32 %v1599, %v1714
      %v1792 = vmul.f32 %v1600, %v1719
      %v1793 = vmul.f32 %v1601, %v1724
      %v1794 = vmul.f32 %v1602, %v1729
      %v1795 = vmul.f32 %v1603, %v1734
      %v1796 = vmul.f32 %v1604, %v1739
      %v1797 = vmul.f32 %v1605, %v1744
      %v1798 = vmul.f32 %v1606, %v1749
      %v1799 = vmul.f32 %v1607, %v1754
      %v1800 = vmul.f32 %v1608, %v1759
      %v1801 = vmul.f32 %v1609, %v1764
      %v1802 = vmul.f32 %v1610, %v1769
      %s1803 = scalar_lea.vmem %s1, 256
      %v1804 = vld [vmem:[%s1803] sm:$0xff]
      %v1805 = vld [vmem:[%s1803 + $0x8] sm:$0xff]
      %v1806 = vld [vmem:[%s1803 + $0x10] sm:$0xff]
      %v1807 = vld [vmem:[%s1803 + $0x18] sm:$0xff]
      %v1808 = vld [vmem:[%s1803 + $0x20] sm:$0xff]
      %v1809 = vld [vmem:[%s1803 + $0x28] sm:$0xff]
      %v1810 = vld [vmem:[%s1803 + $0x30] sm:$0xff]
      %v1811 = vld [vmem:[%s1803 + $0x38] sm:$0xff]
      %v1812 = vld [vmem:[%s1803 + $0x40] sm:$0xff]
      %v1813 = vld [vmem:[%s1803 + $0x48] sm:$0xff]
      %v1814 = vld [vmem:[%s1803 + $0x50] sm:$0xff]
      %v1815 = vld [vmem:[%s1803 + $0x58] sm:$0xff]
      %v1816 = vld [vmem:[%s1803 + $0x60] sm:$0xff]
      %v1817 = vld [vmem:[%s1803 + $0x68] sm:$0xff]
      %v1818 = vld [vmem:[%s1803 + $0x70] sm:$0xff]
      %v1819 = vld [vmem:[%s1803 + $0x78] sm:$0xff]
      %1820 = vmatprep.subr.mxu0 0.0
      %1821 = vmatpush1.msra.mxu0 %v1804
      %1822 = vmatprep.subr.mxu0 0.0
      %1823 = vmatpush1.msra.mxu0 %v1805
      %1824 = vmatprep.subr.mxu0 0.0
      %1825 = vmatpush1.msra.mxu0 %v1806
      %1826 = vmatprep.subr.mxu0 0.0
      %1827 = vmatpush1.msra.mxu0 %v1807
      %1828 = vmatprep.subr.mxu0 0.0
      %1829 = vmatpush1.msra.mxu0 %v1808
      %1830 = vmatprep.subr.mxu0 0.0
      %1831 = vmatpush1.msra.mxu0 %v1809
      %1832 = vmatprep.subr.mxu0 0.0
      %1833 = vmatpush1.msra.mxu0 %v1810
      %1834 = vmatprep.subr.mxu0 0.0
      %1835 = vmatpush1.msra.mxu0 %v1811
      %1836 = vmatprep.subr.mxu0 0.0
      %1837 = vmatpush1.msra.mxu0 %v1812
      %1838 = vmatprep.subr.mxu0 0.0
      %1839 = vmatpush1.msra.mxu0 %v1813
      %1840 = vmatprep.subr.mxu0 0.0
      %1841 = vmatpush1.msra.mxu0 %v1814
      %1842 = vmatprep.subr.mxu0 0.0
      %1843 = vmatpush1.msra.mxu0 %v1815
      %1844 = vmatprep.subr.mxu0 0.0
      %1845 = vmatpush1.msra.mxu0 %v1816
      %1846 = vmatprep.subr.mxu0 0.0
      %1847 = vmatpush1.msra.mxu0 %v1817
      %1848 = vmatprep.subr.mxu0 0.0
      %1849 = vmatpush1.msra.mxu0 %v1818
      %1850 = vmatprep.subr.mxu0 0.0
      %1851 = vmatpush1.msra.mxu0 %v1819
      %1852 = vmatprep.subr.mxu0 0.0
      %1853 = vmatpush1.msra.mxu0 0.0
      %1854 = vmatprep.subr.mxu0 0.0
      %1855 = vmatpush1.msra.mxu0 0.0
      %1856 = vmatprep.subr.mxu0 0.0
      %1857 = vmatpush1.msra.mxu0 0.0
      %1858 = vmatprep.subr.mxu0 0.0
      %1859 = vmatpush1.msra.mxu0 0.0
      %1860 = vmatprep.subr.mxu0 0.0
      %1861 = vmatpush1.msra.mxu0 0.0
      %1862 = vmatprep.subr.mxu0 0.0
      %1863 = vmatpush1.msra.mxu0 0.0
      %1864 = vmatprep.subr.mxu0 0.0
      %1865 = vmatpush1.msra.mxu0 0.0
      %1866 = vmatprep.subr.mxu0 0.0
      %1867 = vmatpush1.msra.mxu0 0.0
      %1868 = vmatprep.subr.mxu0 0.0
      %1869 = vmatpush1.msra.mxu0 0.0
      %1870 = vmatprep.subr.mxu0 0.0
      %1871 = vmatpush1.msra.mxu0 0.0
      %1872 = vmatprep.subr.mxu0 0.0
      %1873 = vmatpush1.msra.mxu0 0.0
      %1874 = vmatprep.subr.mxu0 0.0
      %1875 = vmatpush1.msra.mxu0 0.0
      %1876 = vmatprep.subr.mxu0 0.0
      %1877 = vmatpush1.msra.mxu0 0.0
      %1878 = vmatprep.subr.mxu0 0.0
      %1879 = vmatpush1.msra.mxu0 0.0
      %1880 = vmatprep.subr.mxu0 0.0
      %1881 = vmatpush1.msra.mxu0 0.0
      %1882 = vmatprep.subr.mxu0 0.0
      %1883 = vmatpush1.msra.mxu0 0.0
      %1884 = vmatprep.mubr.f32.mxu0 0.0
      %1885 = vmatmul.mubr.f32.gmra.mrb[0].mxu0 %v1771
      %v1886 = vpop.f32.mrb[0].mxu0
      %v1887 = vadd.f32 0.0, %v1886
      %v1888 = vpop.f32.mrb[0].mxu0
      %1889 = vmatprep.mubr.f32.mxu0 0.0
      %1890 = vmatmul.mubr.f32.gmra.mrb[0].mxu0 %v1772
      %v1891 = vpop.f32.mrb[0].mxu0
      %v1892 = vadd.f32 0.0, %v1891
      %v1893 = vpop.f32.mrb[0].mxu0
      %1894 = vmatprep.mubr.f32.mxu0 0.0
      %1895 = vmatmul.mubr.f32.gmra.mrb[0].mxu0 %v1773
      %v1896 = vpop.f32.mrb[0].mxu0
      %v1897 = vadd.f32 0.0, %v1896
      %v1898 = vpop.f32.mrb[0].mxu0
      %1899 = vmatprep.mubr.f32.mxu0 0.0
      %1900 = vmatmul.mubr.f32.gmra.mrb[0].mxu0 %v1774
      %v1901 = vpop.f32.mrb[0].mxu0
      %v1902 = vadd.f32 0.0, %v1901
      %v1903 = vpop.f32.mrb[0].mxu0
      %1904 = vmatprep.mubr.f32.mxu0 0.0
      %1905 = vmatmul.mubr.f32.gmra.mrb[0].mxu0 %v1775
      %v1906 = vpop.f32.mrb[0].mxu0
      %v1907 = vadd.f32 0.0, %v1906
      %v1908 = vpop.f32.mrb[0].mxu0
      %1909 = vmatprep.mubr.f32.mxu0 0.0
      %1910 = vmatmul.mubr.f32.gmra.mrb[0].mxu0 %v1776
      %v1911 = vpop.f32.mrb[0].mxu0
      %v1912 = vadd.f32 0.0, %v1911
      %v1913 = vpop.f32.mrb[0].mxu0
      %1914 = vmatprep.mubr.f32.mxu0 0.0
      %1915 = vmatmul.mubr.f32.gmra.mrb[0].mxu0 %v1777
      %v1916 = vpop.f32.mrb[0].mxu0
      %v1917 = vadd.f32 0.0, %v1916
      %v1918 = vpop.f32.mrb[0].mxu0
      %1919 = vmatprep.mubr.f32.mxu0 0.0
      %1920 = vmatmul.mubr.f32.gmra.mrb[0].mxu0 %v1778
      %v1921 = vpop.f32.mrb[0].mxu0
      %v1922 = vadd.f32 0.0, %v1921
      %v1923 = vpop.f32.mrb[0].mxu0
      %1924 = vmatprep.mubr.f32.mxu0 0.0
      %1925 = vmatmul.mubr.f32.gmra.mrb[0].mxu0 %v1779
      %v1926 = vpop.f32.mrb[0].mxu0
      %v1927 = vadd.f32 0.0, %v1926
      %v1928 = vpop.f32.mrb[0].mxu0
      %1929 = vmatprep.mubr.f32.mxu0 0.0
      %1930 = vmatmul.mubr.f32.gmra.mrb[0].mxu0 %v1780
      %v1931 = vpop.f32.mrb[0].mxu0
      %v1932 = vadd.f32 0.0, %v1931
      %v1933 = vpop.f32.mrb[0].mxu0
      %1934 = vmatprep.mubr.f32.mxu0 0.0
      %1935 = vmatmul.mubr.f32.gmra.mrb[0].mxu0 %v1781
      %v1936 = vpop.f32.mrb[0].mxu0
      %v1937 = vadd.f32 0.0, %v1936
      %v1938 = vpop.f32.mrb[0].mxu0
      %1939 = vmatprep.mubr.f32.mxu0 0.0
      %1940 = vmatmul.mubr.f32.gmra.mrb[0].mxu0 %v1782
      %v1941 = vpop.f32.mrb[0].mxu0
      %v1942 = vadd.f32 0.0, %v1941
      %v1943 = vpop.f32.mrb[0].mxu0
      %1944 = vmatprep.mubr.f32.mxu0 0.0
      %1945 = vmatmul.mubr.f32.gmra.mrb[0].mxu0 %v1783
      %v1946 = vpop.f32.mrb[0].mxu0
      %v1947 = vadd.f32 0.0, %v1946
      %v1948 = vpop.f32.mrb[0].mxu0
      %1949 = vmatprep.mubr.f32.mxu0 0.0
      %1950 = vmatmul.mubr.f32.gmra.mrb[0].mxu0 %v1784
      %v1951 = vpop.f32.mrb[0].mxu0
      %v1952 = vadd.f32 0.0, %v1951
      %v1953 = vpop.f32.mrb[0].mxu0
      %1954 = vmatprep.mubr.f32.mxu0 0.0
      %1955 = vmatmul.mubr.f32.gmra.mrb[0].mxu0 %v1785
      %v1956 = vpop.f32.mrb[0].mxu0
      %v1957 = vadd.f32 0.0, %v1956
      %v1958 = vpop.f32.mrb[0].mxu0
      %1959 = vmatprep.mubr.f32.mxu0 0.0
      %1960 = vmatmul.mubr.f32.gmra.mrb[0].mxu0 %v1786
      %v1961 = vpop.f32.mrb[0].mxu0
      %v1962 = vadd.f32 0.0, %v1961
      %v1963 = vpop.f32.mrb[0].mxu0
      %1964 = vmatprep.mubr.f32.mxu0 0.0
      %1965 = vmatmul.mubr.f32.gmra.mrb[0].mxu0 %v1787
      %v1966 = vpop.f32.mrb[0].mxu0
      %v1967 = vadd.f32 0.0, %v1966
      %v1968 = vpop.f32.mrb[0].mxu0
      %1969 = vmatprep.mubr.f32.mxu0 0.0
      %1970 = vmatmul.mubr.f32.gmra.mrb[0].mxu0 %v1788
      %v1971 = vpop.f32.mrb[0].mxu0
      %v1972 = vadd.f32 0.0, %v1971
      %v1973 = vpop.f32.mrb[0].mxu0
      %1974 = vmatprep.mubr.f32.mxu0 0.0
      %1975 = vmatmul.mubr.f32.gmra.mrb[0].mxu0 %v1789
      %v1976 = vpop.f32.mrb[0].mxu0
      %v1977 = vadd.f32 0.0, %v1976
      %v1978 = vpop.f32.mrb[0].mxu0
      %1979 = vmatprep.mubr.f32.mxu0 0.0
      %1980 = vmatmul.mubr.f32.gmra.mrb[0].mxu0 %v1790
      %v1981 = vpop.f32.mrb[0].mxu0
      %v1982 = vadd.f32 0.0, %v1981
      %v1983 = vpop.f32.mrb[0].mxu0
      %1984 = vmatprep.mubr.f32.mxu0 0.0
      %1985 = vmatmul.mubr.f32.gmra.mrb[0].mxu0 %v1791
      %v1986 = vpop.f32.mrb[0].mxu0
      %v1987 = vadd.f32 0.0, %v1986
      %v1988 = vpop.f32.mrb[0].mxu0
      %1989 = vmatprep.mubr.f32.mxu0 0.0
      %1990 = vmatmul.mubr.f32.gmra.mrb[0].mxu0 %v1792
      %v1991 = vpop.f32.mrb[0].mxu0
      %v1992 = vadd.f32 0.0, %v1991
      %v1993 = vpop.f32.mrb[0].mxu0
      %1994 = vmatprep.mubr.f32.mxu0 0.0
      %1995 = vmatmul.mubr.f32.gmra.mrb[0].mxu0 %v1793
      %v1996 = vpop.f32.mrb[0].mxu0
      %v1997 = vadd.f32 0.0, %v1996
      %v1998 = vpop.f32.mrb[0].mxu0
      %1999 = vmatprep.mubr.f32.mxu0 0.0
      %2000 = vmatmul.mubr.f32.gmra.mrb[0].mxu0 %v1794
      %v2001 = vpop.f32.mrb[0].mxu0
      %v2002 = vadd.f32 0.0, %v2001
      %v2003 = vpop.f32.mrb[0].mxu0
      %2004 = vmatprep.mubr.f32.mxu0 0.0
      %2005 = vmatmul.mubr.f32.gmra.mrb[0].mxu0 %v1795
      %v2006 = vpop.f32.mrb[0].mxu0
      %v2007 = vadd.f32 0.0, %v2006
      %v2008 = vpop.f32.mrb[0].mxu0
      %2009 = vmatprep.mubr.f32.mxu0 0.0
      %2010 = vmatmul.mubr.f32.gmra.mrb[0].mxu0 %v1796
      %v2011 = vpop.f32.mrb[0].mxu0
      %v2012 = vadd.f32 0.0, %v2011
      %v2013 = vpop.f32.mrb[0].mxu0
      %2014 = vmatprep.mubr.f32.mxu0 0.0
      %2015 = vmatmul.mubr.f32.gmra.mrb[0].mxu0 %v1797
      %v2016 = vpop.f32.mrb[0].mxu0
      %v2017 = vadd.f32 0.0, %v2016
      %v2018 = vpop.f32.mrb[0].mxu0
      %2019 = vmatprep.mubr.f32.mxu0 0.0
      %2020 = vmatmul.mubr.f32.gmra.mrb[0].mxu0 %v1798
      %v2021 = vpop.f32.mrb[0].mxu0
      %v2022 = vadd.f32 0.0, %v2021
      %v2023 = vpop.f32.mrb[0].mxu0
      %2024 = vmatprep.mubr.f32.mxu0 0.0
      %2025 = vmatmul.mubr.f32.gmra.mrb[0].mxu0 %v1799
      %v2026 = vpop.f32.mrb[0].mxu0
      %v2027 = vadd.f32 0.0, %v2026
      %v2028 = vpop.f32.mrb[0].mxu0
      %2029 = vmatprep.mubr.f32.mxu0 0.0
      %2030 = vmatmul.mubr.f32.gmra.mrb[0].mxu0 %v1800
      %v2031 = vpop.f32.mrb[0].mxu0
      %v2032 = vadd.f32 0.0, %v2031
      %v2033 = vpop.f32.mrb[0].mxu0
      %2034 = vmatprep.mubr.f32.mxu0 0.0
      %2035 = vmatmul.mubr.f32.gmra.mrb[0].mxu0 %v1801
      %v2036 = vpop.f32.mrb[0].mxu0
      %v2037 = vadd.f32 0.0, %v2036
      %v2038 = vpop.f32.mrb[0].mxu0
      %2039 = vmatprep.mubr.f32.mxu0 0.0
      %2040 = vmatmul.mubr.f32.gmra.mrb[0].mxu0 %v1802
      %v2041 = vpop.f32.mrb[0].mxu0
      %v2042 = vadd.f32 0.0, %v2041
      %v2043 = vpop.f32.mrb[0].mxu0
      %2044 = vdwg.mxu0
      %v2045 = vadd.f32 %v1421, %v1887
      %v2046 = vadd.f32 %v1426, %v1892
      %v2047 = vadd.f32 %v1431, %v1897
      %v2048 = vadd.f32 %v1436, %v1902
      %v2049 = vadd.f32 %v1441, %v1907
      %v2050 = vadd.f32 %v1446, %v1912
      %v2051 = vadd.f32 %v1451, %v1917
      %v2052 = vadd.f32 %v1456, %v1922
      %v2053 = vadd.f32 %v1461, %v1927
      %v2054 = vadd.f32 %v1466, %v1932
      %v2055 = vadd.f32 %v1471, %v1937
      %v2056 = vadd.f32 %v1476, %v1942
      %v2057 = vadd.f32 %v1481, %v1947
      %v2058 = vadd.f32 %v1486, %v1952
      %v2059 = vadd.f32 %v1491, %v1957
      %v2060 = vadd.f32 %v1496, %v1962
      %v2061 = vadd.f32 %v1501, %v1967
      %v2062 = vadd.f32 %v1506, %v1972
      %v2063 = vadd.f32 %v1511, %v1977
      %v2064 = vadd.f32 %v1516, %v1982
      %v2065 = vadd.f32 %v1521, %v1987
      %v2066 = vadd.f32 %v1526, %v1992
      %v2067 = vadd.f32 %v1531, %v1997
      %v2068 = vadd.f32 %v1536, %v2002
      %v2069 = vadd.f32 %v1541, %v2007
      %v2070 = vadd.f32 %v1546, %v2012
      %v2071 = vadd.f32 %v1551, %v2017
      %v2072 = vadd.f32 %v1556, %v2022
      %v2073 = vadd.f32 %v1561, %v2027
      %v2074 = vadd.f32 %v1566, %v2032
      %v2075 = vadd.f32 %v1571, %v2037
      %v2076 = vadd.f32 %v1576, %v2042
      %v2077 = vld [vmem:[#allocation2 + $0x10] sm:$0xff]
      %v2078 = vld [vmem:[#allocation2 + $0x18] sm:$0xff]
      %v2079 = vld [vmem:[#allocation2 + $0x20] sm:$0xff]
      %v2080 = vld [vmem:[#allocation2 + $0x28] sm:$0xff]
      %v2081 = vld [vmem:[#allocation2 + $0x30] sm:$0xff]
      %v2082 = vld [vmem:[#allocation2 + $0x38] sm:$0xff]
      %v2083 = vld [vmem:[#allocation2 + $0x40] sm:$0xff]
      %v2084 = vld [vmem:[#allocation2 + $0x48] sm:$0xff]
      %v2085 = vld [vmem:[#allocation2 + $0x50] sm:$0xff]
      %v2086 = vld [vmem:[#allocation2 + $0x58] sm:$0xff]
      %v2087 = vld [vmem:[#allocation2 + $0x60] sm:$0xff]
      %v2088 = vld [vmem:[#allocation2 + $0x68] sm:$0xff]
      %v2089 = vld [vmem:[#allocation2 + $0x70] sm:$0xff]
      %v2090 = vld [vmem:[#allocation2 + $0x78] sm:$0xff]
      %v2091 = vld [vmem:[#allocation2 + $0x80] sm:$0xff]
      %v2092 = vld [vmem:[#allocation2 + $0x88] sm:$0xff]
      %v2093 = vld [vmem:[#allocation2 + $0x90] sm:$0xff]
      %v2094 = vld [vmem:[#allocation2 + $0x98] sm:$0xff]
      %v2095 = vld [vmem:[#allocation2 + $0xa0] sm:$0xff]
      %v2096 = vld [vmem:[#allocation2 + $0xa8] sm:$0xff]
      %v2097 = vld [vmem:[#allocation2 + $0xb0] sm:$0xff]
      %v2098 = vld [vmem:[#allocation2 + $0xb8] sm:$0xff]
      %v2099 = vld [vmem:[#allocation2 + $0xc0] sm:$0xff]
      %v2100 = vld [vmem:[#allocation2 + $0xc8] sm:$0xff]
      %v2101 = vld [vmem:[#allocation2 + $0xd0] sm:$0xff]
      %v2102 = vld [vmem:[#allocation2 + $0xd8] sm:$0xff]
      %v2103 = vld [vmem:[#allocation2 + $0xe0] sm:$0xff]
      %v2104 = vld [vmem:[#allocation2 + $0xe8] sm:$0xff]
      %v2105 = vld [vmem:[#allocation2 + $0xf0] sm:$0xff]
      %v2106 = vld [vmem:[#allocation2 + $0xf8] sm:$0xff]
      %v2107 = vld [vmem:[#allocation2 + $0x100] sm:$0xff]
      %v2108 = vld [vmem:[#allocation2 + $0x108] sm:$0xff]
      %v2109 = vmul.f32 %v2077, %v875
      %v2110 = vmul.f32 %v2078, %v880
      %v2111 = vmul.f32 %v2079, %v885
      %v2112 = vmul.f32 %v2080, %v890
      %v2113 = vmul.f32 %v2081, %v895
      %v2114 = vmul.f32 %v2082, %v900
      %v2115 = vmul.f32 %v2083, %v905
      %v2116 = vmul.f32 %v2084, %v910
      %v2117 = vmul.f32 %v2085, %v915
      %v2118 = vmul.f32 %v2086, %v920
      %v2119 = vmul.f32 %v2087, %v925
      %v2120 = vmul.f32 %v2088, %v930
      %v2121 = vmul.f32 %v2089, %v935
      %v2122 = vmul.f32 %v2090, %v940
      %v2123 = vmul.f32 %v2091, %v945
      %v2124 = vmul.f32 %v2092, %v950
      %v2125 = vmul.f32 %v2093, %v955
      %v2126 = vmul.f32 %v2094, %v960
      %v2127 = vmul.f32 %v2095, %v965
      %v2128 = vmul.f32 %v2096, %v970
      %v2129 = vmul.f32 %v2097, %v975
      %v2130 = vmul.f32 %v2098, %v980
      %v2131 = vmul.f32 %v2099, %v985
      %v2132 = vmul.f32 %v2100, %v990
      %v2133 = vmul.f32 %v2101, %v995
      %v2134 = vmul.f32 %v2102, %v1000
      %v2135 = vmul.f32 %v2103, %v1005
      %v2136 = vmul.f32 %v2104, %v1010
      %v2137 = vmul.f32 %v2105, %v1015
      %v2138 = vmul.f32 %v2106, %v1020
      %v2139 = vmul.f32 %v2107, %v1025
      %v2140 = vmul.f32 %v2108, %v1030
      %s2141 = scalar_lea.vmem %s1, 384
      %v2142 = vld [vmem:[%s2141] sm:$0xff]
      %v2143 = vld [vmem:[%s2141 + $0x8] sm:$0xff]
      %v2144 = vld [vmem:[%s2141 + $0x10] sm:$0xff]
      %v2145 = vld [vmem:[%s2141 + $0x18] sm:$0xff]
      %v2146 = vld [vmem:[%s2141 + $0x20] sm:$0xff]
      %v2147 = vld [vmem:[%s2141 + $0x28] sm:$0xff]
      %v2148 = vld [vmem:[%s2141 + $0x30] sm:$0xff]
      %v2149 = vld [vmem:[%s2141 + $0x38] sm:$0xff]
      %v2150 = vld [vmem:[%s2141 + $0x40] sm:$0xff]
      %v2151 = vld [vmem:[%s2141 + $0x48] sm:$0xff]
      %v2152 = vld [vmem:[%s2141 + $0x50] sm:$0xff]
      %v2153 = vld [vmem:[%s2141 + $0x58] sm:$0xff]
      %v2154 = vld [vmem:[%s2141 + $0x60] sm:$0xff]
      %v2155 = vld [vmem:[%s2141 + $0x68] sm:$0xff]
      %v2156 = vld [vmem:[%s2141 + $0x70] sm:$0xff]
      %v2157 = vld [vmem:[%s2141 + $0x78] sm:$0xff]
      %2158 = vmatprep.subr.mxu0 0.0
      %2159 = vmatpush1.msra.mxu0 %v2142
      %2160 = vmatprep.subr.mxu0 0.0
      %2161 = vmatpush1.msra.mxu0 %v2143
      %2162 = vmatprep.subr.mxu0 0.0
      %2163 = vmatpush1.msra.mxu0 %v2144
      %2164 = vmatprep.subr.mxu0 0.0
      %2165 = vmatpush1.msra.mxu0 %v2145
      %2166 = vmatprep.subr.mxu0 0.0
      %2167 = vmatpush1.msra.mxu0 %v2146
      %2168 = vmatprep.subr.mxu0 0.0
      %2169 = vmatpush1.msra.mxu0 %v2147
      %2170 = vmatprep.subr.mxu0 0.0
      %2171 = vmatpush1.msra.mxu0 %v2148
      %2172 = vmatprep.subr.mxu0 0.0
      %2173 = vmatpush1.msra.mxu0 %v2149
      %2174 = vmatprep.subr.mxu0 0.0
      %2175 = vmatpush1.msra.mxu0 %v2150
      %2176 = vmatprep.subr.mxu0 0.0
      %2177 = vmatpush1.msra.mxu0 %v2151
      %2178 = vmatprep.subr.mxu0 0.0
      %2179 = vmatpush1.msra.mxu0 %v2152
      %2180 = vmatprep.subr.mxu0 0.0
      %2181 = vmatpush1.msra.mxu0 %v2153
      %2182 = vmatprep.subr.mxu0 0.0
      %2183 = vmatpush1.msra.mxu0 %v2154
      %2184 = vmatprep.subr.mxu0 0.0
      %2185 = vmatpush1.msra.mxu0 %v2155
      %2186 = vmatprep.subr.mxu0 0.0
      %2187 = vmatpush1.msra.mxu0 %v2156
      %2188 = vmatprep.subr.mxu0 0.0
      %2189 = vmatpush1.msra.mxu0 %v2157
      %2190 = vmatprep.subr.mxu0 0.0
      %2191 = vmatpush1.msra.mxu0 0.0
      %2192 = vmatprep.subr.mxu0 0.0
      %2193 = vmatpush1.msra.mxu0 0.0
      %2194 = vmatprep.subr.mxu0 0.0
      %2195 = vmatpush1.msra.mxu0 0.0
      %2196 = vmatprep.subr.mxu0 0.0
      %2197 = vmatpush1.msra.mxu0 0.0
      %2198 = vmatprep.subr.mxu0 0.0
      %2199 = vmatpush1.msra.mxu0 0.0
      %2200 = vmatprep.subr.mxu0 0.0
      %2201 = vmatpush1.msra.mxu0 0.0
      %2202 = vmatprep.subr.mxu0 0.0
      %2203 = vmatpush1.msra.mxu0 0.0
      %2204 = vmatprep.subr.mxu0 0.0
      %2205 = vmatpush1.msra.mxu0 0.0
      %2206 = vmatprep.subr.mxu0 0.0
      %2207 = vmatpush1.msra.mxu0 0.0
      %2208 = vmatprep.subr.mxu0 0.0
      %2209 = vmatpush1.msra.mxu0 0.0
      %2210 = vmatprep.subr.mxu0 0.0
      %2211 = vmatpush1.msra.mxu0 0.0
      %2212 = vmatprep.subr.mxu0 0.0
      %2213 = vmatpush1.msra.mxu0 0.0
      %2214 = vmatprep.subr.mxu0 0.0
      %2215 = vmatpush1.msra.mxu0 0.0
      %2216 = vmatprep.subr.mxu0 0.0
      %2217 = vmatpush1.msra.mxu0 0.0
      %2218 = vmatprep.subr.mxu0 0.0
      %2219 = vmatpush1.msra.mxu0 0.0
      %2220 = vmatprep.subr.mxu0 0.0
      %2221 = vmatpush1.msra.mxu0 0.0
      %2222 = vmatprep.mubr.f32.mxu0 0.0
      %2223 = vmatmul.mubr.f32.gmra.mrb[0].mxu0 %v2109
      %v2224 = vpop.f32.mrb[0].mxu0
      %v2225 = vadd.f32 0.0, %v2224
      %v2226 = vpop.f32.mrb[0].mxu0
      %2227 = vmatprep.mubr.f32.mxu0 0.0
      %2228 = vmatmul.mubr.f32.gmra.mrb[0].mxu0 %v2110
      %v2229 = vpop.f32.mrb[0].mxu0
      %v2230 = vadd.f32 0.0, %v2229
      %v2231 = vpop.f32.mrb[0].mxu0
      %2232 = vmatprep.mubr.f32.mxu0 0.0
      %2233 = vmatmul.mubr.f32.gmra.mrb[0].mxu0 %v2111
      %v2234 = vpop.f32.mrb[0].mxu0
      %v2235 = vadd.f32 0.0, %v2234
      %v2236 = vpop.f32.mrb[0].mxu0
      %2237 = vmatprep.mubr.f32.mxu0 0.0
      %2238 = vmatmul.mubr.f32.gmra.mrb[0].mxu0 %v2112
      %v2239 = vpop.f32.mrb[0].mxu0
      %v2240 = vadd.f32 0.0, %v2239
      %v2241 = vpop.f32.mrb[0].mxu0
      %2242 = vmatprep.mubr.f32.mxu0 0.0
      %2243 = vmatmul.mubr.f32.gmra.mrb[0].mxu0 %v2113
      %v2244 = vpop.f32.mrb[0].mxu0
      %v2245 = vadd.f32 0.0, %v2244
      %v2246 = vpop.f32.mrb[0].mxu0
      %2247 = vmatprep.mubr.f32.mxu0 0.0
      %2248 = vmatmul.mubr.f32.gmra.mrb[0].mxu0 %v2114
      %v2249 = vpop.f32.mrb[0].mxu0
      %v2250 = vadd.f32 0.0, %v2249
      %v2251 = vpop.f32.mrb[0].mxu0
      %2252 = vmatprep.mubr.f32.mxu0 0.0
      %2253 = vmatmul.mubr.f32.gmra.mrb[0].mxu0 %v2115
      %v2254 = vpop.f32.mrb[0].mxu0
      %v2255 = vadd.f32 0.0, %v2254
      %v2256 = vpop.f32.mrb[0].mxu0
      %2257 = vmatprep.mubr.f32.mxu0 0.0
      %2258 = vmatmul.mubr.f32.gmra.mrb[0].mxu0 %v2116
      %v2259 = vpop.f32.mrb[0].mxu0
      %v2260 = vadd.f32 0.0, %v2259
      %v2261 = vpop.f32.mrb[0].mxu0
      %2262 = vmatprep.mubr.f32.mxu0 0.0
      %2263 = vmatmul.mubr.f32.gmra.mrb[0].mxu0 %v2117
      %v2264 = vpop.f32.mrb[0].mxu0
      %v2265 = vadd.f32 0.0, %v2264
      %v2266 = vpop.f32.mrb[0].mxu0
      %2267 = vmatprep.mubr.f32.mxu0 0.0
      %2268 = vmatmul.mubr.f32.gmra.mrb[0].mxu0 %v2118
      %v2269 = vpop.f32.mrb[0].mxu0
      %v2270 = vadd.f32 0.0, %v2269
      %v2271 = vpop.f32.mrb[0].mxu0
      %2272 = vmatprep.mubr.f32.mxu0 0.0
      %2273 = vmatmul.mubr.f32.gmra.mrb[0].mxu0 %v2119
      %v2274 = vpop.f32.mrb[0].mxu0
      %v2275 = vadd.f32 0.0, %v2274
      %v2276 = vpop.f32.mrb[0].mxu0
      %2277 = vmatprep.mubr.f32.mxu0 0.0
      %2278 = vmatmul.mubr.f32.gmra.mrb[0].mxu0 %v2120
      %v2279 = vpop.f32.mrb[0].mxu0
      %v2280 = vadd.f32 0.0, %v2279
      %v2281 = vpop.f32.mrb[0].mxu0
      %2282 = vmatprep.mubr.f32.mxu0 0.0
      %2283 = vmatmul.mubr.f32.gmra.mrb[0].mxu0 %v2121
      %v2284 = vpop.f32.mrb[0].mxu0
      %v2285 = vadd.f32 0.0, %v2284
      %v2286 = vpop.f32.mrb[0].mxu0
      %2287 = vmatprep.mubr.f32.mxu0 0.0
      %2288 = vmatmul.mubr.f32.gmra.mrb[0].mxu0 %v2122
      %v2289 = vpop.f32.mrb[0].mxu0
      %v2290 = vadd.f32 0.0, %v2289
      %v2291 = vpop.f32.mrb[0].mxu0
      %2292 = vmatprep.mubr.f32.mxu0 0.0
      %2293 = vmatmul.mubr.f32.gmra.mrb[0].mxu0 %v2123
      %v2294 = vpop.f32.mrb[0].mxu0
      %v2295 = vadd.f32 0.0, %v2294
      %v2296 = vpop.f32.mrb[0].mxu0
      %2297 = vmatprep.mubr.f32.mxu0 0.0
      %2298 = vmatmul.mubr.f32.gmra.mrb[0].mxu0 %v2124
      %v2299 = vpop.f32.mrb[0].mxu0
      %v2300 = vadd.f32 0.0, %v2299
      %v2301 = vpop.f32.mrb[0].mxu0
      %2302 = vmatprep.mubr.f32.mxu0 0.0
      %2303 = vmatmul.mubr.f32.gmra.mrb[0].mxu0 %v2125
      %v2304 = vpop.f32.mrb[0].mxu0
      %v2305 = vadd.f32 0.0, %v2304
      %v2306 = vpop.f32.mrb[0].mxu0
      %2307 = vmatprep.mubr.f32.mxu0 0.0
      %2308 = vmatmul.mubr.f32.gmra.mrb[0].mxu0 %v2126
      %v2309 = vpop.f32.mrb[0].mxu0
      %v2310 = vadd.f32 0.0, %v2309
      %v2311 = vpop.f32.mrb[0].mxu0
      %2312 = vmatprep.mubr.f32.mxu0 0.0
      %2313 = vmatmul.mubr.f32.gmra.mrb[0].mxu0 %v2127
      %v2314 = vpop.f32.mrb[0].mxu0
      %v2315 = vadd.f32 0.0, %v2314
      %v2316 = vpop.f32.mrb[0].mxu0
      %2317 = vmatprep.mubr.f32.mxu0 0.0
      %2318 = vmatmul.mubr.f32.gmra.mrb[0].mxu0 %v2128
      %v2319 = vpop.f32.mrb[0].mxu0
      %v2320 = vadd.f32 0.0, %v2319
      %v2321 = vpop.f32.mrb[0].mxu0
      %2322 = vmatprep.mubr.f32.mxu0 0.0
      %2323 = vmatmul.mubr.f32.gmra.mrb[0].mxu0 %v2129
      %v2324 = vpop.f32.mrb[0].mxu0
      %v2325 = vadd.f32 0.0, %v2324
      %v2326 = vpop.f32.mrb[0].mxu0
      %2327 = vmatprep.mubr.f32.mxu0 0.0
      %2328 = vmatmul.mubr.f32.gmra.mrb[0].mxu0 %v2130
      %v2329 = vpop.f32.mrb[0].mxu0
      %v2330 = vadd.f32 0.0, %v2329
      %v2331 = vpop.f32.mrb[0].mxu0
      %2332 = vmatprep.mubr.f32.mxu0 0.0
      %2333 = vmatmul.mubr.f32.gmra.mrb[0].mxu0 %v2131
      %v2334 = vpop.f32.mrb[0].mxu0
      %v2335 = vadd.f32 0.0, %v2334
      %v2336 = vpop.f32.mrb[0].mxu0
      %2337 = vmatprep.mubr.f32.mxu0 0.0
      %2338 = vmatmul.mubr.f32.gmra.mrb[0].mxu0 %v2132
      %v2339 = vpop.f32.mrb[0].mxu0
      %v2340 = vadd.f32 0.0, %v2339
      %v2341 = vpop.f32.mrb[0].mxu0
      %2342 = vmatprep.mubr.f32.mxu0 0.0
      %2343 = vmatmul.mubr.f32.gmra.mrb[0].mxu0 %v2133
      %v2344 = vpop.f32.mrb[0].mxu0
      %v2345 = vadd.f32 0.0, %v2344
      %v2346 = vpop.f32.mrb[0].mxu0
      %2347 = vmatprep.mubr.f32.mxu0 0.0
      %2348 = vmatmul.mubr.f32.gmra.mrb[0].mxu0 %v2134
      %v2349 = vpop.f32.mrb[0].mxu0
      %v2350 = vadd.f32 0.0, %v2349
      %v2351 = vpop.f32.mrb[0].mxu0
      %2352 = vmatprep.mubr.f32.mxu0 0.0
      %2353 = vmatmul.mubr.f32.gmra.mrb[0].mxu0 %v2135
      %v2354 = vpop.f32.mrb[0].mxu0
      %v2355 = vadd.f32 0.0, %v2354
      %v2356 = vpop.f32.mrb[0].mxu0
      %2357 = vmatprep.mubr.f32.mxu0 0.0
      %2358 = vmatmul.mubr.f32.gmra.mrb[0].mxu0 %v2136
      %v2359 = vpop.f32.mrb[0].mxu0
      %v2360 = vadd.f32 0.0, %v2359
      %v2361 = vpop.f32.mrb[0].mxu0
      %2362 = vmatprep.mubr.f32.mxu0 0.0
      %2363 = vmatmul.mubr.f32.gmra.mrb[0].mxu0 %v2137
      %v2364 = vpop.f32.mrb[0].mxu0
      %v2365 = vadd.f32 0.0, %v2364
      %v2366 = vpop.f32.mrb[0].mxu0
      %2367 = vmatprep.mubr.f32.mxu0 0.0
      %2368 = vmatmul.mubr.f32.gmra.mrb[0].mxu0 %v2138
      %v2369 = vpop.f32.mrb[0].mxu0
      %v2370 = vadd.f32 0.0, %v2369
      %v2371 = vpop.f32.mrb[0].mxu0
      %2372 = vmatprep.mubr.f32.mxu0 0.0
      %2373 = vmatmul.mubr.f32.gmra.mrb[0].mxu0 %v2139
      %v2374 = vpop.f32.mrb[0].mxu0
      %v2375 = vadd.f32 0.0, %v2374
      %v2376 = vpop.f32.mrb[0].mxu0
      %2377 = vmatprep.mubr.f32.mxu0 0.0
      %2378 = vmatmul.mubr.f32.gmra.mrb[0].mxu0 %v2140
      %v2379 = vpop.f32.mrb[0].mxu0
      %v2380 = vadd.f32 0.0, %v2379
      %v2381 = vpop.f32.mrb[0].mxu0
      %2382 = vdwg.mxu0
      %v2383 = vadd.f32 %v2045, %v2225
      %v2384 = vadd.f32 %v2046, %v2230
      %v2385 = vadd.f32 %v2047, %v2235
      %v2386 = vadd.f32 %v2048, %v2240
      %v2387 = vadd.f32 %v2049, %v2245
      %v2388 = vadd.f32 %v2050, %v2250
      %v2389 = vadd.f32 %v2051, %v2255
      %v2390 = vadd.f32 %v2052, %v2260
      %v2391 = vadd.f32 %v2053, %v2265
      %v2392 = vadd.f32 %v2054, %v2270
      %v2393 = vadd.f32 %v2055, %v2275
      %v2394 = vadd.f32 %v2056, %v2280
      %v2395 = vadd.f32 %v2057, %v2285
      %v2396 = vadd.f32 %v2058, %v2290
      %v2397 = vadd.f32 %v2059, %v2295
      %v2398 = vadd.f32 %v2060, %v2300
      %v2399 = vadd.f32 %v2061, %v2305
      %v2400 = vadd.f32 %v2062, %v2310
      %v2401 = vadd.f32 %v2063, %v2315
      %v2402 = vadd.f32 %v2064, %v2320
      %v2403 = vadd.f32 %v2065, %v2325
      %v2404 = vadd.f32 %v2066, %v2330
      %v2405 = vadd.f32 %v2067, %v2335
      %v2406 = vadd.f32 %v2068, %v2340
      %v2407 = vadd.f32 %v2069, %v2345
      %v2408 = vadd.f32 %v2070, %v2350
      %v2409 = vadd.f32 %v2071, %v2355
      %v2410 = vadd.f32 %v2072, %v2360
      %v2411 = vadd.f32 %v2073, %v2365
      %v2412 = vadd.f32 %v2074, %v2370
      %v2413 = vadd.f32 %v2075, %v2375
      %v2414 = vadd.f32 %v2076, %v2380
      %v2415 = vld [vmem:[#allocation2 + $0x11] sm:$0xff]
      %v2416 = vld [vmem:[#allocation2 + $0x19] sm:$0xff]
      %v2417 = vld [vmem:[#allocation2 + $0x21] sm:$0xff]
      %v2418 = vld [vmem:[#allocation2 + $0x29] sm:$0xff]
      %v2419 = vld [vmem:[#allocation2 + $0x31] sm:$0xff]
      %v2420 = vld [vmem:[#allocation2 + $0x39] sm:$0xff]
      %v2421 = vld [vmem:[#allocation2 + $0x41] sm:$0xff]
      %v2422 = vld [vmem:[#allocation2 + $0x49] sm:$0xff]
      %v2423 = vld [vmem:[#allocation2 + $0x51] sm:$0xff]
      %v2424 = vld [vmem:[#allocation2 + $0x59] sm:$0xff]
      %v2425 = vld [vmem:[#allocation2 + $0x61] sm:$0xff]
      %v2426 = vld [vmem:[#allocation2 + $0x69] sm:$0xff]
      %v2427 = vld [vmem:[#allocation2 + $0x71] sm:$0xff]
      %v2428 = vld [vmem:[#allocation2 + $0x79] sm:$0xff]
      %v2429 = vld [vmem:[#allocation2 + $0x81] sm:$0xff]
      %v2430 = vld [vmem:[#allocation2 + $0x89] sm:$0xff]
      %v2431 = vld [vmem:[#allocation2 + $0x91] sm:$0xff]
      %v2432 = vld [vmem:[#allocation2 + $0x99] sm:$0xff]
      %v2433 = vld [vmem:[#allocation2 + $0xa1] sm:$0xff]
      %v2434 = vld [vmem:[#allocation2 + $0xa9] sm:$0xff]
      %v2435 = vld [vmem:[#allocation2 + $0xb1] sm:$0xff]
      %v2436 = vld [vmem:[#allocation2 + $0xb9] sm:$0xff]
      %v2437 = vld [vmem:[#allocation2 + $0xc1] sm:$0xff]
      %v2438 = vld [vmem:[#allocation2 + $0xc9] sm:$0xff]
      %v2439 = vld [vmem:[#allocation2 + $0xd1] sm:$0xff]
      %v2440 = vld [vmem:[#allocation2 + $0xd9] sm:$0xff]
      %v2441 = vld [vmem:[#allocation2 + $0xe1] sm:$0xff]
      %v2442 = vld [vmem:[#allocation2 + $0xe9] sm:$0xff]
      %v2443 = vld [vmem:[#allocation2 + $0xf1] sm:$0xff]
      %v2444 = vld [vmem:[#allocation2 + $0xf9] sm:$0xff]
      %v2445 = vld [vmem:[#allocation2 + $0x101] sm:$0xff]
      %v2446 = vld [vmem:[#allocation2 + $0x109] sm:$0xff]
      %s2447 = scalar_lea.vmem %s1, 512
      %v2448 = vld [vmem:[%s2447] sm:$0xff]
      %v2449 = vld [vmem:[%s2447 + $0x8] sm:$0xff]
      %v2450 = vld [vmem:[%s2447 + $0x10] sm:$0xff]
      %v2451 = vld [vmem:[%s2447 + $0x18] sm:$0xff]
      %v2452 = vld [vmem:[%s2447 + $0x20] sm:$0xff]
      %v2453 = vld [vmem:[%s2447 + $0x28] sm:$0xff]
      %v2454 = vld [vmem:[%s2447 + $0x30] sm:$0xff]
      %v2455 = vld [vmem:[%s2447 + $0x38] sm:$0xff]
      %v2456 = vld [vmem:[%s2447 + $0x40] sm:$0xff]
      %v2457 = vld [vmem:[%s2447 + $0x48] sm:$0xff]
      %v2458 = vld [vmem:[%s2447 + $0x50] sm:$0xff]
      %v2459 = vld [vmem:[%s2447 + $0x58] sm:$0xff]
      %v2460 = vld [vmem:[%s2447 + $0x60] sm:$0xff]
      %v2461 = vld [vmem:[%s2447 + $0x68] sm:$0xff]
      %v2462 = vld [vmem:[%s2447 + $0x70] sm:$0xff]
      %v2463 = vld [vmem:[%s2447 + $0x78] sm:$0xff]
      %2464 = vmatprep.subr.mxu0 0.0
      %2465 = vmatpush1.msra.mxu0 %v2448
      %2466 = vmatprep.subr.mxu0 0.0
      %2467 = vmatpush1.msra.mxu0 %v2449
      %2468 = vmatprep.subr.mxu0 0.0
      %2469 = vmatpush1.msra.mxu0 %v2450
      %2470 = vmatprep.subr.mxu0 0.0
      %2471 = vmatpush1.msra.mxu0 %v2451
      %2472 = vmatprep.subr.mxu0 0.0
      %2473 = vmatpush1.msra.mxu0 %v2452
      %2474 = vmatprep.subr.mxu0 0.0
      %2475 = vmatpush1.msra.mxu0 %v2453
      %2476 = vmatprep.subr.mxu0 0.0
      %2477 = vmatpush1.msra.mxu0 %v2454
      %2478 = vmatprep.subr.mxu0 0.0
      %2479 = vmatpush1.msra.mxu0 %v2455
      %2480 = vmatprep.subr.mxu0 0.0
      %2481 = vmatpush1.msra.mxu0 %v2456
      %2482 = vmatprep.subr.mxu0 0.0
      %2483 = vmatpush1.msra.mxu0 %v2457
      %2484 = vmatprep.subr.mxu0 0.0
      %2485 = vmatpush1.msra.mxu0 %v2458
      %2486 = vmatprep.subr.mxu0 0.0
      %2487 = vmatpush1.msra.mxu0 %v2459
      %2488 = vmatprep.subr.mxu0 0.0
      %2489 = vmatpush1.msra.mxu0 %v2460
      %2490 = vmatprep.subr.mxu0 0.0
      %2491 = vmatpush1.msra.mxu0 %v2461
      %2492 = vmatprep.subr.mxu0 0.0
      %2493 = vmatpush1.msra.mxu0 %v2462
      %2494 = vmatprep.subr.mxu0 0.0
      %2495 = vmatpush1.msra.mxu0 %v2463
      %2496 = vmatprep.subr.mxu0 0.0
      %2497 = vmatpush1.msra.mxu0 0.0
      %2498 = vmatprep.subr.mxu0 0.0
      %2499 = vmatpush1.msra.mxu0 0.0
      %2500 = vmatprep.subr.mxu0 0.0
      %2501 = vmatpush1.msra.mxu0 0.0
      %2502 = vmatprep.subr.mxu0 0.0
      %2503 = vmatpush1.msra.mxu0 0.0
      %2504 = vmatprep.subr.mxu0 0.0
      %2505 = vmatpush1.msra.mxu0 0.0
      %2506 = vmatprep.subr.mxu0 0.0
      %2507 = vmatpush1.msra.mxu0 0.0
      %2508 = vmatprep.subr.mxu0 0.0
      %2509 = vmatpush1.msra.mxu0 0.0
      %2510 = vmatprep.subr.mxu0 0.0
      %2511 = vmatpush1.msra.mxu0 0.0
      %2512 = vmatprep.subr.mxu0 0.0
      %2513 = vmatpush1.msra.mxu0 0.0
      %2514 = vmatprep.subr.mxu0 0.0
      %2515 = vmatpush1.msra.mxu0 0.0
      %2516 = vmatprep.subr.mxu0 0.0
      %2517 = vmatpush1.msra.mxu0 0.0
      %2518 = vmatprep.subr.mxu0 0.0
      %2519 = vmatpush1.msra.mxu0 0.0
      %2520 = vmatprep.subr.mxu0 0.0
      %2521 = vmatpush1.msra.mxu0 0.0
      %2522 = vmatprep.subr.mxu0 0.0
      %2523 = vmatpush1.msra.mxu0 0.0
      %2524 = vmatprep.subr.mxu0 0.0
      %2525 = vmatpush1.msra.mxu0 0.0
      %2526 = vmatprep.subr.mxu0 0.0
      %2527 = vmatpush1.msra.mxu0 0.0
      %2528 = vmatprep.mubr.f32.mxu0 0.0
      %2529 = vmatmul.mubr.f32.gmra.mrb[0].mxu0 %v2415
      %v2530 = vpop.f32.mrb[0].mxu0
      %v2531 = vadd.f32 0.0, %v2530
      %v2532 = vpop.f32.mrb[0].mxu0
      %2533 = vmatprep.mubr.f32.mxu0 0.0
      %2534 = vmatmul.mubr.f32.gmra.mrb[0].mxu0 %v2416
      %v2535 = vpop.f32.mrb[0].mxu0
      %v2536 = vadd.f32 0.0, %v2535
      %v2537 = vpop.f32.mrb[0].mxu0
      %2538 = vmatprep.mubr.f32.mxu0 0.0
      %2539 = vmatmul.mubr.f32.gmra.mrb[0].mxu0 %v2417
      %v2540 = vpop.f32.mrb[0].mxu0
      %v2541 = vadd.f32 0.0, %v2540
      %v2542 = vpop.f32.mrb[0].mxu0
      %2543 = vmatprep.mubr.f32.mxu0 0.0
      %2544 = vmatmul.mubr.f32.gmra.mrb[0].mxu0 %v2418
      %v2545 = vpop.f32.mrb[0].mxu0
      %v2546 = vadd.f32 0.0, %v2545
      %v2547 = vpop.f32.mrb[0].mxu0
      %2548 = vmatprep.mubr.f32.mxu0 0.0
      %2549 = vmatmul.mubr.f32.gmra.mrb[0].mxu0 %v2419
      %v2550 = vpop.f32.mrb[0].mxu0
      %v2551 = vadd.f32 0.0, %v2550
      %v2552 = vpop.f32.mrb[0].mxu0
      %2553 = vmatprep.mubr.f32.mxu0 0.0
      %2554 = vmatmul.mubr.f32.gmra.mrb[0].mxu0 %v2420
      %v2555 = vpop.f32.mrb[0].mxu0
      %v2556 = vadd.f32 0.0, %v2555
      %v2557 = vpop.f32.mrb[0].mxu0
      %2558 = vmatprep.mubr.f32.mxu0 0.0
      %2559 = vmatmul.mubr.f32.gmra.mrb[0].mxu0 %v2421
      %v2560 = vpop.f32.mrb[0].mxu0
      %v2561 = vadd.f32 0.0, %v2560
      %v2562 = vpop.f32.mrb[0].mxu0
      %2563 = vmatprep.mubr.f32.mxu0 0.0
      %2564 = vmatmul.mubr.f32.gmra.mrb[0].mxu0 %v2422
      %v2565 = vpop.f32.mrb[0].mxu0
      %v2566 = vadd.f32 0.0, %v2565
      %v2567 = vpop.f32.mrb[0].mxu0
      %2568 = vmatprep.mubr.f32.mxu0 0.0
      %2569 = vmatmul.mubr.f32.gmra.mrb[0].mxu0 %v2423
      %v2570 = vpop.f32.mrb[0].mxu0
      %v2571 = vadd.f32 0.0, %v2570
      %v2572 = vpop.f32.mrb[0].mxu0
      %2573 = vmatprep.mubr.f32.mxu0 0.0
      %2574 = vmatmul.mubr.f32.gmra.mrb[0].mxu0 %v2424
      %v2575 = vpop.f32.mrb[0].mxu0
      %v2576 = vadd.f32 0.0, %v2575
      %v2577 = vpop.f32.mrb[0].mxu0
      %2578 = vmatprep.mubr.f32.mxu0 0.0
      %2579 = vmatmul.mubr.f32.gmra.mrb[0].mxu0 %v2425
      %v2580 = vpop.f32.mrb[0].mxu0
      %v2581 = vadd.f32 0.0, %v2580
      %v2582 = vpop.f32.mrb[0].mxu0
      %2583 = vmatprep.mubr.f32.mxu0 0.0
      %2584 = vmatmul.mubr.f32.gmra.mrb[0].mxu0 %v2426
      %v2585 = vpop.f32.mrb[0].mxu0
      %v2586 = vadd.f32 0.0, %v2585
      %v2587 = vpop.f32.mrb[0].mxu0
      %2588 = vmatprep.mubr.f32.mxu0 0.0
      %2589 = vmatmul.mubr.f32.gmra.mrb[0].mxu0 %v2427
      %v2590 = vpop.f32.mrb[0].mxu0
      %v2591 = vadd.f32 0.0, %v2590
      %v2592 = vpop.f32.mrb[0].mxu0
      %2593 = vmatprep.mubr.f32.mxu0 0.0
      %2594 = vmatmul.mubr.f32.gmra.mrb[0].mxu0 %v2428
      %v2595 = vpop.f32.mrb[0].mxu0
      %v2596 = vadd.f32 0.0, %v2595
      %v2597 = vpop.f32.mrb[0].mxu0
      %2598 = vmatprep.mubr.f32.mxu0 0.0
      %2599 = vmatmul.mubr.f32.gmra.mrb[0].mxu0 %v2429
      %v2600 = vpop.f32.mrb[0].mxu0
      %v2601 = vadd.f32 0.0, %v2600
      %v2602 = vpop.f32.mrb[0].mxu0
      %2603 = vmatprep.mubr.f32.mxu0 0.0
      %2604 = vmatmul.mubr.f32.gmra.mrb[0].mxu0 %v2430
      %v2605 = vpop.f32.mrb[0].mxu0
      %v2606 = vadd.f32 0.0, %v2605
      %v2607 = vpop.f32.mrb[0].mxu0
      %2608 = vmatprep.mubr.f32.mxu0 0.0
      %2609 = vmatmul.mubr.f32.gmra.mrb[0].mxu0 %v2431
      %v2610 = vpop.f32.mrb[0].mxu0
      %v2611 = vadd.f32 0.0, %v2610
      %v2612 = vpop.f32.mrb[0].mxu0
      %2613 = vmatprep.mubr.f32.mxu0 0.0
      %2614 = vmatmul.mubr.f32.gmra.mrb[0].mxu0 %v2432
      %v2615 = vpop.f32.mrb[0].mxu0
      %v2616 = vadd.f32 0.0, %v2615
      %v2617 = vpop.f32.mrb[0].mxu0
      %2618 = vmatprep.mubr.f32.mxu0 0.0
      %2619 = vmatmul.mubr.f32.gmra.mrb[0].mxu0 %v2433
      %v2620 = vpop.f32.mrb[0].mxu0
      %v2621 = vadd.f32 0.0, %v2620
      %v2622 = vpop.f32.mrb[0].mxu0
      %2623 = vmatprep.mubr.f32.mxu0 0.0
      %2624 = vmatmul.mubr.f32.gmra.mrb[0].mxu0 %v2434
      %v2625 = vpop.f32.mrb[0].mxu0
      %v2626 = vadd.f32 0.0, %v2625
      %v2627 = vpop.f32.mrb[0].mxu0
      %2628 = vmatprep.mubr.f32.mxu0 0.0
      %2629 = vmatmul.mubr.f32.gmra.mrb[0].mxu0 %v2435
      %v2630 = vpop.f32.mrb[0].mxu0
      %v2631 = vadd.f32 0.0, %v2630
      %v2632 = vpop.f32.mrb[0].mxu0
      %2633 = vmatprep.mubr.f32.mxu0 0.0
      %2634 = vmatmul.mubr.f32.gmra.mrb[0].mxu0 %v2436
      %v2635 = vpop.f32.mrb[0].mxu0
      %v2636 = vadd.f32 0.0, %v2635
      %v2637 = vpop.f32.mrb[0].mxu0
      %2638 = vmatprep.mubr.f32.mxu0 0.0
      %2639 = vmatmul.mubr.f32.gmra.mrb[0].mxu0 %v2437
      %v2640 = vpop.f32.mrb[0].mxu0
      %v2641 = vadd.f32 0.0, %v2640
      %v2642 = vpop.f32.mrb[0].mxu0
      %2643 = vmatprep.mubr.f32.mxu0 0.0
      %2644 = vmatmul.mubr.f32.gmra.mrb[0].mxu0 %v2438
      %v2645 = vpop.f32.mrb[0].mxu0
      %v2646 = vadd.f32 0.0, %v2645
      %v2647 = vpop.f32.mrb[0].mxu0
      %2648 = vmatprep.mubr.f32.mxu0 0.0
      %2649 = vmatmul.mubr.f32.gmra.mrb[0].mxu0 %v2439
      %v2650 = vpop.f32.mrb[0].mxu0
      %v2651 = vadd.f32 0.0, %v2650
      %v2652 = vpop.f32.mrb[0].mxu0
      %2653 = vmatprep.mubr.f32.mxu0 0.0
      %2654 = vmatmul.mubr.f32.gmra.mrb[0].mxu0 %v2440
      %v2655 = vpop.f32.mrb[0].mxu0
      %v2656 = vadd.f32 0.0, %v2655
      %v2657 = vpop.f32.mrb[0].mxu0
      %2658 = vmatprep.mubr.f32.mxu0 0.0
      %2659 = vmatmul.mubr.f32.gmra.mrb[0].mxu0 %v2441
      %v2660 = vpop.f32.mrb[0].mxu0
      %v2661 = vadd.f32 0.0, %v2660
      %v2662 = vpop.f32.mrb[0].mxu0
      %2663 = vmatprep.mubr.f32.mxu0 0.0
      %2664 = vmatmul.mubr.f32.gmra.mrb[0].mxu0 %v2442
      %v2665 = vpop.f32.mrb[0].mxu0
      %v2666 = vadd.f32 0.0, %v2665
      %v2667 = vpop.f32.mrb[0].mxu0
      %2668 = vmatprep.mubr.f32.mxu0 0.0
      %2669 = vmatmul.mubr.f32.gmra.mrb[0].mxu0 %v2443
      %v2670 = vpop.f32.mrb[0].mxu0
      %v2671 = vadd.f32 0.0, %v2670
      %v2672 = vpop.f32.mrb[0].mxu0
      %2673 = vmatprep.mubr.f32.mxu0 0.0
      %2674 = vmatmul.mubr.f32.gmra.mrb[0].mxu0 %v2444
      %v2675 = vpop.f32.mrb[0].mxu0
      %v2676 = vadd.f32 0.0, %v2675
      %v2677 = vpop.f32.mrb[0].mxu0
      %2678 = vmatprep.mubr.f32.mxu0 0.0
      %2679 = vmatmul.mubr.f32.gmra.mrb[0].mxu0 %v2445
      %v2680 = vpop.f32.mrb[0].mxu0
      %v2681 = vadd.f32 0.0, %v2680
      %v2682 = vpop.f32.mrb[0].mxu0
      %2683 = vmatprep.mubr.f32.mxu0 0.0
      %2684 = vmatmul.mubr.f32.gmra.mrb[0].mxu0 %v2446
      %v2685 = vpop.f32.mrb[0].mxu0
      %v2686 = vadd.f32 0.0, %v2685
      %v2687 = vpop.f32.mrb[0].mxu0
      %2688 = vdwg.mxu0
      %v2689 = vadd.f32 %v2383, %v2531
      %v2690 = vadd.f32 %v2384, %v2536
      %v2691 = vadd.f32 %v2385, %v2541
      %v2692 = vadd.f32 %v2386, %v2546
      %v2693 = vadd.f32 %v2387, %v2551
      %v2694 = vadd.f32 %v2388, %v2556
      %v2695 = vadd.f32 %v2389, %v2561
      %v2696 = vadd.f32 %v2390, %v2566
      %v2697 = vadd.f32 %v2391, %v2571
      %v2698 = vadd.f32 %v2392, %v2576
      %v2699 = vadd.f32 %v2393, %v2581
      %v2700 = vadd.f32 %v2394, %v2586
      %v2701 = vadd.f32 %v2395, %v2591
      %v2702 = vadd.f32 %v2396, %v2596
      %v2703 = vadd.f32 %v2397, %v2601
      %v2704 = vadd.f32 %v2398, %v2606
      %v2705 = vadd.f32 %v2399, %v2611
      %v2706 = vadd.f32 %v2400, %v2616
      %v2707 = vadd.f32 %v2401, %v2621
      %v2708 = vadd.f32 %v2402, %v2626
      %v2709 = vadd.f32 %v2403, %v2631
      %v2710 = vadd.f32 %v2404, %v2636
      %v2711 = vadd.f32 %v2405, %v2641
      %v2712 = vadd.f32 %v2406, %v2646
      %v2713 = vadd.f32 %v2407, %v2651
      %v2714 = vadd.f32 %v2408, %v2656
      %v2715 = vadd.f32 %v2409, %v2661
      %v2716 = vadd.f32 %v2410, %v2666
      %v2717 = vadd.f32 %v2411, %v2671
      %v2718 = vadd.f32 %v2412, %v2676
      %v2719 = vadd.f32 %v2413, %v2681
      %v2720 = vadd.f32 %v2414, %v2686
      %v2721 = vld [vmem:[#allocation2 + $0x12] sm:$0xff]
      %v2722 = vld [vmem:[#allocation2 + $0x1a] sm:$0xff]
      %v2723 = vld [vmem:[#allocation2 + $0x22] sm:$0xff]
      %v2724 = vld [vmem:[#allocation2 + $0x2a] sm:$0xff]
      %v2725 = vld [vmem:[#allocation2 + $0x32] sm:$0xff]
      %v2726 = vld [vmem:[#allocation2 + $0x3a] sm:$0xff]
      %v2727 = vld [vmem:[#allocation2 + $0x42] sm:$0xff]
      %v2728 = vld [vmem:[#allocation2 + $0x4a] sm:$0xff]
      %v2729 = vld [vmem:[#allocation2 + $0x52] sm:$0xff]
      %v2730 = vld [vmem:[#allocation2 + $0x5a] sm:$0xff]
      %v2731 = vld [vmem:[#allocation2 + $0x62] sm:$0xff]
      %v2732 = vld [vmem:[#allocation2 + $0x6a] sm:$0xff]
      %v2733 = vld [vmem:[#allocation2 + $0x72] sm:$0xff]
      %v2734 = vld [vmem:[#allocation2 + $0x7a] sm:$0xff]
      %v2735 = vld [vmem:[#allocation2 + $0x82] sm:$0xff]
      %v2736 = vld [vmem:[#allocation2 + $0x8a] sm:$0xff]
      %v2737 = vld [vmem:[#allocation2 + $0x92] sm:$0xff]
      %v2738 = vld [vmem:[#allocation2 + $0x9a] sm:$0xff]
      %v2739 = vld [vmem:[#allocation2 + $0xa2] sm:$0xff]
      %v2740 = vld [vmem:[#allocation2 + $0xaa] sm:$0xff]
      %v2741 = vld [vmem:[#allocation2 + $0xb2] sm:$0xff]
      %v2742 = vld [vmem:[#allocation2 + $0xba] sm:$0xff]
      %v2743 = vld [vmem:[#allocation2 + $0xc2] sm:$0xff]
      %v2744 = vld [vmem:[#allocation2 + $0xca] sm:$0xff]
      %v2745 = vld [vmem:[#allocation2 + $0xd2] sm:$0xff]
      %v2746 = vld [vmem:[#allocation2 + $0xda] sm:$0xff]
      %v2747 = vld [vmem:[#allocation2 + $0xe2] sm:$0xff]
      %v2748 = vld [vmem:[#allocation2 + $0xea] sm:$0xff]
      %v2749 = vld [vmem:[#allocation2 + $0xf2] sm:$0xff]
      %v2750 = vld [vmem:[#allocation2 + $0xfa] sm:$0xff]
      %v2751 = vld [vmem:[#allocation2 + $0x102] sm:$0xff]
      %v2752 = vld [vmem:[#allocation2 + $0x10a] sm:$0xff]
      %v2753 = vmul.f32 %v2721, %v1614
      %v2754 = vmul.f32 %v2722, %v1619
      %v2755 = vmul.f32 %v2723, %v1624
      %v2756 = vmul.f32 %v2724, %v1629
      %v2757 = vmul.f32 %v2725, %v1634
      %v2758 = vmul.f32 %v2726, %v1639
      %v2759 = vmul.f32 %v2727, %v1644
      %v2760 = vmul.f32 %v2728, %v1649
      %v2761 = vmul.f32 %v2729, %v1654
      %v2762 = vmul.f32 %v2730, %v1659
      %v2763 = vmul.f32 %v2731, %v1664
      %v2764 = vmul.f32 %v2732, %v1669
      %v2765 = vmul.f32 %v2733, %v1674
      %v2766 = vmul.f32 %v2734, %v1679
      %v2767 = vmul.f32 %v2735, %v1684
      %v2768 = vmul.f32 %v2736, %v1689
      %v2769 = vmul.f32 %v2737, %v1694
      %v2770 = vmul.f32 %v2738, %v1699
      %v2771 = vmul.f32 %v2739, %v1704
      %v2772 = vmul.f32 %v2740, %v1709
      %v2773 = vmul.f32 %v2741, %v1714
      %v2774 = vmul.f32 %v2742, %v1719
      %v2775 = vmul.f32 %v2743, %v1724
      %v2776 = vmul.f32 %v2744, %v1729
      %v2777 = vmul.f32 %v2745, %v1734
      %v2778 = vmul.f32 %v2746, %v1739
      %v2779 = vmul.f32 %v2747, %v1744
      %v2780 = vmul.f32 %v2748, %v1749
      %v2781 = vmul.f32 %v2749, %v1754
      %v2782 = vmul.f32 %v2750, %v1759
      %v2783 = vmul.f32 %v2751, %v1764
      %v2784 = vmul.f32 %v2752, %v1769
      %s2785 = scalar_lea.vmem %s1, 640
      %v2786 = vld [vmem:[%s2785] sm:$0xff]
      %v2787 = vld [vmem:[%s2785 + $0x8] sm:$0xff]
      %v2788 = vld [vmem:[%s2785 + $0x10] sm:$0xff]
      %v2789 = vld [vmem:[%s2785 + $0x18] sm:$0xff]
      %v2790 = vld [vmem:[%s2785 + $0x20] sm:$0xff]
      %v2791 = vld [vmem:[%s2785 + $0x28] sm:$0xff]
      %v2792 = vld [vmem:[%s2785 + $0x30] sm:$0xff]
      %v2793 = vld [vmem:[%s2785 + $0x38] sm:$0xff]
      %v2794 = vld [vmem:[%s2785 + $0x40] sm:$0xff]
      %v2795 = vld [vmem:[%s2785 + $0x48] sm:$0xff]
      %v2796 = vld [vmem:[%s2785 + $0x50] sm:$0xff]
      %v2797 = vld [vmem:[%s2785 + $0x58] sm:$0xff]
      %v2798 = vld [vmem:[%s2785 + $0x60] sm:$0xff]
      %v2799 = vld [vmem:[%s2785 + $0x68] sm:$0xff]
      %v2800 = vld [vmem:[%s2785 + $0x70] sm:$0xff]
      %v2801 = vld [vmem:[%s2785 + $0x78] sm:$0xff]
      %2802 = vmatprep.subr.mxu0 0.0
      %2803 = vmatpush1.msra.mxu0 %v2786
      %2804 = vmatprep.subr.mxu0 0.0
      %2805 = vmatpush1.msra.mxu0 %v2787
      %2806 = vmatprep.subr.mxu0 0.0
      %2807 = vmatpush1.msra.mxu0 %v2788
      %2808 = vmatprep.subr.mxu0 0.0
      %2809 = vmatpush1.msra.mxu0 %v2789
      %2810 = vmatprep.subr.mxu0 0.0
      %2811 = vmatpush1.msra.mxu0 %v2790
      %2812 = vmatprep.subr.mxu0 0.0
      %2813 = vmatpush1.msra.mxu0 %v2791
      %2814 = vmatprep.subr.mxu0 0.0
      %2815 = vmatpush1.msra.mxu0 %v2792
      %2816 = vmatprep.subr.mxu0 0.0
      %2817 = vmatpush1.msra.mxu0 %v2793
      %2818 = vmatprep.subr.mxu0 0.0
      %2819 = vmatpush1.msra.mxu0 %v2794
      %2820 = vmatprep.subr.mxu0 0.0
      %2821 = vmatpush1.msra.mxu0 %v2795
      %2822 = vmatprep.subr.mxu0 0.0
      %2823 = vmatpush1.msra.mxu0 %v2796
      %2824 = vmatprep.subr.mxu0 0.0
      %2825 = vmatpush1.msra.mxu0 %v2797
      %2826 = vmatprep.subr.mxu0 0.0
      %2827 = vmatpush1.msra.mxu0 %v2798
      %2828 = vmatprep.subr.mxu0 0.0
      %2829 = vmatpush1.msra.mxu0 %v2799
      %2830 = vmatprep.subr.mxu0 0.0
      %2831 = vmatpush1.msra.mxu0 %v2800
      %2832 = vmatprep.subr.mxu0 0.0
      %2833 = vmatpush1.msra.mxu0 %v2801
      %2834 = vmatprep.subr.mxu0 0.0
      %2835 = vmatpush1.msra.mxu0 0.0
      %2836 = vmatprep.subr.mxu0 0.0
      %2837 = vmatpush1.msra.mxu0 0.0
      %2838 = vmatprep.subr.mxu0 0.0
      %2839 = vmatpush1.msra.mxu0 0.0
      %2840 = vmatprep.subr.mxu0 0.0
      %2841 = vmatpush1.msra.mxu0 0.0
      %2842 = vmatprep.subr.mxu0 0.0
      %2843 = vmatpush1.msra.mxu0 0.0
      %2844 = vmatprep.subr.mxu0 0.0
      %2845 = vmatpush1.msra.mxu0 0.0
      %2846 = vmatprep.subr.mxu0 0.0
      %2847 = vmatpush1.msra.mxu0 0.0
      %2848 = vmatprep.subr.mxu0 0.0
      %2849 = vmatpush1.msra.mxu0 0.0
      %2850 = vmatprep.subr.mxu0 0.0
      %2851 = vmatpush1.msra.mxu0 0.0
      %2852 = vmatprep.subr.mxu0 0.0
      %2853 = vmatpush1.msra.mxu0 0.0
      %2854 = vmatprep.subr.mxu0 0.0
      %2855 = vmatpush1.msra.mxu0 0.0
      %2856 = vmatprep.subr.mxu0 0.0
      %2857 = vmatpush1.msra.mxu0 0.0
      %2858 = vmatprep.subr.mxu0 0.0
      %2859 = vmatpush1.msra.mxu0 0.0
      %2860 = vmatprep.subr.mxu0 0.0
      %2861 = vmatpush1.msra.mxu0 0.0
      %2862 = vmatprep.subr.mxu0 0.0
      %2863 = vmatpush1.msra.mxu0 0.0
      %2864 = vmatprep.subr.mxu0 0.0
      %2865 = vmatpush1.msra.mxu0 0.0
      %2866 = vmatprep.mubr.f32.mxu0 0.0
      %2867 = vmatmul.mubr.f32.gmra.mrb[0].mxu0 %v2753
      %v2868 = vpop.f32.mrb[0].mxu0
      %v2869 = vadd.f32 0.0, %v2868
      %v2870 = vpop.f32.mrb[0].mxu0
      %2871 = vmatprep.mubr.f32.mxu0 0.0
      %2872 = vmatmul.mubr.f32.gmra.mrb[0].mxu0 %v2754
      %v2873 = vpop.f32.mrb[0].mxu0
      %v2874 = vadd.f32 0.0, %v2873
      %v2875 = vpop.f32.mrb[0].mxu0
      %2876 = vmatprep.mubr.f32.mxu0 0.0
      %2877 = vmatmul.mubr.f32.gmra.mrb[0].mxu0 %v2755
      %v2878 = vpop.f32.mrb[0].mxu0
      %v2879 = vadd.f32 0.0, %v2878
      %v2880 = vpop.f32.mrb[0].mxu0
      %2881 = vmatprep.mubr.f32.mxu0 0.0
      %2882 = vmatmul.mubr.f32.gmra.mrb[0].mxu0 %v2756
      %v2883 = vpop.f32.mrb[0].mxu0
      %v2884 = vadd.f32 0.0, %v2883
      %v2885 = vpop.f32.mrb[0].mxu0
      %2886 = vmatprep.mubr.f32.mxu0 0.0
      %2887 = vmatmul.mubr.f32.gmra.mrb[0].mxu0 %v2757
      %v2888 = vpop.f32.mrb[0].mxu0
      %v2889 = vadd.f32 0.0, %v2888
      %v2890 = vpop.f32.mrb[0].mxu0
      %2891 = vmatprep.mubr.f32.mxu0 0.0
      %2892 = vmatmul.mubr.f32.gmra.mrb[0].mxu0 %v2758
      %v2893 = vpop.f32.mrb[0].mxu0
      %v2894 = vadd.f32 0.0, %v2893
      %v2895 = vpop.f32.mrb[0].mxu0
      %2896 = vmatprep.mubr.f32.mxu0 0.0
      %2897 = vmatmul.mubr.f32.gmra.mrb[0].mxu0 %v2759
      %v2898 = vpop.f32.mrb[0].mxu0
      %v2899 = vadd.f32 0.0, %v2898
      %v2900 = vpop.f32.mrb[0].mxu0
      %2901 = vmatprep.mubr.f32.mxu0 0.0
      %2902 = vmatmul.mubr.f32.gmra.mrb[0].mxu0 %v2760
      %v2903 = vpop.f32.mrb[0].mxu0
      %v2904 = vadd.f32 0.0, %v2903
      %v2905 = vpop.f32.mrb[0].mxu0
      %2906 = vmatprep.mubr.f32.mxu0 0.0
      %2907 = vmatmul.mubr.f32.gmra.mrb[0].mxu0 %v2761
      %v2908 = vpop.f32.mrb[0].mxu0
      %v2909 = vadd.f32 0.0, %v2908
      %v2910 = vpop.f32.mrb[0].mxu0
      %2911 = vmatprep.mubr.f32.mxu0 0.0
      %2912 = vmatmul.mubr.f32.gmra.mrb[0].mxu0 %v2762
      %v2913 = vpop.f32.mrb[0].mxu0
      %v2914 = vadd.f32 0.0, %v2913
      %v2915 = vpop.f32.mrb[0].mxu0
      %2916 = vmatprep.mubr.f32.mxu0 0.0
      %2917 = vmatmul.mubr.f32.gmra.mrb[0].mxu0 %v2763
      %v2918 = vpop.f32.mrb[0].mxu0
      %v2919 = vadd.f32 0.0, %v2918
      %v2920 = vpop.f32.mrb[0].mxu0
      %2921 = vmatprep.mubr.f32.mxu0 0.0
      %2922 = vmatmul.mubr.f32.gmra.mrb[0].mxu0 %v2764
      %v2923 = vpop.f32.mrb[0].mxu0
      %v2924 = vadd.f32 0.0, %v2923
      %v2925 = vpop.f32.mrb[0].mxu0
      %2926 = vmatprep.mubr.f32.mxu0 0.0
      %2927 = vmatmul.mubr.f32.gmra.mrb[0].mxu0 %v2765
      %v2928 = vpop.f32.mrb[0].mxu0
      %v2929 = vadd.f32 0.0, %v2928
      %v2930 = vpop.f32.mrb[0].mxu0
      %2931 = vmatprep.mubr.f32.mxu0 0.0
      %2932 = vmatmul.mubr.f32.gmra.mrb[0].mxu0 %v2766
      %v2933 = vpop.f32.mrb[0].mxu0
      %v2934 = vadd.f32 0.0, %v2933
      %v2935 = vpop.f32.mrb[0].mxu0
      %2936 = vmatprep.mubr.f32.mxu0 0.0
      %2937 = vmatmul.mubr.f32.gmra.mrb[0].mxu0 %v2767
      %v2938 = vpop.f32.mrb[0].mxu0
      %v2939 = vadd.f32 0.0, %v2938
      %v2940 = vpop.f32.mrb[0].mxu0
      %2941 = vmatprep.mubr.f32.mxu0 0.0
      %2942 = vmatmul.mubr.f32.gmra.mrb[0].mxu0 %v2768
      %v2943 = vpop.f32.mrb[0].mxu0
      %v2944 = vadd.f32 0.0, %v2943
      %v2945 = vpop.f32.mrb[0].mxu0
      %2946 = vmatprep.mubr.f32.mxu0 0.0
      %2947 = vmatmul.mubr.f32.gmra.mrb[0].mxu0 %v2769
      %v2948 = vpop.f32.mrb[0].mxu0
      %v2949 = vadd.f32 0.0, %v2948
      %v2950 = vpop.f32.mrb[0].mxu0
      %2951 = vmatprep.mubr.f32.mxu0 0.0
      %2952 = vmatmul.mubr.f32.gmra.mrb[0].mxu0 %v2770
      %v2953 = vpop.f32.mrb[0].mxu0
      %v2954 = vadd.f32 0.0, %v2953
      %v2955 = vpop.f32.mrb[0].mxu0
      %2956 = vmatprep.mubr.f32.mxu0 0.0
      %2957 = vmatmul.mubr.f32.gmra.mrb[0].mxu0 %v2771
      %v2958 = vpop.f32.mrb[0].mxu0
      %v2959 = vadd.f32 0.0, %v2958
      %v2960 = vpop.f32.mrb[0].mxu0
      %2961 = vmatprep.mubr.f32.mxu0 0.0
      %2962 = vmatmul.mubr.f32.gmra.mrb[0].mxu0 %v2772
      %v2963 = vpop.f32.mrb[0].mxu0
      %v2964 = vadd.f32 0.0, %v2963
      %v2965 = vpop.f32.mrb[0].mxu0
      %2966 = vmatprep.mubr.f32.mxu0 0.0
      %2967 = vmatmul.mubr.f32.gmra.mrb[0].mxu0 %v2773
      %v2968 = vpop.f32.mrb[0].mxu0
      %v2969 = vadd.f32 0.0, %v2968
      %v2970 = vpop.f32.mrb[0].mxu0
      %2971 = vmatprep.mubr.f32.mxu0 0.0
      %2972 = vmatmul.mubr.f32.gmra.mrb[0].mxu0 %v2774
      %v2973 = vpop.f32.mrb[0].mxu0
      %v2974 = vadd.f32 0.0, %v2973
      %v2975 = vpop.f32.mrb[0].mxu0
      %2976 = vmatprep.mubr.f32.mxu0 0.0
      %2977 = vmatmul.mubr.f32.gmra.mrb[0].mxu0 %v2775
      %v2978 = vpop.f32.mrb[0].mxu0
      %v2979 = vadd.f32 0.0, %v2978
      %v2980 = vpop.f32.mrb[0].mxu0
      %2981 = vmatprep.mubr.f32.mxu0 0.0
      %2982 = vmatmul.mubr.f32.gmra.mrb[0].mxu0 %v2776
      %v2983 = vpop.f32.mrb[0].mxu0
      %v2984 = vadd.f32 0.0, %v2983
      %v2985 = vpop.f32.mrb[0].mxu0
      %2986 = vmatprep.mubr.f32.mxu0 0.0
      %2987 = vmatmul.mubr.f32.gmra.mrb[0].mxu0 %v2777
      %v2988 = vpop.f32.mrb[0].mxu0
      %v2989 = vadd.f32 0.0, %v2988
      %v2990 = vpop.f32.mrb[0].mxu0
      %2991 = vmatprep.mubr.f32.mxu0 0.0
      %2992 = vmatmul.mubr.f32.gmra.mrb[0].mxu0 %v2778
      %v2993 = vpop.f32.mrb[0].mxu0
      %v2994 = vadd.f32 0.0, %v2993
      %v2995 = vpop.f32.mrb[0].mxu0
      %2996 = vmatprep.mubr.f32.mxu0 0.0
      %2997 = vmatmul.mubr.f32.gmra.mrb[0].mxu0 %v2779
      %v2998 = vpop.f32.mrb[0].mxu0
      %v2999 = vadd.f32 0.0, %v2998
      %v3000 = vpop.f32.mrb[0].mxu0
      %3001 = vmatprep.mubr.f32.mxu0 0.0
      %3002 = vmatmul.mubr.f32.gmra.mrb[0].mxu0 %v2780
      %v3003 = vpop.f32.mrb[0].mxu0
      %v3004 = vadd.f32 0.0, %v3003
      %v3005 = vpop.f32.mrb[0].mxu0
      %3006 = vmatprep.mubr.f32.mxu0 0.0
      %3007 = vmatmul.mubr.f32.gmra.mrb[0].mxu0 %v2781
      %v3008 = vpop.f32.mrb[0].mxu0
      %v3009 = vadd.f32 0.0, %v3008
      %v3010 = vpop.f32.mrb[0].mxu0
      %3011 = vmatprep.mubr.f32.mxu0 0.0
      %3012 = vmatmul.mubr.f32.gmra.mrb[0].mxu0 %v2782
      %v3013 = vpop.f32.mrb[0].mxu0
      %v3014 = vadd.f32 0.0, %v3013
      %v3015 = vpop.f32.mrb[0].mxu0
      %3016 = vmatprep.mubr.f32.mxu0 0.0
      %3017 = vmatmul.mubr.f32.gmra.mrb[0].mxu0 %v2783
      %v3018 = vpop.f32.mrb[0].mxu0
      %v3019 = vadd.f32 0.0, %v3018
      %v3020 = vpop.f32.mrb[0].mxu0
      %3021 = vmatprep.mubr.f32.mxu0 0.0
      %3022 = vmatmul.mubr.f32.gmra.mrb[0].mxu0 %v2784
      %v3023 = vpop.f32.mrb[0].mxu0
      %v3024 = vadd.f32 0.0, %v3023
      %v3025 = vpop.f32.mrb[0].mxu0
      %3026 = vdwg.mxu0
      %v3027 = vadd.f32 %v2689, %v2869
      %v3028 = vadd.f32 %v2690, %v2874
      %v3029 = vadd.f32 %v2691, %v2879
      %v3030 = vadd.f32 %v2692, %v2884
      %v3031 = vadd.f32 %v2693, %v2889
      %v3032 = vadd.f32 %v2694, %v2894
      %v3033 = vadd.f32 %v2695, %v2899
      %v3034 = vadd.f32 %v2696, %v2904
      %v3035 = vadd.f32 %v2697, %v2909
      %v3036 = vadd.f32 %v2698, %v2914
      %v3037 = vadd.f32 %v2699, %v2919
      %v3038 = vadd.f32 %v2700, %v2924
      %v3039 = vadd.f32 %v2701, %v2929
      %v3040 = vadd.f32 %v2702, %v2934
      %v3041 = vadd.f32 %v2703, %v2939
      %v3042 = vadd.f32 %v2704, %v2944
      %v3043 = vadd.f32 %v2705, %v2949
      %v3044 = vadd.f32 %v2706, %v2954
      %v3045 = vadd.f32 %v2707, %v2959
      %v3046 = vadd.f32 %v2708, %v2964
      %v3047 = vadd.f32 %v2709, %v2969
      %v3048 = vadd.f32 %v2710, %v2974
      %v3049 = vadd.f32 %v2711, %v2979
      %v3050 = vadd.f32 %v2712, %v2984
      %v3051 = vadd.f32 %v2713, %v2989
      %v3052 = vadd.f32 %v2714, %v2994
      %v3053 = vadd.f32 %v2715, %v2999
      %v3054 = vadd.f32 %v2716, %v3004
      %v3055 = vadd.f32 %v2717, %v3009
      %v3056 = vadd.f32 %v2718, %v3014
      %v3057 = vadd.f32 %v2719, %v3019
      %v3058 = vadd.f32 %v2720, %v3024
      %v3059 = vld [vmem:[#allocation2 + $0x20] sm:$0xff]
      %v3060 = vld [vmem:[#allocation2 + $0x28] sm:$0xff]
      %v3061 = vld [vmem:[#allocation2 + $0x30] sm:$0xff]
      %v3062 = vld [vmem:[#allocation2 + $0x38] sm:$0xff]
      %v3063 = vld [vmem:[#allocation2 + $0x40] sm:$0xff]
      %v3064 = vld [vmem:[#allocation2 + $0x48] sm:$0xff]
      %v3065 = vld [vmem:[#allocation2 + $0x50] sm:$0xff]
      %v3066 = vld [vmem:[#allocation2 + $0x58] sm:$0xff]
      %v3067 = vld [vmem:[#allocation2 + $0x60] sm:$0xff]
      %v3068 = vld [vmem:[#allocation2 + $0x68] sm:$0xff]
      %v3069 = vld [vmem:[#allocation2 + $0x70] sm:$0xff]
      %v3070 = vld [vmem:[#allocation2 + $0x78] sm:$0xff]
      %v3071 = vld [vmem:[#allocation2 + $0x80] sm:$0xff]
      %v3072 = vld [vmem:[#allocation2 + $0x88] sm:$0xff]
      %v3073 = vld [vmem:[#allocation2 + $0x90] sm:$0xff]
      %v3074 = vld [vmem:[#allocation2 + $0x98] sm:$0xff]
      %v3075 = vld [vmem:[#allocation2 + $0xa0] sm:$0xff]
      %v3076 = vld [vmem:[#allocation2 + $0xa8] sm:$0xff]
      %v3077 = vld [vmem:[#allocation2 + $0xb0] sm:$0xff]
      %v3078 = vld [vmem:[#allocation2 + $0xb8] sm:$0xff]
      %v3079 = vld [vmem:[#allocation2 + $0xc0] sm:$0xff]
      %v3080 = vld [vmem:[#allocation2 + $0xc8] sm:$0xff]
      %v3081 = vld [vmem:[#allocation2 + $0xd0] sm:$0xff]
      %v3082 = vld [vmem:[#allocation2 + $0xd8] sm:$0xff]
      %v3083 = vld [vmem:[#allocation2 + $0xe0] sm:$0xff]
      %v3084 = vld [vmem:[#allocation2 + $0xe8] sm:$0xff]
      %v3085 = vld [vmem:[#allocation2 + $0xf0] sm:$0xff]
      %v3086 = vld [vmem:[#allocation2 + $0xf8] sm:$0xff]
      %v3087 = vld [vmem:[#allocation2 + $0x100] sm:$0xff]
      %v3088 = vld [vmem:[#allocation2 + $0x108] sm:$0xff]
      %v3089 = vld [vmem:[#allocation2 + $0x110] sm:$0xff]
      %v3090 = vld [vmem:[#allocation2 + $0x118] sm:$0xff]
      %v3091 = vmul.f32 %v3059, %v875
      %v3092 = vmul.f32 %v3060, %v880
      %v3093 = vmul.f32 %v3061, %v885
      %v3094 = vmul.f32 %v3062, %v890
      %v3095 = vmul.f32 %v3063, %v895
      %v3096 = vmul.f32 %v3064, %v900
      %v3097 = vmul.f32 %v3065, %v905
      %v3098 = vmul.f32 %v3066, %v910
      %v3099 = vmul.f32 %v3067, %v915
      %v3100 = vmul.f32 %v3068, %v920
      %v3101 = vmul.f32 %v3069, %v925
      %v3102 = vmul.f32 %v3070, %v930
      %v3103 = vmul.f32 %v3071, %v935
      %v3104 = vmul.f32 %v3072, %v940
      %v3105 = vmul.f32 %v3073, %v945
      %v3106 = vmul.f32 %v3074, %v950
      %v3107 = vmul.f32 %v3075, %v955
      %v3108 = vmul.f32 %v3076, %v960
      %v3109 = vmul.f32 %v3077, %v965
      %v3110 = vmul.f32 %v3078, %v970
      %v3111 = vmul.f32 %v3079, %v975
      %v3112 = vmul.f32 %v3080, %v980
      %v3113 = vmul.f32 %v3081, %v985
      %v3114 = vmul.f32 %v3082, %v990
      %v3115 = vmul.f32 %v3083, %v995
      %v3116 = vmul.f32 %v3084, %v1000
      %v3117 = vmul.f32 %v3085, %v1005
      %v3118 = vmul.f32 %v3086, %v1010
      %v3119 = vmul.f32 %v3087, %v1015
      %v3120 = vmul.f32 %v3088, %v1020
      %v3121 = vmul.f32 %v3089, %v1025
      %v3122 = vmul.f32 %v3090, %v1030
      %s3123 = scalar_lea.vmem %s1, 768
      %v3124 = vld [vmem:[%s3123] sm:$0xff]
      %v3125 = vld [vmem:[%s3123 + $0x8] sm:$0xff]
      %v3126 = vld [vmem:[%s3123 + $0x10] sm:$0xff]
      %v3127 = vld [vmem:[%s3123 + $0x18] sm:$0xff]
      %v3128 = vld [vmem:[%s3123 + $0x20] sm:$0xff]
      %v3129 = vld [vmem:[%s3123 + $0x28] sm:$0xff]
      %v3130 = vld [vmem:[%s3123 + $0x30] sm:$0xff]
      %v3131 = vld [vmem:[%s3123 + $0x38] sm:$0xff]
      %v3132 = vld [vmem:[%s3123 + $0x40] sm:$0xff]
      %v3133 = vld [vmem:[%s3123 + $0x48] sm:$0xff]
      %v3134 = vld [vmem:[%s3123 + $0x50] sm:$0xff]
      %v3135 = vld [vmem:[%s3123 + $0x58] sm:$0xff]
      %v3136 = vld [vmem:[%s3123 + $0x60] sm:$0xff]
      %v3137 = vld [vmem:[%s3123 + $0x68] sm:$0xff]
      %v3138 = vld [vmem:[%s3123 + $0x70] sm:$0xff]
      %v3139 = vld [vmem:[%s3123 + $0x78] sm:$0xff]
      %3140 = vmatprep.subr.mxu0 0.0
      %3141 = vmatpush1.msra.mxu0 %v3124
      %3142 = vmatprep.subr.mxu0 0.0
      %3143 = vmatpush1.msra.mxu0 %v3125
      %3144 = vmatprep.subr.mxu0 0.0
      %3145 = vmatpush1.msra.mxu0 %v3126
      %3146 = vmatprep.subr.mxu0 0.0
      %3147 = vmatpush1.msra.mxu0 %v3127
      %3148 = vmatprep.subr.mxu0 0.0
      %3149 = vmatpush1.msra.mxu0 %v3128
      %3150 = vmatprep.subr.mxu0 0.0
      %3151 = vmatpush1.msra.mxu0 %v3129
      %3152 = vmatprep.subr.mxu0 0.0
      %3153 = vmatpush1.msra.mxu0 %v3130
      %3154 = vmatprep.subr.mxu0 0.0
      %3155 = vmatpush1.msra.mxu0 %v3131
      %3156 = vmatprep.subr.mxu0 0.0
      %3157 = vmatpush1.msra.mxu0 %v3132
      %3158 = vmatprep.subr.mxu0 0.0
      %3159 = vmatpush1.msra.mxu0 %v3133
      %3160 = vmatprep.subr.mxu0 0.0
      %3161 = vmatpush1.msra.mxu0 %v3134
      %3162 = vmatprep.subr.mxu0 0.0
      %3163 = vmatpush1.msra.mxu0 %v3135
      %3164 = vmatprep.subr.mxu0 0.0
      %3165 = vmatpush1.msra.mxu0 %v3136
      %3166 = vmatprep.subr.mxu0 0.0
      %3167 = vmatpush1.msra.mxu0 %v3137
      %3168 = vmatprep.subr.mxu0 0.0
      %3169 = vmatpush1.msra.mxu0 %v3138
      %3170 = vmatprep.subr.mxu0 0.0
      %3171 = vmatpush1.msra.mxu0 %v3139
      %3172 = vmatprep.subr.mxu0 0.0
      %3173 = vmatpush1.msra.mxu0 0.0
      %3174 = vmatprep.subr.mxu0 0.0
      %3175 = vmatpush1.msra.mxu0 0.0
      %3176 = vmatprep.subr.mxu0 0.0
      %3177 = vmatpush1.msra.mxu0 0.0
      %3178 = vmatprep.subr.mxu0 0.0
      %3179 = vmatpush1.msra.mxu0 0.0
      %3180 = vmatprep.subr.mxu0 0.0
      %3181 = vmatpush1.msra.mxu0 0.0
      %3182 = vmatprep.subr.mxu0 0.0
      %3183 = vmatpush1.msra.mxu0 0.0
      %3184 = vmatprep.subr.mxu0 0.0
      %3185 = vmatpush1.msra.mxu0 0.0
      %3186 = vmatprep.subr.mxu0 0.0
      %3187 = vmatpush1.msra.mxu0 0.0
      %3188 = vmatprep.subr.mxu0 0.0
      %3189 = vmatpush1.msra.mxu0 0.0
      %3190 = vmatprep.subr.mxu0 0.0
      %3191 = vmatpush1.msra.mxu0 0.0
      %3192 = vmatprep.subr.mxu0 0.0
      %3193 = vmatpush1.msra.mxu0 0.0
      %3194 = vmatprep.subr.mxu0 0.0
      %3195 = vmatpush1.msra.mxu0 0.0
      %3196 = vmatprep.subr.mxu0 0.0
      %3197 = vmatpush1.msra.mxu0 0.0
      %3198 = vmatprep.subr.mxu0 0.0
      %3199 = vmatpush1.msra.mxu0 0.0
      %3200 = vmatprep.subr.mxu0 0.0
      %3201 = vmatpush1.msra.mxu0 0.0
      %3202 = vmatprep.subr.mxu0 0.0
      %3203 = vmatpush1.msra.mxu0 0.0
      %3204 = vmatprep.mubr.f32.mxu0 0.0
      %3205 = vmatmul.mubr.f32.gmra.mrb[0].mxu0 %v3091
      %v3206 = vpop.f32.mrb[0].mxu0
      %v3207 = vadd.f32 0.0, %v3206
      %v3208 = vpop.f32.mrb[0].mxu0
      %3209 = vmatprep.mubr.f32.mxu0 0.0
      %3210 = vmatmul.mubr.f32.gmra.mrb[0].mxu0 %v3092
      %v3211 = vpop.f32.mrb[0].mxu0
      %v3212 = vadd.f32 0.0, %v3211
      %v3213 = vpop.f32.mrb[0].mxu0
      %3214 = vmatprep.mubr.f32.mxu0 0.0
      %3215 = vmatmul.mubr.f32.gmra.mrb[0].mxu0 %v3093
      %v3216 = vpop.f32.mrb[0].mxu0
      %v3217 = vadd.f32 0.0, %v3216
      %v3218 = vpop.f32.mrb[0].mxu0
      %3219 = vmatprep.mubr.f32.mxu0 0.0
      %3220 = vmatmul.mubr.f32.gmra.mrb[0].mxu0 %v3094
      %v3221 = vpop.f32.mrb[0].mxu0
      %v3222 = vadd.f32 0.0, %v3221
      %v3223 = vpop.f32.mrb[0].mxu0
      %3224 = vmatprep.mubr.f32.mxu0 0.0
      %3225 = vmatmul.mubr.f32.gmra.mrb[0].mxu0 %v3095
      %v3226 = vpop.f32.mrb[0].mxu0
      %v3227 = vadd.f32 0.0, %v3226
      %v3228 = vpop.f32.mrb[0].mxu0
      %3229 = vmatprep.mubr.f32.mxu0 0.0
      %3230 = vmatmul.mubr.f32.gmra.mrb[0].mxu0 %v3096
      %v3231 = vpop.f32.mrb[0].mxu0
      %v3232 = vadd.f32 0.0, %v3231
      %v3233 = vpop.f32.mrb[0].mxu0
      %3234 = vmatprep.mubr.f32.mxu0 0.0
      %3235 = vmatmul.mubr.f32.gmra.mrb[0].mxu0 %v3097
      %v3236 = vpop.f32.mrb[0].mxu0
      %v3237 = vadd.f32 0.0, %v3236
      %v3238 = vpop.f32.mrb[0].mxu0
      %3239 = vmatprep.mubr.f32.mxu0 0.0
      %3240 = vmatmul.mubr.f32.gmra.mrb[0].mxu0 %v3098
      %v3241 = vpop.f32.mrb[0].mxu0
      %v3242 = vadd.f32 0.0, %v3241
      %v3243 = vpop.f32.mrb[0].mxu0
      %3244 = vmatprep.mubr.f32.mxu0 0.0
      %3245 = vmatmul.mubr.f32.gmra.mrb[0].mxu0 %v3099
      %v3246 = vpop.f32.mrb[0].mxu0
      %v3247 = vadd.f32 0.0, %v3246
      %v3248 = vpop.f32.mrb[0].mxu0
      %3249 = vmatprep.mubr.f32.mxu0 0.0
      %3250 = vmatmul.mubr.f32.gmra.mrb[0].mxu0 %v3100
      %v3251 = vpop.f32.mrb[0].mxu0
      %v3252 = vadd.f32 0.0, %v3251
      %v3253 = vpop.f32.mrb[0].mxu0
      %3254 = vmatprep.mubr.f32.mxu0 0.0
      %3255 = vmatmul.mubr.f32.gmra.mrb[0].mxu0 %v3101
      %v3256 = vpop.f32.mrb[0].mxu0
      %v3257 = vadd.f32 0.0, %v3256
      %v3258 = vpop.f32.mrb[0].mxu0
      %3259 = vmatprep.mubr.f32.mxu0 0.0
      %3260 = vmatmul.mubr.f32.gmra.mrb[0].mxu0 %v3102
      %v3261 = vpop.f32.mrb[0].mxu0
      %v3262 = vadd.f32 0.0, %v3261
      %v3263 = vpop.f32.mrb[0].mxu0
      %3264 = vmatprep.mubr.f32.mxu0 0.0
      %3265 = vmatmul.mubr.f32.gmra.mrb[0].mxu0 %v3103
      %v3266 = vpop.f32.mrb[0].mxu0
      %v3267 = vadd.f32 0.0, %v3266
      %v3268 = vpop.f32.mrb[0].mxu0
      %3269 = vmatprep.mubr.f32.mxu0 0.0
      %3270 = vmatmul.mubr.f32.gmra.mrb[0].mxu0 %v3104
      %v3271 = vpop.f32.mrb[0].mxu0
      %v3272 = vadd.f32 0.0, %v3271
      %v3273 = vpop.f32.mrb[0].mxu0
      %3274 = vmatprep.mubr.f32.mxu0 0.0
      %3275 = vmatmul.mubr.f32.gmra.mrb[0].mxu0 %v3105
      %v3276 = vpop.f32.mrb[0].mxu0
      %v3277 = vadd.f32 0.0, %v3276
      %v3278 = vpop.f32.mrb[0].mxu0
      %3279 = vmatprep.mubr.f32.mxu0 0.0
      %3280 = vmatmul.mubr.f32.gmra.mrb[0].mxu0 %v3106
      %v3281 = vpop.f32.mrb[0].mxu0
      %v3282 = vadd.f32 0.0, %v3281
      %v3283 = vpop.f32.mrb[0].mxu0
      %3284 = vmatprep.mubr.f32.mxu0 0.0
      %3285 = vmatmul.mubr.f32.gmra.mrb[0].mxu0 %v3107
      %v3286 = vpop.f32.mrb[0].mxu0
      %v3287 = vadd.f32 0.0, %v3286
      %v3288 = vpop.f32.mrb[0].mxu0
      %3289 = vmatprep.mubr.f32.mxu0 0.0
      %3290 = vmatmul.mubr.f32.gmra.mrb[0].mxu0 %v3108
      %v3291 = vpop.f32.mrb[0].mxu0
      %v3292 = vadd.f32 0.0, %v3291
      %v3293 = vpop.f32.mrb[0].mxu0
      %3294 = vmatprep.mubr.f32.mxu0 0.0
      %3295 = vmatmul.mubr.f32.gmra.mrb[0].mxu0 %v3109
      %v3296 = vpop.f32.mrb[0].mxu0
      %v3297 = vadd.f32 0.0, %v3296
      %v3298 = vpop.f32.mrb[0].mxu0
      %3299 = vmatprep.mubr.f32.mxu0 0.0
      %3300 = vmatmul.mubr.f32.gmra.mrb[0].mxu0 %v3110
      %v3301 = vpop.f32.mrb[0].mxu0
      %v3302 = vadd.f32 0.0, %v3301
      %v3303 = vpop.f32.mrb[0].mxu0
      %3304 = vmatprep.mubr.f32.mxu0 0.0
      %3305 = vmatmul.mubr.f32.gmra.mrb[0].mxu0 %v3111
      %v3306 = vpop.f32.mrb[0].mxu0
      %v3307 = vadd.f32 0.0, %v3306
      %v3308 = vpop.f32.mrb[0].mxu0
      %3309 = vmatprep.mubr.f32.mxu0 0.0
      %3310 = vmatmul.mubr.f32.gmra.mrb[0].mxu0 %v3112
      %v3311 = vpop.f32.mrb[0].mxu0
      %v3312 = vadd.f32 0.0, %v3311
      %v3313 = vpop.f32.mrb[0].mxu0
      %3314 = vmatprep.mubr.f32.mxu0 0.0
      %3315 = vmatmul.mubr.f32.gmra.mrb[0].mxu0 %v3113
      %v3316 = vpop.f32.mrb[0].mxu0
      %v3317 = vadd.f32 0.0, %v3316
      %v3318 = vpop.f32.mrb[0].mxu0
      %3319 = vmatprep.mubr.f32.mxu0 0.0
      %3320 = vmatmul.mubr.f32.gmra.mrb[0].mxu0 %v3114
      %v3321 = vpop.f32.mrb[0].mxu0
      %v3322 = vadd.f32 0.0, %v3321
      %v3323 = vpop.f32.mrb[0].mxu0
      %3324 = vmatprep.mubr.f32.mxu0 0.0
      %3325 = vmatmul.mubr.f32.gmra.mrb[0].mxu0 %v3115
      %v3326 = vpop.f32.mrb[0].mxu0
      %v3327 = vadd.f32 0.0, %v3326
      %v3328 = vpop.f32.mrb[0].mxu0
      %3329 = vmatprep.mubr.f32.mxu0 0.0
      %3330 = vmatmul.mubr.f32.gmra.mrb[0].mxu0 %v3116
      %v3331 = vpop.f32.mrb[0].mxu0
      %v3332 = vadd.f32 0.0, %v3331
      %v3333 = vpop.f32.mrb[0].mxu0
      %3334 = vmatprep.mubr.f32.mxu0 0.0
      %3335 = vmatmul.mubr.f32.gmra.mrb[0].mxu0 %v3117
      %v3336 = vpop.f32.mrb[0].mxu0
      %v3337 = vadd.f32 0.0, %v3336
      %v3338 = vpop.f32.mrb[0].mxu0
      %3339 = vmatprep.mubr.f32.mxu0 0.0
      %3340 = vmatmul.mubr.f32.gmra.mrb[0].mxu0 %v3118
      %v3341 = vpop.f32.mrb[0].mxu0
      %v3342 = vadd.f32 0.0, %v3341
      %v3343 = vpop.f32.mrb[0].mxu0
      %3344 = vmatprep.mubr.f32.mxu0 0.0
      %3345 = vmatmul.mubr.f32.gmra.mrb[0].mxu0 %v3119
      %v3346 = vpop.f32.mrb[0].mxu0
      %v3347 = vadd.f32 0.0, %v3346
      %v3348 = vpop.f32.mrb[0].mxu0
      %3349 = vmatprep.mubr.f32.mxu0 0.0
      %3350 = vmatmul.mubr.f32.gmra.mrb[0].mxu0 %v3120
      %v3351 = vpop.f32.mrb[0].mxu0
      %v3352 = vadd.f32 0.0, %v3351
      %v3353 = vpop.f32.mrb[0].mxu0
      %3354 = vmatprep.mubr.f32.mxu0 0.0
      %3355 = vmatmul.mubr.f32.gmra.mrb[0].mxu0 %v3121
      %v3356 = vpop.f32.mrb[0].mxu0
      %v3357 = vadd.f32 0.0, %v3356
      %v3358 = vpop.f32.mrb[0].mxu0
      %3359 = vmatprep.mubr.f32.mxu0 0.0
      %3360 = vmatmul.mubr.f32.gmra.mrb[0].mxu0 %v3122
      %v3361 = vpop.f32.mrb[0].mxu0
      %v3362 = vadd.f32 0.0, %v3361
      %v3363 = vpop.f32.mrb[0].mxu0
      %3364 = vdwg.mxu0
      %v3365 = vadd.f32 %v3027, %v3207
      %v3366 = vadd.f32 %v3028, %v3212
      %v3367 = vadd.f32 %v3029, %v3217
      %v3368 = vadd.f32 %v3030, %v3222
      %v3369 = vadd.f32 %v3031, %v3227
      %v3370 = vadd.f32 %v3032, %v3232
      %v3371 = vadd.f32 %v3033, %v3237
      %v3372 = vadd.f32 %v3034, %v3242
      %v3373 = vadd.f32 %v3035, %v3247
      %v3374 = vadd.f32 %v3036, %v3252
      %v3375 = vadd.f32 %v3037, %v3257
      %v3376 = vadd.f32 %v3038, %v3262
      %v3377 = vadd.f32 %v3039, %v3267
      %v3378 = vadd.f32 %v3040, %v3272
      %v3379 = vadd.f32 %v3041, %v3277
      %v3380 = vadd.f32 %v3042, %v3282
      %v3381 = vadd.f32 %v3043, %v3287
      %v3382 = vadd.f32 %v3044, %v3292
      %v3383 = vadd.f32 %v3045, %v3297
      %v3384 = vadd.f32 %v3046, %v3302
      %v3385 = vadd.f32 %v3047, %v3307
      %v3386 = vadd.f32 %v3048, %v3312
      %v3387 = vadd.f32 %v3049, %v3317
      %v3388 = vadd.f32 %v3050, %v3322
      %v3389 = vadd.f32 %v3051, %v3327
      %v3390 = vadd.f32 %v3052, %v3332
      %v3391 = vadd.f32 %v3053, %v3337
      %v3392 = vadd.f32 %v3054, %v3342
      %v3393 = vadd.f32 %v3055, %v3347
      %v3394 = vadd.f32 %v3056, %v3352
      %v3395 = vadd.f32 %v3057, %v3357
      %v3396 = vadd.f32 %v3058, %v3362
      %v3397 = vld [vmem:[#allocation2 + $0x21] sm:$0xff]
      %v3398 = vld [vmem:[#allocation2 + $0x29] sm:$0xff]
      %v3399 = vld [vmem:[#allocation2 + $0x31] sm:$0xff]
      %v3400 = vld [vmem:[#allocation2 + $0x39] sm:$0xff]
      %v3401 = vld [vmem:[#allocation2 + $0x41] sm:$0xff]
      %v3402 = vld [vmem:[#allocation2 + $0x49] sm:$0xff]
      %v3403 = vld [vmem:[#allocation2 + $0x51] sm:$0xff]
      %v3404 = vld [vmem:[#allocation2 + $0x59] sm:$0xff]
      %v3405 = vld [vmem:[#allocation2 + $0x61] sm:$0xff]
      %v3406 = vld [vmem:[#allocation2 + $0x69] sm:$0xff]
      %v3407 = vld [vmem:[#allocation2 + $0x71] sm:$0xff]
      %v3408 = vld [vmem:[#allocation2 + $0x79] sm:$0xff]
      %v3409 = vld [vmem:[#allocation2 + $0x81] sm:$0xff]
      %v3410 = vld [vmem:[#allocation2 + $0x89] sm:$0xff]
      %v3411 = vld [vmem:[#allocation2 + $0x91] sm:$0xff]
      %v3412 = vld [vmem:[#allocation2 + $0x99] sm:$0xff]
      %v3413 = vld [vmem:[#allocation2 + $0xa1] sm:$0xff]
      %v3414 = vld [vmem:[#allocation2 + $0xa9] sm:$0xff]
      %v3415 = vld [vmem:[#allocation2 + $0xb1] sm:$0xff]
      %v3416 = vld [vmem:[#allocation2 + $0xb9] sm:$0xff]
      %v3417 = vld [vmem:[#allocation2 + $0xc1] sm:$0xff]
      %v3418 = vld [vmem:[#allocation2 + $0xc9] sm:$0xff]
      %v3419 = vld [vmem:[#allocation2 + $0xd1] sm:$0xff]
      %v3420 = vld [vmem:[#allocation2 + $0xd9] sm:$0xff]
      %v3421 = vld [vmem:[#allocation2 + $0xe1] sm:$0xff]
      %v3422 = vld [vmem:[#allocation2 + $0xe9] sm:$0xff]
      %v3423 = vld [vmem:[#allocation2 + $0xf1] sm:$0xff]
      %v3424 = vld [vmem:[#allocation2 + $0xf9] sm:$0xff]
      %v3425 = vld [vmem:[#allocation2 + $0x101] sm:$0xff]
      %v3426 = vld [vmem:[#allocation2 + $0x109] sm:$0xff]
      %v3427 = vld [vmem:[#allocation2 + $0x111] sm:$0xff]
      %v3428 = vld [vmem:[#allocation2 + $0x119] sm:$0xff]
      %s3429 = scalar_lea.vmem %s1, 896
      %v3430 = vld [vmem:[%s3429] sm:$0xff]
      %v3431 = vld [vmem:[%s3429 + $0x8] sm:$0xff]
      %v3432 = vld [vmem:[%s3429 + $0x10] sm:$0xff]
      %v3433 = vld [vmem:[%s3429 + $0x18] sm:$0xff]
      %v3434 = vld [vmem:[%s3429 + $0x20] sm:$0xff]
      %v3435 = vld [vmem:[%s3429 + $0x28] sm:$0xff]
      %v3436 = vld [vmem:[%s3429 + $0x30] sm:$0xff]
      %v3437 = vld [vmem:[%s3429 + $0x38] sm:$0xff]
      %v3438 = vld [vmem:[%s3429 + $0x40] sm:$0xff]
      %v3439 = vld [vmem:[%s3429 + $0x48] sm:$0xff]
      %v3440 = vld [vmem:[%s3429 + $0x50] sm:$0xff]
      %v3441 = vld [vmem:[%s3429 + $0x58] sm:$0xff]
      %v3442 = vld [vmem:[%s3429 + $0x60] sm:$0xff]
      %v3443 = vld [vmem:[%s3429 + $0x68] sm:$0xff]
      %v3444 = vld [vmem:[%s3429 + $0x70] sm:$0xff]
      %v3445 = vld [vmem:[%s3429 + $0x78] sm:$0xff]
      %3446 = vmatprep.subr.mxu0 0.0
      %3447 = vmatpush1.msra.mxu0 %v3430
      %3448 = vmatprep.subr.mxu0 0.0
      %3449 = vmatpush1.msra.mxu0 %v3431
      %3450 = vmatprep.subr.mxu0 0.0
      %3451 = vmatpush1.msra.mxu0 %v3432
      %3452 = vmatprep.subr.mxu0 0.0
      %3453 = vmatpush1.msra.mxu0 %v3433
      %3454 = vmatprep.subr.mxu0 0.0
      %3455 = vmatpush1.msra.mxu0 %v3434
      %3456 = vmatprep.subr.mxu0 0.0
      %3457 = vmatpush1.msra.mxu0 %v3435
      %3458 = vmatprep.subr.mxu0 0.0
      %3459 = vmatpush1.msra.mxu0 %v3436
      %3460 = vmatprep.subr.mxu0 0.0
      %3461 = vmatpush1.msra.mxu0 %v3437
      %3462 = vmatprep.subr.mxu0 0.0
      %3463 = vmatpush1.msra.mxu0 %v3438
      %3464 = vmatprep.subr.mxu0 0.0
      %3465 = vmatpush1.msra.mxu0 %v3439
      %3466 = vmatprep.subr.mxu0 0.0
      %3467 = vmatpush1.msra.mxu0 %v3440
      %3468 = vmatprep.subr.mxu0 0.0
      %3469 = vmatpush1.msra.mxu0 %v3441
      %3470 = vmatprep.subr.mxu0 0.0
      %3471 = vmatpush1.msra.mxu0 %v3442
      %3472 = vmatprep.subr.mxu0 0.0
      %3473 = vmatpush1.msra.mxu0 %v3443
      %3474 = vmatprep.subr.mxu0 0.0
      %3475 = vmatpush1.msra.mxu0 %v3444
      %3476 = vmatprep.subr.mxu0 0.0
      %3477 = vmatpush1.msra.mxu0 %v3445
      %3478 = vmatprep.subr.mxu0 0.0
      %3479 = vmatpush1.msra.mxu0 0.0
      %3480 = vmatprep.subr.mxu0 0.0
      %3481 = vmatpush1.msra.mxu0 0.0
      %3482 = vmatprep.subr.mxu0 0.0
      %3483 = vmatpush1.msra.mxu0 0.0
      %3484 = vmatprep.subr.mxu0 0.0
      %3485 = vmatpush1.msra.mxu0 0.0
      %3486 = vmatprep.subr.mxu0 0.0
      %3487 = vmatpush1.msra.mxu0 0.0
      %3488 = vmatprep.subr.mxu0 0.0
      %3489 = vmatpush1.msra.mxu0 0.0
      %3490 = vmatprep.subr.mxu0 0.0
      %3491 = vmatpush1.msra.mxu0 0.0
      %3492 = vmatprep.subr.mxu0 0.0
      %3493 = vmatpush1.msra.mxu0 0.0
      %3494 = vmatprep.subr.mxu0 0.0
      %3495 = vmatpush1.msra.mxu0 0.0
      %3496 = vmatprep.subr.mxu0 0.0
      %3497 = vmatpush1.msra.mxu0 0.0
      %3498 = vmatprep.subr.mxu0 0.0
      %3499 = vmatpush1.msra.mxu0 0.0
      %3500 = vmatprep.subr.mxu0 0.0
      %3501 = vmatpush1.msra.mxu0 0.0
      %3502 = vmatprep.subr.mxu0 0.0
      %3503 = vmatpush1.msra.mxu0 0.0
      %3504 = vmatprep.subr.mxu0 0.0
      %3505 = vmatpush1.msra.mxu0 0.0
      %3506 = vmatprep.subr.mxu0 0.0
      %3507 = vmatpush1.msra.mxu0 0.0
      %3508 = vmatprep.subr.mxu0 0.0
      %3509 = vmatpush1.msra.mxu0 0.0
      %3510 = vmatprep.mubr.f32.mxu0 0.0
      %3511 = vmatmul.mubr.f32.gmra.mrb[0].mxu0 %v3397
      %v3512 = vpop.f32.mrb[0].mxu0
      %v3513 = vadd.f32 0.0, %v3512
      %v3514 = vpop.f32.mrb[0].mxu0
      %3515 = vmatprep.mubr.f32.mxu0 0.0
      %3516 = vmatmul.mubr.f32.gmra.mrb[0].mxu0 %v3398
      %v3517 = vpop.f32.mrb[0].mxu0
      %v3518 = vadd.f32 0.0, %v3517
      %v3519 = vpop.f32.mrb[0].mxu0
      %3520 = vmatprep.mubr.f32.mxu0 0.0
      %3521 = vmatmul.mubr.f32.gmra.mrb[0].mxu0 %v3399
      %v3522 = vpop.f32.mrb[0].mxu0
      %v3523 = vadd.f32 0.0, %v3522
      %v3524 = vpop.f32.mrb[0].mxu0
      %3525 = vmatprep.mubr.f32.mxu0 0.0
      %3526 = vmatmul.mubr.f32.gmra.mrb[0].mxu0 %v3400
      %v3527 = vpop.f32.mrb[0].mxu0
      %v3528 = vadd.f32 0.0, %v3527
      %v3529 = vpop.f32.mrb[0].mxu0
      %3530 = vmatprep.mubr.f32.mxu0 0.0
      %3531 = vmatmul.mubr.f32.gmra.mrb[0].mxu0 %v3401
      %v3532 = vpop.f32.mrb[0].mxu0
      %v3533 = vadd.f32 0.0, %v3532
      %v3534 = vpop.f32.mrb[0].mxu0
      %3535 = vmatprep.mubr.f32.mxu0 0.0
      %3536 = vmatmul.mubr.f32.gmra.mrb[0].mxu0 %v3402
      %v3537 = vpop.f32.mrb[0].mxu0
      %v3538 = vadd.f32 0.0, %v3537
      %v3539 = vpop.f32.mrb[0].mxu0
      %3540 = vmatprep.mubr.f32.mxu0 0.0
      %3541 = vmatmul.mubr.f32.gmra.mrb[0].mxu0 %v3403
      %v3542 = vpop.f32.mrb[0].mxu0
      %v3543 = vadd.f32 0.0, %v3542
      %v3544 = vpop.f32.mrb[0].mxu0
      %3545 = vmatprep.mubr.f32.mxu0 0.0
      %3546 = vmatmul.mubr.f32.gmra.mrb[0].mxu0 %v3404
      %v3547 = vpop.f32.mrb[0].mxu0
      %v3548 = vadd.f32 0.0, %v3547
      %v3549 = vpop.f32.mrb[0].mxu0
      %3550 = vmatprep.mubr.f32.mxu0 0.0
      %3551 = vmatmul.mubr.f32.gmra.mrb[0].mxu0 %v3405
      %v3552 = vpop.f32.mrb[0].mxu0
      %v3553 = vadd.f32 0.0, %v3552
      %v3554 = vpop.f32.mrb[0].mxu0
      %3555 = vmatprep.mubr.f32.mxu0 0.0
      %3556 = vmatmul.mubr.f32.gmra.mrb[0].mxu0 %v3406
      %v3557 = vpop.f32.mrb[0].mxu0
      %v3558 = vadd.f32 0.0, %v3557
      %v3559 = vpop.f32.mrb[0].mxu0
      %3560 = vmatprep.mubr.f32.mxu0 0.0
      %3561 = vmatmul.mubr.f32.gmra.mrb[0].mxu0 %v3407
      %v3562 = vpop.f32.mrb[0].mxu0
      %v3563 = vadd.f32 0.0, %v3562
      %v3564 = vpop.f32.mrb[0].mxu0
      %3565 = vmatprep.mubr.f32.mxu0 0.0
      %3566 = vmatmul.mubr.f32.gmra.mrb[0].mxu0 %v3408
      %v3567 = vpop.f32.mrb[0].mxu0
      %v3568 = vadd.f32 0.0, %v3567
      %v3569 = vpop.f32.mrb[0].mxu0
      %3570 = vmatprep.mubr.f32.mxu0 0.0
      %3571 = vmatmul.mubr.f32.gmra.mrb[0].mxu0 %v3409
      %v3572 = vpop.f32.mrb[0].mxu0
      %v3573 = vadd.f32 0.0, %v3572
      %v3574 = vpop.f32.mrb[0].mxu0
      %3575 = vmatprep.mubr.f32.mxu0 0.0
      %3576 = vmatmul.mubr.f32.gmra.mrb[0].mxu0 %v3410
      %v3577 = vpop.f32.mrb[0].mxu0
      %v3578 = vadd.f32 0.0, %v3577
      %v3579 = vpop.f32.mrb[0].mxu0
      %3580 = vmatprep.mubr.f32.mxu0 0.0
      %3581 = vmatmul.mubr.f32.gmra.mrb[0].mxu0 %v3411
      %v3582 = vpop.f32.mrb[0].mxu0
      %v3583 = vadd.f32 0.0, %v3582
      %v3584 = vpop.f32.mrb[0].mxu0
      %3585 = vmatprep.mubr.f32.mxu0 0.0
      %3586 = vmatmul.mubr.f32.gmra.mrb[0].mxu0 %v3412
      %v3587 = vpop.f32.mrb[0].mxu0
      %v3588 = vadd.f32 0.0, %v3587
      %v3589 = vpop.f32.mrb[0].mxu0
      %3590 = vmatprep.mubr.f32.mxu0 0.0
      %3591 = vmatmul.mubr.f32.gmra.mrb[0].mxu0 %v3413
      %v3592 = vpop.f32.mrb[0].mxu0
      %v3593 = vadd.f32 0.0, %v3592
      %v3594 = vpop.f32.mrb[0].mxu0
      %3595 = vmatprep.mubr.f32.mxu0 0.0
      %3596 = vmatmul.mubr.f32.gmra.mrb[0].mxu0 %v3414
      %v3597 = vpop.f32.mrb[0].mxu0
      %v3598 = vadd.f32 0.0, %v3597
      %v3599 = vpop.f32.mrb[0].mxu0
      %3600 = vmatprep.mubr.f32.mxu0 0.0
      %3601 = vmatmul.mubr.f32.gmra.mrb[0].mxu0 %v3415
      %v3602 = vpop.f32.mrb[0].mxu0
      %v3603 = vadd.f32 0.0, %v3602
      %v3604 = vpop.f32.mrb[0].mxu0
      %3605 = vmatprep.mubr.f32.mxu0 0.0
      %3606 = vmatmul.mubr.f32.gmra.mrb[0].mxu0 %v3416
      %v3607 = vpop.f32.mrb[0].mxu0
      %v3608 = vadd.f32 0.0, %v3607
      %v3609 = vpop.f32.mrb[0].mxu0
      %3610 = vmatprep.mubr.f32.mxu0 0.0
      %3611 = vmatmul.mubr.f32.gmra.mrb[0].mxu0 %v3417
      %v3612 = vpop.f32.mrb[0].mxu0
      %v3613 = vadd.f32 0.0, %v3612
      %v3614 = vpop.f32.mrb[0].mxu0
      %3615 = vmatprep.mubr.f32.mxu0 0.0
      %3616 = vmatmul.mubr.f32.gmra.mrb[0].mxu0 %v3418
      %v3617 = vpop.f32.mrb[0].mxu0
      %v3618 = vadd.f32 0.0, %v3617
      %v3619 = vpop.f32.mrb[0].mxu0
      %3620 = vmatprep.mubr.f32.mxu0 0.0
      %3621 = vmatmul.mubr.f32.gmra.mrb[0].mxu0 %v3419
      %v3622 = vpop.f32.mrb[0].mxu0
      %v3623 = vadd.f32 0.0, %v3622
      %v3624 = vpop.f32.mrb[0].mxu0
      %3625 = vmatprep.mubr.f32.mxu0 0.0
      %3626 = vmatmul.mubr.f32.gmra.mrb[0].mxu0 %v3420
      %v3627 = vpop.f32.mrb[0].mxu0
      %v3628 = vadd.f32 0.0, %v3627
      %v3629 = vpop.f32.mrb[0].mxu0
      %3630 = vmatprep.mubr.f32.mxu0 0.0
      %3631 = vmatmul.mubr.f32.gmra.mrb[0].mxu0 %v3421
      %v3632 = vpop.f32.mrb[0].mxu0
      %v3633 = vadd.f32 0.0, %v3632
      %v3634 = vpop.f32.mrb[0].mxu0
      %3635 = vmatprep.mubr.f32.mxu0 0.0
      %3636 = vmatmul.mubr.f32.gmra.mrb[0].mxu0 %v3422
      %v3637 = vpop.f32.mrb[0].mxu0
      %v3638 = vadd.f32 0.0, %v3637
      %v3639 = vpop.f32.mrb[0].mxu0
      %3640 = vmatprep.mubr.f32.mxu0 0.0
      %3641 = vmatmul.mubr.f32.gmra.mrb[0].mxu0 %v3423
      %v3642 = vpop.f32.mrb[0].mxu0
      %v3643 = vadd.f32 0.0, %v3642
      %v3644 = vpop.f32.mrb[0].mxu0
      %3645 = vmatprep.mubr.f32.mxu0 0.0
      %3646 = vmatmul.mubr.f32.gmra.mrb[0].mxu0 %v3424
      %v3647 = vpop.f32.mrb[0].mxu0
      %v3648 = vadd.f32 0.0, %v3647
      %v3649 = vpop.f32.mrb[0].mxu0
      %3650 = vmatprep.mubr.f32.mxu0 0.0
      %3651 = vmatmul.mubr.f32.gmra.mrb[0].mxu0 %v3425
      %v3652 = vpop.f32.mrb[0].mxu0
      %v3653 = vadd.f32 0.0, %v3652
      %v3654 = vpop.f32.mrb[0].mxu0
      %3655 = vmatprep.mubr.f32.mxu0 0.0
      %3656 = vmatmul.mubr.f32.gmra.mrb[0].mxu0 %v3426
      %v3657 = vpop.f32.mrb[0].mxu0
      %v3658 = vadd.f32 0.0, %v3657
      %v3659 = vpop.f32.mrb[0].mxu0
      %3660 = vmatprep.mubr.f32.mxu0 0.0
      %3661 = vmatmul.mubr.f32.gmra.mrb[0].mxu0 %v3427
      %v3662 = vpop.f32.mrb[0].mxu0
      %v3663 = vadd.f32 0.0, %v3662
      %v3664 = vpop.f32.mrb[0].mxu0
      %3665 = vmatprep.mubr.f32.mxu0 0.0
      %3666 = vmatmul.mubr.f32.gmra.mrb[0].mxu0 %v3428
      %v3667 = vpop.f32.mrb[0].mxu0
      %v3668 = vadd.f32 0.0, %v3667
      %v3669 = vpop.f32.mrb[0].mxu0
      %3670 = vdwg.mxu0
      %v3671 = vadd.f32 %v3365, %v3513
      %v3672 = vadd.f32 %v3366, %v3518
      %v3673 = vadd.f32 %v3367, %v3523
      %v3674 = vadd.f32 %v3368, %v3528
      %v3675 = vadd.f32 %v3369, %v3533
      %v3676 = vadd.f32 %v3370, %v3538
      %v3677 = vadd.f32 %v3371, %v3543
      %v3678 = vadd.f32 %v3372, %v3548
      %v3679 = vadd.f32 %v3373, %v3553
      %v3680 = vadd.f32 %v3374, %v3558
      %v3681 = vadd.f32 %v3375, %v3563
      %v3682 = vadd.f32 %v3376, %v3568
      %v3683 = vadd.f32 %v3377, %v3573
      %v3684 = vadd.f32 %v3378, %v3578
      %v3685 = vadd.f32 %v3379, %v3583
      %v3686 = vadd.f32 %v3380, %v3588
      %v3687 = vadd.f32 %v3381, %v3593
      %v3688 = vadd.f32 %v3382, %v3598
      %v3689 = vadd.f32 %v3383, %v3603
      %v3690 = vadd.f32 %v3384, %v3608
      %v3691 = vadd.f32 %v3385, %v3613
      %v3692 = vadd.f32 %v3386, %v3618
      %v3693 = vadd.f32 %v3387, %v3623
      %v3694 = vadd.f32 %v3388, %v3628
      %v3695 = vadd.f32 %v3389, %v3633
      %v3696 = vadd.f32 %v3390, %v3638
      %v3697 = vadd.f32 %v3391, %v3643
      %v3698 = vadd.f32 %v3392, %v3648
      %v3699 = vadd.f32 %v3393, %v3653
      %v3700 = vadd.f32 %v3394, %v3658
      %v3701 = vadd.f32 %v3395, %v3663
      %v3702 = vadd.f32 %v3396, %v3668
      %v3703 = vld [vmem:[#allocation2 + $0x22] sm:$0xff]
      %v3704 = vld [vmem:[#allocation2 + $0x2a] sm:$0xff]
      %v3705 = vld [vmem:[#allocation2 + $0x32] sm:$0xff]
      %v3706 = vld [vmem:[#allocation2 + $0x3a] sm:$0xff]
      %v3707 = vld [vmem:[#allocation2 + $0x42] sm:$0xff]
      %v3708 = vld [vmem:[#allocation2 + $0x4a] sm:$0xff]
      %v3709 = vld [vmem:[#allocation2 + $0x52] sm:$0xff]
      %v3710 = vld [vmem:[#allocation2 + $0x5a] sm:$0xff]
      %v3711 = vld [vmem:[#allocation2 + $0x62] sm:$0xff]
      %v3712 = vld [vmem:[#allocation2 + $0x6a] sm:$0xff]
      %v3713 = vld [vmem:[#allocation2 + $0x72] sm:$0xff]
      %v3714 = vld [vmem:[#allocation2 + $0x7a] sm:$0xff]
      %v3715 = vld [vmem:[#allocation2 + $0x82] sm:$0xff]
      %v3716 = vld [vmem:[#allocation2 + $0x8a] sm:$0xff]
      %v3717 = vld [vmem:[#allocation2 + $0x92] sm:$0xff]
      %v3718 = vld [vmem:[#allocation2 + $0x9a] sm:$0xff]
      %v3719 = vld [vmem:[#allocation2 + $0xa2] sm:$0xff]
      %v3720 = vld [vmem:[#allocation2 + $0xaa] sm:$0xff]
      %v3721 = vld [vmem:[#allocation2 + $0xb2] sm:$0xff]
      %v3722 = vld [vmem:[#allocation2 + $0xba] sm:$0xff]
      %v3723 = vld [vmem:[#allocation2 + $0xc2] sm:$0xff]
      %v3724 = vld [vmem:[#allocation2 + $0xca] sm:$0xff]
      %v3725 = vld [vmem:[#allocation2 + $0xd2] sm:$0xff]
      %v3726 = vld [vmem:[#allocation2 + $0xda] sm:$0xff]
      %v3727 = vld [vmem:[#allocation2 + $0xe2] sm:$0xff]
      %v3728 = vld [vmem:[#allocation2 + $0xea] sm:$0xff]
      %v3729 = vld [vmem:[#allocation2 + $0xf2] sm:$0xff]
      %v3730 = vld [vmem:[#allocation2 + $0xfa] sm:$0xff]
      %v3731 = vld [vmem:[#allocation2 + $0x102] sm:$0xff]
      %v3732 = vld [vmem:[#allocation2 + $0x10a] sm:$0xff]
      %v3733 = vld [vmem:[#allocation2 + $0x112] sm:$0xff]
      %v3734 = vld [vmem:[#allocation2 + $0x11a] sm:$0xff]
      %v3735 = vmul.f32 %v3703, %v1614
      %v3736 = vmul.f32 %v3704, %v1619
      %v3737 = vmul.f32 %v3705, %v1624
      %v3738 = vmul.f32 %v3706, %v1629
      %v3739 = vmul.f32 %v3707, %v1634
      %v3740 = vmul.f32 %v3708, %v1639
      %v3741 = vmul.f32 %v3709, %v1644
      %v3742 = vmul.f32 %v3710, %v1649
      %v3743 = vmul.f32 %v3711, %v1654
      %v3744 = vmul.f32 %v3712, %v1659
      %v3745 = vmul.f32 %v3713, %v1664
      %v3746 = vmul.f32 %v3714, %v1669
      %v3747 = vmul.f32 %v3715, %v1674
      %v3748 = vmul.f32 %v3716, %v1679
      %v3749 = vmul.f32 %v3717, %v1684
      %v3750 = vmul.f32 %v3718, %v1689
      %v3751 = vmul.f32 %v3719, %v1694
      %v3752 = vmul.f32 %v3720, %v1699
      %v3753 = vmul.f32 %v3721, %v1704
      %v3754 = vmul.f32 %v3722, %v1709
      %v3755 = vmul.f32 %v3723, %v1714
      %v3756 = vmul.f32 %v3724, %v1719
      %v3757 = vmul.f32 %v3725, %v1724
      %v3758 = vmul.f32 %v3726, %v1729
      %v3759 = vmul.f32 %v3727, %v1734
      %v3760 = vmul.f32 %v3728, %v1739
      %v3761 = vmul.f32 %v3729, %v1744
      %v3762 = vmul.f32 %v3730, %v1749
      %v3763 = vmul.f32 %v3731, %v1754
      %v3764 = vmul.f32 %v3732, %v1759
      %v3765 = vmul.f32 %v3733, %v1764
      %v3766 = vmul.f32 %v3734, %v1769
      %s3767 = scalar_lea.vmem %s1, 1024
      %v3768 = vld [vmem:[%s3767] sm:$0xff]
      %v3769 = vld [vmem:[%s3767 + $0x8] sm:$0xff]
      %v3770 = vld [vmem:[%s3767 + $0x10] sm:$0xff]
      %v3771 = vld [vmem:[%s3767 + $0x18] sm:$0xff]
      %v3772 = vld [vmem:[%s3767 + $0x20] sm:$0xff]
      %v3773 = vld [vmem:[%s3767 + $0x28] sm:$0xff]
      %v3774 = vld [vmem:[%s3767 + $0x30] sm:$0xff]
      %v3775 = vld [vmem:[%s3767 + $0x38] sm:$0xff]
      %v3776 = vld [vmem:[%s3767 + $0x40] sm:$0xff]
      %v3777 = vld [vmem:[%s3767 + $0x48] sm:$0xff]
      %v3778 = vld [vmem:[%s3767 + $0x50] sm:$0xff]
      %v3779 = vld [vmem:[%s3767 + $0x58] sm:$0xff]
      %v3780 = vld [vmem:[%s3767 + $0x60] sm:$0xff]
      %v3781 = vld [vmem:[%s3767 + $0x68] sm:$0xff]
      %v3782 = vld [vmem:[%s3767 + $0x70] sm:$0xff]
      %v3783 = vld [vmem:[%s3767 + $0x78] sm:$0xff]
      %3784 = vmatprep.subr.mxu0 0.0
      %3785 = vmatpush1.msra.mxu0 %v3768
      %3786 = vmatprep.subr.mxu0 0.0
      %3787 = vmatpush1.msra.mxu0 %v3769
      %3788 = vmatprep.subr.mxu0 0.0
      %3789 = vmatpush1.msra.mxu0 %v3770
      %3790 = vmatprep.subr.mxu0 0.0
      %3791 = vmatpush1.msra.mxu0 %v3771
      %3792 = vmatprep.subr.mxu0 0.0
      %3793 = vmatpush1.msra.mxu0 %v3772
      %3794 = vmatprep.subr.mxu0 0.0
      %3795 = vmatpush1.msra.mxu0 %v3773
      %3796 = vmatprep.subr.mxu0 0.0
      %3797 = vmatpush1.msra.mxu0 %v3774
      %3798 = vmatprep.subr.mxu0 0.0
      %3799 = vmatpush1.msra.mxu0 %v3775
      %3800 = vmatprep.subr.mxu0 0.0
      %3801 = vmatpush1.msra.mxu0 %v3776
      %3802 = vmatprep.subr.mxu0 0.0
      %3803 = vmatpush1.msra.mxu0 %v3777
      %3804 = vmatprep.subr.mxu0 0.0
      %3805 = vmatpush1.msra.mxu0 %v3778
      %3806 = vmatprep.subr.mxu0 0.0
      %3807 = vmatpush1.msra.mxu0 %v3779
      %3808 = vmatprep.subr.mxu0 0.0
      %3809 = vmatpush1.msra.mxu0 %v3780
      %3810 = vmatprep.subr.mxu0 0.0
      %3811 = vmatpush1.msra.mxu0 %v3781
      %3812 = vmatprep.subr.mxu0 0.0
      %3813 = vmatpush1.msra.mxu0 %v3782
      %3814 = vmatprep.subr.mxu0 0.0
      %3815 = vmatpush1.msra.mxu0 %v3783
      %3816 = vmatprep.subr.mxu0 0.0
      %3817 = vmatpush1.msra.mxu0 0.0
      %3818 = vmatprep.subr.mxu0 0.0
      %3819 = vmatpush1.msra.mxu0 0.0
      %3820 = vmatprep.subr.mxu0 0.0
      %3821 = vmatpush1.msra.mxu0 0.0
      %3822 = vmatprep.subr.mxu0 0.0
      %3823 = vmatpush1.msra.mxu0 0.0
      %3824 = vmatprep.subr.mxu0 0.0
      %3825 = vmatpush1.msra.mxu0 0.0
      %3826 = vmatprep.subr.mxu0 0.0
      %3827 = vmatpush1.msra.mxu0 0.0
      %3828 = vmatprep.subr.mxu0 0.0
      %3829 = vmatpush1.msra.mxu0 0.0
      %3830 = vmatprep.subr.mxu0 0.0
      %3831 = vmatpush1.msra.mxu0 0.0
      %3832 = vmatprep.subr.mxu0 0.0
      %3833 = vmatpush1.msra.mxu0 0.0
      %3834 = vmatprep.subr.mxu0 0.0
      %3835 = vmatpush1.msra.mxu0 0.0
      %3836 = vmatprep.subr.mxu0 0.0
      %3837 = vmatpush1.msra.mxu0 0.0
      %3838 = vmatprep.subr.mxu0 0.0
      %3839 = vmatpush1.msra.mxu0 0.0
      %3840 = vmatprep.subr.mxu0 0.0
      %3841 = vmatpush1.msra.mxu0 0.0
      %3842 = vmatprep.subr.mxu0 0.0
      %3843 = vmatpush1.msra.mxu0 0.0
      %3844 = vmatprep.subr.mxu0 0.0
      %3845 = vmatpush1.msra.mxu0 0.0
      %3846 = vmatprep.subr.mxu0 0.0
      %3847 = vmatpush1.msra.mxu0 0.0
      %3848 = vmatprep.mubr.f32.mxu0 0.0
      %3849 = vmatmul.mubr.f32.gmra.mrb[0].mxu0 %v3735
      %v3850 = vpop.f32.mrb[0].mxu0
      %v3851 = vadd.f32 0.0, %v3850
      %v3852 = vpop.f32.mrb[0].mxu0
      %3853 = vmatprep.mubr.f32.mxu0 0.0
      %3854 = vmatmul.mubr.f32.gmra.mrb[0].mxu0 %v3736
      %v3855 = vpop.f32.mrb[0].mxu0
      %v3856 = vadd.f32 0.0, %v3855
      %v3857 = vpop.f32.mrb[0].mxu0
      %3858 = vmatprep.mubr.f32.mxu0 0.0
      %3859 = vmatmul.mubr.f32.gmra.mrb[0].mxu0 %v3737
      %v3860 = vpop.f32.mrb[0].mxu0
      %v3861 = vadd.f32 0.0, %v3860
      %v3862 = vpop.f32.mrb[0].mxu0
      %3863 = vmatprep.mubr.f32.mxu0 0.0
      %3864 = vmatmul.mubr.f32.gmra.mrb[0].mxu0 %v3738
      %v3865 = vpop.f32.mrb[0].mxu0
      %v3866 = vadd.f32 0.0, %v3865
      %v3867 = vpop.f32.mrb[0].mxu0
      %3868 = vmatprep.mubr.f32.mxu0 0.0
      %3869 = vmatmul.mubr.f32.gmra.mrb[0].mxu0 %v3739
      %v3870 = vpop.f32.mrb[0].mxu0
      %v3871 = vadd.f32 0.0, %v3870
      %v3872 = vpop.f32.mrb[0].mxu0
      %3873 = vmatprep.mubr.f32.mxu0 0.0
      %3874 = vmatmul.mubr.f32.gmra.mrb[0].mxu0 %v3740
      %v3875 = vpop.f32.mrb[0].mxu0
      %v3876 = vadd.f32 0.0, %v3875
      %v3877 = vpop.f32.mrb[0].mxu0
      %3878 = vmatprep.mubr.f32.mxu0 0.0
      %3879 = vmatmul.mubr.f32.gmra.mrb[0].mxu0 %v3741
      %v3880 = vpop.f32.mrb[0].mxu0
      %v3881 = vadd.f32 0.0, %v3880
      %v3882 = vpop.f32.mrb[0].mxu0
      %3883 = vmatprep.mubr.f32.mxu0 0.0
      %3884 = vmatmul.mubr.f32.gmra.mrb[0].mxu0 %v3742
      %v3885 = vpop.f32.mrb[0].mxu0
      %v3886 = vadd.f32 0.0, %v3885
      %v3887 = vpop.f32.mrb[0].mxu0
      %3888 = vmatprep.mubr.f32.mxu0 0.0
      %3889 = vmatmul.mubr.f32.gmra.mrb[0].mxu0 %v3743
      %v3890 = vpop.f32.mrb[0].mxu0
      %v3891 = vadd.f32 0.0, %v3890
      %v3892 = vpop.f32.mrb[0].mxu0
      %3893 = vmatprep.mubr.f32.mxu0 0.0
      %3894 = vmatmul.mubr.f32.gmra.mrb[0].mxu0 %v3744
      %v3895 = vpop.f32.mrb[0].mxu0
      %v3896 = vadd.f32 0.0, %v3895
      %v3897 = vpop.f32.mrb[0].mxu0
      %3898 = vmatprep.mubr.f32.mxu0 0.0
      %3899 = vmatmul.mubr.f32.gmra.mrb[0].mxu0 %v3745
      %v3900 = vpop.f32.mrb[0].mxu0
      %v3901 = vadd.f32 0.0, %v3900
      %v3902 = vpop.f32.mrb[0].mxu0
      %3903 = vmatprep.mubr.f32.mxu0 0.0
      %3904 = vmatmul.mubr.f32.gmra.mrb[0].mxu0 %v3746
      %v3905 = vpop.f32.mrb[0].mxu0
      %v3906 = vadd.f32 0.0, %v3905
      %v3907 = vpop.f32.mrb[0].mxu0
      %3908 = vmatprep.mubr.f32.mxu0 0.0
      %3909 = vmatmul.mubr.f32.gmra.mrb[0].mxu0 %v3747
      %v3910 = vpop.f32.mrb[0].mxu0
      %v3911 = vadd.f32 0.0, %v3910
      %v3912 = vpop.f32.mrb[0].mxu0
      %3913 = vmatprep.mubr.f32.mxu0 0.0
      %3914 = vmatmul.mubr.f32.gmra.mrb[0].mxu0 %v3748
      %v3915 = vpop.f32.mrb[0].mxu0
      %v3916 = vadd.f32 0.0, %v3915
      %v3917 = vpop.f32.mrb[0].mxu0
      %3918 = vmatprep.mubr.f32.mxu0 0.0
      %3919 = vmatmul.mubr.f32.gmra.mrb[0].mxu0 %v3749
      %v3920 = vpop.f32.mrb[0].mxu0
      %v3921 = vadd.f32 0.0, %v3920
      %v3922 = vpop.f32.mrb[0].mxu0
      %3923 = vmatprep.mubr.f32.mxu0 0.0
      %3924 = vmatmul.mubr.f32.gmra.mrb[0].mxu0 %v3750
      %v3925 = vpop.f32.mrb[0].mxu0
      %v3926 = vadd.f32 0.0, %v3925
      %v3927 = vpop.f32.mrb[0].mxu0
      %3928 = vmatprep.mubr.f32.mxu0 0.0
      %3929 = vmatmul.mubr.f32.gmra.mrb[0].mxu0 %v3751
      %v3930 = vpop.f32.mrb[0].mxu0
      %v3931 = vadd.f32 0.0, %v3930
      %v3932 = vpop.f32.mrb[0].mxu0
      %3933 = vmatprep.mubr.f32.mxu0 0.0
      %3934 = vmatmul.mubr.f32.gmra.mrb[0].mxu0 %v3752
      %v3935 = vpop.f32.mrb[0].mxu0
      %v3936 = vadd.f32 0.0, %v3935
      %v3937 = vpop.f32.mrb[0].mxu0
      %3938 = vmatprep.mubr.f32.mxu0 0.0
      %3939 = vmatmul.mubr.f32.gmra.mrb[0].mxu0 %v3753
      %v3940 = vpop.f32.mrb[0].mxu0
      %v3941 = vadd.f32 0.0, %v3940
      %v3942 = vpop.f32.mrb[0].mxu0
      %3943 = vmatprep.mubr.f32.mxu0 0.0
      %3944 = vmatmul.mubr.f32.gmra.mrb[0].mxu0 %v3754
      %v3945 = vpop.f32.mrb[0].mxu0
      %v3946 = vadd.f32 0.0, %v3945
      %v3947 = vpop.f32.mrb[0].mxu0
      %3948 = vmatprep.mubr.f32.mxu0 0.0
      %3949 = vmatmul.mubr.f32.gmra.mrb[0].mxu0 %v3755
      %v3950 = vpop.f32.mrb[0].mxu0
      %v3951 = vadd.f32 0.0, %v3950
      %v3952 = vpop.f32.mrb[0].mxu0
      %3953 = vmatprep.mubr.f32.mxu0 0.0
      %3954 = vmatmul.mubr.f32.gmra.mrb[0].mxu0 %v3756
      %v3955 = vpop.f32.mrb[0].mxu0
      %v3956 = vadd.f32 0.0, %v3955
      %v3957 = vpop.f32.mrb[0].mxu0
      %3958 = vmatprep.mubr.f32.mxu0 0.0
      %3959 = vmatmul.mubr.f32.gmra.mrb[0].mxu0 %v3757
      %v3960 = vpop.f32.mrb[0].mxu0
      %v3961 = vadd.f32 0.0, %v3960
      %v3962 = vpop.f32.mrb[0].mxu0
      %3963 = vmatprep.mubr.f32.mxu0 0.0
      %3964 = vmatmul.mubr.f32.gmra.mrb[0].mxu0 %v3758
      %v3965 = vpop.f32.mrb[0].mxu0
      %v3966 = vadd.f32 0.0, %v3965
      %v3967 = vpop.f32.mrb[0].mxu0
      %3968 = vmatprep.mubr.f32.mxu0 0.0
      %3969 = vmatmul.mubr.f32.gmra.mrb[0].mxu0 %v3759
      %v3970 = vpop.f32.mrb[0].mxu0
      %v3971 = vadd.f32 0.0, %v3970
      %v3972 = vpop.f32.mrb[0].mxu0
      %3973 = vmatprep.mubr.f32.mxu0 0.0
      %3974 = vmatmul.mubr.f32.gmra.mrb[0].mxu0 %v3760
      %v3975 = vpop.f32.mrb[0].mxu0
      %v3976 = vadd.f32 0.0, %v3975
      %v3977 = vpop.f32.mrb[0].mxu0
      %3978 = vmatprep.mubr.f32.mxu0 0.0
      %3979 = vmatmul.mubr.f32.gmra.mrb[0].mxu0 %v3761
      %v3980 = vpop.f32.mrb[0].mxu0
      %v3981 = vadd.f32 0.0, %v3980
      %v3982 = vpop.f32.mrb[0].mxu0
      %3983 = vmatprep.mubr.f32.mxu0 0.0
      %3984 = vmatmul.mubr.f32.gmra.mrb[0].mxu0 %v3762
      %v3985 = vpop.f32.mrb[0].mxu0
      %v3986 = vadd.f32 0.0, %v3985
      %v3987 = vpop.f32.mrb[0].mxu0
      %3988 = vmatprep.mubr.f32.mxu0 0.0
      %3989 = vmatmul.mubr.f32.gmra.mrb[0].mxu0 %v3763
      %v3990 = vpop.f32.mrb[0].mxu0
      %v3991 = vadd.f32 0.0, %v3990
      %v3992 = vpop.f32.mrb[0].mxu0
      %3993 = vmatprep.mubr.f32.mxu0 0.0
      %3994 = vmatmul.mubr.f32.gmra.mrb[0].mxu0 %v3764
      %v3995 = vpop.f32.mrb[0].mxu0
      %v3996 = vadd.f32 0.0, %v3995
      %v3997 = vpop.f32.mrb[0].mxu0
      %3998 = vmatprep.mubr.f32.mxu0 0.0
      %3999 = vmatmul.mubr.f32.gmra.mrb[0].mxu0 %v3765
      %v4000 = vpop.f32.mrb[0].mxu0
      %v4001 = vadd.f32 0.0, %v4000
      %v4002 = vpop.f32.mrb[0].mxu0
      %4003 = vmatprep.mubr.f32.mxu0 0.0
      %4004 = vmatmul.mubr.f32.gmra.mrb[0].mxu0 %v3766
      %v4005 = vpop.f32.mrb[0].mxu0
      %v4006 = vadd.f32 0.0, %v4005
      %v4007 = vpop.f32.mrb[0].mxu0
      %4008 = vdwg.mxu0
      %v4009 = vadd.f32 %v3671, %v3851
      %v4010 = vadd.f32 %v3672, %v3856
      %v4011 = vadd.f32 %v3673, %v3861
      %v4012 = vadd.f32 %v3674, %v3866
      %v4013 = vadd.f32 %v3675, %v3871
      %v4014 = vadd.f32 %v3676, %v3876
      %v4015 = vadd.f32 %v3677, %v3881
      %v4016 = vadd.f32 %v3678, %v3886
      %v4017 = vadd.f32 %v3679, %v3891
      %v4018 = vadd.f32 %v3680, %v3896
      %v4019 = vadd.f32 %v3681, %v3901
      %v4020 = vadd.f32 %v3682, %v3906
      %v4021 = vadd.f32 %v3683, %v3911
      %v4022 = vadd.f32 %v3684, %v3916
      %v4023 = vadd.f32 %v3685, %v3921
      %v4024 = vadd.f32 %v3686, %v3926
      %v4025 = vadd.f32 %v3687, %v3931
      %v4026 = vadd.f32 %v3688, %v3936
      %v4027 = vadd.f32 %v3689, %v3941
      %v4028 = vadd.f32 %v3690, %v3946
      %v4029 = vadd.f32 %v3691, %v3951
      %v4030 = vadd.f32 %v3692, %v3956
      %v4031 = vadd.f32 %v3693, %v3961
      %v4032 = vadd.f32 %v3694, %v3966
      %v4033 = vadd.f32 %v3695, %v3971
      %v4034 = vadd.f32 %v3696, %v3976
      %v4035 = vadd.f32 %v3697, %v3981
      %v4036 = vadd.f32 %v3698, %v3986
      %v4037 = vadd.f32 %v3699, %v3991
      %v4038 = vadd.f32 %v3700, %v3996
      %v4039 = vadd.f32 %v3701, %v4001
      %v4040 = vadd.f32 %v3702, %v4006
      %4041 = vst [vmem:[%s312] sm:$0xff] %v4009
      %4042 = vst [vmem:[%s312 + $0x8] sm:$0xff] %v4010
      %4043 = vst [vmem:[%s312 + $0x10] sm:$0xff] %v4011
      %4044 = vst [vmem:[%s312 + $0x18] sm:$0xff] %v4012
      %4045 = vst [vmem:[%s312 + $0x20] sm:$0xff] %v4013
      %4046 = vst [vmem:[%s312 + $0x28] sm:$0xff] %v4014
      %4047 = vst [vmem:[%s312 + $0x30] sm:$0xff] %v4015
      %4048 = vst [vmem:[%s312 + $0x38] sm:$0xff] %v4016
      %4049 = vst [vmem:[%s312 + $0x40] sm:$0xff] %v4017
      %4050 = vst [vmem:[%s312 + $0x48] sm:$0xff] %v4018
      %4051 = vst [vmem:[%s312 + $0x50] sm:$0xff] %v4019
      %4052 = vst [vmem:[%s312 + $0x58] sm:$0xff] %v4020
      %4053 = vst [vmem:[%s312 + $0x60] sm:$0xff] %v4021
      %4054 = vst [vmem:[%s312 + $0x68] sm:$0xff] %v4022
      %4055 = vst [vmem:[%s312 + $0x70] sm:$0xff] %v4023
      %4056 = vst [vmem:[%s312 + $0x78] sm:$0xff] %v4024
      %4057 = vst [vmem:[%s312 + $0x80] sm:$0xff] %v4025
      %4058 = vst [vmem:[%s312 + $0x88] sm:$0xff] %v4026
      %4059 = vst [vmem:[%s312 + $0x90] sm:$0xff] %v4027
      %4060 = vst [vmem:[%s312 + $0x98] sm:$0xff] %v4028
      %4061 = vst [vmem:[%s312 + $0xa0] sm:$0xff] %v4029
      %4062 = vst [vmem:[%s312 + $0xa8] sm:$0xff] %v4030
      %4063 = vst [vmem:[%s312 + $0xb0] sm:$0xff] %v4031
      %4064 = vst [vmem:[%s312 + $0xb8] sm:$0xff] %v4032
      %4065 = vst [vmem:[%s312 + $0xc0] sm:$0xff] %v4033
      %4066 = vst [vmem:[%s312 + $0xc8] sm:$0xff] %v4034
      %4067 = vst [vmem:[%s312 + $0xd0] sm:$0xff] %v4035
      %4068 = vst [vmem:[%s312 + $0xd8] sm:$0xff] %v4036
      %4069 = vst [vmem:[%s312 + $0xe0] sm:$0xff] %v4037
      %4070 = vst [vmem:[%s312 + $0xe8] sm:$0xff] %v4038
      %4071 = vst [vmem:[%s312 + $0xf0] sm:$0xff] %v4039
      %4072 = vst [vmem:[%s312 + $0xf8] sm:$0xff] %v4040
      %v4073 = vadd.f32 %v4009, %v4010
      %v4074 = vadd.f32 %v4073, %v4011
      %v4075 = vadd.f32 %v4074, %v4012
      %v4076 = vadd.f32 %v4075, %v4013
      %v4077 = vadd.f32 %v4076, %v4014
      %v4078 = vadd.f32 %v4077, %v4015
      %v4079 = vadd.f32 %v4078, %v4016
      %v4080 = vadd.f32 %v4079, %v4017
      %v4081 = vadd.f32 %v4080, %v4018
      %v4082 = vadd.f32 %v4081, %v4019
      %v4083 = vadd.f32 %v4082, %v4020
      %v4084 = vadd.f32 %v4083, %v4021
      %v4085 = vadd.f32 %v4084, %v4022
      %v4086 = vadd.f32 %v4085, %v4023
      %v4087 = vadd.f32 %v4086, %v4024
      %v4088 = vadd.f32 %v4087, %v4025
      %v4089 = vadd.f32 %v4088, %v4026
      %v4090 = vadd.f32 %v4089, %v4027
      %v4091 = vadd.f32 %v4090, %v4028
      %v4092 = vadd.f32 %v4091, %v4029
      %v4093 = vadd.f32 %v4092, %v4030
      %v4094 = vadd.f32 %v4093, %v4031
      %v4095 = vadd.f32 %v4094, %v4032
      %v4096 = vadd.f32 %v4095, %v4033
      %v4097 = vadd.f32 %v4096, %v4034
      %v4098 = vadd.f32 %v4097, %v4035
      %v4099 = vadd.f32 %v4098, %v4036
      %v4100 = vadd.f32 %v4099, %v4037
      %v4101 = vadd.f32 %v4100, %v4038
      %v4102 = vadd.f32 %v4101, %v4039
      %v4103 = vadd.f32 %v4102, %v4040
      %v4104 = vrot.slane %v4103, 4
      %v4105 = vadd.f32 %v4103, %v4104
      %v4106 = vrot.slane %v4105, 2
      %v4107 = vadd.f32 %v4105, %v4106
      %v4108 = vrot.slane %v4107, 1
      %v4109 = vadd.f32 %v4107, %v4108
      %4110 = vst [vmem:[%s317] sm:$0x1] %v4109
      %v4111 = vmul.f32 %v4009, %v4009
      %v4112 = vmul.f32 %v4010, %v4010
      %v4113 = vmul.f32 %v4011, %v4011
      %v4114 = vmul.f32 %v4012, %v4012
      %v4115 = vmul.f32 %v4013, %v4013
      %v4116 = vmul.f32 %v4014, %v4014
      %v4117 = vmul.f32 %v4015, %v4015
      %v4118 = vmul.f32 %v4016, %v4016
      %v4119 = vmul.f32 %v4017, %v4017
      %v4120 = vmul.f32 %v4018, %v4018
      %v4121 = vmul.f32 %v4019, %v4019
      %v4122 = vmul.f32 %v4020, %v4020
      %v4123 = vmul.f32 %v4021, %v4021
      %v4124 = vmul.f32 %v4022, %v4022
      %v4125 = vmul.f32 %v4023, %v4023
      %v4126 = vmul.f32 %v4024, %v4024
      %v4127 = vmul.f32 %v4025, %v4025
      %v4128 = vmul.f32 %v4026, %v4026
      %v4129 = vmul.f32 %v4027, %v4027
      %v4130 = vmul.f32 %v4028, %v4028
      %v4131 = vmul.f32 %v4029, %v4029
      %v4132 = vmul.f32 %v4030, %v4030
      %v4133 = vmul.f32 %v4031, %v4031
      %v4134 = vmul.f32 %v4032, %v4032
      %v4135 = vmul.f32 %v4033, %v4033
      %v4136 = vmul.f32 %v4034, %v4034
      %v4137 = vmul.f32 %v4035, %v4035
      %v4138 = vmul.f32 %v4036, %v4036
      %v4139 = vmul.f32 %v4037, %v4037
      %v4140 = vmul.f32 %v4038, %v4038
      %v4141 = vmul.f32 %v4039, %v4039
      %v4142 = vmul.f32 %v4040, %v4040
      %v4143 = vadd.f32 %v4111, %v4112
      %v4144 = vadd.f32 %v4143, %v4113
      %v4145 = vadd.f32 %v4144, %v4114
      %v4146 = vadd.f32 %v4145, %v4115
      %v4147 = vadd.f32 %v4146, %v4116
      %v4148 = vadd.f32 %v4147, %v4117
      %v4149 = vadd.f32 %v4148, %v4118
      %v4150 = vadd.f32 %v4149, %v4119
      %v4151 = vadd.f32 %v4150, %v4120
      %v4152 = vadd.f32 %v4151, %v4121
      %v4153 = vadd.f32 %v4152, %v4122
      %v4154 = vadd.f32 %v4153, %v4123
      %v4155 = vadd.f32 %v4154, %v4124
      %v4156 = vadd.f32 %v4155, %v4125
      %v4157 = vadd.f32 %v4156, %v4126
      %v4158 = vadd.f32 %v4157, %v4127
      %v4159 = vadd.f32 %v4158, %v4128
      %v4160 = vadd.f32 %v4159, %v4129
      %v4161 = vadd.f32 %v4160, %v4130
      %v4162 = vadd.f32 %v4161, %v4131
      %v4163 = vadd.f32 %v4162, %v4132
      %v4164 = vadd.f32 %v4163, %v4133
      %v4165 = vadd.f32 %v4164, %v4134
      %v4166 = vadd.f32 %v4165, %v4135
      %v4167 = vadd.f32 %v4166, %v4136
      %v4168 = vadd.f32 %v4167, %v4137
      %v4169 = vadd.f32 %v4168, %v4138
      %v4170 = vadd.f32 %v4169, %v4139
      %v4171 = vadd.f32 %v4170, %v4140
      %v4172 = vadd.f32 %v4171, %v4141
      %v4173 = vadd.f32 %v4172, %v4142
      %v4174 = vrot.slane %v4173, 4
      %v4175 = vadd.f32 %v4173, %v4174
      %v4176 = vrot.slane %v4175, 2
      %v4177 = vadd.f32 %v4175, %v4176
      %v4178 = vrot.slane %v4177, 1
      %v4179 = vadd.f32 %v4177, %v4178
      %4180 = vst [vmem:[%s317 + $0x1] sm:$0x1] %v4179
      %s4181 = smul.u32 32, %s20
      %p4182 = scmp.lt.s32.totalorder %s4181, 63
      %s4183 = scalar_select %p4182, %s4181, 63
      %s4184 = smul.addr %s4183, 8
      %s4185 = scalar_lea.vmem %s7, %s4184
      %p4186 = scmp.lt.s32.totalorder %s20, 1
      %s4187 = scalar_select %p4186, %s20, 1
      %s4188 = smul.addr %s4187, 2
      %s4189 = scalar_lea.vmem %s8, %s4188
      // Predicated region
      $region49: #{res_block_forward.4} parent=47 // pred_check
        %p4190 = pneg %p190
      $region50: #{res_block_forward.4} parent=47 // pred_check_branch
        %4192 = sbr.rel (%p4190) target = $region52
      $region51: #{res_block_forward.4} parent=47 // pred_region
        %s4193 = smul.u32 32, %s20
      $region52: #{res_block_forward.4} parent=47 // pred_fallthru
        _
      // Predicated region
      $region53: #{res_block_forward.4} parent=47 // pred_check
        %p4194 = pneg %p216
      $region54: #{res_block_forward.4} parent=47 // pred_check_branch
        %4196 = sbr.rel (%p4194) target = $region56
      $region55: #{res_block_forward.4} parent=47 // pred_region
        _
      $region56: #{res_block_forward.4} parent=47 // pred_fallthru
        _
    $region48: #{res_block_forward.4} parent=5 // pred_fallthru
      _
    %p4197 = scmp.le.s32.totalorder 2, %s15
    // Predicated region
    $region57: #{res_block_forward.4} parent=5 // pred_check
      %p4198 = pneg %p4197
    $region58: #{res_block_forward.4} parent=5 // pred_check_branch
      %4200 = sbr.rel (%p4198) target = $region60
    $region59: #{res_block_forward.4} parent=5 // pred_region
      %s4201 = ssub.s32 %s15, 2
      // Predicated region
      $region61: #{res_block_forward.4} parent=59 // pred_check
        %p4202 = pneg %p196
      $region62: #{res_block_forward.4} parent=59 // pred_check_branch
        %4204 = sbr.rel (%p4202) target = $region64
      $region63: #{res_block_forward.4} parent=59 // pred_region
        %s4205 = smul.u32 32, %s21
        %p4206 = scmp.lt.s32.totalorder %s4205, 63
        %s4207 = scalar_select %p4206, %s4205, 63
        %s4208 = smul.addr %s4207, 8
        %s4209 = scalar_lea.vmem %s7, %s4208
      $region64: #{res_block_forward.4} parent=59 // pred_fallthru
        _
      // Predicated region
      $region65: #{res_block_forward.4} parent=59 // pred_check
        %p4210 = pneg %p222
      $region66: #{res_block_forward.4} parent=59 // pred_check_branch
        %4212 = sbr.rel (%p4210) target = $region68
      $region67: #{res_block_forward.4} parent=59 // pred_region
        %p4213 = scmp.lt.s32.totalorder %s21, 1
        %s4214 = scalar_select %p4213, %s21, 1
        %s4215 = smul.addr %s4214, 2
        %s4216 = scalar_lea.vmem %s8, %s4215
      $region68: #{res_block_forward.4} parent=59 // pred_fallthru
        _
    $region60: #{res_block_forward.4} parent=5 // pred_fallthru
      _
  $region6: #{res_block_forward.4} parent=0 // loop_footer
    %s19 = sadd.s32 1, %s15
  $region7: #{res_block_forward.4} parent=0 // loop_footer_branch
    %14 = sbr.rel target = $region3
  $region8: #{res_block_forward.4} parent=0 // loop_exit
    _

</llo_original>
